<compile_context>
chip_gen: v5e
topology: v5e:2x2
jax: 0.10.0
libtpu: 0.0.40
codegen_flags: <defaults>
</compile_context>

<pallas_src>
import functools
import math

import jax
import jax.numpy as jnp
from jax.experimental import pallas as pl
from jax.experimental.pallas import tpu as pltpu


_SENT = -1.0e30          # pad sentinel; padded taps are zeroed inside the kernel
_SENT_THRESH = -1.0e29
_LANE_TILE_CAP = 4096    # lanes per tile (~1-2 MiB/buffer at K<=72).  v6e/v5e
                         # have headroom for ~2x this; keep <= this on v7x.
_VMEM_LIMIT = 32 * 1024 * 1024  # explicit scoped-VMEM limit, safe on v5e/v6e/v7x


def _round_up(x, m):
    return ((x + m - 1) // m) * m


def _same_pad(stride, k, dil, size):
    # Exactly the padding formula used in conv_blockT.__init__ (np.ceil / 2),
    # computed against the fixed input_tensor_size=(512, 352).
    return int(math.ceil((stride * (size - 1) - size + dil * (k - 1) + 1) / 2))


def _const_spec(shape):
    """BlockSpec for a grid-invariant operand (fetched once; single-buffered)."""
    idx = lambda i, j: (0, 0)
    if hasattr(pl, "Buffered"):
        try:
            return pl.BlockSpec(shape, idx, pipeline_mode=pl.Buffered(1))
        except TypeError:  # older BlockSpec without pipeline_mode
            pass
    return pl.BlockSpec(shape, idx)


# ----------------------------------------------------------------------------
# Pallas kernel: fused  [ReLU -> BN affine] -> conv matmul -> +bias [-> +skip]
# ----------------------------------------------------------------------------
def _fused_conv_kernel(*refs, apply_relu, has_skip):
    # cols_ref : [1, K, TB]    K = KH*KW*Cin taps folded into one contraction
    # w_ref    : [Cout, K]
    # b_ref    : [Cout, 1]
    # scale_ref: [K, 1]        per-input-channel BN scale, tiled across taps
    # shift_ref: [K, 1]
    # skip_ref : [1, Cout, TB] (only when has_skip)
    # o_ref    : [1, Cout, TB]
    if has_skip:
        cols_ref, w_ref, b_ref, scale_ref, shift_ref, skip_ref, o_ref = refs
    else:
        cols_ref, w_ref, b_ref, scale_ref, shift_ref, o_ref = refs
        skip_ref = None

    t = cols_ref[0]                                    # [K, TB]
    pre = jnp.maximum(t, 0.0) if apply_relu else t
    a = pre * scale_ref[...] + shift_ref[...]          # ReLU -> BN(eval affine)
    # Padded taps carry the sentinel; the module zero-pads *after* BN/ReLU, so
    # they must contribute exactly 0.
    a = jnp.where(t < _SENT_THRESH, 0.0, a)
    acc = jnp.dot(w_ref[...], a, preferred_element_type=jnp.float32)  # [Cout,TB]
    acc = acc + b_ref[...]
    if has_skip:
        acc = acc + skip_ref[0]
    o_ref[0] = acc.astype(o_ref.dtype)


# ----------------------------------------------------------------------------
# wrapper: fused ReLU->BN->conv2d(+bias)(+residual) in NCHW
# ----------------------------------------------------------------------------
def conv2d_fused(x, w_hwio, b, stride, padding, dilation,
                 scale=None, shift=None, apply_relu=False, skip=None):
    """x: [N,Cin,H,W]; w_hwio: [KH,KW,Cin,Cout]; b: [Cout].

    scale/shift: [Cin] eval-mode BN affine applied to relu(x) before the conv
                 (None -> identity).  skip: optional [N,Cout,Ho,Wo] added to
                 the conv output inside the kernel epilogue.
    """
    n, cin, h, w_in = x.shape
    kh, kw, _, cout = w_hwio.shape
    sh, sw = stride
    ph, pw = padding
    dil = dilation
    ho = (h + 2 * ph - dil * (kh - 1) - 1) // sh + 1
    wo = (w_in + 2 * pw - dil * (kw - 1) - 1) // sw + 1
    m = ho * wo
    k_dim = kh * kw * cin

    # --- data movement only: sentinel pad + strided tap extraction (im2col) ---
    xp = jnp.pad(x, ((0, 0), (0, 0), (ph, ph), (pw, pw)), constant_values=_SENT)
    taps = []
    for ikh in range(kh):
        for ikw in range(kw):
            tap = jax.lax.slice(
                xp,
                (0, 0, ikh * dil, ikw * dil),
                (n, cin, ikh * dil + sh * (ho - 1) + 1,
                 ikw * dil + sw * (wo - 1) + 1),
                (1, 1, sh, sw),
            )
            taps.append(tap.reshape(n, cin, m))
    cols = jnp.concatenate(taps, axis=1) if len(taps) > 1 else taps[0]  # [N,K,M]

    # Lane tiling: spatial pixels on the lane axis, padded up to the tile size.
    tb = min(_LANE_TILE_CAP, _round_up(m, 128))
    m_pad = _round_up(m, tb)
    if m_pad != m:
        cols = jnp.pad(cols, ((0, 0), (0, 0), (0, m_pad - m)))

    # Weight folded to [Cout, K], K ordered (kh, kw, cin) to match the taps.
    w2d = w_hwio.reshape(k_dim, cout).T
    b2 = b.reshape(cout, 1)
    if scale is None:
        scale = jnp.ones((cin,), x.dtype)
    if shift is None:
        shift = jnp.zeros((cin,), x.dtype)
    scale_k = jnp.tile(scale, kh * kw).reshape(k_dim, 1)
    shift_k = jnp.tile(shift, kh * kw).reshape(k_dim, 1)

    args = [cols, w2d, b2, scale_k, shift_k]
    in_specs = [
        pl.BlockSpec((1, k_dim, tb), lambda i, j: (i, 0, j)),
        _const_spec((cout, k_dim)),
        _const_spec((cout, 1)),
        _const_spec((k_dim, 1)),
        _const_spec((k_dim, 1)),
    ]
    has_skip = skip is not None
    if has_skip:
        assert skip.shape == (n, cout, ho, wo), (skip.shape, (n, cout, ho, wo))
        skip3 = skip.reshape(n, cout, m)
        if m_pad != m:
            skip3 = jnp.pad(skip3, ((0, 0), (0, 0), (0, m_pad - m)))
        args.append(skip3)
        in_specs.append(pl.BlockSpec((1, cout, tb), lambda i, j: (i, 0, j)))

    in_bytes = 4 * (n * k_dim * m_pad
                    + (n * cout * m_pad if has_skip else 0)
                    + cout * (k_dim + 1) + 2 * k_dim)
    out_bytes = 4 * n * cout * m_pad

    kernel = functools.partial(
        _fused_conv_kernel, apply_relu=apply_relu, has_skip=has_skip)

    out = pl.pallas_call(
        kernel,
        out_shape=jax.ShapeDtypeStruct((n, cout, m_pad), x.dtype),
        grid_spec=pltpu.PrefetchScalarGridSpec(
            num_scalar_prefetch=0,
            grid=(n, m_pad // tb),
            in_specs=in_specs,
            out_specs=pl.BlockSpec((1, cout, tb), lambda i, j: (i, 0, j)),
        ),
        compiler_params=pltpu.CompilerParams(
            dimension_semantics=("parallel", "parallel"),
            vmem_limit_bytes=_VMEM_LIMIT,
        ),
        cost_estimate=pl.CostEstimate(
            flops=2 * n * m_pad * k_dim * cout,
            transcendentals=0,
            bytes_accessed=in_bytes + out_bytes,
        ),
    )(*args)

    return out[:, :, :m].reshape(n, cout, ho, wo)


# ----------------------------------------------------------------------------
# conv_blockT forward (eval semantics), NCHW in / NCHW out
# ----------------------------------------------------------------------------
def conv_blockT_forward(x_nchw, p, strides, pads, dilation):
    # t = cnn1(norm1(relu(x)))        (Dropout is identity in eval)
    t = conv2d_fused(x_nchw, p["w1"], p["b1"], strides, pads[0], dilation,
                     scale=p["bn1_scale"], shift=p["bn1_shift"], apply_relu=True)
    # skip path
    if strides != (1, 1):
        skip = conv2d_fused(x_nchw, p["w3"], p["b3"], strides, pads[2], 1,
                            apply_relu=False)
    else:
        skip = x_nchw
    # out = cnn2(norm2(relu(t))) + skip   (residual add fused into the epilogue)
    return conv2d_fused(t, p["w2"], p["b2"], (1, 1), pads[1], dilation,
                        scale=p["bn2_scale"], shift=p["bn2_shift"],
                        apply_relu=True, skip=skip)


# Pure-JAX reference (same eval semantics) for a numerical sanity check.
def _ref_forward(x, p, strides, pads, dilation):
    def bn_relu(v, scale, shift):
        return (jnp.maximum(v, 0.0) * scale.reshape(1, -1, 1, 1)
                + shift.reshape(1, -1, 1, 1))

    def conv(v, w, b, stride, pad, dil):
        out = jax.lax.conv_general_dilated(
            v, w, window_strides=stride,
            padding=[(pad[0], pad[0]), (pad[1], pad[1])],
            rhs_dilation=(dil, dil),
            dimension_numbers=("NCHW", "HWIO", "NCHW"),
        )
        return out + b.reshape(1, -1, 1, 1)

    skip = x
    t = bn_relu(x, p["bn1_scale"], p["bn1_shift"])
    t = conv(t, p["w1"], p["b1"], strides, pads[0], dilation)
    t = bn_relu(t, p["bn2_scale"], p["bn2_shift"])
    t = conv(t, p["w2"], p["b2"], (1, 1), pads[1], dilation)
    if strides != (1, 1):
        skip = conv(skip, p["w3"], p["b3"], strides, pads[2], 1)
    return t + skip


if __name__ == "__main__":
    # module config: conv_blockT(in_channel=4, out_channel=8, kernel_size=(3,3))
    c_in, c_out = 4, 8
    kh, kw = 3, 3
    strides = (2, 2)
    dilation = 1
    input_tensor_size = (512, 352)  # hard-coded in the module; drives padding

    pads = (
        (_same_pad(strides[0], kh, dilation, input_tensor_size[0]),
         _same_pad(strides[1], kw, dilation, input_tensor_size[1])),
        (_same_pad(1, kh, dilation, input_tensor_size[0]),
         _same_pad(1, kw, dilation, input_tensor_size[1])),
        (_same_pad(strides[0], 1, 1, input_tensor_size[0]),
         _same_pad(strides[1], 1, 1, input_tensor_size[1])),
    )

    key = jax.random.PRNGKey(0)
    ks = jax.random.split(key, 16)

    x = jax.random.normal(ks[0], (2, c_in, 16, 16), jnp.float32)

    eps = 1e-5
    # BatchNorm1 (over in_channel) — deterministic synthetic params.
    g1 = 1.0 + 0.1 * jax.random.normal(ks[1], (c_in,), jnp.float32)
    beta1 = 0.1 * jax.random.normal(ks[2], (c_in,), jnp.float32)
    rm1 = 0.1 * jax.random.normal(ks[3], (c_in,), jnp.float32)
    rv1 = 1.0 + 0.1 * jax.random.uniform(ks[4], (c_in,), jnp.float32)
    # BatchNorm2 (over out_channel).
    g2 = 1.0 + 0.1 * jax.random.normal(ks[5], (c_out,), jnp.float32)
    beta2 = 0.1 * jax.random.normal(ks[6], (c_out,), jnp.float32)
    rm2 = 0.1 * jax.random.normal(ks[7], (c_out,), jnp.float32)
    rv2 = 1.0 + 0.1 * jax.random.uniform(ks[8], (c_out,), jnp.float32)

    s1 = g1 * jax.lax.rsqrt(rv1 + eps)
    s2 = g2 * jax.lax.rsqrt(rv2 + eps)

    params = {
        "bn1_scale": s1, "bn1_shift": beta1 - rm1 * s1,
        "bn2_scale": s2, "bn2_shift": beta2 - rm2 * s2,
        # conv weights in HWIO layout (equivalent to PyTorch OIHW, synthetic)
        "w1": 0.05 * jax.random.normal(ks[9], (kh, kw, c_in, c_out), jnp.float32),
        "b1": 0.05 * jax.random.normal(ks[10], (c_out,), jnp.float32),
        "w2": 0.05 * jax.random.normal(ks[11], (kh, kw, c_out, c_out), jnp.float32),
        "b2": 0.05 * jax.random.normal(ks[12], (c_out,), jnp.float32),
        "w3": 0.05 * jax.random.normal(ks[13], (1, 1, c_in, c_out), jnp.float32),
        "b3": 0.05 * jax.random.normal(ks[14], (c_out,), jnp.float32),
    }

    fwd = jax.jit(conv_blockT_forward, static_argnums=(2, 3, 4))
    out = jax.block_until_ready(fwd(x, params, strides, pads, dilation))

    ref = jax.block_until_ready(_ref_forward(x, params, strides, pads, dilation))
    assert out.shape == ref.shape, (out.shape, ref.shape)
    err = float(jnp.max(jnp.abs(out - ref)))
    if not (err < 1e-3):
        raise AssertionError(f"mismatch vs reference: max abs err = {err}")

    print("KERNEL_OK")
</pallas_src>

<mosaic_0001>
module attributes {stable_mosaic.version = 11 : i64} {
  func.func @_fused_conv_kernel(%arg0: i32, %arg1: i32, %arg2: memref<1x4x4096xf32, #tpu.memory_space<vmem>>, %arg3: memref<8x4xf32, #tpu.memory_space<vmem>>, %arg4: memref<8x1xf32, #tpu.memory_space<vmem>>, %arg5: memref<4x1xf32, #tpu.memory_space<vmem>>, %arg6: memref<4x1xf32, #tpu.memory_space<vmem>>, %arg7: memref<1x8x4096xf32, #tpu.memory_space<vmem>>) attributes {dimension_semantics = [#tpu.dimension_semantics<parallel>, #tpu.dimension_semantics<parallel>], iteration_bounds = array<i64: 2, 12>, scalar_prefetch = 0 : i64, scratch_operands = 0 : i64, tpu.core_type = #tpu.core_type<tc>, window_params = [{transform_indices = @transform_0, window_bounds = array<i64: 1, 4, 4096>}, {pipeline_mode = #tpu.pipeline_mode<synchronous>, transform_indices = @transform_1, window_bounds = array<i64: 8, 4>}, {pipeline_mode = #tpu.pipeline_mode<synchronous>, transform_indices = @transform_2, window_bounds = array<i64: 8, 1>}, {pipeline_mode = #tpu.pipeline_mode<synchronous>, transform_indices = @transform_3, window_bounds = array<i64: 4, 1>}, {pipeline_mode = #tpu.pipeline_mode<synchronous>, transform_indices = @transform_4, window_bounds = array<i64: 4, 1>}, {transform_indices = @transform_5, window_bounds = array<i64: 1, 8, 4096>}]} {
    %c0 = arith.constant 0 : index
    %c0_0 = arith.constant 0 : index
    %c0_1 = arith.constant 0 : index
    %0 = vector.load %arg2[%c0, %c0_0, %c0_1] : memref<1x4x4096xf32, #tpu.memory_space<vmem>>, vector<1x4x4096xf32>
    %1 = vector.shape_cast %0 : vector<1x4x4096xf32> to vector<4x4096xf32>
    %c0_2 = arith.constant 0 : index
    %c0_3 = arith.constant 0 : index
    %2 = vector.load %arg5[%c0_2, %c0_3] : memref<4x1xf32, #tpu.memory_space<vmem>>, vector<4x1xf32>
    %3 = vector.broadcast %2 : vector<4x1xf32> to vector<4x4096xf32>
    %4 = arith.mulf %1, %3 : vector<4x4096xf32>
    %c0_4 = arith.constant 0 : index
    %c0_5 = arith.constant 0 : index
    %5 = vector.load %arg6[%c0_4, %c0_5] : memref<4x1xf32, #tpu.memory_space<vmem>>, vector<4x1xf32>
    %6 = vector.broadcast %5 : vector<4x1xf32> to vector<4x4096xf32>
    %7 = arith.addf %4, %6 : vector<4x4096xf32>
    %cst = arith.constant -1.000000e+29 : f32
    %8 = vector.broadcast %cst : f32 to vector<4x4096xf32>
    %9 = arith.cmpf olt, %1, %8 : vector<4x4096xf32>
    %cst_6 = arith.constant 0.000000e+00 : f32
    %10 = vector.broadcast %cst_6 : f32 to vector<4x4096xf32>
    %11 = arith.select %9, %10, %7 : vector<4x4096xi1>, vector<4x4096xf32>
    %c0_7 = arith.constant 0 : index
    %c0_8 = arith.constant 0 : index
    %12 = vector.load %arg3[%c0_7, %c0_8] : memref<8x4xf32, #tpu.memory_space<vmem>>, vector<8x4xf32>
    %cst_9 = arith.constant dense<0.000000e+00> : vector<8x4096xf32>
    %13 = tpu.matmul %12, %11, %cst_9 {dimension_numbers = #tpu.dot_dimension_numbers<[1], [0], [0], [1], [0, 0, 1, 1], [], []>} : vector<8x4xf32>, vector<4x4096xf32>, vector<8x4096xf32> -> vector<8x4096xf32>
    %c0_10 = arith.constant 0 : index
    %c0_11 = arith.constant 0 : index
    %14 = vector.load %arg4[%c0_10, %c0_11] : memref<8x1xf32, #tpu.memory_space<vmem>>, vector<8x1xf32>
    %15 = vector.broadcast %14 : vector<8x1xf32> to vector<8x4096xf32>
    %16 = arith.addf %13, %15 : vector<8x4096xf32>
    %c0_12 = arith.constant 0 : index
    %c0_13 = arith.constant 0 : index
    %c0_14 = arith.constant 0 : index
    %17 = vector.load %arg7[%c0_12, %c0_13, %c0_14] : memref<1x8x4096xf32, #tpu.memory_space<vmem>>, vector<1x8x4096xf32>
    %18 = vector.shape_cast %17 : vector<1x8x4096xf32> to vector<8x4096xf32>
    %19 = vector.shape_cast %16 : vector<8x4096xf32> to vector<1x8x4096xf32>
    tpu.vector_store %arg7[%c0_12, %c0_13, %c0_14], %19 {strides = array<i32>} : memref<1x8x4096xf32, #tpu.memory_space<vmem>>, vector<1x8x4096xf32>,
    return
  }
  func.func @transform_0(%arg0: i32, %arg1: i32) -> (i32, i32, i32) {
    %c0_i32 = arith.constant 0 : i32
    %c0_i32_0 = arith.constant 0 : i32
    return %arg0, %c0_i32, %arg1 : i32, i32, i32
  }
  func.func @transform_1(%arg0: i32, %arg1: i32) -> (i32, i32) {
    %c0_i32 = arith.constant 0 : i32
    %c0_i32_0 = arith.constant 0 : i32
    %c0_i32_1 = arith.constant 0 : i32
    return %c0_i32, %c0_i32_0 : i32, i32
  }
  func.func @transform_2(%arg0: i32, %arg1: i32) -> (i32, i32) {
    %c0_i32 = arith.constant 0 : i32
    %c0_i32_0 = arith.constant 0 : i32
    %c0_i32_1 = arith.constant 0 : i32
    return %c0_i32, %c0_i32_0 : i32, i32
  }
  func.func @transform_3(%arg0: i32, %arg1: i32) -> (i32, i32) {
    %c0_i32 = arith.constant 0 : i32
    %c0_i32_0 = arith.constant 0 : i32
    %c0_i32_1 = arith.constant 0 : i32
    return %c0_i32, %c0_i32_0 : i32, i32
  }
  func.func @transform_4(%arg0: i32, %arg1: i32) -> (i32, i32) {
    %c0_i32 = arith.constant 0 : i32
    %c0_i32_0 = arith.constant 0 : i32
    %c0_i32_1 = arith.constant 0 : i32
    return %c0_i32, %c0_i32_0 : i32, i32
  }
  func.func @transform_5(%arg0: i32, %arg1: i32) -> (i32, i32, i32) {
    %c0_i32 = arith.constant 0 : i32
    %c0_i32_0 = arith.constant 0 : i32
    return %arg0, %c0_i32, %arg1 : i32, i32, i32
  }
}

module attributes {stable_mosaic.version = 11 : i64} {
  func.func @_fused_conv_kernel(%arg0: i32, %arg1: i32, %arg2: memref<1x36x4096xf32, #tpu.memory_space<vmem>>, %arg3: memref<8x36xf32, #tpu.memory_space<vmem>>, %arg4: memref<8x1xf32, #tpu.memory_space<vmem>>, %arg5: memref<36x1xf32, #tpu.memory_space<vmem>>, %arg6: memref<36x1xf32, #tpu.memory_space<vmem>>, %arg7: memref<1x8x4096xf32, #tpu.memory_space<vmem>>) attributes {dimension_semantics = [#tpu.dimension_semantics<parallel>, #tpu.dimension_semantics<parallel>], iteration_bounds = array<i64: 2, 12>, scalar_prefetch = 0 : i64, scratch_operands = 0 : i64, tpu.core_type = #tpu.core_type<tc>, window_params = [{transform_indices = @transform_0, window_bounds = array<i64: 1, 36, 4096>}, {pipeline_mode = #tpu.pipeline_mode<synchronous>, transform_indices = @transform_1, window_bounds = array<i64: 8, 36>}, {pipeline_mode = #tpu.pipeline_mode<synchronous>, transform_indices = @transform_2, window_bounds = array<i64: 8, 1>}, {pipeline_mode = #tpu.pipeline_mode<synchronous>, transform_indices = @transform_3, window_bounds = array<i64: 36, 1>}, {pipeline_mode = #tpu.pipeline_mode<synchronous>, transform_indices = @transform_4, window_bounds = array<i64: 36, 1>}, {transform_indices = @transform_5, window_bounds = array<i64: 1, 8, 4096>}]} {
    %c0 = arith.constant 0 : index
    %c0_0 = arith.constant 0 : index
    %c0_1 = arith.constant 0 : index
    %0 = vector.load %arg2[%c0, %c0_0, %c0_1] : memref<1x36x4096xf32, #tpu.memory_space<vmem>>, vector<1x36x4096xf32>
    %1 = vector.shape_cast %0 : vector<1x36x4096xf32> to vector<36x4096xf32>
    %cst = arith.constant 0.000000e+00 : f32
    %2 = vector.broadcast %cst : f32 to vector<36x4096xf32>
    %3 = arith.maximumf %1, %2 : vector<36x4096xf32>
    %c0_2 = arith.constant 0 : index
    %c0_3 = arith.constant 0 : index
    %4 = vector.load %arg5[%c0_2, %c0_3] : memref<36x1xf32, #tpu.memory_space<vmem>>, vector<36x1xf32>
    %5 = vector.broadcast %4 : vector<36x1xf32> to vector<36x4096xf32>
    %6 = arith.mulf %3, %5 : vector<36x4096xf32>
    %c0_4 = arith.constant 0 : index
    %c0_5 = arith.constant 0 : index
    %7 = vector.load %arg6[%c0_4, %c0_5] : memref<36x1xf32, #tpu.memory_space<vmem>>, vector<36x1xf32>
    %8 = vector.broadcast %7 : vector<36x1xf32> to vector<36x4096xf32>
    %9 = arith.addf %6, %8 : vector<36x4096xf32>
    %cst_6 = arith.constant -1.000000e+29 : f32
    %10 = vector.broadcast %cst_6 : f32 to vector<36x4096xf32>
    %11 = arith.cmpf olt, %1, %10 : vector<36x4096xf32>
    %cst_7 = arith.constant 0.000000e+00 : f32
    %12 = vector.broadcast %cst_7 : f32 to vector<36x4096xf32>
    %13 = arith.select %11, %12, %9 : vector<36x4096xi1>, vector<36x4096xf32>
    %c0_8 = arith.constant 0 : index
    %c0_9 = arith.constant 0 : index
    %14 = vector.load %arg3[%c0_8, %c0_9] : memref<8x36xf32, #tpu.memory_space<vmem>>, vector<8x36xf32>
    %cst_10 = arith.constant dense<0.000000e+00> : vector<8x4096xf32>
    %15 = tpu.matmul %14, %13, %cst_10 {dimension_numbers = #tpu.dot_dimension_numbers<[1], [0], [0], [1], [0, 0, 1, 1], [], []>} : vector<8x36xf32>, vector<36x4096xf32>, vector<8x4096xf32> -> vector<8x4096xf32>
    %c0_11 = arith.constant 0 : index
    %c0_12 = arith.constant 0 : index
    %16 = vector.load %arg4[%c0_11, %c0_12] : memref<8x1xf32, #tpu.memory_space<vmem>>, vector<8x1xf32>
    %17 = vector.broadcast %16 : vector<8x1xf32> to vector<8x4096xf32>
    %18 = arith.addf %15, %17 : vector<8x4096xf32>
    %c0_13 = arith.constant 0 : index
    %c0_14 = arith.constant 0 : index
    %c0_15 = arith.constant 0 : index
    %19 = vector.load %arg7[%c0_13, %c0_14, %c0_15] : memref<1x8x4096xf32, #tpu.memory_space<vmem>>, vector<1x8x4096xf32>
    %20 = vector.shape_cast %19 : vector<1x8x4096xf32> to vector<8x4096xf32>
    %21 = vector.shape_cast %18 : vector<8x4096xf32> to vector<1x8x4096xf32>
    tpu.vector_store %arg7[%c0_13, %c0_14, %c0_15], %21 {strides = array<i32>} : memref<1x8x4096xf32, #tpu.memory_space<vmem>>, vector<1x8x4096xf32>,
    return
  }
  func.func @transform_0(%arg0: i32, %arg1: i32) -> (i32, i32, i32) {
    %c0_i32 = arith.constant 0 : i32
    %c0_i32_0 = arith.constant 0 : i32
    return %arg0, %c0_i32, %arg1 : i32, i32, i32
  }
  func.func @transform_1(%arg0: i32, %arg1: i32) -> (i32, i32) {
    %c0_i32 = arith.constant 0 : i32
    %c0_i32_0 = arith.constant 0 : i32
    %c0_i32_1 = arith.constant 0 : i32
    return %c0_i32, %c0_i32_0 : i32, i32
  }
  func.func @transform_2(%arg0: i32, %arg1: i32) -> (i32, i32) {
    %c0_i32 = arith.constant 0 : i32
    %c0_i32_0 = arith.constant 0 : i32
    %c0_i32_1 = arith.constant 0 : i32
    return %c0_i32, %c0_i32_0 : i32, i32
  }
  func.func @transform_3(%arg0: i32, %arg1: i32) -> (i32, i32) {
    %c0_i32 = arith.constant 0 : i32
    %c0_i32_0 = arith.constant 0 : i32
    %c0_i32_1 = arith.constant 0 : i32
    return %c0_i32, %c0_i32_0 : i32, i32
  }
  func.func @transform_4(%arg0: i32, %arg1: i32) -> (i32, i32) {
    %c0_i32 = arith.constant 0 : i32
    %c0_i32_0 = arith.constant 0 : i32
    %c0_i32_1 = arith.constant 0 : i32
    return %c0_i32, %c0_i32_0 : i32, i32
  }
  func.func @transform_5(%arg0: i32, %arg1: i32) -> (i32, i32, i32) {
    %c0_i32 = arith.constant 0 : i32
    %c0_i32_0 = arith.constant 0 : i32
    return %arg0, %c0_i32, %arg1 : i32, i32, i32
  }
}

module attributes {stable_mosaic.version = 11 : i64} {
  func.func @_fused_conv_kernel(%arg0: i32, %arg1: i32, %arg2: memref<1x72x4096xf32, #tpu.memory_space<vmem>>, %arg3: memref<8x72xf32, #tpu.memory_space<vmem>>, %arg4: memref<8x1xf32, #tpu.memory_space<vmem>>, %arg5: memref<72x1xf32, #tpu.memory_space<vmem>>, %arg6: memref<72x1xf32, #tpu.memory_space<vmem>>, %arg7: memref<1x8x4096xf32, #tpu.memory_space<vmem>>, %arg8: memref<1x8x4096xf32, #tpu.memory_space<vmem>>) attributes {dimension_semantics = [#tpu.dimension_semantics<parallel>, #tpu.dimension_semantics<parallel>], iteration_bounds = array<i64: 2, 12>, scalar_prefetch = 0 : i64, scratch_operands = 0 : i64, tpu.core_type = #tpu.core_type<tc>, window_params = [{transform_indices = @transform_0, window_bounds = array<i64: 1, 72, 4096>}, {pipeline_mode = #tpu.pipeline_mode<synchronous>, transform_indices = @transform_1, window_bounds = array<i64: 8, 72>}, {pipeline_mode = #tpu.pipeline_mode<synchronous>, transform_indices = @transform_2, window_bounds = array<i64: 8, 1>}, {pipeline_mode = #tpu.pipeline_mode<synchronous>, transform_indices = @transform_3, window_bounds = array<i64: 72, 1>}, {pipeline_mode = #tpu.pipeline_mode<synchronous>, transform_indices = @transform_4, window_bounds = array<i64: 72, 1>}, {transform_indices = @transform_5, window_bounds = array<i64: 1, 8, 4096>}, {transform_indices = @transform_6, window_bounds = array<i64: 1, 8, 4096>}]} {
    %c0 = arith.constant 0 : index
    %c0_0 = arith.constant 0 : index
    %c0_1 = arith.constant 0 : index
    %0 = vector.load %arg2[%c0, %c0_0, %c0_1] : memref<1x72x4096xf32, #tpu.memory_space<vmem>>, vector<1x72x4096xf32>
    %1 = vector.shape_cast %0 : vector<1x72x4096xf32> to vector<72x4096xf32>
    %cst = arith.constant 0.000000e+00 : f32
    %2 = vector.broadcast %cst : f32 to vector<72x4096xf32>
    %3 = arith.maximumf %1, %2 : vector<72x4096xf32>
    %c0_2 = arith.constant 0 : index
    %c0_3 = arith.constant 0 : index
    %4 = vector.load %arg5[%c0_2, %c0_3] : memref<72x1xf32, #tpu.memory_space<vmem>>, vector<72x1xf32>
    %5 = vector.broadcast %4 : vector<72x1xf32> to vector<72x4096xf32>
    %6 = arith.mulf %3, %5 : vector<72x4096xf32>
    %c0_4 = arith.constant 0 : index
    %c0_5 = arith.constant 0 : index
    %7 = vector.load %arg6[%c0_4, %c0_5] : memref<72x1xf32, #tpu.memory_space<vmem>>, vector<72x1xf32>
    %8 = vector.broadcast %7 : vector<72x1xf32> to vector<72x4096xf32>
    %9 = arith.addf %6, %8 : vector<72x4096xf32>
    %cst_6 = arith.constant -1.000000e+29 : f32
    %10 = vector.broadcast %cst_6 : f32 to vector<72x4096xf32>
    %11 = arith.cmpf olt, %1, %10 : vector<72x4096xf32>
    %cst_7 = arith.constant 0.000000e+00 : f32
    %12 = vector.broadcast %cst_7 : f32 to vector<72x4096xf32>
    %13 = arith.select %11, %12, %9 : vector<72x4096xi1>, vector<72x4096xf32>
    %c0_8 = arith.constant 0 : index
    %c0_9 = arith.constant 0 : index
    %14 = vector.load %arg3[%c0_8, %c0_9] : memref<8x72xf32, #tpu.memory_space<vmem>>, vector<8x72xf32>
    %cst_10 = arith.constant dense<0.000000e+00> : vector<8x4096xf32>
    %15 = tpu.matmul %14, %13, %cst_10 {dimension_numbers = #tpu.dot_dimension_numbers<[1], [0], [0], [1], [0, 0, 1, 1], [], []>} : vector<8x72xf32>, vector<72x4096xf32>, vector<8x4096xf32> -> vector<8x4096xf32>
    %c0_11 = arith.constant 0 : index
    %c0_12 = arith.constant 0 : index
    %16 = vector.load %arg4[%c0_11, %c0_12] : memref<8x1xf32, #tpu.memory_space<vmem>>, vector<8x1xf32>
    %17 = vector.broadcast %16 : vector<8x1xf32> to vector<8x4096xf32>
    %18 = arith.addf %15, %17 : vector<8x4096xf32>
    %c0_13 = arith.constant 0 : index
    %c0_14 = arith.constant 0 : index
    %c0_15 = arith.constant 0 : index
    %19 = vector.load %arg7[%c0_13, %c0_14, %c0_15] : memref<1x8x4096xf32, #tpu.memory_space<vmem>>, vector<1x8x4096xf32>
    %20 = vector.shape_cast %19 : vector<1x8x4096xf32> to vector<8x4096xf32>
    %21 = arith.addf %18, %20 : vector<8x4096xf32>
    %c0_16 = arith.constant 0 : index
    %c0_17 = arith.constant 0 : index
    %c0_18 = arith.constant 0 : index
    %22 = vector.load %arg8[%c0_16, %c0_17, %c0_18] : memref<1x8x4096xf32, #tpu.memory_space<vmem>>, vector<1x8x4096xf32>
    %23 = vector.shape_cast %22 : vector<1x8x4096xf32> to vector<8x4096xf32>
    %24 = vector.shape_cast %21 : vector<8x4096xf32> to vector<1x8x4096xf32>
    tpu.vector_store %arg8[%c0_16, %c0_17, %c0_18], %24 {strides = array<i32>} : memref<1x8x4096xf32, #tpu.memory_space<vmem>>, vector<1x8x4096xf32>,
    return
  }
  func.func @transform_0(%arg0: i32, %arg1: i32) -> (i32, i32, i32) {
    %c0_i32 = arith.constant 0 : i32
    %c0_i32_0 = arith.constant 0 : i32
    return %arg0, %c0_i32, %arg1 : i32, i32, i32
  }
  func.func @transform_1(%arg0: i32, %arg1: i32) -> (i32, i32) {
    %c0_i32 = arith.constant 0 : i32
    %c0_i32_0 = arith.constant 0 : i32
    %c0_i32_1 = arith.constant 0 : i32
    return %c0_i32, %c0_i32_0 : i32, i32
  }
  func.func @transform_2(%arg0: i32, %arg1: i32) -> (i32, i32) {
    %c0_i32 = arith.constant 0 : i32
    %c0_i32_0 = arith.constant 0 : i32
    %c0_i32_1 = arith.constant 0 : i32
    return %c0_i32, %c0_i32_0 : i32, i32
  }
  func.func @transform_3(%arg0: i32, %arg1: i32) -> (i32, i32) {
    %c0_i32 = arith.constant 0 : i32
    %c0_i32_0 = arith.constant 0 : i32
    %c0_i32_1 = arith.constant 0 : i32
    return %c0_i32, %c0_i32_0 : i32, i32
  }
  func.func @transform_4(%arg0: i32, %arg1: i32) -> (i32, i32) {
    %c0_i32 = arith.constant 0 : i32
    %c0_i32_0 = arith.constant 0 : i32
    %c0_i32_1 = arith.constant 0 : i32
    return %c0_i32, %c0_i32_0 : i32, i32
  }
  func.func @transform_5(%arg0: i32, %arg1: i32) -> (i32, i32, i32) {
    %c0_i32 = arith.constant 0 : i32
    %c0_i32_0 = arith.constant 0 : i32
    return %arg0, %c0_i32, %arg1 : i32, i32, i32
  }
  func.func @transform_6(%arg0: i32, %arg1: i32) -> (i32, i32, i32) {
    %c0_i32 = arith.constant 0 : i32
    %c0_i32_0 = arith.constant 0 : i32
    return %arg0, %c0_i32, %arg1 : i32, i32, i32
  }
}

</mosaic_0001>

<llo_original>
// kernel: tile.23
$region0: #{tile.23}
  #allocation2 [shape = 's32[1]{0}', space=sflag, size = 0x4, scoped, tag = 'scoped memory for tile.23']
  %s0 = inlined_call_operand.hbm [shape: f32[4], index: 0, kind: input, shape index: {}]
  %s1 = inlined_call_operand.vmem [shape: f32[9,4], index: 1, kind: output, shape index: {}]
  $region1: #{tile.23} parent=0
    #allocation0 [shape = 'u8[512]{0}', space=vmem, size = 0x400, scoped, tag = 'operand span for operand 0']
    #allocation1 [shape = 's32[1]{0}', space=sflag, size = 0x4, scoped, tag = 'scoped memory for tile.23']
    %2 = vsyncpa [#allocation1], 0
    // Predicated region
    $region2: #{tile.23} parent=1 // pred_check
      _
    $region3: #{tile.23} parent=1 // pred_check_branch
      %4 = sbr.rel (0) target = $region5
    $region4: #{tile.23} parent=1 // pred_region
      %6 = vsyncadd [#allocation1], 0
      %s8 = sshll.u32 %s0, 4
      %s9 = int_to_ptr.hbm [resolvable:$true] %s8
      %s10 = sshll.u32 [#allocation0], 4
      %s11 = int_to_ptr.vmem [resolvable:$true] %s10
      %13 = dma.hbm_to_vmem [thread:$0]  %s9, 16, %s11, [#allocation1]
    $region5: #{tile.23} parent=1 // pred_fallthru
      _
    // Predicated region
    $region6: #{tile.23} parent=1 // pred_check
      _
    $region7: #{tile.23} parent=1 // pred_check_branch
      %15 = sbr.rel (0) target = $region9
    $region8: #{tile.23} parent=1 // pred_region
      %17 = dma.done [#allocation1], 16
    $region9: #{tile.23} parent=1 // pred_fallthru
      _
    %v18 = vld [vmem:[#allocation0] ss:$0 sm:$0xff]
    %19 = vst [vmem:[%s1] sm:$0xff] %v18
    %s20 = scalar_lea.vmem %s1, 8
    %21 = vst [vmem:[%s20] sm:$0xff] %v18
    %22 = vsyncpa [#allocation1], 1

// kernel: tile.33
$region0: #{tile.33}
  #allocation2 [shape = 's32[1]{0}', space=sflag, size = 0x4, scoped, tag = 'scoped memory for tile.33']
  %s0 = inlined_call_operand.hbm [shape: f32[8], index: 0, kind: input, shape index: {}]
  %s1 = inlined_call_operand.vmem [shape: f32[9,8], index: 1, kind: output, shape index: {}]
  $region1: #{tile.33} parent=0
    #allocation0 [shape = 'u8[512]{0}', space=vmem, size = 0x400, scoped, tag = 'operand span for operand 0']
    #allocation1 [shape = 's32[1]{0}', space=sflag, size = 0x4, scoped, tag = 'scoped memory for tile.33']
    %2 = vsyncpa [#allocation1], 0
    // Predicated region
    $region2: #{tile.33} parent=1 // pred_check
      _
    $region3: #{tile.33} parent=1 // pred_check_branch
      %4 = sbr.rel (0) target = $region5
    $region4: #{tile.33} parent=1 // pred_region
      %6 = vsyncadd [#allocation1], 0
      %s8 = sshll.u32 %s0, 4
      %s9 = int_to_ptr.hbm [resolvable:$true] %s8
      %s10 = sshll.u32 [#allocation0], 4
      %s11 = int_to_ptr.vmem [resolvable:$true] %s10
      %13 = dma.hbm_to_vmem [thread:$0]  %s9, 16, %s11, [#allocation1]
    $region5: #{tile.33} parent=1 // pred_fallthru
      _
    // Predicated region
    $region6: #{tile.33} parent=1 // pred_check
      _
    $region7: #{tile.33} parent=1 // pred_check_branch
      %15 = sbr.rel (0) target = $region9
    $region8: #{tile.33} parent=1 // pred_region
      %17 = dma.done [#allocation1], 16
    $region9: #{tile.33} parent=1 // pred_fallthru
      _
    %v18 = vld [vmem:[#allocation0] ss:$0 sm:$0xff]
    %19 = vst [vmem:[%s1] sm:$0xff] %v18
    %s20 = scalar_lea.vmem %s1, 8
    %21 = vst [vmem:[%s20] sm:$0xff] %v18
    %22 = vsyncpa [#allocation1], 1

// kernel: tile.1
$region0: #{tile.1}
  %s0 = inlined_call_operand.vmem [shape: f32[9,4], index: 0, kind: input, shape index: {}]
  %s1 = inlined_call_operand.vmem [shape: f32[36,1], index: 1, kind: output, shape index: {}]
  %v2 = vld [vmem:[%s0] sm:$0xff]
  %vm3 = vcmask 7168
  %4 = vst.msk [vmem:[%s1] ss:$4 sm:$0xff] %vm3, %v2
  %s5 = scalar_lea.vmem %s0, 8
  %v6 = vld [vmem:[%s5] sm:$0x1]
  %vm7 = vcmask 7168
  %s8 = scalar_lea.vmem %s1, 32
  %9 = vst.msk [vmem:[%s8] sm:$0x1] %vm7, %v6
  %v10 = vld [vmem:[%s0] sm:$0xff]
  %11 = vrot.lane.b32.xlu0 %v10, 127
  %v12 = vpop.permute.xlu0 %11
  %vm13 = vcmask 7168
  %s14 = scalar_lea.vmem %s1, 1
  %15 = vst.msk [vmem:[%s14] ss:$4 sm:$0xff] %vm13, %v12
  %s16 = scalar_lea.vmem %s0, 8
  %v17 = vld [vmem:[%s16] sm:$0x1]
  %18 = vrot.lane.b32.xlu0 %v17, 127
  %v19 = vpop.permute.xlu0 %18
  %vm20 = vcmask 7168
  %s21 = scalar_lea.vmem %s1, 33
  %22 = vst.msk [vmem:[%s21] sm:$0x1] %vm20, %v19
  %v23 = vld [vmem:[%s0] sm:$0xff]
  %24 = vrot.lane.b32.xlu0 %v23, 126
  %v25 = vpop.permute.xlu0 %24
  %vm26 = vcmask 7168
  %s27 = scalar_lea.vmem %s1, 2
  %28 = vst.msk [vmem:[%s27] ss:$4 sm:$0xff] %vm26, %v25
  %s29 = scalar_lea.vmem %s0, 8
  %v30 = vld [vmem:[%s29] sm:$0x1]
  %31 = vrot.lane.b32.xlu0 %v30, 126
  %v32 = vpop.permute.xlu0 %31
  %vm33 = vcmask 7168
  %s34 = scalar_lea.vmem %s1, 34
  %35 = vst.msk [vmem:[%s34] sm:$0x1] %vm33, %v32
  %v36 = vld [vmem:[%s0] sm:$0xff]
  %37 = vrot.lane.b32.xlu0 %v36, 125
  %v38 = vpop.permute.xlu0 %37
  %vm39 = vcmask 7168
  %s40 = scalar_lea.vmem %s1, 3
  %41 = vst.msk [vmem:[%s40] ss:$4 sm:$0xff] %vm39, %v38
  %s42 = scalar_lea.vmem %s0, 8
  %v43 = vld [vmem:[%s42] sm:$0x1]
  %44 = vrot.lane.b32.xlu0 %v43, 125
  %v45 = vpop.permute.xlu0 %44
  %vm46 = vcmask 7168
  %s47 = scalar_lea.vmem %s1, 35
  %48 = vst.msk [vmem:[%s47] sm:$0x1] %vm46, %v45

// kernel: tile.3
$region0: #{tile.3}
  %s0 = inlined_call_operand.vmem [shape: f32[9,8], index: 0, kind: input, shape index: {}]
  %s1 = inlined_call_operand.vmem [shape: f32[72,1], index: 1, kind: output, shape index: {}]
  %v2 = vld [vmem:[%s0] sm:$0xff]
  %vm3 = vcmask 7168
  %4 = vst.msk [vmem:[%s1] ss:$8 sm:$0xf] %vm3, %v2
  %5 = vst.msk [vmem:[%s1] ss:$8 sm:$0xf0] %vm3, %v2
  %s6 = scalar_lea.vmem %s0, 8
  %v7 = vld [vmem:[%s6] sm:$0x1]
  %vm8 = vcmask 7168
  %s9 = scalar_lea.vmem %s1, 64
  %10 = vst.msk [vmem:[%s9] sm:$0x1] %vm8, %v7
  %v11 = vld [vmem:[%s0] sm:$0xff]
  %12 = vrot.lane.b32.xlu0 %v11, 127
  %v13 = vpop.permute.xlu0 %12
  %vm14 = vcmask 7168
  %s15 = scalar_lea.vmem %s1, 1
  %16 = vst.msk [vmem:[%s15] ss:$8 sm:$0xf] %vm14, %v13
  %s17 = scalar_lea.vmem %s1, 1
  %18 = vst.msk [vmem:[%s17] ss:$8 sm:$0xf0] %vm14, %v13
  %s19 = scalar_lea.vmem %s0, 8
  %v20 = vld [vmem:[%s19] sm:$0x1]
  %21 = vrot.lane.b32.xlu0 %v20, 127
  %v22 = vpop.permute.xlu0 %21
  %vm23 = vcmask 7168
  %s24 = scalar_lea.vmem %s1, 65
  %25 = vst.msk [vmem:[%s24] sm:$0x1] %vm23, %v22
  %v26 = vld [vmem:[%s0] sm:$0xff]
  %27 = vrot.lane.b32.xlu0 %v26, 126
  %v28 = vpop.permute.xlu0 %27
  %vm29 = vcmask 7168
  %s30 = scalar_lea.vmem %s1, 2
  %31 = vst.msk [vmem:[%s30] ss:$8 sm:$0xf] %vm29, %v28
  %s32 = scalar_lea.vmem %s1, 2
  %33 = vst.msk [vmem:[%s32] ss:$8 sm:$0xf0] %vm29, %v28
  %s34 = scalar_lea.vmem %s0, 8
  %v35 = vld [vmem:[%s34] sm:$0x1]
  %36 = vrot.lane.b32.xlu0 %v35, 126
  %v37 = vpop.permute.xlu0 %36
  %vm38 = vcmask 7168
  %s39 = scalar_lea.vmem %s1, 66
  %40 = vst.msk [vmem:[%s39] sm:$0x1] %vm38, %v37
  %v41 = vld [vmem:[%s0] sm:$0xff]
  %42 = vrot.lane.b32.xlu0 %v41, 125
  %v43 = vpop.permute.xlu0 %42
  %vm44 = vcmask 7168
  %s45 = scalar_lea.vmem %s1, 3
  %46 = vst.msk [vmem:[%s45] ss:$8 sm:$0xf] %vm44, %v43
  %s47 = scalar_lea.vmem %s1, 3
  %48 = vst.msk [vmem:[%s47] ss:$8 sm:$0xf0] %vm44, %v43
  %s49 = scalar_lea.vmem %s0, 8
  %v50 = vld [vmem:[%s49] sm:$0x1]
  %51 = vrot.lane.b32.xlu0 %v50, 125
  %v52 = vpop.permute.xlu0 %51
  %vm53 = vcmask 7168
  %s54 = scalar_lea.vmem %s1, 67
  %55 = vst.msk [vmem:[%s54] sm:$0x1] %vm53, %v52
  %v56 = vld [vmem:[%s0] sm:$0xff]
  %57 = vrot.lane.b32.xlu0 %v56, 124
  %v58 = vpop.permute.xlu0 %57
  %vm59 = vcmask 7168
  %s60 = scalar_lea.vmem %s1, 4
  %61 = vst.msk [vmem:[%s60] ss:$8 sm:$0xf] %vm59, %v58
  %s62 = scalar_lea.vmem %s1, 4
  %63 = vst.msk [vmem:[%s62] ss:$8 sm:$0xf0] %vm59, %v58
  %s64 = scalar_lea.vmem %s0, 8
  %v65 = vld [vmem:[%s64] sm:$0x1]
  %66 = vrot.lane.b32.xlu0 %v65, 124
  %v67 = vpop.permute.xlu0 %66
  %vm68 = vcmask 7168
  %s69 = scalar_lea.vmem %s1, 68
  %70 = vst.msk [vmem:[%s69] sm:$0x1] %vm68, %v67
  %v71 = vld [vmem:[%s0] sm:$0xff]
  %72 = vrot.lane.b32.xlu0 %v71, 123
  %v73 = vpop.permute.xlu0 %72
  %vm74 = vcmask 7168
  %s75 = scalar_lea.vmem %s1, 5
  %76 = vst.msk [vmem:[%s75] ss:$8 sm:$0xf] %vm74, %v73
  %s77 = scalar_lea.vmem %s1, 5
  %78 = vst.msk [vmem:[%s77] ss:$8 sm:$0xf0] %vm74, %v73
  %s79 = scalar_lea.vmem %s0, 8
  %v80 = vld [vmem:[%s79] sm:$0x1]
  %81 = vrot.lane.b32.xlu0 %v80, 123
  %v82 = vpop.permute.xlu0 %81
  %vm83 = vcmask 7168
  %s84 = scalar_lea.vmem %s1, 69
  %85 = vst.msk [vmem:[%s84] sm:$0x1] %vm83, %v82
  %v86 = vld [vmem:[%s0] sm:$0xff]
  %87 = vrot.lane.b32.xlu0 %v86, 122
  %v88 = vpop.permute.xlu0 %87
  %vm89 = vcmask 7168
  %s90 = scalar_lea.vmem %s1, 6
  %91 = vst.msk [vmem:[%s90] ss:$8 sm:$0xf] %vm89, %v88
  %s92 = scalar_lea.vmem %s1, 6
  %93 = vst.msk [vmem:[%s92] ss:$8 sm:$0xf0] %vm89, %v88
  %s94 = scalar_lea.vmem %s0, 8
  %v95 = vld [vmem:[%s94] sm:$0x1]
  %96 = vrot.lane.b32.xlu0 %v95, 122
  %v97 = vpop.permute.xlu0 %96
  %vm98 = vcmask 7168
  %s99 = scalar_lea.vmem %s1, 70
  %100 = vst.msk [vmem:[%s99] sm:$0x1] %vm98, %v97
  %v101 = vld [vmem:[%s0] sm:$0xff]
  %102 = vrot.lane.b32.xlu0 %v101, 121
  %v103 = vpop.permute.xlu0 %102
  %vm104 = vcmask 7168
  %s105 = scalar_lea.vmem %s1, 7
  %106 = vst.msk [vmem:[%s105] ss:$8 sm:$0xf] %vm104, %v103
  %s107 = scalar_lea.vmem %s1, 7
  %108 = vst.msk [vmem:[%s107] ss:$8 sm:$0xf0] %vm104, %v103
  %s109 = scalar_lea.vmem %s0, 8
  %v110 = vld [vmem:[%s109] sm:$0x1]
  %111 = vrot.lane.b32.xlu0 %v110, 121
  %v112 = vpop.permute.xlu0 %111
  %vm113 = vcmask 7168
  %s114 = scalar_lea.vmem %s1, 71
  %115 = vst.msk [vmem:[%s114] sm:$0x1] %vm113, %v112

// kernel: conv_blockT_forward.4
$region0: #{conv_blockT_forward.4}
  #allocation0 [shape = 'u32[]', space=smem, size = 0x4, offset = 0x4, fixed_abs, tag = 'smem constant byte address 0x4 - core index']
  #allocation1 [shape = 'u32[72,128]{1,0:T(1,128)}', space=vmem, size = 0x9000, scoped, tag = 'internal scratch']
  %s0 = inlined_call_operand.vmem [shape: f32[2,4,49152], index: 0, kind: input, shape index: {}]
  %s1 = inlined_call_operand.vmem [shape: f32[8,4], index: 1, kind: input, shape index: {}]
  %s2 = inlined_call_operand.vmem [shape: f32[8,1], index: 2, kind: input, shape index: {}]
  %s3 = inlined_call_operand.vmem [shape: f32[4,1], index: 3, kind: input, shape index: {}]
  %s4 = inlined_call_operand.vmem [shape: f32[4,1], index: 4, kind: input, shape index: {}]
  %s5 = inlined_call_operand.vmem [shape: f32[2,8,49152], index: 5, kind: output, shape index: {}]
  %s6 = sld [smem:[#allocation0]]
  $region53: #{conv_blockT_forward.4} parent=0
    _
  %s8 = ssub.s32 1, %s6
  %s9 = scalar_select 0, %s8, %s6
  loop: start=0, step=1, limit=26
  $region2: #{conv_blockT_forward.4} parent=0 // loop_pre_header
    _
  $region3: #{conv_blockT_forward.4} parent=0 // loop_header
    %s11 = sphi 0, %s15
    %p12 = scmp.ge.s32.totalorder %s11, 26
    %s18 = sphi 0, %s30
    %s19 = sphi 0, %s26
    %s20 = sphi 0, %s18
    %s21 = sphi 0, %s19
    %s22 = sphi 0, %s20
    %s23 = sphi 0, %s21
    %s35 = sphi 0, %s37
    %s38 = sphi 0, %s35
    %s39 = sphi 0, %s38
    %s55 = sphi 0, %s39
    %s59 = sphi 0, %s59
    %s61 = sphi 0, %s59
    %s62 = sphi 0, %s61
    %s76 = sphi 0, %s62
    %s80 = sphi 0, %s80
    %s82 = sphi 0, %s80
    %s83 = sphi 0, %s82
    %s97 = sphi 0, %s83
    %s101 = sphi 0, %s101
    %s103 = sphi 0, %s101
    %s104 = sphi 0, %s103
    %s118 = sphi 0, %s104
    %s122 = sphi 0, %s122
    %s124 = sphi 0, %s122
    %s125 = sphi 0, %s124
    %s139 = sphi 0, %s125
    %s147 = sphi 0, %s149
    %s150 = sphi 0, %s147
    %s151 = sphi 0, %s150
    %s167 = sphi 0, %s151
  $region4: #{conv_blockT_forward.4} parent=0 // loop_header_branch
    %14 = sbr.rel (%p12) target = $region8
  $region5: #{conv_blockT_forward.4} parent=0 // loop_body
    %s16 = ssub.s32 %s11, 1
    %s17 = ssub.s32 %s11, 2
    %s24 = sadd.s32 1, %s19
    %p25 = scmp.ge.s32.totalorder %s24, 12
    %s26 = scalar_select %p25, 0, %s24
    %s27 = sadd.s32 1, %s18
    %s28 = scalar_select %p25, %s27, %s18
    %p29 = scmp.ge.s32.totalorder %s28, 2
    %s30 = scalar_select %p29, 0, %s28
    %s31 = ssub.s32 %s18, %s30
    %s32 = ssub.s32 %s19, %s26
    %s33 = sor.u32 %s31, %s32
    %p34 = scmp.eq.s32.totalorder %s33, 0
    %s36 = sadd.s32 %s35, 1
    %s37 = scalar_select %p34, %s35, %s36
    %p40 = pneg %p34
    %p41 = scmp.eq.s32.totalorder %s11, 23
    %p42 = por %p40, %p41
    %p43 = scmp.ne.s32.totalorder %s35, %s38
    %p44 = scmp.eq.s32.totalorder %s11, 0
    %p45 = por %p43, %p44
    %p46 = scmp.ne.s32.totalorder %s35, %s38
    %p47 = scmp.eq.s32.totalorder %s16, 23
    %p48 = por %p46, %p47
    %p49 = scmp.ne.s32.totalorder %s38, %s39
    %p50 = scmp.eq.s32.totalorder %s16, 0
    %p51 = por %p49, %p50
    %p52 = scmp.ne.s32.totalorder %s38, %s39
    %p53 = scmp.eq.s32.totalorder %s17, 23
    %p54 = por %p52, %p53
    %p56 = scmp.ne.s32.totalorder %s39, %s55
    %p57 = scmp.eq.s32.totalorder %s17, 0
    %p58 = por %p56, %p57
    %s60 = sadd.s32 %s59, 1
    %p63 = scmp.eq.s32.totalorder %s11, 23
    %p64 = scmp.ne.s32.totalorder %s59, %s61
    %p65 = scmp.eq.s32.totalorder %s11, 0
    %p66 = por %p64, %p65
    %p67 = scmp.ne.s32.totalorder %s59, %s61
    %p68 = scmp.eq.s32.totalorder %s16, 23
    %p69 = por %p67, %p68
    %p70 = scmp.ne.s32.totalorder %s61, %s62
    %p71 = scmp.eq.s32.totalorder %s16, 0
    %p72 = por %p70, %p71
    %p73 = scmp.ne.s32.totalorder %s61, %s62
    %p74 = scmp.eq.s32.totalorder %s17, 23
    %p75 = por %p73, %p74
    %p77 = scmp.ne.s32.totalorder %s62, %s76
    %p78 = scmp.eq.s32.totalorder %s17, 0
    %p79 = por %p77, %p78
    %s81 = sadd.s32 %s80, 1
    %p84 = scmp.eq.s32.totalorder %s11, 23
    %p85 = scmp.ne.s32.totalorder %s80, %s82
    %p86 = scmp.eq.s32.totalorder %s11, 0
    %p87 = por %p85, %p86
    %p88 = scmp.ne.s32.totalorder %s80, %s82
    %p89 = scmp.eq.s32.totalorder %s16, 23
    %p90 = por %p88, %p89
    %p91 = scmp.ne.s32.totalorder %s82, %s83
    %p92 = scmp.eq.s32.totalorder %s16, 0
    %p93 = por %p91, %p92
    %p94 = scmp.ne.s32.totalorder %s82, %s83
    %p95 = scmp.eq.s32.totalorder %s17, 23
    %p96 = por %p94, %p95
    %p98 = scmp.ne.s32.totalorder %s83, %s97
    %p99 = scmp.eq.s32.totalorder %s17, 0
    %p100 = por %p98, %p99
    %s102 = sadd.s32 %s101, 1
    %p105 = scmp.eq.s32.totalorder %s11, 23
    %p106 = scmp.ne.s32.totalorder %s101, %s103
    %p107 = scmp.eq.s32.totalorder %s11, 0
    %p108 = por %p106, %p107
    %p109 = scmp.ne.s32.totalorder %s101, %s103
    %p110 = scmp.eq.s32.totalorder %s16, 23
    %p111 = por %p109, %p110
    %p112 = scmp.ne.s32.totalorder %s103, %s104
    %p113 = scmp.eq.s32.totalorder %s16, 0
    %p114 = por %p112, %p113
    %p115 = scmp.ne.s32.totalorder %s103, %s104
    %p116 = scmp.eq.s32.totalorder %s17, 23
    %p117 = por %p115, %p116
    %p119 = scmp.ne.s32.totalorder %s104, %s118
    %p120 = scmp.eq.s32.totalorder %s17, 0
    %p121 = por %p119, %p120
    %s123 = sadd.s32 %s122, 1
    %p126 = scmp.eq.s32.totalorder %s11, 23
    %p127 = scmp.ne.s32.totalorder %s122, %s124
    %p128 = scmp.eq.s32.totalorder %s11, 0
    %p129 = por %p127, %p128
    %p130 = scmp.ne.s32.totalorder %s122, %s124
    %p131 = scmp.eq.s32.totalorder %s16, 23
    %p132 = por %p130, %p131
    %p133 = scmp.ne.s32.totalorder %s124, %s125
    %p134 = scmp.eq.s32.totalorder %s16, 0
    %p135 = por %p133, %p134
    %p136 = scmp.ne.s32.totalorder %s124, %s125
    %p137 = scmp.eq.s32.totalorder %s17, 23
    %p138 = por %p136, %p137
    %p140 = scmp.ne.s32.totalorder %s125, %s139
    %p141 = scmp.eq.s32.totalorder %s17, 0
    %p142 = por %p140, %p141
    %s143 = ssub.s32 %s18, %s30
    %s144 = ssub.s32 %s19, %s26
    %s145 = sor.u32 %s143, %s144
    %p146 = scmp.eq.s32.totalorder %s145, 0
    %s148 = sadd.s32 %s147, 1
    %s149 = scalar_select %p146, %s147, %s148
    %p152 = pneg %p146
    %p153 = scmp.eq.s32.totalorder %s11, 23
    %p154 = por %p152, %p153
    %p155 = scmp.ne.s32.totalorder %s147, %s150
    %p156 = scmp.eq.s32.totalorder %s11, 0
    %p157 = por %p155, %p156
    %p158 = scmp.ne.s32.totalorder %s147, %s150
    %p159 = scmp.eq.s32.totalorder %s16, 23
    %p160 = por %p158, %p159
    %p161 = scmp.ne.s32.totalorder %s150, %s151
    %p162 = scmp.eq.s32.totalorder %s16, 0
    %p163 = por %p161, %p162
    %p164 = scmp.ne.s32.totalorder %s150, %s151
    %p165 = scmp.eq.s32.totalorder %s17, 23
    %p166 = por %p164, %p165
    %p168 = scmp.ne.s32.totalorder %s151, %s167
    %p169 = scmp.eq.s32.totalorder %s17, 0
    %p170 = por %p168, %p169
    %p171 = scmp.le.s32.totalorder 1, %s11
    %p172 = scmp.lt.s32.totalorder %s11, 25
    %p173 = pnand %p171, %p172
    %p174 = pneg %p173
    // Predicated region
    $region9: #{conv_blockT_forward.4} parent=5 // pred_check
      _
    $region10: #{conv_blockT_forward.4} parent=5 // pred_check_branch
      %176 = sbr.rel (%p173) target = $region12
    $region11: #{conv_blockT_forward.4} parent=5 // pred_region
      %s177 = ssub.s32 %s11, 1
      // Predicated region
      $region13: #{conv_blockT_forward.4} parent=11 // pred_check
        %p178 = pneg %p72
      $region14: #{conv_blockT_forward.4} parent=11 // pred_check_branch
        %180 = sbr.rel (%p178) target = $region16
      $region15: #{conv_blockT_forward.4} parent=11 // pred_region
        _
      $region16: #{conv_blockT_forward.4} parent=11 // pred_fallthru
        _
      // Predicated region
      $region17: #{conv_blockT_forward.4} parent=11 // pred_check
        %p181 = pneg %p93
      $region18: #{conv_blockT_forward.4} parent=11 // pred_check_branch
        %183 = sbr.rel (%p181) target = $region20
      $region19: #{conv_blockT_forward.4} parent=11 // pred_region
        _
      $region20: #{conv_blockT_forward.4} parent=11 // pred_fallthru
        _
      // Predicated region
      $region21: #{conv_blockT_forward.4} parent=11 // pred_check
        %p184 = pneg %p114
      $region22: #{conv_blockT_forward.4} parent=11 // pred_check_branch
        %186 = sbr.rel (%p184) target = $region24
      $region23: #{conv_blockT_forward.4} parent=11 // pred_region
        _
      $region24: #{conv_blockT_forward.4} parent=11 // pred_fallthru
        _
      // Predicated region
      $region25: #{conv_blockT_forward.4} parent=11 // pred_check
        %p187 = pneg %p135
      $region26: #{conv_blockT_forward.4} parent=11 // pred_check_branch
        %189 = sbr.rel (%p187) target = $region28
      $region27: #{conv_blockT_forward.4} parent=11 // pred_region
        _
      $region28: #{conv_blockT_forward.4} parent=11 // pred_fallthru
        _
    $region12: #{conv_blockT_forward.4} parent=5 // pred_fallthru
      _
    %p190 = scmp.lt.s32.totalorder %s11, 24
    // Predicated region
    $region29: #{conv_blockT_forward.4} parent=5 // pred_check
      %p191 = pneg %p190
    $region30: #{conv_blockT_forward.4} parent=5 // pred_check_branch
      %193 = sbr.rel (%p191) target = $region32
    $region31: #{conv_blockT_forward.4} parent=5 // pred_region
      // Predicated region
      $region33: #{conv_blockT_forward.4} parent=31 // pred_check
        %p194 = pneg %p45
      $region34: #{conv_blockT_forward.4} parent=31 // pred_check_branch
        %196 = sbr.rel (%p194) target = $region36
      $region35: #{conv_blockT_forward.4} parent=31 // pred_region
        %s197 = smul.u32 32, %s19
        %p198 = scmp.lt.s32.totalorder %s18, 1
        %s199 = scalar_select %p198, %s18, 1
        %p200 = scmp.lt.s32.totalorder %s197, 383
        %s201 = scalar_select %p200, %s197, 383
        %s202 = smul.addr %s199, 384
        %s203 = sadd.s32 %s201, %s202
        %s204 = smul.addr %s203, 4
        %s205 = scalar_lea.vmem %s0, %s204
        %s206 = smul.u32 32, %s19
      $region36: #{conv_blockT_forward.4} parent=31 // pred_fallthru
        _
    $region32: #{conv_blockT_forward.4} parent=5 // pred_fallthru
      _
    %p207 = scmp.le.s32.totalorder 1, %s11
    %p208 = scmp.lt.s32.totalorder %s11, 25
    %p209 = pnand %p207, %p208
    %p210 = pneg %p209
    // Predicated region
    $region37: #{conv_blockT_forward.4} parent=5 // pred_check
      _
    $region38: #{conv_blockT_forward.4} parent=5 // pred_check_branch
      %212 = sbr.rel (%p209) target = $region40
    $region39: #{conv_blockT_forward.4} parent=5 // pred_region
      %s213 = ssub.s32 %s11, 1
      %s214 = smul.u32 32, %s21
      %p215 = scmp.lt.s32.totalorder %s20, 1
      %s216 = scalar_select %p215, %s20, 1
      %p217 = scmp.lt.s32.totalorder %s214, 383
      %s218 = scalar_select %p217, %s214, 383
      %s219 = smul.addr %s216, 384
      %s220 = sadd.s32 %s218, %s219
      %s221 = smul.addr %s220, 4
      %s222 = scalar_lea.vmem %s0, %s221
      %p223 = pneg %p51
      %p224 = pneg %p48
      %p225 = pneg %p72
      %p226 = pneg %p69
      %p227 = pneg %p93
      %p228 = pneg %p90
      %p229 = pneg %p114
      %p230 = pneg %p111
      %p231 = pneg %p135
      %p232 = pneg %p132
      %p233 = pneg %p163
      %p234 = pneg %p160
      %s235 = smul.u32 32, %s21
      %p236 = scmp.lt.s32.totalorder %s20, 1
      %s237 = scalar_select %p236, %s20, 1
      %p238 = scmp.lt.s32.totalorder %s235, 383
      %s239 = scalar_select %p238, %s235, 383
      %s240 = smul.addr %s237, 384
      %s241 = sadd.s32 %s239, %s240
      %s242 = smul.addr %s241, 8
      %s243 = scalar_lea.vmem %s5, %s242
      %s244 = smul.u32 32, %s21
      %p245 = scmp.lt.s32.totalorder %s20, 1
      %s246 = scalar_select %p245, %s20, 1
      %p247 = scmp.lt.s32.totalorder %s244, 383
      %s248 = scalar_select %p247, %s244, 383
      %s249 = smul.addr %s246, 384
      %s250 = sadd.s32 %s248, %s249
      %s251 = smul.addr %s250, 4
      %s252 = scalar_lea.vmem %s0, %s251
      %s253 = smul.u32 32, %s21
      %s254 = smul.u32 32, %s21
      %p255 = scmp.lt.s32.totalorder %s20, 1
      %s256 = scalar_select %p255, %s20, 1
      %p257 = scmp.lt.s32.totalorder %s254, 383
      %s258 = scalar_select %p257, %s254, 383
      %s259 = smul.addr %s256, 384
      %s260 = sadd.s32 %s258, %s259
      %s261 = smul.addr %s260, 8
      %s262 = scalar_lea.vmem %s5, %s261
      %s263 = smul.u32 32, %s21
      %v264 = vld [vmem:[%s252] sm:$0xff]
      %v265 = vld [vmem:[%s252 + $0x8] sm:$0xff]
      %v266 = vld [vmem:[%s252 + $0x10] sm:$0xff]
      %v267 = vld [vmem:[%s252 + $0x18] sm:$0xff]
      %v268 = vld [vmem:[%s252 + $0x20] sm:$0xff]
      %v269 = vld [vmem:[%s252 + $0x28] sm:$0xff]
      %v270 = vld [vmem:[%s252 + $0x30] sm:$0xff]
      %v271 = vld [vmem:[%s252 + $0x38] sm:$0xff]
      %v272 = vld [vmem:[%s252 + $0x40] sm:$0xff]
      %v273 = vld [vmem:[%s252 + $0x48] sm:$0xff]
      %v274 = vld [vmem:[%s252 + $0x50] sm:$0xff]
      %v275 = vld [vmem:[%s252 + $0x58] sm:$0xff]
      %v276 = vld [vmem:[%s252 + $0x60] sm:$0xff]
      %v277 = vld [vmem:[%s252 + $0x68] sm:$0xff]
      %v278 = vld [vmem:[%s252 + $0x70] sm:$0xff]
      %v279 = vld [vmem:[%s252 + $0x78] sm:$0xff]
      %v280 = vld [vmem:[%s3] sm:$0xf]
      %282 = vset.pattern.permute.xlu0 0
      %283 = vperm.xlu0 %282, %v280
      %v284 = vpop.permute.xlu0 %283
      %v286 = vunpack.c.l.s4 839922192
      %v287 = vunpack.c.0.s8 %v286
      %v288 = vperm.slane %v284, %v287
      %v290 = vmul.f32 %v264, %v288
      %v291 = vmul.f32 %v265, %v288
      %v292 = vmul.f32 %v266, %v288
      %v293 = vmul.f32 %v267, %v288
      %v294 = vmul.f32 %v268, %v288
      %v295 = vmul.f32 %v269, %v288
      %v296 = vmul.f32 %v270, %v288
      %v297 = vmul.f32 %v271, %v288
      %v298 = vmul.f32 %v272, %v288
      %v299 = vmul.f32 %v273, %v288
      %v300 = vmul.f32 %v274, %v288
      %v301 = vmul.f32 %v275, %v288
      %v302 = vmul.f32 %v276, %v288
      %v303 = vmul.f32 %v277, %v288
      %v304 = vmul.f32 %v278, %v288
      %v305 = vmul.f32 %v279, %v288
      %v306 = vld [vmem:[%s4] sm:$0xf]
      %308 = vset.pattern.permute.xlu0 0
      %309 = vperm.xlu0 %308, %v306
      %v310 = vpop.permute.xlu0 %309
      %v312 = vunpack.c.l.s4 839922192
      %v313 = vunpack.c.0.s8 %v312
      %v314 = vperm.slane %v310, %v313
      %v316 = vadd.f32 %v290, %v314
      %v317 = vadd.f32 %v291, %v314
      %v318 = vadd.f32 %v292, %v314
      %v319 = vadd.f32 %v293, %v314
      %v320 = vadd.f32 %v294, %v314
      %v321 = vadd.f32 %v295, %v314
      %v322 = vadd.f32 %v296, %v314
      %v323 = vadd.f32 %v297, %v314
      %v324 = vadd.f32 %v298, %v314
      %v325 = vadd.f32 %v299, %v314
      %v326 = vadd.f32 %v300, %v314
      %v327 = vadd.f32 %v301, %v314
      %v328 = vadd.f32 %v302, %v314
      %v329 = vadd.f32 %v303, %v314
      %v330 = vadd.f32 %v304, %v314
      %v331 = vadd.f32 %v305, %v314
      %vm332 = vcmp.lt.f32.partialorder %v264, -1e+29
      %vm333 = vcmp.lt.f32.partialorder %v265, -1e+29
      %vm334 = vcmp.lt.f32.partialorder %v266, -1e+29
      %vm335 = vcmp.lt.f32.partialorder %v267, -1e+29
      %vm336 = vcmp.lt.f32.partialorder %v268, -1e+29
      %vm337 = vcmp.lt.f32.partialorder %v269, -1e+29
      %vm338 = vcmp.lt.f32.partialorder %v270, -1e+29
      %vm339 = vcmp.lt.f32.partialorder %v271, -1e+29
      %vm340 = vcmp.lt.f32.partialorder %v272, -1e+29
      %vm341 = vcmp.lt.f32.partialorder %v273, -1e+29
      %vm342 = vcmp.lt.f32.partialorder %v274, -1e+29
      %vm343 = vcmp.lt.f32.partialorder %v275, -1e+29
      %vm344 = vcmp.lt.f32.partialorder %v276, -1e+29
      %vm345 = vcmp.lt.f32.partialorder %v277, -1e+29
      %vm346 = vcmp.lt.f32.partialorder %v278, -1e+29
      %vm347 = vcmp.lt.f32.partialorder %v279, -1e+29
      %v348 = vsel %vm332, 0.0, %v316
      %v349 = vsel %vm333, 0.0, %v317
      %v350 = vsel %vm334, 0.0, %v318
      %v351 = vsel %vm335, 0.0, %v319
      %v352 = vsel %vm336, 0.0, %v320
      %v353 = vsel %vm337, 0.0, %v321
      %v354 = vsel %vm338, 0.0, %v322
      %v355 = vsel %vm339, 0.0, %v323
      %v356 = vsel %vm340, 0.0, %v324
      %v357 = vsel %vm341, 0.0, %v325
      %v358 = vsel %vm342, 0.0, %v326
      %v359 = vsel %vm343, 0.0, %v327
      %v360 = vsel %vm344, 0.0, %v328
      %v361 = vsel %vm345, 0.0, %v329
      %v362 = vsel %vm346, 0.0, %v330
      %v363 = vsel %vm347, 0.0, %v331
      %v364 = vld [vmem:[%s1] sm:$0xff]
      %v365 = vld [vmem:[%s2] sm:$0xff]
      %367 = vset.pattern.permute.xlu0 0
      %368 = vperm.xlu0 %367, %v365
      %v369 = vpop.permute.xlu0 %368
      %387 = vst [vmem:[#allocation1] ss:$2 sm:$0xff] %v348
      %s388 = scalar_lea.vmem [#allocation1], 16
      %389 = vst [vmem:[%s388] ss:$2 sm:$0xff] %v349
      %s390 = scalar_lea.vmem [#allocation1], 32
      %391 = vst [vmem:[%s390] ss:$2 sm:$0xff] %v350
      %s392 = scalar_lea.vmem [#allocation1], 48
      %393 = vst [vmem:[%s392] ss:$2 sm:$0xff] %v351
      %v394 = vld.sshfl [vmem:[#allocation1] sm:$0xff pattern:$0x75316420]
      %v395 = vld.sshfl [vmem:[#allocation1 + $0x8] sm:$0xff pattern:$0x75316420]
      %v396 = vld.sshfl [vmem:[#allocation1 + $0x10] sm:$0xff pattern:$0x75316420]
      %v397 = vld.sshfl [vmem:[#allocation1 + $0x18] sm:$0xff pattern:$0x75316420]
      %v398 = vld.sshfl [vmem:[#allocation1 + $0x20] sm:$0xff pattern:$0x75316420]
      %v399 = vld.sshfl [vmem:[#allocation1 + $0x28] sm:$0xff pattern:$0x75316420]
      %v400 = vld.sshfl [vmem:[#allocation1 + $0x30] sm:$0xff pattern:$0x75316420]
      %v401 = vld.sshfl [vmem:[#allocation1 + $0x38] sm:$0xff pattern:$0x75316420]
      %402 = vst [vmem:[#allocation1] ss:$2 sm:$0xff] %v352
      %403 = vst [vmem:[%s388] ss:$2 sm:$0xff] %v353
      %404 = vst [vmem:[%s390] ss:$2 sm:$0xff] %v354
      %405 = vst [vmem:[%s392] ss:$2 sm:$0xff] %v355
      %v406 = vld.sshfl [vmem:[#allocation1] sm:$0xff pattern:$0x75316420]
      %v407 = vld.sshfl [vmem:[#allocation1 + $0x8] sm:$0xff pattern:$0x75316420]
      %v408 = vld.sshfl [vmem:[#allocation1 + $0x10] sm:$0xff pattern:$0x75316420]
      %v409 = vld.sshfl [vmem:[#allocation1 + $0x18] sm:$0xff pattern:$0x75316420]
      %v410 = vld.sshfl [vmem:[#allocation1 + $0x20] sm:$0xff pattern:$0x75316420]
      %v411 = vld.sshfl [vmem:[#allocation1 + $0x28] sm:$0xff pattern:$0x75316420]
      %v412 = vld.sshfl [vmem:[#allocation1 + $0x30] sm:$0xff pattern:$0x75316420]
      %v413 = vld.sshfl [vmem:[#allocation1 + $0x38] sm:$0xff pattern:$0x75316420]
      %414 = vst [vmem:[#allocation1] ss:$2 sm:$0xff] %v356
      %415 = vst [vmem:[%s388] ss:$2 sm:$0xff] %v357
      %416 = vst [vmem:[%s390] ss:$2 sm:$0xff] %v358
      %417 = vst [vmem:[%s392] ss:$2 sm:$0xff] %v359
      %v418 = vld.sshfl [vmem:[#allocation1] sm:$0xff pattern:$0x75316420]
      %v419 = vld.sshfl [vmem:[#allocation1 + $0x8] sm:$0xff pattern:$0x75316420]
      %v420 = vld.sshfl [vmem:[#allocation1 + $0x10] sm:$0xff pattern:$0x75316420]
      %v421 = vld.sshfl [vmem:[#allocation1 + $0x18] sm:$0xff pattern:$0x75316420]
      %v422 = vld.sshfl [vmem:[#allocation1 + $0x20] sm:$0xff pattern:$0x75316420]
      %v423 = vld.sshfl [vmem:[#allocation1 + $0x28] sm:$0xff pattern:$0x75316420]
      %v424 = vld.sshfl [vmem:[#allocation1 + $0x30] sm:$0xff pattern:$0x75316420]
      %v425 = vld.sshfl [vmem:[#allocation1 + $0x38] sm:$0xff pattern:$0x75316420]
      %426 = vst [vmem:[#allocation1] ss:$2 sm:$0xff] %v360
      %427 = vst [vmem:[%s388] ss:$2 sm:$0xff] %v361
      %428 = vst [vmem:[%s390] ss:$2 sm:$0xff] %v362
      %429 = vst [vmem:[%s392] ss:$2 sm:$0xff] %v363
      %v430 = vld.sshfl [vmem:[#allocation1] sm:$0xff pattern:$0x75316420]
      %v431 = vld.sshfl [vmem:[#allocation1 + $0x8] sm:$0xff pattern:$0x75316420]
      %v432 = vld.sshfl [vmem:[#allocation1 + $0x10] sm:$0xff pattern:$0x75316420]
      %v433 = vld.sshfl [vmem:[#allocation1 + $0x18] sm:$0xff pattern:$0x75316420]
      %v434 = vld.sshfl [vmem:[#allocation1 + $0x20] sm:$0xff pattern:$0x75316420]
      %v435 = vld.sshfl [vmem:[#allocation1 + $0x28] sm:$0xff pattern:$0x75316420]
      %v436 = vld.sshfl [vmem:[#allocation1 + $0x30] sm:$0xff pattern:$0x75316420]
      %v437 = vld.sshfl [vmem:[#allocation1 + $0x38] sm:$0xff pattern:$0x75316420]
      %vm438 = vcmask 31744
      %v440 = vsel %vm438, %v364, 0
      %vm442 = vcmask 1043456
      %v443 = vsel %vm442, %v394, 0
      %v445 = vsel %vm442, %v395, 0
      %v447 = vsel %vm442, %v396, 0
      %v449 = vsel %vm442, %v397, 0
      %v451 = vsel %vm442, %v398, 0
      %v453 = vsel %vm442, %v399, 0
      %v455 = vsel %vm442, %v400, 0
      %v457 = vsel %vm442, %v401, 0
      %v459 = vsel %vm442, %v406, 0
      %v461 = vsel %vm442, %v407, 0
      %v463 = vsel %vm442, %v408, 0
      %v465 = vsel %vm442, %v409, 0
      %v467 = vsel %vm442, %v410, 0
      %v469 = vsel %vm442, %v411, 0
      %v471 = vsel %vm442, %v412, 0
      %v473 = vsel %vm442, %v413, 0
      %v475 = vsel %vm442, %v418, 0
      %v477 = vsel %vm442, %v419, 0
      %v479 = vsel %vm442, %v420, 0
      %v481 = vsel %vm442, %v421, 0
      %v483 = vsel %vm442, %v422, 0
      %v485 = vsel %vm442, %v423, 0
      %v487 = vsel %vm442, %v424, 0
      %v489 = vsel %vm442, %v425, 0
      %v491 = vsel %vm442, %v430, 0
      %v493 = vsel %vm442, %v431, 0
      %v495 = vsel %vm442, %v432, 0
      %v497 = vsel %vm442, %v433, 0
      %v499 = vsel %vm442, %v434, 0
      %v501 = vsel %vm442, %v435, 0
      %v503 = vsel %vm442, %v436, 0
      %v505 = vsel %vm442, %v437, 0
      %507 = vmatpush.msra.mxu0 0.0
      %508 = vmatpush.msra.mxu0 0.0
      %509 = vmatpush.msra.mxu0 0.0
      %510 = vmatpush.msra.mxu0 0.0
      %511 = vmatpush.msra.mxu0 0.0
      %512 = vmatpush.msra.mxu0 0.0
      %513 = vmatpush.msra.mxu0 0.0
      %514 = vmatpush.msra.mxu0 0.0
      %515 = vmatpush.msra.mxu0 0.0
      %516 = vmatpush.msra.mxu0 0.0
      %517 = vmatpush.msra.mxu0 0.0
      %518 = vmatpush.msra.mxu0 0.0
      %519 = vmatpush.msra.mxu0 0.0
      %520 = vmatpush.msra.mxu0 0.0
      %521 = vmatpush.msra.mxu0 0.0
      %522 = vmatpush.msra.mxu0 %v443
      %523 = vmatmul.f32.gmra.mxu0 %v440
      %v524 = vpop.f32.mrf.mxu0
      %v525 = vadd.f32 %v369, %v524
      %526 = vdwg.mxu0
      %527 = vmatpush.msra.mxu0 0.0
      %528 = vmatpush.msra.mxu0 0.0
      %529 = vmatpush.msra.mxu0 0.0
      %530 = vmatpush.msra.mxu0 0.0
      %531 = vmatpush.msra.mxu0 0.0
      %532 = vmatpush.msra.mxu0 0.0
      %533 = vmatpush.msra.mxu0 0.0
      %534 = vmatpush.msra.mxu0 0.0
      %535 = vmatpush.msra.mxu0 0.0
      %536 = vmatpush.msra.mxu0 0.0
      %537 = vmatpush.msra.mxu0 0.0
      %538 = vmatpush.msra.mxu0 0.0
      %539 = vmatpush.msra.mxu0 0.0
      %540 = vmatpush.msra.mxu0 0.0
      %541 = vmatpush.msra.mxu0 0.0
      %542 = vmatpush.msra.mxu0 %v445
      %543 = vmatmul.f32.gmra.mxu0 %v440
      %v544 = vpop.f32.mrf.mxu0
      %v545 = vadd.f32 %v369, %v544
      %546 = vdwg.mxu0
      %547 = vmatpush.msra.mxu0 0.0
      %548 = vmatpush.msra.mxu0 0.0
      %549 = vmatpush.msra.mxu0 0.0
      %550 = vmatpush.msra.mxu0 0.0
      %551 = vmatpush.msra.mxu0 0.0
      %552 = vmatpush.msra.mxu0 0.0
      %553 = vmatpush.msra.mxu0 0.0
      %554 = vmatpush.msra.mxu0 0.0
      %555 = vmatpush.msra.mxu0 0.0
      %556 = vmatpush.msra.mxu0 0.0
      %557 = vmatpush.msra.mxu0 0.0
      %558 = vmatpush.msra.mxu0 0.0
      %559 = vmatpush.msra.mxu0 0.0
      %560 = vmatpush.msra.mxu0 0.0
      %561 = vmatpush.msra.mxu0 0.0
      %562 = vmatpush.msra.mxu0 %v447
      %563 = vmatmul.f32.gmra.mxu0 %v440
      %v564 = vpop.f32.mrf.mxu0
      %v565 = vadd.f32 %v369, %v564
      %566 = vdwg.mxu0
      %567 = vmatpush.msra.mxu0 0.0
      %568 = vmatpush.msra.mxu0 0.0
      %569 = vmatpush.msra.mxu0 0.0
      %570 = vmatpush.msra.mxu0 0.0
      %571 = vmatpush.msra.mxu0 0.0
      %572 = vmatpush.msra.mxu0 0.0
      %573 = vmatpush.msra.mxu0 0.0
      %574 = vmatpush.msra.mxu0 0.0
      %575 = vmatpush.msra.mxu0 0.0
      %576 = vmatpush.msra.mxu0 0.0
      %577 = vmatpush.msra.mxu0 0.0
      %578 = vmatpush.msra.mxu0 0.0
      %579 = vmatpush.msra.mxu0 0.0
      %580 = vmatpush.msra.mxu0 0.0
      %581 = vmatpush.msra.mxu0 0.0
      %582 = vmatpush.msra.mxu0 %v449
      %583 = vmatmul.f32.gmra.mxu0 %v440
      %v584 = vpop.f32.mrf.mxu0
      %v585 = vadd.f32 %v369, %v584
      %586 = vdwg.mxu0
      %587 = vmatpush.msra.mxu0 0.0
      %588 = vmatpush.msra.mxu0 0.0
      %589 = vmatpush.msra.mxu0 0.0
      %590 = vmatpush.msra.mxu0 0.0
      %591 = vmatpush.msra.mxu0 0.0
      %592 = vmatpush.msra.mxu0 0.0
      %593 = vmatpush.msra.mxu0 0.0
      %594 = vmatpush.msra.mxu0 0.0
      %595 = vmatpush.msra.mxu0 0.0
      %596 = vmatpush.msra.mxu0 0.0
      %597 = vmatpush.msra.mxu0 0.0
      %598 = vmatpush.msra.mxu0 0.0
      %599 = vmatpush.msra.mxu0 0.0
      %600 = vmatpush.msra.mxu0 0.0
      %601 = vmatpush.msra.mxu0 0.0
      %602 = vmatpush.msra.mxu0 %v451
      %603 = vmatmul.f32.gmra.mxu0 %v440
      %v604 = vpop.f32.mrf.mxu0
      %v605 = vadd.f32 %v369, %v604
      %606 = vdwg.mxu0
      %607 = vmatpush.msra.mxu0 0.0
      %608 = vmatpush.msra.mxu0 0.0
      %609 = vmatpush.msra.mxu0 0.0
      %610 = vmatpush.msra.mxu0 0.0
      %611 = vmatpush.msra.mxu0 0.0
      %612 = vmatpush.msra.mxu0 0.0
      %613 = vmatpush.msra.mxu0 0.0
      %614 = vmatpush.msra.mxu0 0.0
      %615 = vmatpush.msra.mxu0 0.0
      %616 = vmatpush.msra.mxu0 0.0
      %617 = vmatpush.msra.mxu0 0.0
      %618 = vmatpush.msra.mxu0 0.0
      %619 = vmatpush.msra.mxu0 0.0
      %620 = vmatpush.msra.mxu0 0.0
      %621 = vmatpush.msra.mxu0 0.0
      %622 = vmatpush.msra.mxu0 %v453
      %623 = vmatmul.f32.gmra.mxu0 %v440
      %v624 = vpop.f32.mrf.mxu0
      %v625 = vadd.f32 %v369, %v624
      %626 = vdwg.mxu0
      %627 = vmatpush.msra.mxu0 0.0
      %628 = vmatpush.msra.mxu0 0.0
      %629 = vmatpush.msra.mxu0 0.0
      %630 = vmatpush.msra.mxu0 0.0
      %631 = vmatpush.msra.mxu0 0.0
      %632 = vmatpush.msra.mxu0 0.0
      %633 = vmatpush.msra.mxu0 0.0
      %634 = vmatpush.msra.mxu0 0.0
      %635 = vmatpush.msra.mxu0 0.0
      %636 = vmatpush.msra.mxu0 0.0
      %637 = vmatpush.msra.mxu0 0.0
      %638 = vmatpush.msra.mxu0 0.0
      %639 = vmatpush.msra.mxu0 0.0
      %640 = vmatpush.msra.mxu0 0.0
      %641 = vmatpush.msra.mxu0 0.0
      %642 = vmatpush.msra.mxu0 %v455
      %643 = vmatmul.f32.gmra.mxu0 %v440
      %v644 = vpop.f32.mrf.mxu0
      %v645 = vadd.f32 %v369, %v644
      %646 = vdwg.mxu0
      %647 = vmatpush.msra.mxu0 0.0
      %648 = vmatpush.msra.mxu0 0.0
      %649 = vmatpush.msra.mxu0 0.0
      %650 = vmatpush.msra.mxu0 0.0
      %651 = vmatpush.msra.mxu0 0.0
      %652 = vmatpush.msra.mxu0 0.0
      %653 = vmatpush.msra.mxu0 0.0
      %654 = vmatpush.msra.mxu0 0.0
      %655 = vmatpush.msra.mxu0 0.0
      %656 = vmatpush.msra.mxu0 0.0
      %657 = vmatpush.msra.mxu0 0.0
      %658 = vmatpush.msra.mxu0 0.0
      %659 = vmatpush.msra.mxu0 0.0
      %660 = vmatpush.msra.mxu0 0.0
      %661 = vmatpush.msra.mxu0 0.0
      %662 = vmatpush.msra.mxu0 %v457
      %663 = vmatmul.f32.gmra.mxu0 %v440
      %v664 = vpop.f32.mrf.mxu0
      %v665 = vadd.f32 %v369, %v664
      %666 = vdwg.mxu0
      %667 = vmatpush.msra.mxu0 0.0
      %668 = vmatpush.msra.mxu0 0.0
      %669 = vmatpush.msra.mxu0 0.0
      %670 = vmatpush.msra.mxu0 0.0
      %671 = vmatpush.msra.mxu0 0.0
      %672 = vmatpush.msra.mxu0 0.0
      %673 = vmatpush.msra.mxu0 0.0
      %674 = vmatpush.msra.mxu0 0.0
      %675 = vmatpush.msra.mxu0 0.0
      %676 = vmatpush.msra.mxu0 0.0
      %677 = vmatpush.msra.mxu0 0.0
      %678 = vmatpush.msra.mxu0 0.0
      %679 = vmatpush.msra.mxu0 0.0
      %680 = vmatpush.msra.mxu0 0.0
      %681 = vmatpush.msra.mxu0 0.0
      %682 = vmatpush.msra.mxu0 %v459
      %683 = vmatmul.f32.gmra.mxu0 %v440
      %v684 = vpop.f32.mrf.mxu0
      %v685 = vadd.f32 %v369, %v684
      %686 = vdwg.mxu0
      %687 = vmatpush.msra.mxu0 0.0
      %688 = vmatpush.msra.mxu0 0.0
      %689 = vmatpush.msra.mxu0 0.0
      %690 = vmatpush.msra.mxu0 0.0
      %691 = vmatpush.msra.mxu0 0.0
      %692 = vmatpush.msra.mxu0 0.0
      %693 = vmatpush.msra.mxu0 0.0
      %694 = vmatpush.msra.mxu0 0.0
      %695 = vmatpush.msra.mxu0 0.0
      %696 = vmatpush.msra.mxu0 0.0
      %697 = vmatpush.msra.mxu0 0.0
      %698 = vmatpush.msra.mxu0 0.0
      %699 = vmatpush.msra.mxu0 0.0
      %700 = vmatpush.msra.mxu0 0.0
      %701 = vmatpush.msra.mxu0 0.0
      %702 = vmatpush.msra.mxu0 %v461
      %703 = vmatmul.f32.gmra.mxu0 %v440
      %v704 = vpop.f32.mrf.mxu0
      %v705 = vadd.f32 %v369, %v704
      %706 = vdwg.mxu0
      %707 = vmatpush.msra.mxu0 0.0
      %708 = vmatpush.msra.mxu0 0.0
      %709 = vmatpush.msra.mxu0 0.0
      %710 = vmatpush.msra.mxu0 0.0
      %711 = vmatpush.msra.mxu0 0.0
      %712 = vmatpush.msra.mxu0 0.0
      %713 = vmatpush.msra.mxu0 0.0
      %714 = vmatpush.msra.mxu0 0.0
      %715 = vmatpush.msra.mxu0 0.0
      %716 = vmatpush.msra.mxu0 0.0
      %717 = vmatpush.msra.mxu0 0.0
      %718 = vmatpush.msra.mxu0 0.0
      %719 = vmatpush.msra.mxu0 0.0
      %720 = vmatpush.msra.mxu0 0.0
      %721 = vmatpush.msra.mxu0 0.0
      %722 = vmatpush.msra.mxu0 %v463
      %723 = vmatmul.f32.gmra.mxu0 %v440
      %v724 = vpop.f32.mrf.mxu0
      %v725 = vadd.f32 %v369, %v724
      %726 = vdwg.mxu0
      %727 = vmatpush.msra.mxu0 0.0
      %728 = vmatpush.msra.mxu0 0.0
      %729 = vmatpush.msra.mxu0 0.0
      %730 = vmatpush.msra.mxu0 0.0
      %731 = vmatpush.msra.mxu0 0.0
      %732 = vmatpush.msra.mxu0 0.0
      %733 = vmatpush.msra.mxu0 0.0
      %734 = vmatpush.msra.mxu0 0.0
      %735 = vmatpush.msra.mxu0 0.0
      %736 = vmatpush.msra.mxu0 0.0
      %737 = vmatpush.msra.mxu0 0.0
      %738 = vmatpush.msra.mxu0 0.0
      %739 = vmatpush.msra.mxu0 0.0
      %740 = vmatpush.msra.mxu0 0.0
      %741 = vmatpush.msra.mxu0 0.0
      %742 = vmatpush.msra.mxu0 %v465
      %743 = vmatmul.f32.gmra.mxu0 %v440
      %v744 = vpop.f32.mrf.mxu0
      %v745 = vadd.f32 %v369, %v744
      %746 = vdwg.mxu0
      %747 = vmatpush.msra.mxu0 0.0
      %748 = vmatpush.msra.mxu0 0.0
      %749 = vmatpush.msra.mxu0 0.0
      %750 = vmatpush.msra.mxu0 0.0
      %751 = vmatpush.msra.mxu0 0.0
      %752 = vmatpush.msra.mxu0 0.0
      %753 = vmatpush.msra.mxu0 0.0
      %754 = vmatpush.msra.mxu0 0.0
      %755 = vmatpush.msra.mxu0 0.0
      %756 = vmatpush.msra.mxu0 0.0
      %757 = vmatpush.msra.mxu0 0.0
      %758 = vmatpush.msra.mxu0 0.0
      %759 = vmatpush.msra.mxu0 0.0
      %760 = vmatpush.msra.mxu0 0.0
      %761 = vmatpush.msra.mxu0 0.0
      %762 = vmatpush.msra.mxu0 %v467
      %763 = vmatmul.f32.gmra.mxu0 %v440
      %v764 = vpop.f32.mrf.mxu0
      %v765 = vadd.f32 %v369, %v764
      %766 = vdwg.mxu0
      %767 = vmatpush.msra.mxu0 0.0
      %768 = vmatpush.msra.mxu0 0.0
      %769 = vmatpush.msra.mxu0 0.0
      %770 = vmatpush.msra.mxu0 0.0
      %771 = vmatpush.msra.mxu0 0.0
      %772 = vmatpush.msra.mxu0 0.0
      %773 = vmatpush.msra.mxu0 0.0
      %774 = vmatpush.msra.mxu0 0.0
      %775 = vmatpush.msra.mxu0 0.0
      %776 = vmatpush.msra.mxu0 0.0
      %777 = vmatpush.msra.mxu0 0.0
      %778 = vmatpush.msra.mxu0 0.0
      %779 = vmatpush.msra.mxu0 0.0
      %780 = vmatpush.msra.mxu0 0.0
      %781 = vmatpush.msra.mxu0 0.0
      %782 = vmatpush.msra.mxu0 %v469
      %783 = vmatmul.f32.gmra.mxu0 %v440
      %v784 = vpop.f32.mrf.mxu0
      %v785 = vadd.f32 %v369, %v784
      %786 = vdwg.mxu0
      %787 = vmatpush.msra.mxu0 0.0
      %788 = vmatpush.msra.mxu0 0.0
      %789 = vmatpush.msra.mxu0 0.0
      %790 = vmatpush.msra.mxu0 0.0
      %791 = vmatpush.msra.mxu0 0.0
      %792 = vmatpush.msra.mxu0 0.0
      %793 = vmatpush.msra.mxu0 0.0
      %794 = vmatpush.msra.mxu0 0.0
      %795 = vmatpush.msra.mxu0 0.0
      %796 = vmatpush.msra.mxu0 0.0
      %797 = vmatpush.msra.mxu0 0.0
      %798 = vmatpush.msra.mxu0 0.0
      %799 = vmatpush.msra.mxu0 0.0
      %800 = vmatpush.msra.mxu0 0.0
      %801 = vmatpush.msra.mxu0 0.0
      %802 = vmatpush.msra.mxu0 %v471
      %803 = vmatmul.f32.gmra.mxu0 %v440
      %v804 = vpop.f32.mrf.mxu0
      %v805 = vadd.f32 %v369, %v804
      %806 = vdwg.mxu0
      %807 = vmatpush.msra.mxu0 0.0
      %808 = vmatpush.msra.mxu0 0.0
      %809 = vmatpush.msra.mxu0 0.0
      %810 = vmatpush.msra.mxu0 0.0
      %811 = vmatpush.msra.mxu0 0.0
      %812 = vmatpush.msra.mxu0 0.0
      %813 = vmatpush.msra.mxu0 0.0
      %814 = vmatpush.msra.mxu0 0.0
      %815 = vmatpush.msra.mxu0 0.0
      %816 = vmatpush.msra.mxu0 0.0
      %817 = vmatpush.msra.mxu0 0.0
      %818 = vmatpush.msra.mxu0 0.0
      %819 = vmatpush.msra.mxu0 0.0
      %820 = vmatpush.msra.mxu0 0.0
      %821 = vmatpush.msra.mxu0 0.0
      %822 = vmatpush.msra.mxu0 %v473
      %823 = vmatmul.f32.gmra.mxu0 %v440
      %v824 = vpop.f32.mrf.mxu0
      %v825 = vadd.f32 %v369, %v824
      %826 = vdwg.mxu0
      %827 = vmatpush.msra.mxu0 0.0
      %828 = vmatpush.msra.mxu0 0.0
      %829 = vmatpush.msra.mxu0 0.0
      %830 = vmatpush.msra.mxu0 0.0
      %831 = vmatpush.msra.mxu0 0.0
      %832 = vmatpush.msra.mxu0 0.0
      %833 = vmatpush.msra.mxu0 0.0
      %834 = vmatpush.msra.mxu0 0.0
      %835 = vmatpush.msra.mxu0 0.0
      %836 = vmatpush.msra.mxu0 0.0
      %837 = vmatpush.msra.mxu0 0.0
      %838 = vmatpush.msra.mxu0 0.0
      %839 = vmatpush.msra.mxu0 0.0
      %840 = vmatpush.msra.mxu0 0.0
      %841 = vmatpush.msra.mxu0 0.0
      %842 = vmatpush.msra.mxu0 %v475
      %843 = vmatmul.f32.gmra.mxu0 %v440
      %v844 = vpop.f32.mrf.mxu0
      %v845 = vadd.f32 %v369, %v844
      %846 = vdwg.mxu0
      %847 = vmatpush.msra.mxu0 0.0
      %848 = vmatpush.msra.mxu0 0.0
      %849 = vmatpush.msra.mxu0 0.0
      %850 = vmatpush.msra.mxu0 0.0
      %851 = vmatpush.msra.mxu0 0.0
      %852 = vmatpush.msra.mxu0 0.0
      %853 = vmatpush.msra.mxu0 0.0
      %854 = vmatpush.msra.mxu0 0.0
      %855 = vmatpush.msra.mxu0 0.0
      %856 = vmatpush.msra.mxu0 0.0
      %857 = vmatpush.msra.mxu0 0.0
      %858 = vmatpush.msra.mxu0 0.0
      %859 = vmatpush.msra.mxu0 0.0
      %860 = vmatpush.msra.mxu0 0.0
      %861 = vmatpush.msra.mxu0 0.0
      %862 = vmatpush.msra.mxu0 %v477
      %863 = vmatmul.f32.gmra.mxu0 %v440
      %v864 = vpop.f32.mrf.mxu0
      %v865 = vadd.f32 %v369, %v864
      %866 = vdwg.mxu0
      %867 = vmatpush.msra.mxu0 0.0
      %868 = vmatpush.msra.mxu0 0.0
      %869 = vmatpush.msra.mxu0 0.0
      %870 = vmatpush.msra.mxu0 0.0
      %871 = vmatpush.msra.mxu0 0.0
      %872 = vmatpush.msra.mxu0 0.0
      %873 = vmatpush.msra.mxu0 0.0
      %874 = vmatpush.msra.mxu0 0.0
      %875 = vmatpush.msra.mxu0 0.0
      %876 = vmatpush.msra.mxu0 0.0
      %877 = vmatpush.msra.mxu0 0.0
      %878 = vmatpush.msra.mxu0 0.0
      %879 = vmatpush.msra.mxu0 0.0
      %880 = vmatpush.msra.mxu0 0.0
      %881 = vmatpush.msra.mxu0 0.0
      %882 = vmatpush.msra.mxu0 %v479
      %883 = vmatmul.f32.gmra.mxu0 %v440
      %v884 = vpop.f32.mrf.mxu0
      %v885 = vadd.f32 %v369, %v884
      %886 = vdwg.mxu0
      %887 = vmatpush.msra.mxu0 0.0
      %888 = vmatpush.msra.mxu0 0.0
      %889 = vmatpush.msra.mxu0 0.0
      %890 = vmatpush.msra.mxu0 0.0
      %891 = vmatpush.msra.mxu0 0.0
      %892 = vmatpush.msra.mxu0 0.0
      %893 = vmatpush.msra.mxu0 0.0
      %894 = vmatpush.msra.mxu0 0.0
      %895 = vmatpush.msra.mxu0 0.0
      %896 = vmatpush.msra.mxu0 0.0
      %897 = vmatpush.msra.mxu0 0.0
      %898 = vmatpush.msra.mxu0 0.0
      %899 = vmatpush.msra.mxu0 0.0
      %900 = vmatpush.msra.mxu0 0.0
      %901 = vmatpush.msra.mxu0 0.0
      %902 = vmatpush.msra.mxu0 %v481
      %903 = vmatmul.f32.gmra.mxu0 %v440
      %v904 = vpop.f32.mrf.mxu0
      %v905 = vadd.f32 %v369, %v904
      %906 = vdwg.mxu0
      %907 = vmatpush.msra.mxu0 0.0
      %908 = vmatpush.msra.mxu0 0.0
      %909 = vmatpush.msra.mxu0 0.0
      %910 = vmatpush.msra.mxu0 0.0
      %911 = vmatpush.msra.mxu0 0.0
      %912 = vmatpush.msra.mxu0 0.0
      %913 = vmatpush.msra.mxu0 0.0
      %914 = vmatpush.msra.mxu0 0.0
      %915 = vmatpush.msra.mxu0 0.0
      %916 = vmatpush.msra.mxu0 0.0
      %917 = vmatpush.msra.mxu0 0.0
      %918 = vmatpush.msra.mxu0 0.0
      %919 = vmatpush.msra.mxu0 0.0
      %920 = vmatpush.msra.mxu0 0.0
      %921 = vmatpush.msra.mxu0 0.0
      %922 = vmatpush.msra.mxu0 %v483
      %923 = vmatmul.f32.gmra.mxu0 %v440
      %v924 = vpop.f32.mrf.mxu0
      %v925 = vadd.f32 %v369, %v924
      %926 = vdwg.mxu0
      %927 = vmatpush.msra.mxu0 0.0
      %928 = vmatpush.msra.mxu0 0.0
      %929 = vmatpush.msra.mxu0 0.0
      %930 = vmatpush.msra.mxu0 0.0
      %931 = vmatpush.msra.mxu0 0.0
      %932 = vmatpush.msra.mxu0 0.0
      %933 = vmatpush.msra.mxu0 0.0
      %934 = vmatpush.msra.mxu0 0.0
      %935 = vmatpush.msra.mxu0 0.0
      %936 = vmatpush.msra.mxu0 0.0
      %937 = vmatpush.msra.mxu0 0.0
      %938 = vmatpush.msra.mxu0 0.0
      %939 = vmatpush.msra.mxu0 0.0
      %940 = vmatpush.msra.mxu0 0.0
      %941 = vmatpush.msra.mxu0 0.0
      %942 = vmatpush.msra.mxu0 %v485
      %943 = vmatmul.f32.gmra.mxu0 %v440
      %v944 = vpop.f32.mrf.mxu0
      %v945 = vadd.f32 %v369, %v944
      %946 = vdwg.mxu0
      %947 = vmatpush.msra.mxu0 0.0
      %948 = vmatpush.msra.mxu0 0.0
      %949 = vmatpush.msra.mxu0 0.0
      %950 = vmatpush.msra.mxu0 0.0
      %951 = vmatpush.msra.mxu0 0.0
      %952 = vmatpush.msra.mxu0 0.0
      %953 = vmatpush.msra.mxu0 0.0
      %954 = vmatpush.msra.mxu0 0.0
      %955 = vmatpush.msra.mxu0 0.0
      %956 = vmatpush.msra.mxu0 0.0
      %957 = vmatpush.msra.mxu0 0.0
      %958 = vmatpush.msra.mxu0 0.0
      %959 = vmatpush.msra.mxu0 0.0
      %960 = vmatpush.msra.mxu0 0.0
      %961 = vmatpush.msra.mxu0 0.0
      %962 = vmatpush.msra.mxu0 %v487
      %963 = vmatmul.f32.gmra.mxu0 %v440
      %v964 = vpop.f32.mrf.mxu0
      %v965 = vadd.f32 %v369, %v964
      %966 = vdwg.mxu0
      %967 = vmatpush.msra.mxu0 0.0
      %968 = vmatpush.msra.mxu0 0.0
      %969 = vmatpush.msra.mxu0 0.0
      %970 = vmatpush.msra.mxu0 0.0
      %971 = vmatpush.msra.mxu0 0.0
      %972 = vmatpush.msra.mxu0 0.0
      %973 = vmatpush.msra.mxu0 0.0
      %974 = vmatpush.msra.mxu0 0.0
      %975 = vmatpush.msra.mxu0 0.0
      %976 = vmatpush.msra.mxu0 0.0
      %977 = vmatpush.msra.mxu0 0.0
      %978 = vmatpush.msra.mxu0 0.0
      %979 = vmatpush.msra.mxu0 0.0
      %980 = vmatpush.msra.mxu0 0.0
      %981 = vmatpush.msra.mxu0 0.0
      %982 = vmatpush.msra.mxu0 %v489
      %983 = vmatmul.f32.gmra.mxu0 %v440
      %v984 = vpop.f32.mrf.mxu0
      %v985 = vadd.f32 %v369, %v984
      %986 = vdwg.mxu0
      %987 = vmatpush.msra.mxu0 0.0
      %988 = vmatpush.msra.mxu0 0.0
      %989 = vmatpush.msra.mxu0 0.0
      %990 = vmatpush.msra.mxu0 0.0
      %991 = vmatpush.msra.mxu0 0.0
      %992 = vmatpush.msra.mxu0 0.0
      %993 = vmatpush.msra.mxu0 0.0
      %994 = vmatpush.msra.mxu0 0.0
      %995 = vmatpush.msra.mxu0 0.0
      %996 = vmatpush.msra.mxu0 0.0
      %997 = vmatpush.msra.mxu0 0.0
      %998 = vmatpush.msra.mxu0 0.0
      %999 = vmatpush.msra.mxu0 0.0
      %1000 = vmatpush.msra.mxu0 0.0
      %1001 = vmatpush.msra.mxu0 0.0
      %1002 = vmatpush.msra.mxu0 %v491
      %1003 = vmatmul.f32.gmra.mxu0 %v440
      %v1004 = vpop.f32.mrf.mxu0
      %v1005 = vadd.f32 %v369, %v1004
      %1006 = vdwg.mxu0
      %1007 = vmatpush.msra.mxu0 0.0
      %1008 = vmatpush.msra.mxu0 0.0
      %1009 = vmatpush.msra.mxu0 0.0
      %1010 = vmatpush.msra.mxu0 0.0
      %1011 = vmatpush.msra.mxu0 0.0
      %1012 = vmatpush.msra.mxu0 0.0
      %1013 = vmatpush.msra.mxu0 0.0
      %1014 = vmatpush.msra.mxu0 0.0
      %1015 = vmatpush.msra.mxu0 0.0
      %1016 = vmatpush.msra.mxu0 0.0
      %1017 = vmatpush.msra.mxu0 0.0
      %1018 = vmatpush.msra.mxu0 0.0
      %1019 = vmatpush.msra.mxu0 0.0
      %1020 = vmatpush.msra.mxu0 0.0
      %1021 = vmatpush.msra.mxu0 0.0
      %1022 = vmatpush.msra.mxu0 %v493
      %1023 = vmatmul.f32.gmra.mxu0 %v440
      %v1024 = vpop.f32.mrf.mxu0
      %v1025 = vadd.f32 %v369, %v1024
      %1026 = vdwg.mxu0
      %1027 = vmatpush.msra.mxu0 0.0
      %1028 = vmatpush.msra.mxu0 0.0
      %1029 = vmatpush.msra.mxu0 0.0
      %1030 = vmatpush.msra.mxu0 0.0
      %1031 = vmatpush.msra.mxu0 0.0
      %1032 = vmatpush.msra.mxu0 0.0
      %1033 = vmatpush.msra.mxu0 0.0
      %1034 = vmatpush.msra.mxu0 0.0
      %1035 = vmatpush.msra.mxu0 0.0
      %1036 = vmatpush.msra.mxu0 0.0
      %1037 = vmatpush.msra.mxu0 0.0
      %1038 = vmatpush.msra.mxu0 0.0
      %1039 = vmatpush.msra.mxu0 0.0
      %1040 = vmatpush.msra.mxu0 0.0
      %1041 = vmatpush.msra.mxu0 0.0
      %1042 = vmatpush.msra.mxu0 %v495
      %1043 = vmatmul.f32.gmra.mxu0 %v440
      %v1044 = vpop.f32.mrf.mxu0
      %v1045 = vadd.f32 %v369, %v1044
      %1046 = vdwg.mxu0
      %1047 = vmatpush.msra.mxu0 0.0
      %1048 = vmatpush.msra.mxu0 0.0
      %1049 = vmatpush.msra.mxu0 0.0
      %1050 = vmatpush.msra.mxu0 0.0
      %1051 = vmatpush.msra.mxu0 0.0
      %1052 = vmatpush.msra.mxu0 0.0
      %1053 = vmatpush.msra.mxu0 0.0
      %1054 = vmatpush.msra.mxu0 0.0
      %1055 = vmatpush.msra.mxu0 0.0
      %1056 = vmatpush.msra.mxu0 0.0
      %1057 = vmatpush.msra.mxu0 0.0
      %1058 = vmatpush.msra.mxu0 0.0
      %1059 = vmatpush.msra.mxu0 0.0
      %1060 = vmatpush.msra.mxu0 0.0
      %1061 = vmatpush.msra.mxu0 0.0
      %1062 = vmatpush.msra.mxu0 %v497
      %1063 = vmatmul.f32.gmra.mxu0 %v440
      %v1064 = vpop.f32.mrf.mxu0
      %v1065 = vadd.f32 %v369, %v1064
      %1066 = vdwg.mxu0
      %1067 = vmatpush.msra.mxu0 0.0
      %1068 = vmatpush.msra.mxu0 0.0
      %1069 = vmatpush.msra.mxu0 0.0
      %1070 = vmatpush.msra.mxu0 0.0
      %1071 = vmatpush.msra.mxu0 0.0
      %1072 = vmatpush.msra.mxu0 0.0
      %1073 = vmatpush.msra.mxu0 0.0
      %1074 = vmatpush.msra.mxu0 0.0
      %1075 = vmatpush.msra.mxu0 0.0
      %1076 = vmatpush.msra.mxu0 0.0
      %1077 = vmatpush.msra.mxu0 0.0
      %1078 = vmatpush.msra.mxu0 0.0
      %1079 = vmatpush.msra.mxu0 0.0
      %1080 = vmatpush.msra.mxu0 0.0
      %1081 = vmatpush.msra.mxu0 0.0
      %1082 = vmatpush.msra.mxu0 %v499
      %1083 = vmatmul.f32.gmra.mxu0 %v440
      %v1084 = vpop.f32.mrf.mxu0
      %v1085 = vadd.f32 %v369, %v1084
      %1086 = vdwg.mxu0
      %1087 = vmatpush.msra.mxu0 0.0
      %1088 = vmatpush.msra.mxu0 0.0
      %1089 = vmatpush.msra.mxu0 0.0
      %1090 = vmatpush.msra.mxu0 0.0
      %1091 = vmatpush.msra.mxu0 0.0
      %1092 = vmatpush.msra.mxu0 0.0
      %1093 = vmatpush.msra.mxu0 0.0
      %1094 = vmatpush.msra.mxu0 0.0
      %1095 = vmatpush.msra.mxu0 0.0
      %1096 = vmatpush.msra.mxu0 0.0
      %1097 = vmatpush.msra.mxu0 0.0
      %1098 = vmatpush.msra.mxu0 0.0
      %1099 = vmatpush.msra.mxu0 0.0
      %1100 = vmatpush.msra.mxu0 0.0
      %1101 = vmatpush.msra.mxu0 0.0
      %1102 = vmatpush.msra.mxu0 %v501
      %1103 = vmatmul.f32.gmra.mxu0 %v440
      %v1104 = vpop.f32.mrf.mxu0
      %v1105 = vadd.f32 %v369, %v1104
      %1106 = vdwg.mxu0
      %1107 = vmatpush.msra.mxu0 0.0
      %1108 = vmatpush.msra.mxu0 0.0
      %1109 = vmatpush.msra.mxu0 0.0
      %1110 = vmatpush.msra.mxu0 0.0
      %1111 = vmatpush.msra.mxu0 0.0
      %1112 = vmatpush.msra.mxu0 0.0
      %1113 = vmatpush.msra.mxu0 0.0
      %1114 = vmatpush.msra.mxu0 0.0
      %1115 = vmatpush.msra.mxu0 0.0
      %1116 = vmatpush.msra.mxu0 0.0
      %1117 = vmatpush.msra.mxu0 0.0
      %1118 = vmatpush.msra.mxu0 0.0
      %1119 = vmatpush.msra.mxu0 0.0
      %1120 = vmatpush.msra.mxu0 0.0
      %1121 = vmatpush.msra.mxu0 0.0
      %1122 = vmatpush.msra.mxu0 %v503
      %1123 = vmatmul.f32.gmra.mxu0 %v440
      %v1124 = vpop.f32.mrf.mxu0
      %v1125 = vadd.f32 %v369, %v1124
      %1126 = vdwg.mxu0
      %1127 = vmatpush.msra.mxu0 0.0
      %1128 = vmatpush.msra.mxu0 0.0
      %1129 = vmatpush.msra.mxu0 0.0
      %1130 = vmatpush.msra.mxu0 0.0
      %1131 = vmatpush.msra.mxu0 0.0
      %1132 = vmatpush.msra.mxu0 0.0
      %1133 = vmatpush.msra.mxu0 0.0
      %1134 = vmatpush.msra.mxu0 0.0
      %1135 = vmatpush.msra.mxu0 0.0
      %1136 = vmatpush.msra.mxu0 0.0
      %1137 = vmatpush.msra.mxu0 0.0
      %1138 = vmatpush.msra.mxu0 0.0
      %1139 = vmatpush.msra.mxu0 0.0
      %1140 = vmatpush.msra.mxu0 0.0
      %1141 = vmatpush.msra.mxu0 0.0
      %1142 = vmatpush.msra.mxu0 %v505
      %1143 = vmatmul.f32.gmra.mxu0 %v440
      %v1144 = vpop.f32.mrf.mxu0
      %v1145 = vadd.f32 %v369, %v1144
      %1146 = vdwg.mxu0
      %1147 = vst [vmem:[%s262] sm:$0xff] %v525
      %1148 = vst [vmem:[%s262 + $0x8] sm:$0xff] %v545
      %1149 = vst [vmem:[%s262 + $0x10] sm:$0xff] %v565
      %1150 = vst [vmem:[%s262 + $0x18] sm:$0xff] %v585
      %1151 = vst [vmem:[%s262 + $0x20] sm:$0xff] %v605
      %1152 = vst [vmem:[%s262 + $0x28] sm:$0xff] %v625
      %1153 = vst [vmem:[%s262 + $0x30] sm:$0xff] %v645
      %1154 = vst [vmem:[%s262 + $0x38] sm:$0xff] %v665
      %1155 = vst [vmem:[%s262 + $0x40] sm:$0xff] %v685
      %1156 = vst [vmem:[%s262 + $0x48] sm:$0xff] %v705
      %1157 = vst [vmem:[%s262 + $0x50] sm:$0xff] %v725
      %1158 = vst [vmem:[%s262 + $0x58] sm:$0xff] %v745
      %1159 = vst [vmem:[%s262 + $0x60] sm:$0xff] %v765
      %1160 = vst [vmem:[%s262 + $0x68] sm:$0xff] %v785
      %1161 = vst [vmem:[%s262 + $0x70] sm:$0xff] %v805
      %1162 = vst [vmem:[%s262 + $0x78] sm:$0xff] %v825
      %1163 = vst [vmem:[%s262 + $0x80] sm:$0xff] %v845
      %1164 = vst [vmem:[%s262 + $0x88] sm:$0xff] %v865
      %1165 = vst [vmem:[%s262 + $0x90] sm:$0xff] %v885
      %1166 = vst [vmem:[%s262 + $0x98] sm:$0xff] %v905
      %1167 = vst [vmem:[%s262 + $0xa0] sm:$0xff] %v925
      %1168 = vst [vmem:[%s262 + $0xa8] sm:$0xff] %v945
      %1169 = vst [vmem:[%s262 + $0xb0] sm:$0xff] %v965
      %1170 = vst [vmem:[%s262 + $0xb8] sm:$0xff] %v985
      %1171 = vst [vmem:[%s262 + $0xc0] sm:$0xff] %v1005
      %1172 = vst [vmem:[%s262 + $0xc8] sm:$0xff] %v1025
      %1173 = vst [vmem:[%s262 + $0xd0] sm:$0xff] %v1045
      %1174 = vst [vmem:[%s262 + $0xd8] sm:$0xff] %v1065
      %1175 = vst [vmem:[%s262 + $0xe0] sm:$0xff] %v1085
      %1176 = vst [vmem:[%s262 + $0xe8] sm:$0xff] %v1105
      %1177 = vst [vmem:[%s262 + $0xf0] sm:$0xff] %v1125
      %1178 = vst [vmem:[%s262 + $0xf8] sm:$0xff] %v1145
      %s1179 = smul.u32 32, %s21
      %p1180 = scmp.lt.s32.totalorder %s20, 1
      %s1181 = scalar_select %p1180, %s20, 1
      %p1182 = scmp.lt.s32.totalorder %s1179, 383
      %s1183 = scalar_select %p1182, %s1179, 383
      %s1184 = smul.addr %s1181, 384
      %s1185 = sadd.s32 %s1183, %s1184
      %s1186 = smul.addr %s1185, 8
      %s1187 = scalar_lea.vmem %s5, %s1186
      // Predicated region
      $region41: #{conv_blockT_forward.4} parent=39 // pred_check
        %p1188 = pneg %p160
      $region42: #{conv_blockT_forward.4} parent=39 // pred_check_branch
        %1190 = sbr.rel (%p1188) target = $region44
      $region43: #{conv_blockT_forward.4} parent=39 // pred_region
        %s1191 = smul.u32 32, %s21
      $region44: #{conv_blockT_forward.4} parent=39 // pred_fallthru
        _
    $region40: #{conv_blockT_forward.4} parent=5 // pred_fallthru
      _
    %p1192 = scmp.le.s32.totalorder 2, %s11
    // Predicated region
    $region45: #{conv_blockT_forward.4} parent=5 // pred_check
      %p1193 = pneg %p1192
    $region46: #{conv_blockT_forward.4} parent=5 // pred_check_branch
      %1195 = sbr.rel (%p1193) target = $region48
    $region47: #{conv_blockT_forward.4} parent=5 // pred_region
      %s1196 = ssub.s32 %s11, 2
      // Predicated region
      $region49: #{conv_blockT_forward.4} parent=47 // pred_check
        %p1197 = pneg %p166
      $region50: #{conv_blockT_forward.4} parent=47 // pred_check_branch
        %1199 = sbr.rel (%p1197) target = $region52
      $region51: #{conv_blockT_forward.4} parent=47 // pred_region
        %s1200 = smul.u32 32, %s23
        %p1201 = scmp.lt.s32.totalorder %s22, 1
        %s1202 = scalar_select %p1201, %s22, 1
        %p1203 = scmp.lt.s32.totalorder %s1200, 383
        %s1204 = scalar_select %p1203, %s1200, 383
        %s1205 = smul.addr %s1202, 384
        %s1206 = sadd.s32 %s1204, %s1205
        %s1207 = smul.addr %s1206, 8
        %s1208 = scalar_lea.vmem %s5, %s1207
      $region52: #{conv_blockT_forward.4} parent=47 // pred_fallthru
        _
    $region48: #{conv_blockT_forward.4} parent=5 // pred_fallthru
      _
  $region6: #{conv_blockT_forward.4} parent=0 // loop_footer
    %s15 = sadd.s32 1, %s11
  $region7: #{conv_blockT_forward.4} parent=0 // loop_footer_branch
    %10 = sbr.rel target = $region3
  $region8: #{conv_blockT_forward.4} parent=0 // loop_exit
    _

// kernel: conv_blockT_forward.3
$region0: #{conv_blockT_forward.3}
  #allocation0 [shape = 'u32[]', space=smem, size = 0x4, offset = 0x4, fixed_abs, tag = 'smem constant byte address 0x4 - core index']
  #allocation1 [shape = 'u32[72,128]{1,0:T(1,128)}', space=vmem, size = 0x9000, scoped, tag = 'internal scratch']
  %s0 = inlined_call_operand.vmem [shape: f32[2,36,49152], index: 0, kind: input, shape index: {}]
  %s1 = inlined_call_operand.vmem [shape: f32[8,36], index: 1, kind: input, shape index: {}]
  %s2 = inlined_call_operand.vmem [shape: f32[8,1], index: 2, kind: input, shape index: {}]
  %s3 = inlined_call_operand.vmem [shape: f32[36,1], index: 3, kind: input, shape index: {}]
  %s4 = inlined_call_operand.vmem [shape: f32[36,1], index: 4, kind: input, shape index: {}]
  %s5 = inlined_call_operand.vmem [shape: f32[2,8,49152], index: 5, kind: output, shape index: {}]
  %s6 = sld [smem:[#allocation0]]
  $region76: #{conv_blockT_forward.3} parent=0
    _
  %s8 = ssub.s32 1, %s6
  %s9 = scalar_select 0, %s8, %s6
  $region1: #{conv_blockT_forward.3} parent=0
    #allocation2 [shape = 'u8[1310720]{0}', space=vmem, size = 0x140000, scoped, tag = 'input window, operand 0']
    loop: start=0, step=1, limit=26
    $region2: #{conv_blockT_forward.3} parent=1 // loop_pre_header
      _
    $region3: #{conv_blockT_forward.3} parent=1 // loop_header
      %s11 = sphi 0, %s15
      %p12 = scmp.ge.s32.totalorder %s11, 26
      %s18 = sphi 0, %s30
      %s19 = sphi 0, %s26
      %s20 = sphi 0, %s18
      %s21 = sphi 0, %s19
      %s22 = sphi 0, %s20
      %s23 = sphi 0, %s21
      %s35 = sphi 0, %s37
      %s38 = sphi 0, %s35
      %s39 = sphi 0, %s38
      %s55 = sphi 0, %s39
      %s59 = sphi 0, %s59
      %s61 = sphi 0, %s59
      %s62 = sphi 0, %s61
      %s76 = sphi 0, %s62
      %s80 = sphi 0, %s80
      %s82 = sphi 0, %s80
      %s83 = sphi 0, %s82
      %s97 = sphi 0, %s83
      %s101 = sphi 0, %s101
      %s103 = sphi 0, %s101
      %s104 = sphi 0, %s103
      %s118 = sphi 0, %s104
      %s122 = sphi 0, %s122
      %s124 = sphi 0, %s122
      %s125 = sphi 0, %s124
      %s139 = sphi 0, %s125
      %s147 = sphi 0, %s149
      %s150 = sphi 0, %s147
      %s151 = sphi 0, %s150
      %s167 = sphi 0, %s151
    $region4: #{conv_blockT_forward.3} parent=1 // loop_header_branch
      %14 = sbr.rel (%p12) target = $region8
    $region5: #{conv_blockT_forward.3} parent=1 // loop_body
      %s16 = ssub.s32 %s11, 1
      %s17 = ssub.s32 %s11, 2
      %s24 = sadd.s32 1, %s19
      %p25 = scmp.ge.s32.totalorder %s24, 12
      %s26 = scalar_select %p25, 0, %s24
      %s27 = sadd.s32 1, %s18
      %s28 = scalar_select %p25, %s27, %s18
      %p29 = scmp.ge.s32.totalorder %s28, 2
      %s30 = scalar_select %p29, 0, %s28
      %s31 = ssub.s32 %s18, %s30
      %s32 = ssub.s32 %s19, %s26
      %s33 = sor.u32 %s31, %s32
      %p34 = scmp.eq.s32.totalorder %s33, 0
      %s36 = sadd.s32 %s35, 1
      %s37 = scalar_select %p34, %s35, %s36
      %p40 = pneg %p34
      %p41 = scmp.eq.s32.totalorder %s11, 23
      %p42 = por %p40, %p41
      %p43 = scmp.ne.s32.totalorder %s35, %s38
      %p44 = scmp.eq.s32.totalorder %s11, 0
      %p45 = por %p43, %p44
      %p46 = scmp.ne.s32.totalorder %s35, %s38
      %p47 = scmp.eq.s32.totalorder %s16, 23
      %p48 = por %p46, %p47
      %p49 = scmp.ne.s32.totalorder %s38, %s39
      %p50 = scmp.eq.s32.totalorder %s16, 0
      %p51 = por %p49, %p50
      %p52 = scmp.ne.s32.totalorder %s38, %s39
      %p53 = scmp.eq.s32.totalorder %s17, 23
      %p54 = por %p52, %p53
      %p56 = scmp.ne.s32.totalorder %s39, %s55
      %p57 = scmp.eq.s32.totalorder %s17, 0
      %p58 = por %p56, %p57
      %s60 = sadd.s32 %s59, 1
      %p63 = scmp.eq.s32.totalorder %s11, 23
      %p64 = scmp.ne.s32.totalorder %s59, %s61
      %p65 = scmp.eq.s32.totalorder %s11, 0
      %p66 = por %p64, %p65
      %p67 = scmp.ne.s32.totalorder %s59, %s61
      %p68 = scmp.eq.s32.totalorder %s16, 23
      %p69 = por %p67, %p68
      %p70 = scmp.ne.s32.totalorder %s61, %s62
      %p71 = scmp.eq.s32.totalorder %s16, 0
      %p72 = por %p70, %p71
      %p73 = scmp.ne.s32.totalorder %s61, %s62
      %p74 = scmp.eq.s32.totalorder %s17, 23
      %p75 = por %p73, %p74
      %p77 = scmp.ne.s32.totalorder %s62, %s76
      %p78 = scmp.eq.s32.totalorder %s17, 0
      %p79 = por %p77, %p78
      %s81 = sadd.s32 %s80, 1
      %p84 = scmp.eq.s32.totalorder %s11, 23
      %p85 = scmp.ne.s32.totalorder %s80, %s82
      %p86 = scmp.eq.s32.totalorder %s11, 0
      %p87 = por %p85, %p86
      %p88 = scmp.ne.s32.totalorder %s80, %s82
      %p89 = scmp.eq.s32.totalorder %s16, 23
      %p90 = por %p88, %p89
      %p91 = scmp.ne.s32.totalorder %s82, %s83
      %p92 = scmp.eq.s32.totalorder %s16, 0
      %p93 = por %p91, %p92
      %p94 = scmp.ne.s32.totalorder %s82, %s83
      %p95 = scmp.eq.s32.totalorder %s17, 23
      %p96 = por %p94, %p95
      %p98 = scmp.ne.s32.totalorder %s83, %s97
      %p99 = scmp.eq.s32.totalorder %s17, 0
      %p100 = por %p98, %p99
      %s102 = sadd.s32 %s101, 1
      %p105 = scmp.eq.s32.totalorder %s11, 23
      %p106 = scmp.ne.s32.totalorder %s101, %s103
      %p107 = scmp.eq.s32.totalorder %s11, 0
      %p108 = por %p106, %p107
      %p109 = scmp.ne.s32.totalorder %s101, %s103
      %p110 = scmp.eq.s32.totalorder %s16, 23
      %p111 = por %p109, %p110
      %p112 = scmp.ne.s32.totalorder %s103, %s104
      %p113 = scmp.eq.s32.totalorder %s16, 0
      %p114 = por %p112, %p113
      %p115 = scmp.ne.s32.totalorder %s103, %s104
      %p116 = scmp.eq.s32.totalorder %s17, 23
      %p117 = por %p115, %p116
      %p119 = scmp.ne.s32.totalorder %s104, %s118
      %p120 = scmp.eq.s32.totalorder %s17, 0
      %p121 = por %p119, %p120
      %s123 = sadd.s32 %s122, 1
      %p126 = scmp.eq.s32.totalorder %s11, 23
      %p127 = scmp.ne.s32.totalorder %s122, %s124
      %p128 = scmp.eq.s32.totalorder %s11, 0
      %p129 = por %p127, %p128
      %p130 = scmp.ne.s32.totalorder %s122, %s124
      %p131 = scmp.eq.s32.totalorder %s16, 23
      %p132 = por %p130, %p131
      %p133 = scmp.ne.s32.totalorder %s124, %s125
      %p134 = scmp.eq.s32.totalorder %s16, 0
      %p135 = por %p133, %p134
      %p136 = scmp.ne.s32.totalorder %s124, %s125
      %p137 = scmp.eq.s32.totalorder %s17, 23
      %p138 = por %p136, %p137
      %p140 = scmp.ne.s32.totalorder %s125, %s139
      %p141 = scmp.eq.s32.totalorder %s17, 0
      %p142 = por %p140, %p141
      %s143 = ssub.s32 %s18, %s30
      %s144 = ssub.s32 %s19, %s26
      %s145 = sor.u32 %s143, %s144
      %p146 = scmp.eq.s32.totalorder %s145, 0
      %s148 = sadd.s32 %s147, 1
      %s149 = scalar_select %p146, %s147, %s148
      %p152 = pneg %p146
      %p153 = scmp.eq.s32.totalorder %s11, 23
      %p154 = por %p152, %p153
      %p155 = scmp.ne.s32.totalorder %s147, %s150
      %p156 = scmp.eq.s32.totalorder %s11, 0
      %p157 = por %p155, %p156
      %p158 = scmp.ne.s32.totalorder %s147, %s150
      %p159 = scmp.eq.s32.totalorder %s16, 23
      %p160 = por %p158, %p159
      %p161 = scmp.ne.s32.totalorder %s150, %s151
      %p162 = scmp.eq.s32.totalorder %s16, 0
      %p163 = por %p161, %p162
      %p164 = scmp.ne.s32.totalorder %s150, %s151
      %p165 = scmp.eq.s32.totalorder %s17, 23
      %p166 = por %p164, %p165
      %p168 = scmp.ne.s32.totalorder %s151, %s167
      %p169 = scmp.eq.s32.totalorder %s17, 0
      %p170 = por %p168, %p169
      %p171 = scmp.le.s32.totalorder 1, %s11
      %p172 = scmp.lt.s32.totalorder %s11, 25
      %p173 = pnand %p171, %p172
      %p174 = pneg %p173
      // Predicated region
      $region9: #{conv_blockT_forward.3} parent=5 // pred_check
        _
      $region10: #{conv_blockT_forward.3} parent=5 // pred_check_branch
        %176 = sbr.rel (%p173) target = $region12
      $region11: #{conv_blockT_forward.3} parent=5 // pred_region
        %s177 = ssub.s32 %s11, 1
        // Predicated region
        $region13: #{conv_blockT_forward.3} parent=11 // pred_check
          %p178 = pneg %p72
        $region14: #{conv_blockT_forward.3} parent=11 // pred_check_branch
          %180 = sbr.rel (%p178) target = $region16
        $region15: #{conv_blockT_forward.3} parent=11 // pred_region
          _
        $region16: #{conv_blockT_forward.3} parent=11 // pred_fallthru
          _
        // Predicated region
        $region17: #{conv_blockT_forward.3} parent=11 // pred_check
          %p181 = pneg %p93
        $region18: #{conv_blockT_forward.3} parent=11 // pred_check_branch
          %183 = sbr.rel (%p181) target = $region20
        $region19: #{conv_blockT_forward.3} parent=11 // pred_region
          _
        $region20: #{conv_blockT_forward.3} parent=11 // pred_fallthru
          _
        // Predicated region
        $region21: #{conv_blockT_forward.3} parent=11 // pred_check
          %p184 = pneg %p114
        $region22: #{conv_blockT_forward.3} parent=11 // pred_check_branch
          %186 = sbr.rel (%p184) target = $region24
        $region23: #{conv_blockT_forward.3} parent=11 // pred_region
          _
        $region24: #{conv_blockT_forward.3} parent=11 // pred_fallthru
          _
        // Predicated region
        $region25: #{conv_blockT_forward.3} parent=11 // pred_check
          %p187 = pneg %p135
        $region26: #{conv_blockT_forward.3} parent=11 // pred_check_branch
          %189 = sbr.rel (%p187) target = $region28
        $region27: #{conv_blockT_forward.3} parent=11 // pred_region
          _
        $region28: #{conv_blockT_forward.3} parent=11 // pred_fallthru
          _
      $region12: #{conv_blockT_forward.3} parent=5 // pred_fallthru
        _
      %p190 = scmp.lt.s32.totalorder %s11, 24
      // Predicated region
      $region29: #{conv_blockT_forward.3} parent=5 // pred_check
        %p191 = pneg %p190
      $region30: #{conv_blockT_forward.3} parent=5 // pred_check_branch
        %193 = sbr.rel (%p191) target = $region32
      $region31: #{conv_blockT_forward.3} parent=5 // pred_region
        // Predicated region
        $region33: #{conv_blockT_forward.3} parent=31 // pred_check
          %p194 = pneg %p45
        $region34: #{conv_blockT_forward.3} parent=31 // pred_check_branch
          %196 = sbr.rel (%p194) target = $region36
        $region35: #{conv_blockT_forward.3} parent=31 // pred_region
          %s197 = sand.u32 %s35, 1
          %s198 = sand.u32 %s35, 1
          %s199 = smul.addr %s198, 1280
          %s200 = scalar_lea.vmem [#allocation2], %s199
          %s201 = smul.u32 32, %s19
          %s202 = smul.addr %s18, 1920
          %s203 = sadd.s32 %s201, %s202
          %s204 = smul.addr %s203, 8
          %s205 = scalar_lea.vmem %s0, %s204
          // Predicated region
          $region37: #{conv_blockT_forward.3} parent=35 // pred_check
            _
          $region38: #{conv_blockT_forward.3} parent=35 // pred_check_branch
            %207 = sbr.rel (0) target = $region40
          $region39: #{conv_blockT_forward.3} parent=35 // pred_region
            // Predicated region
            $region41: #{conv_blockT_forward.3} parent=39 // pred_check
              _
            $region42: #{conv_blockT_forward.3} parent=39 // pred_check_branch
              %209 = sbr.rel (0) target = $region44
            $region43: #{conv_blockT_forward.3} parent=39 // pred_region
              loop: start=0, step=1, limit=1
              $region45: #{conv_blockT_forward.3} parent=43 // loop_pre_header
                _
              $region46: #{conv_blockT_forward.3} parent=43 // loop_header
                %s211 = sphi 0, %s215
                %p212 = scmp.ge.s32.totalorder %s211, 1
                %s216 = sphi %s205, %s205
                %s217 = sphi %s200, %s200
              $region47: #{conv_blockT_forward.3} parent=43 // loop_header_branch
                %214 = sbr.rel (%p212) target = $region51
              $region48: #{conv_blockT_forward.3} parent=43 // loop_body
                %v218 = vld [vmem:[%s216] sm:$0xff]
                %219 = vst [vmem:[%s217] sm:$0xff] %v218
                %v220 = vld [vmem:[%s216 + $0x8] sm:$0xff]
                %221 = vst [vmem:[%s217 + $0x8] sm:$0xff] %v220
                %v222 = vld [vmem:[%s216 + $0x10] sm:$0xff]
                %223 = vst [vmem:[%s217 + $0x10] sm:$0xff] %v222
                %v224 = vld [vmem:[%s216 + $0x18] sm:$0xff]
                %225 = vst [vmem:[%s217 + $0x18] sm:$0xff] %v224
                %v226 = vld [vmem:[%s216 + $0x20] sm:$0xff]
                %227 = vst [vmem:[%s217 + $0x20] sm:$0xff] %v226
                %v228 = vld [vmem:[%s216 + $0x28] sm:$0xff]
                %229 = vst [vmem:[%s217 + $0x28] sm:$0xff] %v228
                %v230 = vld [vmem:[%s216 + $0x30] sm:$0xff]
                %231 = vst [vmem:[%s217 + $0x30] sm:$0xff] %v230
                %v232 = vld [vmem:[%s216 + $0x38] sm:$0xff]
                %233 = vst [vmem:[%s217 + $0x38] sm:$0xff] %v232
                %v234 = vld [vmem:[%s216 + $0x40] sm:$0xff]
                %235 = vst [vmem:[%s217 + $0x40] sm:$0xff] %v234
                %v236 = vld [vmem:[%s216 + $0x48] sm:$0xff]
                %237 = vst [vmem:[%s217 + $0x48] sm:$0xff] %v236
                %v238 = vld [vmem:[%s216 + $0x50] sm:$0xff]
                %239 = vst [vmem:[%s217 + $0x50] sm:$0xff] %v238
                %v240 = vld [vmem:[%s216 + $0x58] sm:$0xff]
                %241 = vst [vmem:[%s217 + $0x58] sm:$0xff] %v240
                %v242 = vld [vmem:[%s216 + $0x60] sm:$0xff]
                %243 = vst [vmem:[%s217 + $0x60] sm:$0xff] %v242
                %v244 = vld [vmem:[%s216 + $0x68] sm:$0xff]
                %245 = vst [vmem:[%s217 + $0x68] sm:$0xff] %v244
                %v246 = vld [vmem:[%s216 + $0x70] sm:$0xff]
                %247 = vst [vmem:[%s217 + $0x70] sm:$0xff] %v246
                %v248 = vld [vmem:[%s216 + $0x78] sm:$0xff]
                %249 = vst [vmem:[%s217 + $0x78] sm:$0xff] %v248
                %v250 = vld [vmem:[%s216 + $0x80] sm:$0xff]
                %251 = vst [vmem:[%s217 + $0x80] sm:$0xff] %v250
                %v252 = vld [vmem:[%s216 + $0x88] sm:$0xff]
                %253 = vst [vmem:[%s217 + $0x88] sm:$0xff] %v252
                %v254 = vld [vmem:[%s216 + $0x90] sm:$0xff]
                %255 = vst [vmem:[%s217 + $0x90] sm:$0xff] %v254
                %v256 = vld [vmem:[%s216 + $0x98] sm:$0xff]
                %257 = vst [vmem:[%s217 + $0x98] sm:$0xff] %v256
                %v258 = vld [vmem:[%s216 + $0xa0] sm:$0xff]
                %259 = vst [vmem:[%s217 + $0xa0] sm:$0xff] %v258
                %v260 = vld [vmem:[%s216 + $0xa8] sm:$0xff]
                %261 = vst [vmem:[%s217 + $0xa8] sm:$0xff] %v260
                %v262 = vld [vmem:[%s216 + $0xb0] sm:$0xff]
                %263 = vst [vmem:[%s217 + $0xb0] sm:$0xff] %v262
                %v264 = vld [vmem:[%s216 + $0xb8] sm:$0xff]
                %265 = vst [vmem:[%s217 + $0xb8] sm:$0xff] %v264
                %v266 = vld [vmem:[%s216 + $0xc0] sm:$0xff]
                %267 = vst [vmem:[%s217 + $0xc0] sm:$0xff] %v266
                %v268 = vld [vmem:[%s216 + $0xc8] sm:$0xff]
                %269 = vst [vmem:[%s217 + $0xc8] sm:$0xff] %v268
                %v270 = vld [vmem:[%s216 + $0xd0] sm:$0xff]
                %271 = vst [vmem:[%s217 + $0xd0] sm:$0xff] %v270
                %v272 = vld [vmem:[%s216 + $0xd8] sm:$0xff]
                %273 = vst [vmem:[%s217 + $0xd8] sm:$0xff] %v272
                %v274 = vld [vmem:[%s216 + $0xe0] sm:$0xff]
                %275 = vst [vmem:[%s217 + $0xe0] sm:$0xff] %v274
                %v276 = vld [vmem:[%s216 + $0xe8] sm:$0xff]
                %277 = vst [vmem:[%s217 + $0xe8] sm:$0xff] %v276
                %v278 = vld [vmem:[%s216 + $0xf0] sm:$0xff]
                %279 = vst [vmem:[%s217 + $0xf0] sm:$0xff] %v278
                %v280 = vld [vmem:[%s216 + $0xf8] sm:$0xff]
                %281 = vst [vmem:[%s217 + $0xf8] sm:$0xff] %v280
                %v282 = vld [vmem:[%s216 + $0xc00] sm:$0xff]
                %283 = vst [vmem:[%s217 + $0x100] sm:$0xff] %v282
                %v284 = vld [vmem:[%s216 + $0xc08] sm:$0xff]
                %285 = vst [vmem:[%s217 + $0x108] sm:$0xff] %v284
                %v286 = vld [vmem:[%s216 + $0xc10] sm:$0xff]
                %287 = vst [vmem:[%s217 + $0x110] sm:$0xff] %v286
                %v288 = vld [vmem:[%s216 + $0xc18] sm:$0xff]
                %289 = vst [vmem:[%s217 + $0x118] sm:$0xff] %v288
                %v290 = vld [vmem:[%s216 + $0xc20] sm:$0xff]
                %291 = vst [vmem:[%s217 + $0x120] sm:$0xff] %v290
                %v292 = vld [vmem:[%s216 + $0xc28] sm:$0xff]
                %293 = vst [vmem:[%s217 + $0x128] sm:$0xff] %v292
                %v294 = vld [vmem:[%s216 + $0xc30] sm:$0xff]
                %295 = vst [vmem:[%s217 + $0x130] sm:$0xff] %v294
                %v296 = vld [vmem:[%s216 + $0xc38] sm:$0xff]
                %297 = vst [vmem:[%s217 + $0x138] sm:$0xff] %v296
                %v298 = vld [vmem:[%s216 + $0xc40] sm:$0xff]
                %299 = vst [vmem:[%s217 + $0x140] sm:$0xff] %v298
                %v300 = vld [vmem:[%s216 + $0xc48] sm:$0xff]
                %301 = vst [vmem:[%s217 + $0x148] sm:$0xff] %v300
                %v302 = vld [vmem:[%s216 + $0xc50] sm:$0xff]
                %303 = vst [vmem:[%s217 + $0x150] sm:$0xff] %v302
                %v304 = vld [vmem:[%s216 + $0xc58] sm:$0xff]
                %305 = vst [vmem:[%s217 + $0x158] sm:$0xff] %v304
                %v306 = vld [vmem:[%s216 + $0xc60] sm:$0xff]
                %307 = vst [vmem:[%s217 + $0x160] sm:$0xff] %v306
                %v308 = vld [vmem:[%s216 + $0xc68] sm:$0xff]
                %309 = vst [vmem:[%s217 + $0x168] sm:$0xff] %v308
                %v310 = vld [vmem:[%s216 + $0xc70] sm:$0xff]
                %311 = vst [vmem:[%s217 + $0x170] sm:$0xff] %v310
                %v312 = vld [vmem:[%s216 + $0xc78] sm:$0xff]
                %313 = vst [vmem:[%s217 + $0x178] sm:$0xff] %v312
                %v314 = vld [vmem:[%s216 + $0xc80] sm:$0xff]
                %315 = vst [vmem:[%s217 + $0x180] sm:$0xff] %v314
                %v316 = vld [vmem:[%s216 + $0xc88] sm:$0xff]
                %317 = vst [vmem:[%s217 + $0x188] sm:$0xff] %v316
                %v318 = vld [vmem:[%s216 + $0xc90] sm:$0xff]
                %319 = vst [vmem:[%s217 + $0x190] sm:$0xff] %v318
                %v320 = vld [vmem:[%s216 + $0xc98] sm:$0xff]
                %321 = vst [vmem:[%s217 + $0x198] sm:$0xff] %v320
                %v322 = vld [vmem:[%s216 + $0xca0] sm:$0xff]
                %323 = vst [vmem:[%s217 + $0x1a0] sm:$0xff] %v322
                %v324 = vld [vmem:[%s216 + $0xca8] sm:$0xff]
                %325 = vst [vmem:[%s217 + $0x1a8] sm:$0xff] %v324
                %v326 = vld [vmem:[%s216 + $0xcb0] sm:$0xff]
                %327 = vst [vmem:[%s217 + $0x1b0] sm:$0xff] %v326
                %v328 = vld [vmem:[%s216 + $0xcb8] sm:$0xff]
                %329 = vst [vmem:[%s217 + $0x1b8] sm:$0xff] %v328
                %v330 = vld [vmem:[%s216 + $0xcc0] sm:$0xff]
                %331 = vst [vmem:[%s217 + $0x1c0] sm:$0xff] %v330
                %v332 = vld [vmem:[%s216 + $0xcc8] sm:$0xff]
                %333 = vst [vmem:[%s217 + $0x1c8] sm:$0xff] %v332
                %v334 = vld [vmem:[%s216 + $0xcd0] sm:$0xff]
                %335 = vst [vmem:[%s217 + $0x1d0] sm:$0xff] %v334
                %v336 = vld [vmem:[%s216 + $0xcd8] sm:$0xff]
                %337 = vst [vmem:[%s217 + $0x1d8] sm:$0xff] %v336
                %v338 = vld [vmem:[%s216 + $0xce0] sm:$0xff]
                %339 = vst [vmem:[%s217 + $0x1e0] sm:$0xff] %v338
                %v340 = vld [vmem:[%s216 + $0xce8] sm:$0xff]
                %341 = vst [vmem:[%s217 + $0x1e8] sm:$0xff] %v340
                %v342 = vld [vmem:[%s216 + $0xcf0] sm:$0xff]
                %343 = vst [vmem:[%s217 + $0x1f0] sm:$0xff] %v342
                %v344 = vld [vmem:[%s216 + $0xcf8] sm:$0xff]
                %345 = vst [vmem:[%s217 + $0x1f8] sm:$0xff] %v344
                %v346 = vld [vmem:[%s216 + $0x1800] sm:$0xff]
                %347 = vst [vmem:[%s217 + $0x200] sm:$0xff] %v346
                %v348 = vld [vmem:[%s216 + $0x1808] sm:$0xff]
                %349 = vst [vmem:[%s217 + $0x208] sm:$0xff] %v348
                %v350 = vld [vmem:[%s216 + $0x1810] sm:$0xff]
                %351 = vst [vmem:[%s217 + $0x210] sm:$0xff] %v350
                %v352 = vld [vmem:[%s216 + $0x1818] sm:$0xff]
                %353 = vst [vmem:[%s217 + $0x218] sm:$0xff] %v352
                %v354 = vld [vmem:[%s216 + $0x1820] sm:$0xff]
                %355 = vst [vmem:[%s217 + $0x220] sm:$0xff] %v354
                %v356 = vld [vmem:[%s216 + $0x1828] sm:$0xff]
                %357 = vst [vmem:[%s217 + $0x228] sm:$0xff] %v356
                %v358 = vld [vmem:[%s216 + $0x1830] sm:$0xff]
                %359 = vst [vmem:[%s217 + $0x230] sm:$0xff] %v358
                %v360 = vld [vmem:[%s216 + $0x1838] sm:$0xff]
                %361 = vst [vmem:[%s217 + $0x238] sm:$0xff] %v360
                %v362 = vld [vmem:[%s216 + $0x1840] sm:$0xff]
                %363 = vst [vmem:[%s217 + $0x240] sm:$0xff] %v362
                %v364 = vld [vmem:[%s216 + $0x1848] sm:$0xff]
                %365 = vst [vmem:[%s217 + $0x248] sm:$0xff] %v364
                %v366 = vld [vmem:[%s216 + $0x1850] sm:$0xff]
                %367 = vst [vmem:[%s217 + $0x250] sm:$0xff] %v366
                %v368 = vld [vmem:[%s216 + $0x1858] sm:$0xff]
                %369 = vst [vmem:[%s217 + $0x258] sm:$0xff] %v368
                %v370 = vld [vmem:[%s216 + $0x1860] sm:$0xff]
                %371 = vst [vmem:[%s217 + $0x260] sm:$0xff] %v370
                %v372 = vld [vmem:[%s216 + $0x1868] sm:$0xff]
                %373 = vst [vmem:[%s217 + $0x268] sm:$0xff] %v372
                %v374 = vld [vmem:[%s216 + $0x1870] sm:$0xff]
                %375 = vst [vmem:[%s217 + $0x270] sm:$0xff] %v374
                %v376 = vld [vmem:[%s216 + $0x1878] sm:$0xff]
                %377 = vst [vmem:[%s217 + $0x278] sm:$0xff] %v376
                %v378 = vld [vmem:[%s216 + $0x1880] sm:$0xff]
                %379 = vst [vmem:[%s217 + $0x280] sm:$0xff] %v378
                %v380 = vld [vmem:[%s216 + $0x1888] sm:$0xff]
                %381 = vst [vmem:[%s217 + $0x288] sm:$0xff] %v380
                %v382 = vld [vmem:[%s216 + $0x1890] sm:$0xff]
                %383 = vst [vmem:[%s217 + $0x290] sm:$0xff] %v382
                %v384 = vld [vmem:[%s216 + $0x1898] sm:$0xff]
                %385 = vst [vmem:[%s217 + $0x298] sm:$0xff] %v384
                %v386 = vld [vmem:[%s216 + $0x18a0] sm:$0xff]
                %387 = vst [vmem:[%s217 + $0x2a0] sm:$0xff] %v386
                %v388 = vld [vmem:[%s216 + $0x18a8] sm:$0xff]
                %389 = vst [vmem:[%s217 + $0x2a8] sm:$0xff] %v388
                %v390 = vld [vmem:[%s216 + $0x18b0] sm:$0xff]
                %391 = vst [vmem:[%s217 + $0x2b0] sm:$0xff] %v390
                %v392 = vld [vmem:[%s216 + $0x18b8] sm:$0xff]
                %393 = vst [vmem:[%s217 + $0x2b8] sm:$0xff] %v392
                %v394 = vld [vmem:[%s216 + $0x18c0] sm:$0xff]
                %395 = vst [vmem:[%s217 + $0x2c0] sm:$0xff] %v394
                %v396 = vld [vmem:[%s216 + $0x18c8] sm:$0xff]
                %397 = vst [vmem:[%s217 + $0x2c8] sm:$0xff] %v396
                %v398 = vld [vmem:[%s216 + $0x18d0] sm:$0xff]
                %399 = vst [vmem:[%s217 + $0x2d0] sm:$0xff] %v398
                %v400 = vld [vmem:[%s216 + $0x18d8] sm:$0xff]
                %401 = vst [vmem:[%s217 + $0x2d8] sm:$0xff] %v400
                %v402 = vld [vmem:[%s216 + $0x18e0] sm:$0xff]
                %403 = vst [vmem:[%s217 + $0x2e0] sm:$0xff] %v402
                %v404 = vld [vmem:[%s216 + $0x18e8] sm:$0xff]
                %405 = vst [vmem:[%s217 + $0x2e8] sm:$0xff] %v404
                %v406 = vld [vmem:[%s216 + $0x18f0] sm:$0xff]
                %407 = vst [vmem:[%s217 + $0x2f0] sm:$0xff] %v406
                %v408 = vld [vmem:[%s216 + $0x18f8] sm:$0xff]
                %409 = vst [vmem:[%s217 + $0x2f8] sm:$0xff] %v408
                %v410 = vld [vmem:[%s216 + $0x2400] sm:$0xff]
                %411 = vst [vmem:[%s217 + $0x300] sm:$0xff] %v410
                %v412 = vld [vmem:[%s216 + $0x2408] sm:$0xff]
                %413 = vst [vmem:[%s217 + $0x308] sm:$0xff] %v412
                %v414 = vld [vmem:[%s216 + $0x2410] sm:$0xff]
                %415 = vst [vmem:[%s217 + $0x310] sm:$0xff] %v414
                %v416 = vld [vmem:[%s216 + $0x2418] sm:$0xff]
                %417 = vst [vmem:[%s217 + $0x318] sm:$0xff] %v416
                %v418 = vld [vmem:[%s216 + $0x2420] sm:$0xff]
                %419 = vst [vmem:[%s217 + $0x320] sm:$0xff] %v418
                %v420 = vld [vmem:[%s216 + $0x2428] sm:$0xff]
                %421 = vst [vmem:[%s217 + $0x328] sm:$0xff] %v420
                %v422 = vld [vmem:[%s216 + $0x2430] sm:$0xff]
                %423 = vst [vmem:[%s217 + $0x330] sm:$0xff] %v422
                %v424 = vld [vmem:[%s216 + $0x2438] sm:$0xff]
                %425 = vst [vmem:[%s217 + $0x338] sm:$0xff] %v424
                %v426 = vld [vmem:[%s216 + $0x2440] sm:$0xff]
                %427 = vst [vmem:[%s217 + $0x340] sm:$0xff] %v426
                %v428 = vld [vmem:[%s216 + $0x2448] sm:$0xff]
                %429 = vst [vmem:[%s217 + $0x348] sm:$0xff] %v428
                %v430 = vld [vmem:[%s216 + $0x2450] sm:$0xff]
                %431 = vst [vmem:[%s217 + $0x350] sm:$0xff] %v430
                %v432 = vld [vmem:[%s216 + $0x2458] sm:$0xff]
                %433 = vst [vmem:[%s217 + $0x358] sm:$0xff] %v432
                %v434 = vld [vmem:[%s216 + $0x2460] sm:$0xff]
                %435 = vst [vmem:[%s217 + $0x360] sm:$0xff] %v434
                %v436 = vld [vmem:[%s216 + $0x2468] sm:$0xff]
                %437 = vst [vmem:[%s217 + $0x368] sm:$0xff] %v436
                %v438 = vld [vmem:[%s216 + $0x2470] sm:$0xff]
                %439 = vst [vmem:[%s217 + $0x370] sm:$0xff] %v438
                %v440 = vld [vmem:[%s216 + $0x2478] sm:$0xff]
                %441 = vst [vmem:[%s217 + $0x378] sm:$0xff] %v440
                %v442 = vld [vmem:[%s216 + $0x2480] sm:$0xff]
                %443 = vst [vmem:[%s217 + $0x380] sm:$0xff] %v442
                %v444 = vld [vmem:[%s216 + $0x2488] sm:$0xff]
                %445 = vst [vmem:[%s217 + $0x388] sm:$0xff] %v444
                %v446 = vld [vmem:[%s216 + $0x2490] sm:$0xff]
                %447 = vst [vmem:[%s217 + $0x390] sm:$0xff] %v446
                %v448 = vld [vmem:[%s216 + $0x2498] sm:$0xff]
                %449 = vst [vmem:[%s217 + $0x398] sm:$0xff] %v448
                %v450 = vld [vmem:[%s216 + $0x24a0] sm:$0xff]
                %451 = vst [vmem:[%s217 + $0x3a0] sm:$0xff] %v450
                %v452 = vld [vmem:[%s216 + $0x24a8] sm:$0xff]
                %453 = vst [vmem:[%s217 + $0x3a8] sm:$0xff] %v452
                %v454 = vld [vmem:[%s216 + $0x24b0] sm:$0xff]
                %455 = vst [vmem:[%s217 + $0x3b0] sm:$0xff] %v454
                %v456 = vld [vmem:[%s216 + $0x24b8] sm:$0xff]
                %457 = vst [vmem:[%s217 + $0x3b8] sm:$0xff] %v456
                %v458 = vld [vmem:[%s216 + $0x24c0] sm:$0xff]
                %459 = vst [vmem:[%s217 + $0x3c0] sm:$0xff] %v458
                %v460 = vld [vmem:[%s216 + $0x24c8] sm:$0xff]
                %461 = vst [vmem:[%s217 + $0x3c8] sm:$0xff] %v460
                %v462 = vld [vmem:[%s216 + $0x24d0] sm:$0xff]
                %463 = vst [vmem:[%s217 + $0x3d0] sm:$0xff] %v462
                %v464 = vld [vmem:[%s216 + $0x24d8] sm:$0xff]
                %465 = vst [vmem:[%s217 + $0x3d8] sm:$0xff] %v464
                %v466 = vld [vmem:[%s216 + $0x24e0] sm:$0xff]
                %467 = vst [vmem:[%s217 + $0x3e0] sm:$0xff] %v466
                %v468 = vld [vmem:[%s216 + $0x24e8] sm:$0xff]
                %469 = vst [vmem:[%s217 + $0x3e8] sm:$0xff] %v468
                %v470 = vld [vmem:[%s216 + $0x24f0] sm:$0xff]
                %471 = vst [vmem:[%s217 + $0x3f0] sm:$0xff] %v470
                %v472 = vld [vmem:[%s216 + $0x24f8] sm:$0xff]
                %473 = vst [vmem:[%s217 + $0x3f8] sm:$0xff] %v472
                %v474 = vld [vmem:[%s216 + $0x3000] sm:$0xff]
                %475 = vst [vmem:[%s217 + $0x400] sm:$0xff] %v474
                %v476 = vld [vmem:[%s216 + $0x3008] sm:$0xff]
                %477 = vst [vmem:[%s217 + $0x408] sm:$0xff] %v476
                %v478 = vld [vmem:[%s216 + $0x3010] sm:$0xff]
                %479 = vst [vmem:[%s217 + $0x410] sm:$0xff] %v478
                %v480 = vld [vmem:[%s216 + $0x3018] sm:$0xff]
                %481 = vst [vmem:[%s217 + $0x418] sm:$0xff] %v480
                %v482 = vld [vmem:[%s216 + $0x3020] sm:$0xff]
                %483 = vst [vmem:[%s217 + $0x420] sm:$0xff] %v482
                %v484 = vld [vmem:[%s216 + $0x3028] sm:$0xff]
                %485 = vst [vmem:[%s217 + $0x428] sm:$0xff] %v484
                %v486 = vld [vmem:[%s216 + $0x3030] sm:$0xff]
                %487 = vst [vmem:[%s217 + $0x430] sm:$0xff] %v486
                %v488 = vld [vmem:[%s216 + $0x3038] sm:$0xff]
                %489 = vst [vmem:[%s217 + $0x438] sm:$0xff] %v488
                %v490 = vld [vmem:[%s216 + $0x3040] sm:$0xff]
                %491 = vst [vmem:[%s217 + $0x440] sm:$0xff] %v490
                %v492 = vld [vmem:[%s216 + $0x3048] sm:$0xff]
                %493 = vst [vmem:[%s217 + $0x448] sm:$0xff] %v492
                %v494 = vld [vmem:[%s216 + $0x3050] sm:$0xff]
                %495 = vst [vmem:[%s217 + $0x450] sm:$0xff] %v494
                %v496 = vld [vmem:[%s216 + $0x3058] sm:$0xff]
                %497 = vst [vmem:[%s217 + $0x458] sm:$0xff] %v496
                %v498 = vld [vmem:[%s216 + $0x3060] sm:$0xff]
                %499 = vst [vmem:[%s217 + $0x460] sm:$0xff] %v498
                %v500 = vld [vmem:[%s216 + $0x3068] sm:$0xff]
                %501 = vst [vmem:[%s217 + $0x468] sm:$0xff] %v500
                %v502 = vld [vmem:[%s216 + $0x3070] sm:$0xff]
                %503 = vst [vmem:[%s217 + $0x470] sm:$0xff] %v502
                %v504 = vld [vmem:[%s216 + $0x3078] sm:$0xff]
                %505 = vst [vmem:[%s217 + $0x478] sm:$0xff] %v504
                %v506 = vld [vmem:[%s216 + $0x3080] sm:$0xff]
                %507 = vst [vmem:[%s217 + $0x480] sm:$0xff] %v506
                %v508 = vld [vmem:[%s216 + $0x3088] sm:$0xff]
                %509 = vst [vmem:[%s217 + $0x488] sm:$0xff] %v508
                %v510 = vld [vmem:[%s216 + $0x3090] sm:$0xff]
                %511 = vst [vmem:[%s217 + $0x490] sm:$0xff] %v510
                %v512 = vld [vmem:[%s216 + $0x3098] sm:$0xff]
                %513 = vst [vmem:[%s217 + $0x498] sm:$0xff] %v512
                %v514 = vld [vmem:[%s216 + $0x30a0] sm:$0xff]
                %515 = vst [vmem:[%s217 + $0x4a0] sm:$0xff] %v514
                %v516 = vld [vmem:[%s216 + $0x30a8] sm:$0xff]
                %517 = vst [vmem:[%s217 + $0x4a8] sm:$0xff] %v516
                %v518 = vld [vmem:[%s216 + $0x30b0] sm:$0xff]
                %519 = vst [vmem:[%s217 + $0x4b0] sm:$0xff] %v518
                %v520 = vld [vmem:[%s216 + $0x30b8] sm:$0xff]
                %521 = vst [vmem:[%s217 + $0x4b8] sm:$0xff] %v520
                %v522 = vld [vmem:[%s216 + $0x30c0] sm:$0xff]
                %523 = vst [vmem:[%s217 + $0x4c0] sm:$0xff] %v522
                %v524 = vld [vmem:[%s216 + $0x30c8] sm:$0xff]
                %525 = vst [vmem:[%s217 + $0x4c8] sm:$0xff] %v524
                %v526 = vld [vmem:[%s216 + $0x30d0] sm:$0xff]
                %527 = vst [vmem:[%s217 + $0x4d0] sm:$0xff] %v526
                %v528 = vld [vmem:[%s216 + $0x30d8] sm:$0xff]
                %529 = vst [vmem:[%s217 + $0x4d8] sm:$0xff] %v528
                %v530 = vld [vmem:[%s216 + $0x30e0] sm:$0xff]
                %531 = vst [vmem:[%s217 + $0x4e0] sm:$0xff] %v530
                %v532 = vld [vmem:[%s216 + $0x30e8] sm:$0xff]
                %533 = vst [vmem:[%s217 + $0x4e8] sm:$0xff] %v532
                %v534 = vld [vmem:[%s216 + $0x30f0] sm:$0xff]
                %535 = vst [vmem:[%s217 + $0x4f0] sm:$0xff] %v534
                %v536 = vld [vmem:[%s216 + $0x30f8] sm:$0xff]
                %537 = vst [vmem:[%s217 + $0x4f8] sm:$0xff] %v536
              $region49: #{conv_blockT_forward.3} parent=43 // loop_footer
                %s215 = sadd.s32 1, %s211
              $region50: #{conv_blockT_forward.3} parent=43 // loop_footer_branch
                %210 = sbr.rel target = $region46
              $region51: #{conv_blockT_forward.3} parent=43 // loop_exit
                _
            $region44: #{conv_blockT_forward.3} parent=39 // pred_fallthru
              _
            // Predicated region
            $region52: #{conv_blockT_forward.3} parent=39 // pred_check
              _
            $region53: #{conv_blockT_forward.3} parent=39 // pred_check_branch
              %539 = sbr.rel target = $region55
            $region54: #{conv_blockT_forward.3} parent=39 // pred_region
              _
            $region55: #{conv_blockT_forward.3} parent=39 // pred_fallthru
              _
          $region40: #{conv_blockT_forward.3} parent=35 // pred_fallthru
            _
          %540 = vnop
        $region36: #{conv_blockT_forward.3} parent=31 // pred_fallthru
          _
      $region32: #{conv_blockT_forward.3} parent=5 // pred_fallthru
        _
      %p541 = scmp.le.s32.totalorder 1, %s11
      %p542 = scmp.lt.s32.totalorder %s11, 25
      %p543 = pnand %p541, %p542
      %p544 = pneg %p543
      // Predicated region
      $region56: #{conv_blockT_forward.3} parent=5 // pred_check
        _
      $region57: #{conv_blockT_forward.3} parent=5 // pred_check_branch
        %546 = sbr.rel (%p543) target = $region59
      $region58: #{conv_blockT_forward.3} parent=5 // pred_region
        %s547 = ssub.s32 %s11, 1
        %s548 = sand.u32 %s38, 1
        %s549 = sand.u32 %s38, 1
        %s550 = smul.addr %s549, 1280
        %s551 = scalar_lea.vmem [#allocation2], %s550
        // Predicated region
        $region60: #{conv_blockT_forward.3} parent=58 // pred_check
          %p552 = pneg %p51
        $region61: #{conv_blockT_forward.3} parent=58 // pred_check_branch
          %554 = sbr.rel (%p552) target = $region63
        $region62: #{conv_blockT_forward.3} parent=58 // pred_region
          _
        $region63: #{conv_blockT_forward.3} parent=58 // pred_fallthru
          _
        %s555 = sand.u32 %s38, 1
        %s556 = sand.u32 %s38, 1
        %s557 = smul.addr %s556, 1280
        %s558 = scalar_lea.vmem [#allocation2], %s557
        %p559 = pneg %p51
        %p560 = pneg %p48
        %p561 = pneg %p72
        %p562 = pneg %p69
        %p563 = pneg %p93
        %p564 = pneg %p90
        %p565 = pneg %p114
        %p566 = pneg %p111
        %p567 = pneg %p135
        %p568 = pneg %p132
        %p569 = pneg %p163
        %p570 = pneg %p160
        %s571 = smul.u32 32, %s21
        %p572 = scmp.lt.s32.totalorder %s20, 1
        %s573 = scalar_select %p572, %s20, 1
        %p574 = scmp.lt.s32.totalorder %s571, 383
        %s575 = scalar_select %p574, %s571, 383
        %s576 = smul.addr %s573, 384
        %s577 = sadd.s32 %s575, %s576
        %s578 = smul.addr %s577, 8
        %s579 = scalar_lea.vmem %s5, %s578
        %s580 = smul.u32 32, %s21
        %s581 = smul.u32 32, %s21
        %p582 = scmp.lt.s32.totalorder %s20, 1
        %s583 = scalar_select %p582, %s20, 1
        %p584 = scmp.lt.s32.totalorder %s581, 383
        %s585 = scalar_select %p584, %s581, 383
        %s586 = smul.addr %s583, 384
        %s587 = sadd.s32 %s585, %s586
        %s588 = smul.addr %s587, 8
        %s589 = scalar_lea.vmem %s5, %s588
        %s590 = smul.u32 32, %s21
        %v591 = vld [vmem:[%s551] sm:$0xff]
        %v592 = vld [vmem:[%s551 + $0x8] sm:$0xff]
        %v593 = vld [vmem:[%s551 + $0x10] sm:$0xff]
        %v594 = vld [vmem:[%s551 + $0x18] sm:$0xff]
        %v595 = vld [vmem:[%s551 + $0x20] sm:$0xff]
        %v596 = vld [vmem:[%s551 + $0x28] sm:$0xff]
        %v597 = vld [vmem:[%s551 + $0x30] sm:$0xff]
        %v598 = vld [vmem:[%s551 + $0x38] sm:$0xff]
        %v599 = vld [vmem:[%s551 + $0x40] sm:$0xff]
        %v600 = vld [vmem:[%s551 + $0x48] sm:$0xff]
        %v601 = vld [vmem:[%s551 + $0x50] sm:$0xff]
        %v602 = vld [vmem:[%s551 + $0x58] sm:$0xff]
        %v603 = vld [vmem:[%s551 + $0x60] sm:$0xff]
        %v604 = vld [vmem:[%s551 + $0x68] sm:$0xff]
        %v605 = vld [vmem:[%s551 + $0x70] sm:$0xff]
        %v606 = vld [vmem:[%s551 + $0x78] sm:$0xff]
        %v607 = vld [vmem:[%s551 + $0x80] sm:$0xff]
        %v608 = vld [vmem:[%s551 + $0x88] sm:$0xff]
        %v609 = vld [vmem:[%s551 + $0x90] sm:$0xff]
        %v610 = vld [vmem:[%s551 + $0x98] sm:$0xff]
        %v611 = vld [vmem:[%s551 + $0xa0] sm:$0xff]
        %v612 = vld [vmem:[%s551 + $0xa8] sm:$0xff]
        %v613 = vld [vmem:[%s551 + $0xb0] sm:$0xff]
        %v614 = vld [vmem:[%s551 + $0xb8] sm:$0xff]
        %v615 = vld [vmem:[%s551 + $0xc0] sm:$0xff]
        %v616 = vld [vmem:[%s551 + $0xc8] sm:$0xff]
        %v617 = vld [vmem:[%s551 + $0xd0] sm:$0xff]
        %v618 = vld [vmem:[%s551 + $0xd8] sm:$0xff]
        %v619 = vld [vmem:[%s551 + $0xe0] sm:$0xff]
        %v620 = vld [vmem:[%s551 + $0xe8] sm:$0xff]
        %v621 = vld [vmem:[%s551 + $0xf0] sm:$0xff]
        %v622 = vld [vmem:[%s551 + $0xf8] sm:$0xff]
        %v623 = vld [vmem:[%s551 + $0x100] sm:$0xff]
        %v624 = vld [vmem:[%s551 + $0x108] sm:$0xff]
        %v625 = vld [vmem:[%s551 + $0x110] sm:$0xff]
        %v626 = vld [vmem:[%s551 + $0x118] sm:$0xff]
        %v627 = vld [vmem:[%s551 + $0x120] sm:$0xff]
        %v628 = vld [vmem:[%s551 + $0x128] sm:$0xff]
        %v629 = vld [vmem:[%s551 + $0x130] sm:$0xff]
        %v630 = vld [vmem:[%s551 + $0x138] sm:$0xff]
        %v631 = vld [vmem:[%s551 + $0x140] sm:$0xff]
        %v632 = vld [vmem:[%s551 + $0x148] sm:$0xff]
        %v633 = vld [vmem:[%s551 + $0x150] sm:$0xff]
        %v634 = vld [vmem:[%s551 + $0x158] sm:$0xff]
        %v635 = vld [vmem:[%s551 + $0x160] sm:$0xff]
        %v636 = vld [vmem:[%s551 + $0x168] sm:$0xff]
        %v637 = vld [vmem:[%s551 + $0x170] sm:$0xff]
        %v638 = vld [vmem:[%s551 + $0x178] sm:$0xff]
        %v639 = vld [vmem:[%s551 + $0x180] sm:$0xff]
        %v640 = vld [vmem:[%s551 + $0x188] sm:$0xff]
        %v641 = vld [vmem:[%s551 + $0x190] sm:$0xff]
        %v642 = vld [vmem:[%s551 + $0x198] sm:$0xff]
        %v643 = vld [vmem:[%s551 + $0x1a0] sm:$0xff]
        %v644 = vld [vmem:[%s551 + $0x1a8] sm:$0xff]
        %v645 = vld [vmem:[%s551 + $0x1b0] sm:$0xff]
        %v646 = vld [vmem:[%s551 + $0x1b8] sm:$0xff]
        %v647 = vld [vmem:[%s551 + $0x1c0] sm:$0xff]
        %v648 = vld [vmem:[%s551 + $0x1c8] sm:$0xff]
        %v649 = vld [vmem:[%s551 + $0x1d0] sm:$0xff]
        %v650 = vld [vmem:[%s551 + $0x1d8] sm:$0xff]
        %v651 = vld [vmem:[%s551 + $0x1e0] sm:$0xff]
        %v652 = vld [vmem:[%s551 + $0x1e8] sm:$0xff]
        %v653 = vld [vmem:[%s551 + $0x1f0] sm:$0xff]
        %v654 = vld [vmem:[%s551 + $0x1f8] sm:$0xff]
        %v655 = vld [vmem:[%s551 + $0x200] sm:$0xff]
        %v656 = vld [vmem:[%s551 + $0x208] sm:$0xff]
        %v657 = vld [vmem:[%s551 + $0x210] sm:$0xff]
        %v658 = vld [vmem:[%s551 + $0x218] sm:$0xff]
        %v659 = vld [vmem:[%s551 + $0x220] sm:$0xff]
        %v660 = vld [vmem:[%s551 + $0x228] sm:$0xff]
        %v661 = vld [vmem:[%s551 + $0x230] sm:$0xff]
        %v662 = vld [vmem:[%s551 + $0x238] sm:$0xff]
        %v663 = vld [vmem:[%s551 + $0x240] sm:$0xff]
        %v664 = vld [vmem:[%s551 + $0x248] sm:$0xff]
        %v665 = vld [vmem:[%s551 + $0x250] sm:$0xff]
        %v666 = vld [vmem:[%s551 + $0x258] sm:$0xff]
        %v667 = vld [vmem:[%s551 + $0x260] sm:$0xff]
        %v668 = vld [vmem:[%s551 + $0x268] sm:$0xff]
        %v669 = vld [vmem:[%s551 + $0x270] sm:$0xff]
        %v670 = vld [vmem:[%s551 + $0x278] sm:$0xff]
        %v671 = vld [vmem:[%s551 + $0x280] sm:$0xff]
        %v672 = vld [vmem:[%s551 + $0x288] sm:$0xff]
        %v673 = vld [vmem:[%s551 + $0x290] sm:$0xff]
        %v674 = vld [vmem:[%s551 + $0x298] sm:$0xff]
        %v675 = vld [vmem:[%s551 + $0x2a0] sm:$0xff]
        %v676 = vld [vmem:[%s551 + $0x2a8] sm:$0xff]
        %v677 = vld [vmem:[%s551 + $0x2b0] sm:$0xff]
        %v678 = vld [vmem:[%s551 + $0x2b8] sm:$0xff]
        %v679 = vld [vmem:[%s551 + $0x2c0] sm:$0xff]
        %v680 = vld [vmem:[%s551 + $0x2c8] sm:$0xff]
        %v681 = vld [vmem:[%s551 + $0x2d0] sm:$0xff]
        %v682 = vld [vmem:[%s551 + $0x2d8] sm:$0xff]
        %v683 = vld [vmem:[%s551 + $0x2e0] sm:$0xff]
        %v684 = vld [vmem:[%s551 + $0x2e8] sm:$0xff]
        %v685 = vld [vmem:[%s551 + $0x2f0] sm:$0xff]
        %v686 = vld [vmem:[%s551 + $0x2f8] sm:$0xff]
        %v687 = vld [vmem:[%s551 + $0x300] sm:$0xff]
        %v688 = vld [vmem:[%s551 + $0x308] sm:$0xff]
        %v689 = vld [vmem:[%s551 + $0x310] sm:$0xff]
        %v690 = vld [vmem:[%s551 + $0x318] sm:$0xff]
        %v691 = vld [vmem:[%s551 + $0x320] sm:$0xff]
        %v692 = vld [vmem:[%s551 + $0x328] sm:$0xff]
        %v693 = vld [vmem:[%s551 + $0x330] sm:$0xff]
        %v694 = vld [vmem:[%s551 + $0x338] sm:$0xff]
        %v695 = vld [vmem:[%s551 + $0x340] sm:$0xff]
        %v696 = vld [vmem:[%s551 + $0x348] sm:$0xff]
        %v697 = vld [vmem:[%s551 + $0x350] sm:$0xff]
        %v698 = vld [vmem:[%s551 + $0x358] sm:$0xff]
        %v699 = vld [vmem:[%s551 + $0x360] sm:$0xff]
        %v700 = vld [vmem:[%s551 + $0x368] sm:$0xff]
        %v701 = vld [vmem:[%s551 + $0x370] sm:$0xff]
        %v702 = vld [vmem:[%s551 + $0x378] sm:$0xff]
        %v703 = vld [vmem:[%s551 + $0x380] sm:$0xff]
        %v704 = vld [vmem:[%s551 + $0x388] sm:$0xff]
        %v705 = vld [vmem:[%s551 + $0x390] sm:$0xff]
        %v706 = vld [vmem:[%s551 + $0x398] sm:$0xff]
        %v707 = vld [vmem:[%s551 + $0x3a0] sm:$0xff]
        %v708 = vld [vmem:[%s551 + $0x3a8] sm:$0xff]
        %v709 = vld [vmem:[%s551 + $0x3b0] sm:$0xff]
        %v710 = vld [vmem:[%s551 + $0x3b8] sm:$0xff]
        %v711 = vld [vmem:[%s551 + $0x3c0] sm:$0xff]
        %v712 = vld [vmem:[%s551 + $0x3c8] sm:$0xff]
        %v713 = vld [vmem:[%s551 + $0x3d0] sm:$0xff]
        %v714 = vld [vmem:[%s551 + $0x3d8] sm:$0xff]
        %v715 = vld [vmem:[%s551 + $0x3e0] sm:$0xff]
        %v716 = vld [vmem:[%s551 + $0x3e8] sm:$0xff]
        %v717 = vld [vmem:[%s551 + $0x3f0] sm:$0xff]
        %v718 = vld [vmem:[%s551 + $0x3f8] sm:$0xff]
        %v719 = vld [vmem:[%s551 + $0x400] sm:$0xf]
        %v720 = vld [vmem:[%s551 + $0x408] sm:$0xf]
        %v721 = vld [vmem:[%s551 + $0x410] sm:$0xf]
        %v722 = vld [vmem:[%s551 + $0x418] sm:$0xf]
        %v723 = vld [vmem:[%s551 + $0x420] sm:$0xf]
        %v724 = vld [vmem:[%s551 + $0x428] sm:$0xf]
        %v725 = vld [vmem:[%s551 + $0x430] sm:$0xf]
        %v726 = vld [vmem:[%s551 + $0x438] sm:$0xf]
        %v727 = vld [vmem:[%s551 + $0x440] sm:$0xf]
        %v728 = vld [vmem:[%s551 + $0x448] sm:$0xf]
        %v729 = vld [vmem:[%s551 + $0x450] sm:$0xf]
        %v730 = vld [vmem:[%s551 + $0x458] sm:$0xf]
        %v731 = vld [vmem:[%s551 + $0x460] sm:$0xf]
        %v732 = vld [vmem:[%s551 + $0x468] sm:$0xf]
        %v733 = vld [vmem:[%s551 + $0x470] sm:$0xf]
        %v734 = vld [vmem:[%s551 + $0x478] sm:$0xf]
        %v735 = vld [vmem:[%s551 + $0x480] sm:$0xf]
        %v736 = vld [vmem:[%s551 + $0x488] sm:$0xf]
        %v737 = vld [vmem:[%s551 + $0x490] sm:$0xf]
        %v738 = vld [vmem:[%s551 + $0x498] sm:$0xf]
        %v739 = vld [vmem:[%s551 + $0x4a0] sm:$0xf]
        %v740 = vld [vmem:[%s551 + $0x4a8] sm:$0xf]
        %v741 = vld [vmem:[%s551 + $0x4b0] sm:$0xf]
        %v742 = vld [vmem:[%s551 + $0x4b8] sm:$0xf]
        %v743 = vld [vmem:[%s551 + $0x4c0] sm:$0xf]
        %v744 = vld [vmem:[%s551 + $0x4c8] sm:$0xf]
        %v745 = vld [vmem:[%s551 + $0x4d0] sm:$0xf]
        %v746 = vld [vmem:[%s551 + $0x4d8] sm:$0xf]
        %v747 = vld [vmem:[%s551 + $0x4e0] sm:$0xf]
        %v748 = vld [vmem:[%s551 + $0x4e8] sm:$0xf]
        %v749 = vld [vmem:[%s551 + $0x4f0] sm:$0xf]
        %v750 = vld [vmem:[%s551 + $0x4f8] sm:$0xf]
        %v751 = vmax.f32 %v591, 0.0
        %v752 = vmax.f32 %v592, 0.0
        %v753 = vmax.f32 %v593, 0.0
        %v754 = vmax.f32 %v594, 0.0
        %v755 = vmax.f32 %v595, 0.0
        %v756 = vmax.f32 %v596, 0.0
        %v757 = vmax.f32 %v597, 0.0
        %v758 = vmax.f32 %v598, 0.0
        %v759 = vmax.f32 %v599, 0.0
        %v760 = vmax.f32 %v600, 0.0
        %v761 = vmax.f32 %v601, 0.0
        %v762 = vmax.f32 %v602, 0.0
        %v763 = vmax.f32 %v603, 0.0
        %v764 = vmax.f32 %v604, 0.0
        %v765 = vmax.f32 %v605, 0.0
        %v766 = vmax.f32 %v606, 0.0
        %v767 = vmax.f32 %v607, 0.0
        %v768 = vmax.f32 %v608, 0.0
        %v769 = vmax.f32 %v609, 0.0
        %v770 = vmax.f32 %v610, 0.0
        %v771 = vmax.f32 %v611, 0.0
        %v772 = vmax.f32 %v612, 0.0
        %v773 = vmax.f32 %v613, 0.0
        %v774 = vmax.f32 %v614, 0.0
        %v775 = vmax.f32 %v615, 0.0
        %v776 = vmax.f32 %v616, 0.0
        %v777 = vmax.f32 %v617, 0.0
        %v778 = vmax.f32 %v618, 0.0
        %v779 = vmax.f32 %v619, 0.0
        %v780 = vmax.f32 %v620, 0.0
        %v781 = vmax.f32 %v621, 0.0
        %v782 = vmax.f32 %v622, 0.0
        %v783 = vmax.f32 %v623, 0.0
        %v784 = vmax.f32 %v624, 0.0
        %v785 = vmax.f32 %v625, 0.0
        %v786 = vmax.f32 %v626, 0.0
        %v787 = vmax.f32 %v627, 0.0
        %v788 = vmax.f32 %v628, 0.0
        %v789 = vmax.f32 %v629, 0.0
        %v790 = vmax.f32 %v630, 0.0
        %v791 = vmax.f32 %v631, 0.0
        %v792 = vmax.f32 %v632, 0.0
        %v793 = vmax.f32 %v633, 0.0
        %v794 = vmax.f32 %v634, 0.0
        %v795 = vmax.f32 %v635, 0.0
        %v796 = vmax.f32 %v636, 0.0
        %v797 = vmax.f32 %v637, 0.0
        %v798 = vmax.f32 %v638, 0.0
        %v799 = vmax.f32 %v639, 0.0
        %v800 = vmax.f32 %v640, 0.0
        %v801 = vmax.f32 %v641, 0.0
        %v802 = vmax.f32 %v642, 0.0
        %v803 = vmax.f32 %v643, 0.0
        %v804 = vmax.f32 %v644, 0.0
        %v805 = vmax.f32 %v645, 0.0
        %v806 = vmax.f32 %v646, 0.0
        %v807 = vmax.f32 %v647, 0.0
        %v808 = vmax.f32 %v648, 0.0
        %v809 = vmax.f32 %v649, 0.0
        %v810 = vmax.f32 %v650, 0.0
        %v811 = vmax.f32 %v651, 0.0
        %v812 = vmax.f32 %v652, 0.0
        %v813 = vmax.f32 %v653, 0.0
        %v814 = vmax.f32 %v654, 0.0
        %v815 = vmax.f32 %v655, 0.0
        %v816 = vmax.f32 %v656, 0.0
        %v817 = vmax.f32 %v657, 0.0
        %v818 = vmax.f32 %v658, 0.0
        %v819 = vmax.f32 %v659, 0.0
        %v820 = vmax.f32 %v660, 0.0
        %v821 = vmax.f32 %v661, 0.0
        %v822 = vmax.f32 %v662, 0.0
        %v823 = vmax.f32 %v663, 0.0
        %v824 = vmax.f32 %v664, 0.0
        %v825 = vmax.f32 %v665, 0.0
        %v826 = vmax.f32 %v666, 0.0
        %v827 = vmax.f32 %v667, 0.0
        %v828 = vmax.f32 %v668, 0.0
        %v829 = vmax.f32 %v669, 0.0
        %v830 = vmax.f32 %v670, 0.0
        %v831 = vmax.f32 %v671, 0.0
        %v832 = vmax.f32 %v672, 0.0
        %v833 = vmax.f32 %v673, 0.0
        %v834 = vmax.f32 %v674, 0.0
        %v835 = vmax.f32 %v675, 0.0
        %v836 = vmax.f32 %v676, 0.0
        %v837 = vmax.f32 %v677, 0.0
        %v838 = vmax.f32 %v678, 0.0
        %v839 = vmax.f32 %v679, 0.0
        %v840 = vmax.f32 %v680, 0.0
        %v841 = vmax.f32 %v681, 0.0
        %v842 = vmax.f32 %v682, 0.0
        %v843 = vmax.f32 %v683, 0.0
        %v844 = vmax.f32 %v684, 0.0
        %v845 = vmax.f32 %v685, 0.0
        %v846 = vmax.f32 %v686, 0.0
        %v847 = vmax.f32 %v687, 0.0
        %v848 = vmax.f32 %v688, 0.0
        %v849 = vmax.f32 %v689, 0.0
        %v850 = vmax.f32 %v690, 0.0
        %v851 = vmax.f32 %v691, 0.0
        %v852 = vmax.f32 %v692, 0.0
        %v853 = vmax.f32 %v693, 0.0
        %v854 = vmax.f32 %v694, 0.0
        %v855 = vmax.f32 %v695, 0.0
        %v856 = vmax.f32 %v696, 0.0
        %v857 = vmax.f32 %v697, 0.0
        %v858 = vmax.f32 %v698, 0.0
        %v859 = vmax.f32 %v699, 0.0
        %v860 = vmax.f32 %v700, 0.0
        %v861 = vmax.f32 %v701, 0.0
        %v862 = vmax.f32 %v702, 0.0
        %v863 = vmax.f32 %v703, 0.0
        %v864 = vmax.f32 %v704, 0.0
        %v865 = vmax.f32 %v705, 0.0
        %v866 = vmax.f32 %v706, 0.0
        %v867 = vmax.f32 %v707, 0.0
        %v868 = vmax.f32 %v708, 0.0
        %v869 = vmax.f32 %v709, 0.0
        %v870 = vmax.f32 %v710, 0.0
        %v871 = vmax.f32 %v711, 0.0
        %v872 = vmax.f32 %v712, 0.0
        %v873 = vmax.f32 %v713, 0.0
        %v874 = vmax.f32 %v714, 0.0
        %v875 = vmax.f32 %v715, 0.0
        %v876 = vmax.f32 %v716, 0.0
        %v877 = vmax.f32 %v717, 0.0
        %v878 = vmax.f32 %v718, 0.0
        %v879 = vmax.f32 %v719, 0.0
        %v880 = vmax.f32 %v720, 0.0
        %v881 = vmax.f32 %v721, 0.0
        %v882 = vmax.f32 %v722, 0.0
        %v883 = vmax.f32 %v723, 0.0
        %v884 = vmax.f32 %v724, 0.0
        %v885 = vmax.f32 %v725, 0.0
        %v886 = vmax.f32 %v726, 0.0
        %v887 = vmax.f32 %v727, 0.0
        %v888 = vmax.f32 %v728, 0.0
        %v889 = vmax.f32 %v729, 0.0
        %v890 = vmax.f32 %v730, 0.0
        %v891 = vmax.f32 %v731, 0.0
        %v892 = vmax.f32 %v732, 0.0
        %v893 = vmax.f32 %v733, 0.0
        %v894 = vmax.f32 %v734, 0.0
        %v895 = vmax.f32 %v735, 0.0
        %v896 = vmax.f32 %v736, 0.0
        %v897 = vmax.f32 %v737, 0.0
        %v898 = vmax.f32 %v738, 0.0
        %v899 = vmax.f32 %v739, 0.0
        %v900 = vmax.f32 %v740, 0.0
        %v901 = vmax.f32 %v741, 0.0
        %v902 = vmax.f32 %v742, 0.0
        %v903 = vmax.f32 %v743, 0.0
        %v904 = vmax.f32 %v744, 0.0
        %v905 = vmax.f32 %v745, 0.0
        %v906 = vmax.f32 %v746, 0.0
        %v907 = vmax.f32 %v747, 0.0
        %v908 = vmax.f32 %v748, 0.0
        %v909 = vmax.f32 %v749, 0.0
        %v910 = vmax.f32 %v750, 0.0
        %v911 = vld [vmem:[%s3] sm:$0xff]
        %v912 = vld [vmem:[%s3 + $0x8] sm:$0xff]
        %v913 = vld [vmem:[%s3 + $0x10] sm:$0xff]
        %v914 = vld [vmem:[%s3 + $0x18] sm:$0xff]
        %v915 = vld [vmem:[%s3 + $0x20] sm:$0xf]
        %917 = vset.pattern.permute.xlu0 0
        %918 = vperm.xlu0 %917, %v911
        %v919 = vpop.permute.xlu0 %918
        %922 = vset.pattern.permute.xlu0 0
        %923 = vperm.xlu0 %922, %v912
        %v924 = vpop.permute.xlu0 %923
        %927 = vset.pattern.permute.xlu0 0
        %928 = vperm.xlu0 %927, %v913
        %v929 = vpop.permute.xlu0 %928
        %932 = vset.pattern.permute.xlu0 0
        %933 = vperm.xlu0 %932, %v914
        %v934 = vpop.permute.xlu0 %933
        %937 = vset.pattern.permute.xlu0 0
        %938 = vperm.xlu0 %937, %v915
        %v939 = vpop.permute.xlu0 %938
        %v941 = vmul.f32 %v751, %v919
        %v942 = vmul.f32 %v752, %v919
        %v943 = vmul.f32 %v753, %v919
        %v944 = vmul.f32 %v754, %v919
        %v945 = vmul.f32 %v755, %v919
        %v946 = vmul.f32 %v756, %v919
        %v947 = vmul.f32 %v757, %v919
        %v948 = vmul.f32 %v758, %v919
        %v949 = vmul.f32 %v759, %v919
        %v950 = vmul.f32 %v760, %v919
        %v951 = vmul.f32 %v761, %v919
        %v952 = vmul.f32 %v762, %v919
        %v953 = vmul.f32 %v763, %v919
        %v954 = vmul.f32 %v764, %v919
        %v955 = vmul.f32 %v765, %v919
        %v956 = vmul.f32 %v766, %v919
        %v957 = vmul.f32 %v767, %v919
        %v958 = vmul.f32 %v768, %v919
        %v959 = vmul.f32 %v769, %v919
        %v960 = vmul.f32 %v770, %v919
        %v961 = vmul.f32 %v771, %v919
        %v962 = vmul.f32 %v772, %v919
        %v963 = vmul.f32 %v773, %v919
        %v964 = vmul.f32 %v774, %v919
        %v965 = vmul.f32 %v775, %v919
        %v966 = vmul.f32 %v776, %v919
        %v967 = vmul.f32 %v777, %v919
        %v968 = vmul.f32 %v778, %v919
        %v969 = vmul.f32 %v779, %v919
        %v970 = vmul.f32 %v780, %v919
        %v971 = vmul.f32 %v781, %v919
        %v972 = vmul.f32 %v782, %v919
        %v973 = vmul.f32 %v783, %v924
        %v974 = vmul.f32 %v784, %v924
        %v975 = vmul.f32 %v785, %v924
        %v976 = vmul.f32 %v786, %v924
        %v977 = vmul.f32 %v787, %v924
        %v978 = vmul.f32 %v788, %v924
        %v979 = vmul.f32 %v789, %v924
        %v980 = vmul.f32 %v790, %v924
        %v981 = vmul.f32 %v791, %v924
        %v982 = vmul.f32 %v792, %v924
        %v983 = vmul.f32 %v793, %v924
        %v984 = vmul.f32 %v794, %v924
        %v985 = vmul.f32 %v795, %v924
        %v986 = vmul.f32 %v796, %v924
        %v987 = vmul.f32 %v797, %v924
        %v988 = vmul.f32 %v798, %v924
        %v989 = vmul.f32 %v799, %v924
        %v990 = vmul.f32 %v800, %v924
        %v991 = vmul.f32 %v801, %v924
        %v992 = vmul.f32 %v802, %v924
        %v993 = vmul.f32 %v803, %v924
        %v994 = vmul.f32 %v804, %v924
        %v995 = vmul.f32 %v805, %v924
        %v996 = vmul.f32 %v806, %v924
        %v997 = vmul.f32 %v807, %v924
        %v998 = vmul.f32 %v808, %v924
        %v999 = vmul.f32 %v809, %v924
        %v1000 = vmul.f32 %v810, %v924
        %v1001 = vmul.f32 %v811, %v924
        %v1002 = vmul.f32 %v812, %v924
        %v1003 = vmul.f32 %v813, %v924
        %v1004 = vmul.f32 %v814, %v924
        %v1005 = vmul.f32 %v815, %v929
        %v1006 = vmul.f32 %v816, %v929
        %v1007 = vmul.f32 %v817, %v929
        %v1008 = vmul.f32 %v818, %v929
        %v1009 = vmul.f32 %v819, %v929
        %v1010 = vmul.f32 %v820, %v929
        %v1011 = vmul.f32 %v821, %v929
        %v1012 = vmul.f32 %v822, %v929
        %v1013 = vmul.f32 %v823, %v929
        %v1014 = vmul.f32 %v824, %v929
        %v1015 = vmul.f32 %v825, %v929
        %v1016 = vmul.f32 %v826, %v929
        %v1017 = vmul.f32 %v827, %v929
        %v1018 = vmul.f32 %v828, %v929
        %v1019 = vmul.f32 %v829, %v929
        %v1020 = vmul.f32 %v830, %v929
        %v1021 = vmul.f32 %v831, %v929
        %v1022 = vmul.f32 %v832, %v929
        %v1023 = vmul.f32 %v833, %v929
        %v1024 = vmul.f32 %v834, %v929
        %v1025 = vmul.f32 %v835, %v929
        %v1026 = vmul.f32 %v836, %v929
        %v1027 = vmul.f32 %v837, %v929
        %v1028 = vmul.f32 %v838, %v929
        %v1029 = vmul.f32 %v839, %v929
        %v1030 = vmul.f32 %v840, %v929
        %v1031 = vmul.f32 %v841, %v929
        %v1032 = vmul.f32 %v842, %v929
        %v1033 = vmul.f32 %v843, %v929
        %v1034 = vmul.f32 %v844, %v929
        %v1035 = vmul.f32 %v845, %v929
        %v1036 = vmul.f32 %v846, %v929
        %v1037 = vmul.f32 %v847, %v934
        %v1038 = vmul.f32 %v848, %v934
        %v1039 = vmul.f32 %v849, %v934
        %v1040 = vmul.f32 %v850, %v934
        %v1041 = vmul.f32 %v851, %v934
        %v1042 = vmul.f32 %v852, %v934
        %v1043 = vmul.f32 %v853, %v934
        %v1044 = vmul.f32 %v854, %v934
        %v1045 = vmul.f32 %v855, %v934
        %v1046 = vmul.f32 %v856, %v934
        %v1047 = vmul.f32 %v857, %v934
        %v1048 = vmul.f32 %v858, %v934
        %v1049 = vmul.f32 %v859, %v934
        %v1050 = vmul.f32 %v860, %v934
        %v1051 = vmul.f32 %v861, %v934
        %v1052 = vmul.f32 %v862, %v934
        %v1053 = vmul.f32 %v863, %v934
        %v1054 = vmul.f32 %v864, %v934
        %v1055 = vmul.f32 %v865, %v934
        %v1056 = vmul.f32 %v866, %v934
        %v1057 = vmul.f32 %v867, %v934
        %v1058 = vmul.f32 %v868, %v934
        %v1059 = vmul.f32 %v869, %v934
        %v1060 = vmul.f32 %v870, %v934
        %v1061 = vmul.f32 %v871, %v934
        %v1062 = vmul.f32 %v872, %v934
        %v1063 = vmul.f32 %v873, %v934
        %v1064 = vmul.f32 %v874, %v934
        %v1065 = vmul.f32 %v875, %v934
        %v1066 = vmul.f32 %v876, %v934
        %v1067 = vmul.f32 %v877, %v934
        %v1068 = vmul.f32 %v878, %v934
        %v1069 = vmul.f32 %v879, %v939
        %v1070 = vmul.f32 %v880, %v939
        %v1071 = vmul.f32 %v881, %v939
        %v1072 = vmul.f32 %v882, %v939
        %v1073 = vmul.f32 %v883, %v939
        %v1074 = vmul.f32 %v884, %v939
        %v1075 = vmul.f32 %v885, %v939
        %v1076 = vmul.f32 %v886, %v939
        %v1077 = vmul.f32 %v887, %v939
        %v1078 = vmul.f32 %v888, %v939
        %v1079 = vmul.f32 %v889, %v939
        %v1080 = vmul.f32 %v890, %v939
        %v1081 = vmul.f32 %v891, %v939
        %v1082 = vmul.f32 %v892, %v939
        %v1083 = vmul.f32 %v893, %v939
        %v1084 = vmul.f32 %v894, %v939
        %v1085 = vmul.f32 %v895, %v939
        %v1086 = vmul.f32 %v896, %v939
        %v1087 = vmul.f32 %v897, %v939
        %v1088 = vmul.f32 %v898, %v939
        %v1089 = vmul.f32 %v899, %v939
        %v1090 = vmul.f32 %v900, %v939
        %v1091 = vmul.f32 %v901, %v939
        %v1092 = vmul.f32 %v902, %v939
        %v1093 = vmul.f32 %v903, %v939
        %v1094 = vmul.f32 %v904, %v939
        %v1095 = vmul.f32 %v905, %v939
        %v1096 = vmul.f32 %v906, %v939
        %v1097 = vmul.f32 %v907, %v939
        %v1098 = vmul.f32 %v908, %v939
        %v1099 = vmul.f32 %v909, %v939
        %v1100 = vmul.f32 %v910, %v939
        %v1101 = vld [vmem:[%s4] sm:$0xff]
        %v1102 = vld [vmem:[%s4 + $0x8] sm:$0xff]
        %v1103 = vld [vmem:[%s4 + $0x10] sm:$0xff]
        %v1104 = vld [vmem:[%s4 + $0x18] sm:$0xff]
        %v1105 = vld [vmem:[%s4 + $0x20] sm:$0xf]
        %1107 = vset.pattern.permute.xlu0 0
        %1108 = vperm.xlu0 %1107, %v1101
        %v1109 = vpop.permute.xlu0 %1108
        %1112 = vset.pattern.permute.xlu0 0
        %1113 = vperm.xlu0 %1112, %v1102
        %v1114 = vpop.permute.xlu0 %1113
        %1117 = vset.pattern.permute.xlu0 0
        %1118 = vperm.xlu0 %1117, %v1103
        %v1119 = vpop.permute.xlu0 %1118
        %1122 = vset.pattern.permute.xlu0 0
        %1123 = vperm.xlu0 %1122, %v1104
        %v1124 = vpop.permute.xlu0 %1123
        %1127 = vset.pattern.permute.xlu0 0
        %1128 = vperm.xlu0 %1127, %v1105
        %v1129 = vpop.permute.xlu0 %1128
        %v1131 = vadd.f32 %v941, %v1109
        %v1132 = vadd.f32 %v942, %v1109
        %v1133 = vadd.f32 %v943, %v1109
        %v1134 = vadd.f32 %v944, %v1109
        %v1135 = vadd.f32 %v945, %v1109
        %v1136 = vadd.f32 %v946, %v1109
        %v1137 = vadd.f32 %v947, %v1109
        %v1138 = vadd.f32 %v948, %v1109
        %v1139 = vadd.f32 %v949, %v1109
        %v1140 = vadd.f32 %v950, %v1109
        %v1141 = vadd.f32 %v951, %v1109
        %v1142 = vadd.f32 %v952, %v1109
        %v1143 = vadd.f32 %v953, %v1109
        %v1144 = vadd.f32 %v954, %v1109
        %v1145 = vadd.f32 %v955, %v1109
        %v1146 = vadd.f32 %v956, %v1109
        %v1147 = vadd.f32 %v957, %v1109
        %v1148 = vadd.f32 %v958, %v1109
        %v1149 = vadd.f32 %v959, %v1109
        %v1150 = vadd.f32 %v960, %v1109
        %v1151 = vadd.f32 %v961, %v1109
        %v1152 = vadd.f32 %v962, %v1109
        %v1153 = vadd.f32 %v963, %v1109
        %v1154 = vadd.f32 %v964, %v1109
        %v1155 = vadd.f32 %v965, %v1109
        %v1156 = vadd.f32 %v966, %v1109
        %v1157 = vadd.f32 %v967, %v1109
        %v1158 = vadd.f32 %v968, %v1109
        %v1159 = vadd.f32 %v969, %v1109
        %v1160 = vadd.f32 %v970, %v1109
        %v1161 = vadd.f32 %v971, %v1109
        %v1162 = vadd.f32 %v972, %v1109
        %v1163 = vadd.f32 %v973, %v1114
        %v1164 = vadd.f32 %v974, %v1114
        %v1165 = vadd.f32 %v975, %v1114
        %v1166 = vadd.f32 %v976, %v1114
        %v1167 = vadd.f32 %v977, %v1114
        %v1168 = vadd.f32 %v978, %v1114
        %v1169 = vadd.f32 %v979, %v1114
        %v1170 = vadd.f32 %v980, %v1114
        %v1171 = vadd.f32 %v981, %v1114
        %v1172 = vadd.f32 %v982, %v1114
        %v1173 = vadd.f32 %v983, %v1114
        %v1174 = vadd.f32 %v984, %v1114
        %v1175 = vadd.f32 %v985, %v1114
        %v1176 = vadd.f32 %v986, %v1114
        %v1177 = vadd.f32 %v987, %v1114
        %v1178 = vadd.f32 %v988, %v1114
        %v1179 = vadd.f32 %v989, %v1114
        %v1180 = vadd.f32 %v990, %v1114
        %v1181 = vadd.f32 %v991, %v1114
        %v1182 = vadd.f32 %v992, %v1114
        %v1183 = vadd.f32 %v993, %v1114
        %v1184 = vadd.f32 %v994, %v1114
        %v1185 = vadd.f32 %v995, %v1114
        %v1186 = vadd.f32 %v996, %v1114
        %v1187 = vadd.f32 %v997, %v1114
        %v1188 = vadd.f32 %v998, %v1114
        %v1189 = vadd.f32 %v999, %v1114
        %v1190 = vadd.f32 %v1000, %v1114
        %v1191 = vadd.f32 %v1001, %v1114
        %v1192 = vadd.f32 %v1002, %v1114
        %v1193 = vadd.f32 %v1003, %v1114
        %v1194 = vadd.f32 %v1004, %v1114
        %v1195 = vadd.f32 %v1005, %v1119
        %v1196 = vadd.f32 %v1006, %v1119
        %v1197 = vadd.f32 %v1007, %v1119
        %v1198 = vadd.f32 %v1008, %v1119
        %v1199 = vadd.f32 %v1009, %v1119
        %v1200 = vadd.f32 %v1010, %v1119
        %v1201 = vadd.f32 %v1011, %v1119
        %v1202 = vadd.f32 %v1012, %v1119
        %v1203 = vadd.f32 %v1013, %v1119
        %v1204 = vadd.f32 %v1014, %v1119
        %v1205 = vadd.f32 %v1015, %v1119
        %v1206 = vadd.f32 %v1016, %v1119
        %v1207 = vadd.f32 %v1017, %v1119
        %v1208 = vadd.f32 %v1018, %v1119
        %v1209 = vadd.f32 %v1019, %v1119
        %v1210 = vadd.f32 %v1020, %v1119
        %v1211 = vadd.f32 %v1021, %v1119
        %v1212 = vadd.f32 %v1022, %v1119
        %v1213 = vadd.f32 %v1023, %v1119
        %v1214 = vadd.f32 %v1024, %v1119
        %v1215 = vadd.f32 %v1025, %v1119
        %v1216 = vadd.f32 %v1026, %v1119
        %v1217 = vadd.f32 %v1027, %v1119
        %v1218 = vadd.f32 %v1028, %v1119
        %v1219 = vadd.f32 %v1029, %v1119
        %v1220 = vadd.f32 %v1030, %v1119
        %v1221 = vadd.f32 %v1031, %v1119
        %v1222 = vadd.f32 %v1032, %v1119
        %v1223 = vadd.f32 %v1033, %v1119
        %v1224 = vadd.f32 %v1034, %v1119
        %v1225 = vadd.f32 %v1035, %v1119
        %v1226 = vadd.f32 %v1036, %v1119
        %v1227 = vadd.f32 %v1037, %v1124
        %v1228 = vadd.f32 %v1038, %v1124
        %v1229 = vadd.f32 %v1039, %v1124
        %v1230 = vadd.f32 %v1040, %v1124
        %v1231 = vadd.f32 %v1041, %v1124
        %v1232 = vadd.f32 %v1042, %v1124
        %v1233 = vadd.f32 %v1043, %v1124
        %v1234 = vadd.f32 %v1044, %v1124
        %v1235 = vadd.f32 %v1045, %v1124
        %v1236 = vadd.f32 %v1046, %v1124
        %v1237 = vadd.f32 %v1047, %v1124
        %v1238 = vadd.f32 %v1048, %v1124
        %v1239 = vadd.f32 %v1049, %v1124
        %v1240 = vadd.f32 %v1050, %v1124
        %v1241 = vadd.f32 %v1051, %v1124
        %v1242 = vadd.f32 %v1052, %v1124
        %v1243 = vadd.f32 %v1053, %v1124
        %v1244 = vadd.f32 %v1054, %v1124
        %v1245 = vadd.f32 %v1055, %v1124
        %v1246 = vadd.f32 %v1056, %v1124
        %v1247 = vadd.f32 %v1057, %v1124
        %v1248 = vadd.f32 %v1058, %v1124
        %v1249 = vadd.f32 %v1059, %v1124
        %v1250 = vadd.f32 %v1060, %v1124
        %v1251 = vadd.f32 %v1061, %v1124
        %v1252 = vadd.f32 %v1062, %v1124
        %v1253 = vadd.f32 %v1063, %v1124
        %v1254 = vadd.f32 %v1064, %v1124
        %v1255 = vadd.f32 %v1065, %v1124
        %v1256 = vadd.f32 %v1066, %v1124
        %v1257 = vadd.f32 %v1067, %v1124
        %v1258 = vadd.f32 %v1068, %v1124
        %v1259 = vadd.f32 %v1069, %v1129
        %v1260 = vadd.f32 %v1070, %v1129
        %v1261 = vadd.f32 %v1071, %v1129
        %v1262 = vadd.f32 %v1072, %v1129
        %v1263 = vadd.f32 %v1073, %v1129
        %v1264 = vadd.f32 %v1074, %v1129
        %v1265 = vadd.f32 %v1075, %v1129
        %v1266 = vadd.f32 %v1076, %v1129
        %v1267 = vadd.f32 %v1077, %v1129
        %v1268 = vadd.f32 %v1078, %v1129
        %v1269 = vadd.f32 %v1079, %v1129
        %v1270 = vadd.f32 %v1080, %v1129
        %v1271 = vadd.f32 %v1081, %v1129
        %v1272 = vadd.f32 %v1082, %v1129
        %v1273 = vadd.f32 %v1083, %v1129
        %v1274 = vadd.f32 %v1084, %v1129
        %v1275 = vadd.f32 %v1085, %v1129
        %v1276 = vadd.f32 %v1086, %v1129
        %v1277 = vadd.f32 %v1087, %v1129
        %v1278 = vadd.f32 %v1088, %v1129
        %v1279 = vadd.f32 %v1089, %v1129
        %v1280 = vadd.f32 %v1090, %v1129
        %v1281 = vadd.f32 %v1091, %v1129
        %v1282 = vadd.f32 %v1092, %v1129
        %v1283 = vadd.f32 %v1093, %v1129
        %v1284 = vadd.f32 %v1094, %v1129
        %v1285 = vadd.f32 %v1095, %v1129
        %v1286 = vadd.f32 %v1096, %v1129
        %v1287 = vadd.f32 %v1097, %v1129
        %v1288 = vadd.f32 %v1098, %v1129
        %v1289 = vadd.f32 %v1099, %v1129
        %v1290 = vadd.f32 %v1100, %v1129
        %vm1291 = vcmp.lt.f32.partialorder %v591, -1e+29
        %vm1292 = vcmp.lt.f32.partialorder %v592, -1e+29
        %vm1293 = vcmp.lt.f32.partialorder %v593, -1e+29
        %vm1294 = vcmp.lt.f32.partialorder %v594, -1e+29
        %vm1295 = vcmp.lt.f32.partialorder %v595, -1e+29
        %vm1296 = vcmp.lt.f32.partialorder %v596, -1e+29
        %vm1297 = vcmp.lt.f32.partialorder %v597, -1e+29
        %vm1298 = vcmp.lt.f32.partialorder %v598, -1e+29
        %vm1299 = vcmp.lt.f32.partialorder %v599, -1e+29
        %vm1300 = vcmp.lt.f32.partialorder %v600, -1e+29
        %vm1301 = vcmp.lt.f32.partialorder %v601, -1e+29
        %vm1302 = vcmp.lt.f32.partialorder %v602, -1e+29
        %vm1303 = vcmp.lt.f32.partialorder %v603, -1e+29
        %vm1304 = vcmp.lt.f32.partialorder %v604, -1e+29
        %vm1305 = vcmp.lt.f32.partialorder %v605, -1e+29
        %vm1306 = vcmp.lt.f32.partialorder %v606, -1e+29
        %vm1307 = vcmp.lt.f32.partialorder %v607, -1e+29
        %vm1308 = vcmp.lt.f32.partialorder %v608, -1e+29
        %vm1309 = vcmp.lt.f32.partialorder %v609, -1e+29
        %vm1310 = vcmp.lt.f32.partialorder %v610, -1e+29
        %vm1311 = vcmp.lt.f32.partialorder %v611, -1e+29
        %vm1312 = vcmp.lt.f32.partialorder %v612, -1e+29
        %vm1313 = vcmp.lt.f32.partialorder %v613, -1e+29
        %vm1314 = vcmp.lt.f32.partialorder %v614, -1e+29
        %vm1315 = vcmp.lt.f32.partialorder %v615, -1e+29
        %vm1316 = vcmp.lt.f32.partialorder %v616, -1e+29
        %vm1317 = vcmp.lt.f32.partialorder %v617, -1e+29
        %vm1318 = vcmp.lt.f32.partialorder %v618, -1e+29
        %vm1319 = vcmp.lt.f32.partialorder %v619, -1e+29
        %vm1320 = vcmp.lt.f32.partialorder %v620, -1e+29
        %vm1321 = vcmp.lt.f32.partialorder %v621, -1e+29
        %vm1322 = vcmp.lt.f32.partialorder %v622, -1e+29
        %vm1323 = vcmp.lt.f32.partialorder %v623, -1e+29
        %vm1324 = vcmp.lt.f32.partialorder %v624, -1e+29
        %vm1325 = vcmp.lt.f32.partialorder %v625, -1e+29
        %vm1326 = vcmp.lt.f32.partialorder %v626, -1e+29
        %vm1327 = vcmp.lt.f32.partialorder %v627, -1e+29
        %vm1328 = vcmp.lt.f32.partialorder %v628, -1e+29
        %vm1329 = vcmp.lt.f32.partialorder %v629, -1e+29
        %vm1330 = vcmp.lt.f32.partialorder %v630, -1e+29
        %vm1331 = vcmp.lt.f32.partialorder %v631, -1e+29
        %vm1332 = vcmp.lt.f32.partialorder %v632, -1e+29
        %vm1333 = vcmp.lt.f32.partialorder %v633, -1e+29
        %vm1334 = vcmp.lt.f32.partialorder %v634, -1e+29
        %vm1335 = vcmp.lt.f32.partialorder %v635, -1e+29
        %vm1336 = vcmp.lt.f32.partialorder %v636, -1e+29
        %vm1337 = vcmp.lt.f32.partialorder %v637, -1e+29
        %vm1338 = vcmp.lt.f32.partialorder %v638, -1e+29
        %vm1339 = vcmp.lt.f32.partialorder %v639, -1e+29
        %vm1340 = vcmp.lt.f32.partialorder %v640, -1e+29
        %vm1341 = vcmp.lt.f32.partialorder %v641, -1e+29
        %vm1342 = vcmp.lt.f32.partialorder %v642, -1e+29
        %vm1343 = vcmp.lt.f32.partialorder %v643, -1e+29
        %vm1344 = vcmp.lt.f32.partialorder %v644, -1e+29
        %vm1345 = vcmp.lt.f32.partialorder %v645, -1e+29
        %vm1346 = vcmp.lt.f32.partialorder %v646, -1e+29
        %vm1347 = vcmp.lt.f32.partialorder %v647, -1e+29
        %vm1348 = vcmp.lt.f32.partialorder %v648, -1e+29
        %vm1349 = vcmp.lt.f32.partialorder %v649, -1e+29
        %vm1350 = vcmp.lt.f32.partialorder %v650, -1e+29
        %vm1351 = vcmp.lt.f32.partialorder %v651, -1e+29
        %vm1352 = vcmp.lt.f32.partialorder %v652, -1e+29
        %vm1353 = vcmp.lt.f32.partialorder %v653, -1e+29
        %vm1354 = vcmp.lt.f32.partialorder %v654, -1e+29
        %vm1355 = vcmp.lt.f32.partialorder %v655, -1e+29
        %vm1356 = vcmp.lt.f32.partialorder %v656, -1e+29
        %vm1357 = vcmp.lt.f32.partialorder %v657, -1e+29
        %vm1358 = vcmp.lt.f32.partialorder %v658, -1e+29
        %vm1359 = vcmp.lt.f32.partialorder %v659, -1e+29
        %vm1360 = vcmp.lt.f32.partialorder %v660, -1e+29
        %vm1361 = vcmp.lt.f32.partialorder %v661, -1e+29
        %vm1362 = vcmp.lt.f32.partialorder %v662, -1e+29
        %vm1363 = vcmp.lt.f32.partialorder %v663, -1e+29
        %vm1364 = vcmp.lt.f32.partialorder %v664, -1e+29
        %vm1365 = vcmp.lt.f32.partialorder %v665, -1e+29
        %vm1366 = vcmp.lt.f32.partialorder %v666, -1e+29
        %vm1367 = vcmp.lt.f32.partialorder %v667, -1e+29
        %vm1368 = vcmp.lt.f32.partialorder %v668, -1e+29
        %vm1369 = vcmp.lt.f32.partialorder %v669, -1e+29
        %vm1370 = vcmp.lt.f32.partialorder %v670, -1e+29
        %vm1371 = vcmp.lt.f32.partialorder %v671, -1e+29
        %vm1372 = vcmp.lt.f32.partialorder %v672, -1e+29
        %vm1373 = vcmp.lt.f32.partialorder %v673, -1e+29
        %vm1374 = vcmp.lt.f32.partialorder %v674, -1e+29
        %vm1375 = vcmp.lt.f32.partialorder %v675, -1e+29
        %vm1376 = vcmp.lt.f32.partialorder %v676, -1e+29
        %vm1377 = vcmp.lt.f32.partialorder %v677, -1e+29
        %vm1378 = vcmp.lt.f32.partialorder %v678, -1e+29
        %vm1379 = vcmp.lt.f32.partialorder %v679, -1e+29
        %vm1380 = vcmp.lt.f32.partialorder %v680, -1e+29
        %vm1381 = vcmp.lt.f32.partialorder %v681, -1e+29
        %vm1382 = vcmp.lt.f32.partialorder %v682, -1e+29
        %vm1383 = vcmp.lt.f32.partialorder %v683, -1e+29
        %vm1384 = vcmp.lt.f32.partialorder %v684, -1e+29
        %vm1385 = vcmp.lt.f32.partialorder %v685, -1e+29
        %vm1386 = vcmp.lt.f32.partialorder %v686, -1e+29
        %vm1387 = vcmp.lt.f32.partialorder %v687, -1e+29
        %vm1388 = vcmp.lt.f32.partialorder %v688, -1e+29
        %vm1389 = vcmp.lt.f32.partialorder %v689, -1e+29
        %vm1390 = vcmp.lt.f32.partialorder %v690, -1e+29
        %vm1391 = vcmp.lt.f32.partialorder %v691, -1e+29
        %vm1392 = vcmp.lt.f32.partialorder %v692, -1e+29
        %vm1393 = vcmp.lt.f32.partialorder %v693, -1e+29
        %vm1394 = vcmp.lt.f32.partialorder %v694, -1e+29
        %vm1395 = vcmp.lt.f32.partialorder %v695, -1e+29
        %vm1396 = vcmp.lt.f32.partialorder %v696, -1e+29
        %vm1397 = vcmp.lt.f32.partialorder %v697, -1e+29
        %vm1398 = vcmp.lt.f32.partialorder %v698, -1e+29
        %vm1399 = vcmp.lt.f32.partialorder %v699, -1e+29
        %vm1400 = vcmp.lt.f32.partialorder %v700, -1e+29
        %vm1401 = vcmp.lt.f32.partialorder %v701, -1e+29
        %vm1402 = vcmp.lt.f32.partialorder %v702, -1e+29
        %vm1403 = vcmp.lt.f32.partialorder %v703, -1e+29
        %vm1404 = vcmp.lt.f32.partialorder %v704, -1e+29
        %vm1405 = vcmp.lt.f32.partialorder %v705, -1e+29
        %vm1406 = vcmp.lt.f32.partialorder %v706, -1e+29
        %vm1407 = vcmp.lt.f32.partialorder %v707, -1e+29
        %vm1408 = vcmp.lt.f32.partialorder %v708, -1e+29
        %vm1409 = vcmp.lt.f32.partialorder %v709, -1e+29
        %vm1410 = vcmp.lt.f32.partialorder %v710, -1e+29
        %vm1411 = vcmp.lt.f32.partialorder %v711, -1e+29
        %vm1412 = vcmp.lt.f32.partialorder %v712, -1e+29
        %vm1413 = vcmp.lt.f32.partialorder %v713, -1e+29
        %vm1414 = vcmp.lt.f32.partialorder %v714, -1e+29
        %vm1415 = vcmp.lt.f32.partialorder %v715, -1e+29
        %vm1416 = vcmp.lt.f32.partialorder %v716, -1e+29
        %vm1417 = vcmp.lt.f32.partialorder %v717, -1e+29
        %vm1418 = vcmp.lt.f32.partialorder %v718, -1e+29
        %vm1419 = vcmp.lt.f32.partialorder %v719, -1e+29
        %vm1420 = vcmp.lt.f32.partialorder %v720, -1e+29
        %vm1421 = vcmp.lt.f32.partialorder %v721, -1e+29
        %vm1422 = vcmp.lt.f32.partialorder %v722, -1e+29
        %vm1423 = vcmp.lt.f32.partialorder %v723, -1e+29
        %vm1424 = vcmp.lt.f32.partialorder %v724, -1e+29
        %vm1425 = vcmp.lt.f32.partialorder %v725, -1e+29
        %vm1426 = vcmp.lt.f32.partialorder %v726, -1e+29
        %vm1427 = vcmp.lt.f32.partialorder %v727, -1e+29
        %vm1428 = vcmp.lt.f32.partialorder %v728, -1e+29
        %vm1429 = vcmp.lt.f32.partialorder %v729, -1e+29
        %vm1430 = vcmp.lt.f32.partialorder %v730, -1e+29
        %vm1431 = vcmp.lt.f32.partialorder %v731, -1e+29
        %vm1432 = vcmp.lt.f32.partialorder %v732, -1e+29
        %vm1433 = vcmp.lt.f32.partialorder %v733, -1e+29
        %vm1434 = vcmp.lt.f32.partialorder %v734, -1e+29
        %vm1435 = vcmp.lt.f32.partialorder %v735, -1e+29
        %vm1436 = vcmp.lt.f32.partialorder %v736, -1e+29
        %vm1437 = vcmp.lt.f32.partialorder %v737, -1e+29
        %vm1438 = vcmp.lt.f32.partialorder %v738, -1e+29
        %vm1439 = vcmp.lt.f32.partialorder %v739, -1e+29
        %vm1440 = vcmp.lt.f32.partialorder %v740, -1e+29
        %vm1441 = vcmp.lt.f32.partialorder %v741, -1e+29
        %vm1442 = vcmp.lt.f32.partialorder %v742, -1e+29
        %vm1443 = vcmp.lt.f32.partialorder %v743, -1e+29
        %vm1444 = vcmp.lt.f32.partialorder %v744, -1e+29
        %vm1445 = vcmp.lt.f32.partialorder %v745, -1e+29
        %vm1446 = vcmp.lt.f32.partialorder %v746, -1e+29
        %vm1447 = vcmp.lt.f32.partialorder %v747, -1e+29
        %vm1448 = vcmp.lt.f32.partialorder %v748, -1e+29
        %vm1449 = vcmp.lt.f32.partialorder %v749, -1e+29
        %vm1450 = vcmp.lt.f32.partialorder %v750, -1e+29
        %v1451 = vsel %vm1291, 0.0, %v1131
        %v1452 = vsel %vm1292, 0.0, %v1132
        %v1453 = vsel %vm1293, 0.0, %v1133
        %v1454 = vsel %vm1294, 0.0, %v1134
        %v1455 = vsel %vm1295, 0.0, %v1135
        %v1456 = vsel %vm1296, 0.0, %v1136
        %v1457 = vsel %vm1297, 0.0, %v1137
        %v1458 = vsel %vm1298, 0.0, %v1138
        %v1459 = vsel %vm1299, 0.0, %v1139
        %v1460 = vsel %vm1300, 0.0, %v1140
        %v1461 = vsel %vm1301, 0.0, %v1141
        %v1462 = vsel %vm1302, 0.0, %v1142
        %v1463 = vsel %vm1303, 0.0, %v1143
        %v1464 = vsel %vm1304, 0.0, %v1144
        %v1465 = vsel %vm1305, 0.0, %v1145
        %v1466 = vsel %vm1306, 0.0, %v1146
        %v1467 = vsel %vm1307, 0.0, %v1147
        %v1468 = vsel %vm1308, 0.0, %v1148
        %v1469 = vsel %vm1309, 0.0, %v1149
        %v1470 = vsel %vm1310, 0.0, %v1150
        %v1471 = vsel %vm1311, 0.0, %v1151
        %v1472 = vsel %vm1312, 0.0, %v1152
        %v1473 = vsel %vm1313, 0.0, %v1153
        %v1474 = vsel %vm1314, 0.0, %v1154
        %v1475 = vsel %vm1315, 0.0, %v1155
        %v1476 = vsel %vm1316, 0.0, %v1156
        %v1477 = vsel %vm1317, 0.0, %v1157
        %v1478 = vsel %vm1318, 0.0, %v1158
        %v1479 = vsel %vm1319, 0.0, %v1159
        %v1480 = vsel %vm1320, 0.0, %v1160
        %v1481 = vsel %vm1321, 0.0, %v1161
        %v1482 = vsel %vm1322, 0.0, %v1162
        %v1483 = vsel %vm1323, 0.0, %v1163
        %v1484 = vsel %vm1324, 0.0, %v1164
        %v1485 = vsel %vm1325, 0.0, %v1165
        %v1486 = vsel %vm1326, 0.0, %v1166
        %v1487 = vsel %vm1327, 0.0, %v1167
        %v1488 = vsel %vm1328, 0.0, %v1168
        %v1489 = vsel %vm1329, 0.0, %v1169
        %v1490 = vsel %vm1330, 0.0, %v1170
        %v1491 = vsel %vm1331, 0.0, %v1171
        %v1492 = vsel %vm1332, 0.0, %v1172
        %v1493 = vsel %vm1333, 0.0, %v1173
        %v1494 = vsel %vm1334, 0.0, %v1174
        %v1495 = vsel %vm1335, 0.0, %v1175
        %v1496 = vsel %vm1336, 0.0, %v1176
        %v1497 = vsel %vm1337, 0.0, %v1177
        %v1498 = vsel %vm1338, 0.0, %v1178
        %v1499 = vsel %vm1339, 0.0, %v1179
        %v1500 = vsel %vm1340, 0.0, %v1180
        %v1501 = vsel %vm1341, 0.0, %v1181
        %v1502 = vsel %vm1342, 0.0, %v1182
        %v1503 = vsel %vm1343, 0.0, %v1183
        %v1504 = vsel %vm1344, 0.0, %v1184
        %v1505 = vsel %vm1345, 0.0, %v1185
        %v1506 = vsel %vm1346, 0.0, %v1186
        %v1507 = vsel %vm1347, 0.0, %v1187
        %v1508 = vsel %vm1348, 0.0, %v1188
        %v1509 = vsel %vm1349, 0.0, %v1189
        %v1510 = vsel %vm1350, 0.0, %v1190
        %v1511 = vsel %vm1351, 0.0, %v1191
        %v1512 = vsel %vm1352, 0.0, %v1192
        %v1513 = vsel %vm1353, 0.0, %v1193
        %v1514 = vsel %vm1354, 0.0, %v1194
        %v1515 = vsel %vm1355, 0.0, %v1195
        %v1516 = vsel %vm1356, 0.0, %v1196
        %v1517 = vsel %vm1357, 0.0, %v1197
        %v1518 = vsel %vm1358, 0.0, %v1198
        %v1519 = vsel %vm1359, 0.0, %v1199
        %v1520 = vsel %vm1360, 0.0, %v1200
        %v1521 = vsel %vm1361, 0.0, %v1201
        %v1522 = vsel %vm1362, 0.0, %v1202
        %v1523 = vsel %vm1363, 0.0, %v1203
        %v1524 = vsel %vm1364, 0.0, %v1204
        %v1525 = vsel %vm1365, 0.0, %v1205
        %v1526 = vsel %vm1366, 0.0, %v1206
        %v1527 = vsel %vm1367, 0.0, %v1207
        %v1528 = vsel %vm1368, 0.0, %v1208
        %v1529 = vsel %vm1369, 0.0, %v1209
        %v1530 = vsel %vm1370, 0.0, %v1210
        %v1531 = vsel %vm1371, 0.0, %v1211
        %v1532 = vsel %vm1372, 0.0, %v1212
        %v1533 = vsel %vm1373, 0.0, %v1213
        %v1534 = vsel %vm1374, 0.0, %v1214
        %v1535 = vsel %vm1375, 0.0, %v1215
        %v1536 = vsel %vm1376, 0.0, %v1216
        %v1537 = vsel %vm1377, 0.0, %v1217
        %v1538 = vsel %vm1378, 0.0, %v1218
        %v1539 = vsel %vm1379, 0.0, %v1219
        %v1540 = vsel %vm1380, 0.0, %v1220
        %v1541 = vsel %vm1381, 0.0, %v1221
        %v1542 = vsel %vm1382, 0.0, %v1222
        %v1543 = vsel %vm1383, 0.0, %v1223
        %v1544 = vsel %vm1384, 0.0, %v1224
        %v1545 = vsel %vm1385, 0.0, %v1225
        %v1546 = vsel %vm1386, 0.0, %v1226
        %v1547 = vsel %vm1387, 0.0, %v1227
        %v1548 = vsel %vm1388, 0.0, %v1228
        %v1549 = vsel %vm1389, 0.0, %v1229
        %v1550 = vsel %vm1390, 0.0, %v1230
        %v1551 = vsel %vm1391, 0.0, %v1231
        %v1552 = vsel %vm1392, 0.0, %v1232
        %v1553 = vsel %vm1393, 0.0, %v1233
        %v1554 = vsel %vm1394, 0.0, %v1234
        %v1555 = vsel %vm1395, 0.0, %v1235
        %v1556 = vsel %vm1396, 0.0, %v1236
        %v1557 = vsel %vm1397, 0.0, %v1237
        %v1558 = vsel %vm1398, 0.0, %v1238
        %v1559 = vsel %vm1399, 0.0, %v1239
        %v1560 = vsel %vm1400, 0.0, %v1240
        %v1561 = vsel %vm1401, 0.0, %v1241
        %v1562 = vsel %vm1402, 0.0, %v1242
        %v1563 = vsel %vm1403, 0.0, %v1243
        %v1564 = vsel %vm1404, 0.0, %v1244
        %v1565 = vsel %vm1405, 0.0, %v1245
        %v1566 = vsel %vm1406, 0.0, %v1246
        %v1567 = vsel %vm1407, 0.0, %v1247
        %v1568 = vsel %vm1408, 0.0, %v1248
        %v1569 = vsel %vm1409, 0.0, %v1249
        %v1570 = vsel %vm1410, 0.0, %v1250
        %v1571 = vsel %vm1411, 0.0, %v1251
        %v1572 = vsel %vm1412, 0.0, %v1252
        %v1573 = vsel %vm1413, 0.0, %v1253
        %v1574 = vsel %vm1414, 0.0, %v1254
        %v1575 = vsel %vm1415, 0.0, %v1255
        %v1576 = vsel %vm1416, 0.0, %v1256
        %v1577 = vsel %vm1417, 0.0, %v1257
        %v1578 = vsel %vm1418, 0.0, %v1258
        %v1579 = vsel %vm1419, 0.0, %v1259
        %v1580 = vsel %vm1420, 0.0, %v1260
        %v1581 = vsel %vm1421, 0.0, %v1261
        %v1582 = vsel %vm1422, 0.0, %v1262
        %v1583 = vsel %vm1423, 0.0, %v1263
        %v1584 = vsel %vm1424, 0.0, %v1264
        %v1585 = vsel %vm1425, 0.0, %v1265
        %v1586 = vsel %vm1426, 0.0, %v1266
        %v1587 = vsel %vm1427, 0.0, %v1267
        %v1588 = vsel %vm1428, 0.0, %v1268
        %v1589 = vsel %vm1429, 0.0, %v1269
        %v1590 = vsel %vm1430, 0.0, %v1270
        %v1591 = vsel %vm1431, 0.0, %v1271
        %v1592 = vsel %vm1432, 0.0, %v1272
        %v1593 = vsel %vm1433, 0.0, %v1273
        %v1594 = vsel %vm1434, 0.0, %v1274
        %v1595 = vsel %vm1435, 0.0, %v1275
        %v1596 = vsel %vm1436, 0.0, %v1276
        %v1597 = vsel %vm1437, 0.0, %v1277
        %v1598 = vsel %vm1438, 0.0, %v1278
        %v1599 = vsel %vm1439, 0.0, %v1279
        %v1600 = vsel %vm1440, 0.0, %v1280
        %v1601 = vsel %vm1441, 0.0, %v1281
        %v1602 = vsel %vm1442, 0.0, %v1282
        %v1603 = vsel %vm1443, 0.0, %v1283
        %v1604 = vsel %vm1444, 0.0, %v1284
        %v1605 = vsel %vm1445, 0.0, %v1285
        %v1606 = vsel %vm1446, 0.0, %v1286
        %v1607 = vsel %vm1447, 0.0, %v1287
        %v1608 = vsel %vm1448, 0.0, %v1288
        %v1609 = vsel %vm1449, 0.0, %v1289
        %v1610 = vsel %vm1450, 0.0, %v1290
        %v1611 = vld [vmem:[%s1] sm:$0xff]
        %v1612 = vld [vmem:[%s2] sm:$0xff]
        %1614 = vset.pattern.permute.xlu0 0
        %1615 = vperm.xlu0 %1614, %v1612
        %v1616 = vpop.permute.xlu0 %1615
        %vm1618 = vcmask 293888
        %v1620 = vsel %vm1618, %v1611, 0
        %vm1622 = vcmask 1043456
        %v1624 = vsel %vm1622, %v1579, 0
        %v1627 = vsel %vm1622, %v1580, 0
        %v1630 = vsel %vm1622, %v1581, 0
        %v1633 = vsel %vm1622, %v1582, 0
        %v1636 = vsel %vm1622, %v1583, 0
        %v1639 = vsel %vm1622, %v1584, 0
        %v1642 = vsel %vm1622, %v1585, 0
        %v1645 = vsel %vm1622, %v1586, 0
        %v1648 = vsel %vm1622, %v1587, 0
        %v1651 = vsel %vm1622, %v1588, 0
        %v1654 = vsel %vm1622, %v1589, 0
        %v1657 = vsel %vm1622, %v1590, 0
        %v1660 = vsel %vm1622, %v1591, 0
        %v1663 = vsel %vm1622, %v1592, 0
        %v1666 = vsel %vm1622, %v1593, 0
        %v1669 = vsel %vm1622, %v1594, 0
        %v1672 = vsel %vm1622, %v1595, 0
        %v1675 = vsel %vm1622, %v1596, 0
        %v1678 = vsel %vm1622, %v1597, 0
        %v1681 = vsel %vm1622, %v1598, 0
        %v1684 = vsel %vm1622, %v1599, 0
        %v1687 = vsel %vm1622, %v1600, 0
        %v1690 = vsel %vm1622, %v1601, 0
        %v1693 = vsel %vm1622, %v1602, 0
        %v1696 = vsel %vm1622, %v1603, 0
        %v1699 = vsel %vm1622, %v1604, 0
        %v1702 = vsel %vm1622, %v1605, 0
        %v1705 = vsel %vm1622, %v1606, 0
        %v1708 = vsel %vm1622, %v1607, 0
        %v1711 = vsel %vm1622, %v1608, 0
        %v1714 = vsel %vm1622, %v1609, 0
        %v1717 = vsel %vm1622, %v1610, 0
        %1719 = vmatpush.msra.mxu0 0.0
        %1720 = vmatpush.msra.mxu0 0.0
        %1721 = vmatpush.msra.mxu0 0.0
        %1722 = vmatpush.msra.mxu0 0.0
        %1723 = vmatpush.msra.mxu0 0.0
        %1724 = vmatpush.msra.mxu0 0.0
        %1725 = vmatpush.msra.mxu0 0.0
        %1726 = vmatpush.msra.mxu0 0.0
        %1727 = vmatpush.msra.mxu0 0.0
        %1728 = vmatpush.msra.mxu0 0.0
        %1729 = vmatpush.msra.mxu0 0.0
        %1730 = vmatpush.msra.mxu0 %v1624
        %1731 = vmatpush.msra.mxu0 %v1547
        %1732 = vmatpush.msra.mxu0 %v1515
        %1733 = vmatpush.msra.mxu0 %v1483
        %1734 = vmatpush.msra.mxu0 %v1451
        %1735 = vmatmul.f32.gmra.mxu0 %v1620
        %v1736 = vpop.f32.mrf.mxu0
        %v1737 = vadd.f32 %v1616, %v1736
        %1738 = vdwg.mxu0
        %1739 = vmatpush.msra.mxu0 0.0
        %1740 = vmatpush.msra.mxu0 0.0
        %1741 = vmatpush.msra.mxu0 0.0
        %1742 = vmatpush.msra.mxu0 0.0
        %1743 = vmatpush.msra.mxu0 0.0
        %1744 = vmatpush.msra.mxu0 0.0
        %1745 = vmatpush.msra.mxu0 0.0
        %1746 = vmatpush.msra.mxu0 0.0
        %1747 = vmatpush.msra.mxu0 0.0
        %1748 = vmatpush.msra.mxu0 0.0
        %1749 = vmatpush.msra.mxu0 0.0
        %1750 = vmatpush.msra.mxu0 %v1627
        %1751 = vmatpush.msra.mxu0 %v1548
        %1752 = vmatpush.msra.mxu0 %v1516
        %1753 = vmatpush.msra.mxu0 %v1484
        %1754 = vmatpush.msra.mxu0 %v1452
        %1755 = vmatmul.f32.gmra.mxu0 %v1620
        %v1756 = vpop.f32.mrf.mxu0
        %v1757 = vadd.f32 %v1616, %v1756
        %1758 = vdwg.mxu0
        %1759 = vmatpush.msra.mxu0 0.0
        %1760 = vmatpush.msra.mxu0 0.0
        %1761 = vmatpush.msra.mxu0 0.0
        %1762 = vmatpush.msra.mxu0 0.0
        %1763 = vmatpush.msra.mxu0 0.0
        %1764 = vmatpush.msra.mxu0 0.0
        %1765 = vmatpush.msra.mxu0 0.0
        %1766 = vmatpush.msra.mxu0 0.0
        %1767 = vmatpush.msra.mxu0 0.0
        %1768 = vmatpush.msra.mxu0 0.0
        %1769 = vmatpush.msra.mxu0 0.0
        %1770 = vmatpush.msra.mxu0 %v1630
        %1771 = vmatpush.msra.mxu0 %v1549
        %1772 = vmatpush.msra.mxu0 %v1517
        %1773 = vmatpush.msra.mxu0 %v1485
        %1774 = vmatpush.msra.mxu0 %v1453
        %1775 = vmatmul.f32.gmra.mxu0 %v1620
        %v1776 = vpop.f32.mrf.mxu0
        %v1777 = vadd.f32 %v1616, %v1776
        %1778 = vdwg.mxu0
        %1779 = vmatpush.msra.mxu0 0.0
        %1780 = vmatpush.msra.mxu0 0.0
        %1781 = vmatpush.msra.mxu0 0.0
        %1782 = vmatpush.msra.mxu0 0.0
        %1783 = vmatpush.msra.mxu0 0.0
        %1784 = vmatpush.msra.mxu0 0.0
        %1785 = vmatpush.msra.mxu0 0.0
        %1786 = vmatpush.msra.mxu0 0.0
        %1787 = vmatpush.msra.mxu0 0.0
        %1788 = vmatpush.msra.mxu0 0.0
        %1789 = vmatpush.msra.mxu0 0.0
        %1790 = vmatpush.msra.mxu0 %v1633
        %1791 = vmatpush.msra.mxu0 %v1550
        %1792 = vmatpush.msra.mxu0 %v1518
        %1793 = vmatpush.msra.mxu0 %v1486
        %1794 = vmatpush.msra.mxu0 %v1454
        %1795 = vmatmul.f32.gmra.mxu0 %v1620
        %v1796 = vpop.f32.mrf.mxu0
        %v1797 = vadd.f32 %v1616, %v1796
        %1798 = vdwg.mxu0
        %1799 = vmatpush.msra.mxu0 0.0
        %1800 = vmatpush.msra.mxu0 0.0
        %1801 = vmatpush.msra.mxu0 0.0
        %1802 = vmatpush.msra.mxu0 0.0
        %1803 = vmatpush.msra.mxu0 0.0
        %1804 = vmatpush.msra.mxu0 0.0
        %1805 = vmatpush.msra.mxu0 0.0
        %1806 = vmatpush.msra.mxu0 0.0
        %1807 = vmatpush.msra.mxu0 0.0
        %1808 = vmatpush.msra.mxu0 0.0
        %1809 = vmatpush.msra.mxu0 0.0
        %1810 = vmatpush.msra.mxu0 %v1636
        %1811 = vmatpush.msra.mxu0 %v1551
        %1812 = vmatpush.msra.mxu0 %v1519
        %1813 = vmatpush.msra.mxu0 %v1487
        %1814 = vmatpush.msra.mxu0 %v1455
        %1815 = vmatmul.f32.gmra.mxu0 %v1620
        %v1816 = vpop.f32.mrf.mxu0
        %v1817 = vadd.f32 %v1616, %v1816
        %1818 = vdwg.mxu0
        %1819 = vmatpush.msra.mxu0 0.0
        %1820 = vmatpush.msra.mxu0 0.0
        %1821 = vmatpush.msra.mxu0 0.0
        %1822 = vmatpush.msra.mxu0 0.0
        %1823 = vmatpush.msra.mxu0 0.0
        %1824 = vmatpush.msra.mxu0 0.0
        %1825 = vmatpush.msra.mxu0 0.0
        %1826 = vmatpush.msra.mxu0 0.0
        %1827 = vmatpush.msra.mxu0 0.0
        %1828 = vmatpush.msra.mxu0 0.0
        %1829 = vmatpush.msra.mxu0 0.0
        %1830 = vmatpush.msra.mxu0 %v1639
        %1831 = vmatpush.msra.mxu0 %v1552
        %1832 = vmatpush.msra.mxu0 %v1520
        %1833 = vmatpush.msra.mxu0 %v1488
        %1834 = vmatpush.msra.mxu0 %v1456
        %1835 = vmatmul.f32.gmra.mxu0 %v1620
        %v1836 = vpop.f32.mrf.mxu0
        %v1837 = vadd.f32 %v1616, %v1836
        %1838 = vdwg.mxu0
        %1839 = vmatpush.msra.mxu0 0.0
        %1840 = vmatpush.msra.mxu0 0.0
        %1841 = vmatpush.msra.mxu0 0.0
        %1842 = vmatpush.msra.mxu0 0.0
        %1843 = vmatpush.msra.mxu0 0.0
        %1844 = vmatpush.msra.mxu0 0.0
        %1845 = vmatpush.msra.mxu0 0.0
        %1846 = vmatpush.msra.mxu0 0.0
        %1847 = vmatpush.msra.mxu0 0.0
        %1848 = vmatpush.msra.mxu0 0.0
        %1849 = vmatpush.msra.mxu0 0.0
        %1850 = vmatpush.msra.mxu0 %v1642
        %1851 = vmatpush.msra.mxu0 %v1553
        %1852 = vmatpush.msra.mxu0 %v1521
        %1853 = vmatpush.msra.mxu0 %v1489
        %1854 = vmatpush.msra.mxu0 %v1457
        %1855 = vmatmul.f32.gmra.mxu0 %v1620
        %v1856 = vpop.f32.mrf.mxu0
        %v1857 = vadd.f32 %v1616, %v1856
        %1858 = vdwg.mxu0
        %1859 = vmatpush.msra.mxu0 0.0
        %1860 = vmatpush.msra.mxu0 0.0
        %1861 = vmatpush.msra.mxu0 0.0
        %1862 = vmatpush.msra.mxu0 0.0
        %1863 = vmatpush.msra.mxu0 0.0
        %1864 = vmatpush.msra.mxu0 0.0
        %1865 = vmatpush.msra.mxu0 0.0
        %1866 = vmatpush.msra.mxu0 0.0
        %1867 = vmatpush.msra.mxu0 0.0
        %1868 = vmatpush.msra.mxu0 0.0
        %1869 = vmatpush.msra.mxu0 0.0
        %1870 = vmatpush.msra.mxu0 %v1645
        %1871 = vmatpush.msra.mxu0 %v1554
        %1872 = vmatpush.msra.mxu0 %v1522
        %1873 = vmatpush.msra.mxu0 %v1490
        %1874 = vmatpush.msra.mxu0 %v1458
        %1875 = vmatmul.f32.gmra.mxu0 %v1620
        %v1876 = vpop.f32.mrf.mxu0
        %v1877 = vadd.f32 %v1616, %v1876
        %1878 = vdwg.mxu0
        %1879 = vmatpush.msra.mxu0 0.0
        %1880 = vmatpush.msra.mxu0 0.0
        %1881 = vmatpush.msra.mxu0 0.0
        %1882 = vmatpush.msra.mxu0 0.0
        %1883 = vmatpush.msra.mxu0 0.0
        %1884 = vmatpush.msra.mxu0 0.0
        %1885 = vmatpush.msra.mxu0 0.0
        %1886 = vmatpush.msra.mxu0 0.0
        %1887 = vmatpush.msra.mxu0 0.0
        %1888 = vmatpush.msra.mxu0 0.0
        %1889 = vmatpush.msra.mxu0 0.0
        %1890 = vmatpush.msra.mxu0 %v1648
        %1891 = vmatpush.msra.mxu0 %v1555
        %1892 = vmatpush.msra.mxu0 %v1523
        %1893 = vmatpush.msra.mxu0 %v1491
        %1894 = vmatpush.msra.mxu0 %v1459
        %1895 = vmatmul.f32.gmra.mxu0 %v1620
        %v1896 = vpop.f32.mrf.mxu0
        %v1897 = vadd.f32 %v1616, %v1896
        %1898 = vdwg.mxu0
        %1899 = vmatpush.msra.mxu0 0.0
        %1900 = vmatpush.msra.mxu0 0.0
        %1901 = vmatpush.msra.mxu0 0.0
        %1902 = vmatpush.msra.mxu0 0.0
        %1903 = vmatpush.msra.mxu0 0.0
        %1904 = vmatpush.msra.mxu0 0.0
        %1905 = vmatpush.msra.mxu0 0.0
        %1906 = vmatpush.msra.mxu0 0.0
        %1907 = vmatpush.msra.mxu0 0.0
        %1908 = vmatpush.msra.mxu0 0.0
        %1909 = vmatpush.msra.mxu0 0.0
        %1910 = vmatpush.msra.mxu0 %v1651
        %1911 = vmatpush.msra.mxu0 %v1556
        %1912 = vmatpush.msra.mxu0 %v1524
        %1913 = vmatpush.msra.mxu0 %v1492
        %1914 = vmatpush.msra.mxu0 %v1460
        %1915 = vmatmul.f32.gmra.mxu0 %v1620
        %v1916 = vpop.f32.mrf.mxu0
        %v1917 = vadd.f32 %v1616, %v1916
        %1918 = vdwg.mxu0
        %1919 = vmatpush.msra.mxu0 0.0
        %1920 = vmatpush.msra.mxu0 0.0
        %1921 = vmatpush.msra.mxu0 0.0
        %1922 = vmatpush.msra.mxu0 0.0
        %1923 = vmatpush.msra.mxu0 0.0
        %1924 = vmatpush.msra.mxu0 0.0
        %1925 = vmatpush.msra.mxu0 0.0
        %1926 = vmatpush.msra.mxu0 0.0
        %1927 = vmatpush.msra.mxu0 0.0
        %1928 = vmatpush.msra.mxu0 0.0
        %1929 = vmatpush.msra.mxu0 0.0
        %1930 = vmatpush.msra.mxu0 %v1654
        %1931 = vmatpush.msra.mxu0 %v1557
        %1932 = vmatpush.msra.mxu0 %v1525
        %1933 = vmatpush.msra.mxu0 %v1493
        %1934 = vmatpush.msra.mxu0 %v1461
        %1935 = vmatmul.f32.gmra.mxu0 %v1620
        %v1936 = vpop.f32.mrf.mxu0
        %v1937 = vadd.f32 %v1616, %v1936
        %1938 = vdwg.mxu0
        %1939 = vmatpush.msra.mxu0 0.0
        %1940 = vmatpush.msra.mxu0 0.0
        %1941 = vmatpush.msra.mxu0 0.0
        %1942 = vmatpush.msra.mxu0 0.0
        %1943 = vmatpush.msra.mxu0 0.0
        %1944 = vmatpush.msra.mxu0 0.0
        %1945 = vmatpush.msra.mxu0 0.0
        %1946 = vmatpush.msra.mxu0 0.0
        %1947 = vmatpush.msra.mxu0 0.0
        %1948 = vmatpush.msra.mxu0 0.0
        %1949 = vmatpush.msra.mxu0 0.0
        %1950 = vmatpush.msra.mxu0 %v1657
        %1951 = vmatpush.msra.mxu0 %v1558
        %1952 = vmatpush.msra.mxu0 %v1526
        %1953 = vmatpush.msra.mxu0 %v1494
        %1954 = vmatpush.msra.mxu0 %v1462
        %1955 = vmatmul.f32.gmra.mxu0 %v1620
        %v1956 = vpop.f32.mrf.mxu0
        %v1957 = vadd.f32 %v1616, %v1956
        %1958 = vdwg.mxu0
        %1959 = vmatpush.msra.mxu0 0.0
        %1960 = vmatpush.msra.mxu0 0.0
        %1961 = vmatpush.msra.mxu0 0.0
        %1962 = vmatpush.msra.mxu0 0.0
        %1963 = vmatpush.msra.mxu0 0.0
        %1964 = vmatpush.msra.mxu0 0.0
        %1965 = vmatpush.msra.mxu0 0.0
        %1966 = vmatpush.msra.mxu0 0.0
        %1967 = vmatpush.msra.mxu0 0.0
        %1968 = vmatpush.msra.mxu0 0.0
        %1969 = vmatpush.msra.mxu0 0.0
        %1970 = vmatpush.msra.mxu0 %v1660
        %1971 = vmatpush.msra.mxu0 %v1559
        %1972 = vmatpush.msra.mxu0 %v1527
        %1973 = vmatpush.msra.mxu0 %v1495
        %1974 = vmatpush.msra.mxu0 %v1463
        %1975 = vmatmul.f32.gmra.mxu0 %v1620
        %v1976 = vpop.f32.mrf.mxu0
        %v1977 = vadd.f32 %v1616, %v1976
        %1978 = vdwg.mxu0
        %1979 = vmatpush.msra.mxu0 0.0
        %1980 = vmatpush.msra.mxu0 0.0
        %1981 = vmatpush.msra.mxu0 0.0
        %1982 = vmatpush.msra.mxu0 0.0
        %1983 = vmatpush.msra.mxu0 0.0
        %1984 = vmatpush.msra.mxu0 0.0
        %1985 = vmatpush.msra.mxu0 0.0
        %1986 = vmatpush.msra.mxu0 0.0
        %1987 = vmatpush.msra.mxu0 0.0
        %1988 = vmatpush.msra.mxu0 0.0
        %1989 = vmatpush.msra.mxu0 0.0
        %1990 = vmatpush.msra.mxu0 %v1663
        %1991 = vmatpush.msra.mxu0 %v1560
        %1992 = vmatpush.msra.mxu0 %v1528
        %1993 = vmatpush.msra.mxu0 %v1496
        %1994 = vmatpush.msra.mxu0 %v1464
        %1995 = vmatmul.f32.gmra.mxu0 %v1620
        %v1996 = vpop.f32.mrf.mxu0
        %v1997 = vadd.f32 %v1616, %v1996
        %1998 = vdwg.mxu0
        %1999 = vmatpush.msra.mxu0 0.0
        %2000 = vmatpush.msra.mxu0 0.0
        %2001 = vmatpush.msra.mxu0 0.0
        %2002 = vmatpush.msra.mxu0 0.0
        %2003 = vmatpush.msra.mxu0 0.0
        %2004 = vmatpush.msra.mxu0 0.0
        %2005 = vmatpush.msra.mxu0 0.0
        %2006 = vmatpush.msra.mxu0 0.0
        %2007 = vmatpush.msra.mxu0 0.0
        %2008 = vmatpush.msra.mxu0 0.0
        %2009 = vmatpush.msra.mxu0 0.0
        %2010 = vmatpush.msra.mxu0 %v1666
        %2011 = vmatpush.msra.mxu0 %v1561
        %2012 = vmatpush.msra.mxu0 %v1529
        %2013 = vmatpush.msra.mxu0 %v1497
        %2014 = vmatpush.msra.mxu0 %v1465
        %2015 = vmatmul.f32.gmra.mxu0 %v1620
        %v2016 = vpop.f32.mrf.mxu0
        %v2017 = vadd.f32 %v1616, %v2016
        %2018 = vdwg.mxu0
        %2019 = vmatpush.msra.mxu0 0.0
        %2020 = vmatpush.msra.mxu0 0.0
        %2021 = vmatpush.msra.mxu0 0.0
        %2022 = vmatpush.msra.mxu0 0.0
        %2023 = vmatpush.msra.mxu0 0.0
        %2024 = vmatpush.msra.mxu0 0.0
        %2025 = vmatpush.msra.mxu0 0.0
        %2026 = vmatpush.msra.mxu0 0.0
        %2027 = vmatpush.msra.mxu0 0.0
        %2028 = vmatpush.msra.mxu0 0.0
        %2029 = vmatpush.msra.mxu0 0.0
        %2030 = vmatpush.msra.mxu0 %v1669
        %2031 = vmatpush.msra.mxu0 %v1562
        %2032 = vmatpush.msra.mxu0 %v1530
        %2033 = vmatpush.msra.mxu0 %v1498
        %2034 = vmatpush.msra.mxu0 %v1466
        %2035 = vmatmul.f32.gmra.mxu0 %v1620
        %v2036 = vpop.f32.mrf.mxu0
        %v2037 = vadd.f32 %v1616, %v2036
        %2038 = vdwg.mxu0
        %2039 = vmatpush.msra.mxu0 0.0
        %2040 = vmatpush.msra.mxu0 0.0
        %2041 = vmatpush.msra.mxu0 0.0
        %2042 = vmatpush.msra.mxu0 0.0
        %2043 = vmatpush.msra.mxu0 0.0
        %2044 = vmatpush.msra.mxu0 0.0
        %2045 = vmatpush.msra.mxu0 0.0
        %2046 = vmatpush.msra.mxu0 0.0
        %2047 = vmatpush.msra.mxu0 0.0
        %2048 = vmatpush.msra.mxu0 0.0
        %2049 = vmatpush.msra.mxu0 0.0
        %2050 = vmatpush.msra.mxu0 %v1672
        %2051 = vmatpush.msra.mxu0 %v1563
        %2052 = vmatpush.msra.mxu0 %v1531
        %2053 = vmatpush.msra.mxu0 %v1499
        %2054 = vmatpush.msra.mxu0 %v1467
        %2055 = vmatmul.f32.gmra.mxu0 %v1620
        %v2056 = vpop.f32.mrf.mxu0
        %v2057 = vadd.f32 %v1616, %v2056
        %2058 = vdwg.mxu0
        %2059 = vmatpush.msra.mxu0 0.0
        %2060 = vmatpush.msra.mxu0 0.0
        %2061 = vmatpush.msra.mxu0 0.0
        %2062 = vmatpush.msra.mxu0 0.0
        %2063 = vmatpush.msra.mxu0 0.0
        %2064 = vmatpush.msra.mxu0 0.0
        %2065 = vmatpush.msra.mxu0 0.0
        %2066 = vmatpush.msra.mxu0 0.0
        %2067 = vmatpush.msra.mxu0 0.0
        %2068 = vmatpush.msra.mxu0 0.0
        %2069 = vmatpush.msra.mxu0 0.0
        %2070 = vmatpush.msra.mxu0 %v1675
        %2071 = vmatpush.msra.mxu0 %v1564
        %2072 = vmatpush.msra.mxu0 %v1532
        %2073 = vmatpush.msra.mxu0 %v1500
        %2074 = vmatpush.msra.mxu0 %v1468
        %2075 = vmatmul.f32.gmra.mxu0 %v1620
        %v2076 = vpop.f32.mrf.mxu0
        %v2077 = vadd.f32 %v1616, %v2076
        %2078 = vdwg.mxu0
        %2079 = vmatpush.msra.mxu0 0.0
        %2080 = vmatpush.msra.mxu0 0.0
        %2081 = vmatpush.msra.mxu0 0.0
        %2082 = vmatpush.msra.mxu0 0.0
        %2083 = vmatpush.msra.mxu0 0.0
        %2084 = vmatpush.msra.mxu0 0.0
        %2085 = vmatpush.msra.mxu0 0.0
        %2086 = vmatpush.msra.mxu0 0.0
        %2087 = vmatpush.msra.mxu0 0.0
        %2088 = vmatpush.msra.mxu0 0.0
        %2089 = vmatpush.msra.mxu0 0.0
        %2090 = vmatpush.msra.mxu0 %v1678
        %2091 = vmatpush.msra.mxu0 %v1565
        %2092 = vmatpush.msra.mxu0 %v1533
        %2093 = vmatpush.msra.mxu0 %v1501
        %2094 = vmatpush.msra.mxu0 %v1469
        %2095 = vmatmul.f32.gmra.mxu0 %v1620
        %v2096 = vpop.f32.mrf.mxu0
        %v2097 = vadd.f32 %v1616, %v2096
        %2098 = vdwg.mxu0
        %2099 = vmatpush.msra.mxu0 0.0
        %2100 = vmatpush.msra.mxu0 0.0
        %2101 = vmatpush.msra.mxu0 0.0
        %2102 = vmatpush.msra.mxu0 0.0
        %2103 = vmatpush.msra.mxu0 0.0
        %2104 = vmatpush.msra.mxu0 0.0
        %2105 = vmatpush.msra.mxu0 0.0
        %2106 = vmatpush.msra.mxu0 0.0
        %2107 = vmatpush.msra.mxu0 0.0
        %2108 = vmatpush.msra.mxu0 0.0
        %2109 = vmatpush.msra.mxu0 0.0
        %2110 = vmatpush.msra.mxu0 %v1681
        %2111 = vmatpush.msra.mxu0 %v1566
        %2112 = vmatpush.msra.mxu0 %v1534
        %2113 = vmatpush.msra.mxu0 %v1502
        %2114 = vmatpush.msra.mxu0 %v1470
        %2115 = vmatmul.f32.gmra.mxu0 %v1620
        %v2116 = vpop.f32.mrf.mxu0
        %v2117 = vadd.f32 %v1616, %v2116
        %2118 = vdwg.mxu0
        %2119 = vmatpush.msra.mxu0 0.0
        %2120 = vmatpush.msra.mxu0 0.0
        %2121 = vmatpush.msra.mxu0 0.0
        %2122 = vmatpush.msra.mxu0 0.0
        %2123 = vmatpush.msra.mxu0 0.0
        %2124 = vmatpush.msra.mxu0 0.0
        %2125 = vmatpush.msra.mxu0 0.0
        %2126 = vmatpush.msra.mxu0 0.0
        %2127 = vmatpush.msra.mxu0 0.0
        %2128 = vmatpush.msra.mxu0 0.0
        %2129 = vmatpush.msra.mxu0 0.0
        %2130 = vmatpush.msra.mxu0 %v1684
        %2131 = vmatpush.msra.mxu0 %v1567
        %2132 = vmatpush.msra.mxu0 %v1535
        %2133 = vmatpush.msra.mxu0 %v1503
        %2134 = vmatpush.msra.mxu0 %v1471
        %2135 = vmatmul.f32.gmra.mxu0 %v1620
        %v2136 = vpop.f32.mrf.mxu0
        %v2137 = vadd.f32 %v1616, %v2136
        %2138 = vdwg.mxu0
        %2139 = vmatpush.msra.mxu0 0.0
        %2140 = vmatpush.msra.mxu0 0.0
        %2141 = vmatpush.msra.mxu0 0.0
        %2142 = vmatpush.msra.mxu0 0.0
        %2143 = vmatpush.msra.mxu0 0.0
        %2144 = vmatpush.msra.mxu0 0.0
        %2145 = vmatpush.msra.mxu0 0.0
        %2146 = vmatpush.msra.mxu0 0.0
        %2147 = vmatpush.msra.mxu0 0.0
        %2148 = vmatpush.msra.mxu0 0.0
        %2149 = vmatpush.msra.mxu0 0.0
        %2150 = vmatpush.msra.mxu0 %v1687
        %2151 = vmatpush.msra.mxu0 %v1568
        %2152 = vmatpush.msra.mxu0 %v1536
        %2153 = vmatpush.msra.mxu0 %v1504
        %2154 = vmatpush.msra.mxu0 %v1472
        %2155 = vmatmul.f32.gmra.mxu0 %v1620
        %v2156 = vpop.f32.mrf.mxu0
        %v2157 = vadd.f32 %v1616, %v2156
        %2158 = vdwg.mxu0
        %2159 = vmatpush.msra.mxu0 0.0
        %2160 = vmatpush.msra.mxu0 0.0
        %2161 = vmatpush.msra.mxu0 0.0
        %2162 = vmatpush.msra.mxu0 0.0
        %2163 = vmatpush.msra.mxu0 0.0
        %2164 = vmatpush.msra.mxu0 0.0
        %2165 = vmatpush.msra.mxu0 0.0
        %2166 = vmatpush.msra.mxu0 0.0
        %2167 = vmatpush.msra.mxu0 0.0
        %2168 = vmatpush.msra.mxu0 0.0
        %2169 = vmatpush.msra.mxu0 0.0
        %2170 = vmatpush.msra.mxu0 %v1690
        %2171 = vmatpush.msra.mxu0 %v1569
        %2172 = vmatpush.msra.mxu0 %v1537
        %2173 = vmatpush.msra.mxu0 %v1505
        %2174 = vmatpush.msra.mxu0 %v1473
        %2175 = vmatmul.f32.gmra.mxu0 %v1620
        %v2176 = vpop.f32.mrf.mxu0
        %v2177 = vadd.f32 %v1616, %v2176
        %2178 = vdwg.mxu0
        %2179 = vmatpush.msra.mxu0 0.0
        %2180 = vmatpush.msra.mxu0 0.0
        %2181 = vmatpush.msra.mxu0 0.0
        %2182 = vmatpush.msra.mxu0 0.0
        %2183 = vmatpush.msra.mxu0 0.0
        %2184 = vmatpush.msra.mxu0 0.0
        %2185 = vmatpush.msra.mxu0 0.0
        %2186 = vmatpush.msra.mxu0 0.0
        %2187 = vmatpush.msra.mxu0 0.0
        %2188 = vmatpush.msra.mxu0 0.0
        %2189 = vmatpush.msra.mxu0 0.0
        %2190 = vmatpush.msra.mxu0 %v1693
        %2191 = vmatpush.msra.mxu0 %v1570
        %2192 = vmatpush.msra.mxu0 %v1538
        %2193 = vmatpush.msra.mxu0 %v1506
        %2194 = vmatpush.msra.mxu0 %v1474
        %2195 = vmatmul.f32.gmra.mxu0 %v1620
        %v2196 = vpop.f32.mrf.mxu0
        %v2197 = vadd.f32 %v1616, %v2196
        %2198 = vdwg.mxu0
        %2199 = vmatpush.msra.mxu0 0.0
        %2200 = vmatpush.msra.mxu0 0.0
        %2201 = vmatpush.msra.mxu0 0.0
        %2202 = vmatpush.msra.mxu0 0.0
        %2203 = vmatpush.msra.mxu0 0.0
        %2204 = vmatpush.msra.mxu0 0.0
        %2205 = vmatpush.msra.mxu0 0.0
        %2206 = vmatpush.msra.mxu0 0.0
        %2207 = vmatpush.msra.mxu0 0.0
        %2208 = vmatpush.msra.mxu0 0.0
        %2209 = vmatpush.msra.mxu0 0.0
        %2210 = vmatpush.msra.mxu0 %v1696
        %2211 = vmatpush.msra.mxu0 %v1571
        %2212 = vmatpush.msra.mxu0 %v1539
        %2213 = vmatpush.msra.mxu0 %v1507
        %2214 = vmatpush.msra.mxu0 %v1475
        %2215 = vmatmul.f32.gmra.mxu0 %v1620
        %v2216 = vpop.f32.mrf.mxu0
        %v2217 = vadd.f32 %v1616, %v2216
        %2218 = vdwg.mxu0
        %2219 = vmatpush.msra.mxu0 0.0
        %2220 = vmatpush.msra.mxu0 0.0
        %2221 = vmatpush.msra.mxu0 0.0
        %2222 = vmatpush.msra.mxu0 0.0
        %2223 = vmatpush.msra.mxu0 0.0
        %2224 = vmatpush.msra.mxu0 0.0
        %2225 = vmatpush.msra.mxu0 0.0
        %2226 = vmatpush.msra.mxu0 0.0
        %2227 = vmatpush.msra.mxu0 0.0
        %2228 = vmatpush.msra.mxu0 0.0
        %2229 = vmatpush.msra.mxu0 0.0
        %2230 = vmatpush.msra.mxu0 %v1699
        %2231 = vmatpush.msra.mxu0 %v1572
        %2232 = vmatpush.msra.mxu0 %v1540
        %2233 = vmatpush.msra.mxu0 %v1508
        %2234 = vmatpush.msra.mxu0 %v1476
        %2235 = vmatmul.f32.gmra.mxu0 %v1620
        %v2236 = vpop.f32.mrf.mxu0
        %v2237 = vadd.f32 %v1616, %v2236
        %2238 = vdwg.mxu0
        %2239 = vmatpush.msra.mxu0 0.0
        %2240 = vmatpush.msra.mxu0 0.0
        %2241 = vmatpush.msra.mxu0 0.0
        %2242 = vmatpush.msra.mxu0 0.0
        %2243 = vmatpush.msra.mxu0 0.0
        %2244 = vmatpush.msra.mxu0 0.0
        %2245 = vmatpush.msra.mxu0 0.0
        %2246 = vmatpush.msra.mxu0 0.0
        %2247 = vmatpush.msra.mxu0 0.0
        %2248 = vmatpush.msra.mxu0 0.0
        %2249 = vmatpush.msra.mxu0 0.0
        %2250 = vmatpush.msra.mxu0 %v1702
        %2251 = vmatpush.msra.mxu0 %v1573
        %2252 = vmatpush.msra.mxu0 %v1541
        %2253 = vmatpush.msra.mxu0 %v1509
        %2254 = vmatpush.msra.mxu0 %v1477
        %2255 = vmatmul.f32.gmra.mxu0 %v1620
        %v2256 = vpop.f32.mrf.mxu0
        %v2257 = vadd.f32 %v1616, %v2256
        %2258 = vdwg.mxu0
        %2259 = vmatpush.msra.mxu0 0.0
        %2260 = vmatpush.msra.mxu0 0.0
        %2261 = vmatpush.msra.mxu0 0.0
        %2262 = vmatpush.msra.mxu0 0.0
        %2263 = vmatpush.msra.mxu0 0.0
        %2264 = vmatpush.msra.mxu0 0.0
        %2265 = vmatpush.msra.mxu0 0.0
        %2266 = vmatpush.msra.mxu0 0.0
        %2267 = vmatpush.msra.mxu0 0.0
        %2268 = vmatpush.msra.mxu0 0.0
        %2269 = vmatpush.msra.mxu0 0.0
        %2270 = vmatpush.msra.mxu0 %v1705
        %2271 = vmatpush.msra.mxu0 %v1574
        %2272 = vmatpush.msra.mxu0 %v1542
        %2273 = vmatpush.msra.mxu0 %v1510
        %2274 = vmatpush.msra.mxu0 %v1478
        %2275 = vmatmul.f32.gmra.mxu0 %v1620
        %v2276 = vpop.f32.mrf.mxu0
        %v2277 = vadd.f32 %v1616, %v2276
        %2278 = vdwg.mxu0
        %2279 = vmatpush.msra.mxu0 0.0
        %2280 = vmatpush.msra.mxu0 0.0
        %2281 = vmatpush.msra.mxu0 0.0
        %2282 = vmatpush.msra.mxu0 0.0
        %2283 = vmatpush.msra.mxu0 0.0
        %2284 = vmatpush.msra.mxu0 0.0
        %2285 = vmatpush.msra.mxu0 0.0
        %2286 = vmatpush.msra.mxu0 0.0
        %2287 = vmatpush.msra.mxu0 0.0
        %2288 = vmatpush.msra.mxu0 0.0
        %2289 = vmatpush.msra.mxu0 0.0
        %2290 = vmatpush.msra.mxu0 %v1708
        %2291 = vmatpush.msra.mxu0 %v1575
        %2292 = vmatpush.msra.mxu0 %v1543
        %2293 = vmatpush.msra.mxu0 %v1511
        %2294 = vmatpush.msra.mxu0 %v1479
        %2295 = vmatmul.f32.gmra.mxu0 %v1620
        %v2296 = vpop.f32.mrf.mxu0
        %v2297 = vadd.f32 %v1616, %v2296
        %2298 = vdwg.mxu0
        %2299 = vmatpush.msra.mxu0 0.0
        %2300 = vmatpush.msra.mxu0 0.0
        %2301 = vmatpush.msra.mxu0 0.0
        %2302 = vmatpush.msra.mxu0 0.0
        %2303 = vmatpush.msra.mxu0 0.0
        %2304 = vmatpush.msra.mxu0 0.0
        %2305 = vmatpush.msra.mxu0 0.0
        %2306 = vmatpush.msra.mxu0 0.0
        %2307 = vmatpush.msra.mxu0 0.0
        %2308 = vmatpush.msra.mxu0 0.0
        %2309 = vmatpush.msra.mxu0 0.0
        %2310 = vmatpush.msra.mxu0 %v1711
        %2311 = vmatpush.msra.mxu0 %v1576
        %2312 = vmatpush.msra.mxu0 %v1544
        %2313 = vmatpush.msra.mxu0 %v1512
        %2314 = vmatpush.msra.mxu0 %v1480
        %2315 = vmatmul.f32.gmra.mxu0 %v1620
        %v2316 = vpop.f32.mrf.mxu0
        %v2317 = vadd.f32 %v1616, %v2316
        %2318 = vdwg.mxu0
        %2319 = vmatpush.msra.mxu0 0.0
        %2320 = vmatpush.msra.mxu0 0.0
        %2321 = vmatpush.msra.mxu0 0.0
        %2322 = vmatpush.msra.mxu0 0.0
        %2323 = vmatpush.msra.mxu0 0.0
        %2324 = vmatpush.msra.mxu0 0.0
        %2325 = vmatpush.msra.mxu0 0.0
        %2326 = vmatpush.msra.mxu0 0.0
        %2327 = vmatpush.msra.mxu0 0.0
        %2328 = vmatpush.msra.mxu0 0.0
        %2329 = vmatpush.msra.mxu0 0.0
        %2330 = vmatpush.msra.mxu0 %v1714
        %2331 = vmatpush.msra.mxu0 %v1577
        %2332 = vmatpush.msra.mxu0 %v1545
        %2333 = vmatpush.msra.mxu0 %v1513
        %2334 = vmatpush.msra.mxu0 %v1481
        %2335 = vmatmul.f32.gmra.mxu0 %v1620
        %v2336 = vpop.f32.mrf.mxu0
        %v2337 = vadd.f32 %v1616, %v2336
        %2338 = vdwg.mxu0
        %2339 = vmatpush.msra.mxu0 0.0
        %2340 = vmatpush.msra.mxu0 0.0
        %2341 = vmatpush.msra.mxu0 0.0
        %2342 = vmatpush.msra.mxu0 0.0
        %2343 = vmatpush.msra.mxu0 0.0
        %2344 = vmatpush.msra.mxu0 0.0
        %2345 = vmatpush.msra.mxu0 0.0
        %2346 = vmatpush.msra.mxu0 0.0
        %2347 = vmatpush.msra.mxu0 0.0
        %2348 = vmatpush.msra.mxu0 0.0
        %2349 = vmatpush.msra.mxu0 0.0
        %2350 = vmatpush.msra.mxu0 %v1717
        %2351 = vmatpush.msra.mxu0 %v1578
        %2352 = vmatpush.msra.mxu0 %v1546
        %2353 = vmatpush.msra.mxu0 %v1514
        %2354 = vmatpush.msra.mxu0 %v1482
        %2355 = vmatmul.f32.gmra.mxu0 %v1620
        %v2356 = vpop.f32.mrf.mxu0
        %v2357 = vadd.f32 %v1616, %v2356
        %2358 = vdwg.mxu0
        %2359 = vst [vmem:[%s589] sm:$0xff] %v1737
        %2360 = vst [vmem:[%s589 + $0x8] sm:$0xff] %v1757
        %2361 = vst [vmem:[%s589 + $0x10] sm:$0xff] %v1777
        %2362 = vst [vmem:[%s589 + $0x18] sm:$0xff] %v1797
        %2363 = vst [vmem:[%s589 + $0x20] sm:$0xff] %v1817
        %2364 = vst [vmem:[%s589 + $0x28] sm:$0xff] %v1837
        %2365 = vst [vmem:[%s589 + $0x30] sm:$0xff] %v1857
        %2366 = vst [vmem:[%s589 + $0x38] sm:$0xff] %v1877
        %2367 = vst [vmem:[%s589 + $0x40] sm:$0xff] %v1897
        %2368 = vst [vmem:[%s589 + $0x48] sm:$0xff] %v1917
        %2369 = vst [vmem:[%s589 + $0x50] sm:$0xff] %v1937
        %2370 = vst [vmem:[%s589 + $0x58] sm:$0xff] %v1957
        %2371 = vst [vmem:[%s589 + $0x60] sm:$0xff] %v1977
        %2372 = vst [vmem:[%s589 + $0x68] sm:$0xff] %v1997
        %2373 = vst [vmem:[%s589 + $0x70] sm:$0xff] %v2017
        %2374 = vst [vmem:[%s589 + $0x78] sm:$0xff] %v2037
        %2375 = vst [vmem:[%s589 + $0x80] sm:$0xff] %v2057
        %2376 = vst [vmem:[%s589 + $0x88] sm:$0xff] %v2077
        %2377 = vst [vmem:[%s589 + $0x90] sm:$0xff] %v2097
        %2378 = vst [vmem:[%s589 + $0x98] sm:$0xff] %v2117
        %2379 = vst [vmem:[%s589 + $0xa0] sm:$0xff] %v2137
        %2380 = vst [vmem:[%s589 + $0xa8] sm:$0xff] %v2157
        %2381 = vst [vmem:[%s589 + $0xb0] sm:$0xff] %v2177
        %2382 = vst [vmem:[%s589 + $0xb8] sm:$0xff] %v2197
        %2383 = vst [vmem:[%s589 + $0xc0] sm:$0xff] %v2217
        %2384 = vst [vmem:[%s589 + $0xc8] sm:$0xff] %v2237
        %2385 = vst [vmem:[%s589 + $0xd0] sm:$0xff] %v2257
        %2386 = vst [vmem:[%s589 + $0xd8] sm:$0xff] %v2277
        %2387 = vst [vmem:[%s589 + $0xe0] sm:$0xff] %v2297
        %2388 = vst [vmem:[%s589 + $0xe8] sm:$0xff] %v2317
        %2389 = vst [vmem:[%s589 + $0xf0] sm:$0xff] %v2337
        %2390 = vst [vmem:[%s589 + $0xf8] sm:$0xff] %v2357
        %s2391 = smul.u32 32, %s21
        %p2392 = scmp.lt.s32.totalorder %s20, 1
        %s2393 = scalar_select %p2392, %s20, 1
        %p2394 = scmp.lt.s32.totalorder %s2391, 383
        %s2395 = scalar_select %p2394, %s2391, 383
        %s2396 = smul.addr %s2393, 384
        %s2397 = sadd.s32 %s2395, %s2396
        %s2398 = smul.addr %s2397, 8
        %s2399 = scalar_lea.vmem %s5, %s2398
        // Predicated region
        $region64: #{conv_blockT_forward.3} parent=58 // pred_check
          %p2400 = pneg %p160
        $region65: #{conv_blockT_forward.3} parent=58 // pred_check_branch
          %2402 = sbr.rel (%p2400) target = $region67
        $region66: #{conv_blockT_forward.3} parent=58 // pred_region
          %s2403 = smul.u32 32, %s21
        $region67: #{conv_blockT_forward.3} parent=58 // pred_fallthru
          _
      $region59: #{conv_blockT_forward.3} parent=5 // pred_fallthru
        _
      %p2404 = scmp.le.s32.totalorder 2, %s11
      // Predicated region
      $region68: #{conv_blockT_forward.3} parent=5 // pred_check
        %p2405 = pneg %p2404
      $region69: #{conv_blockT_forward.3} parent=5 // pred_check_branch
        %2407 = sbr.rel (%p2405) target = $region71
      $region70: #{conv_blockT_forward.3} parent=5 // pred_region
        %s2408 = ssub.s32 %s11, 2
        // Predicated region
        $region72: #{conv_blockT_forward.3} parent=70 // pred_check
          %p2409 = pneg %p166
        $region73: #{conv_blockT_forward.3} parent=70 // pred_check_branch
          %2411 = sbr.rel (%p2409) target = $region75
        $region74: #{conv_blockT_forward.3} parent=70 // pred_region
          %s2412 = smul.u32 32, %s23
          %p2413 = scmp.lt.s32.totalorder %s22, 1
          %s2414 = scalar_select %p2413, %s22, 1
          %p2415 = scmp.lt.s32.totalorder %s2412, 383
          %s2416 = scalar_select %p2415, %s2412, 383
          %s2417 = smul.addr %s2414, 384
          %s2418 = sadd.s32 %s2416, %s2417
          %s2419 = smul.addr %s2418, 8
          %s2420 = scalar_lea.vmem %s5, %s2419
        $region75: #{conv_blockT_forward.3} parent=70 // pred_fallthru
          _
      $region71: #{conv_blockT_forward.3} parent=5 // pred_fallthru
        _
    $region6: #{conv_blockT_forward.3} parent=1 // loop_footer
      %s15 = sadd.s32 1, %s11
    $region7: #{conv_blockT_forward.3} parent=1 // loop_footer_branch
      %10 = sbr.rel target = $region3
    $region8: #{conv_blockT_forward.3} parent=1 // loop_exit
      _

// kernel: conv_blockT_forward.5
$region0: #{conv_blockT_forward.5}
  #allocation0 [shape = 'u32[]', space=smem, size = 0x4, offset = 0x4, fixed_abs, tag = 'smem constant byte address 0x4 - core index']
  #allocation1 [shape = 'u32[72,128]{1,0:T(1,128)}', space=vmem, size = 0x9000, scoped, tag = 'internal scratch']
  %s0 = inlined_call_operand.vmem [shape: f32[2,72,49152], index: 0, kind: input, shape index: {}]
  %s1 = inlined_call_operand.vmem [shape: f32[8,72], index: 1, kind: input, shape index: {}]
  %s2 = inlined_call_operand.vmem [shape: f32[8,1], index: 2, kind: input, shape index: {}]
  %s3 = inlined_call_operand.vmem [shape: f32[72,1], index: 3, kind: input, shape index: {}]
  %s4 = inlined_call_operand.vmem [shape: f32[72,1], index: 4, kind: input, shape index: {}]
  %s5 = inlined_call_operand.vmem [shape: f32[2,8,49152], index: 5, kind: input, shape index: {}]
  %s6 = inlined_call_operand.vmem [shape: f32[2,8,49152], index: 6, kind: output, shape index: {}]
  %s7 = sld [smem:[#allocation0]]
  $region80: #{conv_blockT_forward.5} parent=0
    _
  %s9 = ssub.s32 1, %s7
  %s10 = scalar_select 0, %s9, %s7
  $region1: #{conv_blockT_forward.5} parent=0
    #allocation2 [shape = 'u8[2359296]{0}', space=vmem, size = 0x240000, scoped, tag = 'input window, operand 0']
    loop: start=0, step=1, limit=26
    $region2: #{conv_blockT_forward.5} parent=1 // loop_pre_header
      _
    $region3: #{conv_blockT_forward.5} parent=1 // loop_header
      %s12 = sphi 0, %s16
      %p13 = scmp.ge.s32.totalorder %s12, 26
      %s19 = sphi 0, %s31
      %s20 = sphi 0, %s27
      %s21 = sphi 0, %s19
      %s22 = sphi 0, %s20
      %s23 = sphi 0, %s21
      %s24 = sphi 0, %s22
      %s36 = sphi 0, %s38
      %s39 = sphi 0, %s36
      %s40 = sphi 0, %s39
      %s56 = sphi 0, %s40
      %s60 = sphi 0, %s60
      %s62 = sphi 0, %s60
      %s63 = sphi 0, %s62
      %s77 = sphi 0, %s63
      %s81 = sphi 0, %s81
      %s83 = sphi 0, %s81
      %s84 = sphi 0, %s83
      %s98 = sphi 0, %s84
      %s102 = sphi 0, %s102
      %s104 = sphi 0, %s102
      %s105 = sphi 0, %s104
      %s119 = sphi 0, %s105
      %s123 = sphi 0, %s123
      %s125 = sphi 0, %s123
      %s126 = sphi 0, %s125
      %s140 = sphi 0, %s126
      %s148 = sphi 0, %s150
      %s151 = sphi 0, %s148
      %s152 = sphi 0, %s151
      %s168 = sphi 0, %s152
      %s176 = sphi 0, %s178
      %s179 = sphi 0, %s176
      %s180 = sphi 0, %s179
      %s196 = sphi 0, %s180
    $region4: #{conv_blockT_forward.5} parent=1 // loop_header_branch
      %15 = sbr.rel (%p13) target = $region8
    $region5: #{conv_blockT_forward.5} parent=1 // loop_body
      %s17 = ssub.s32 %s12, 1
      %s18 = ssub.s32 %s12, 2
      %s25 = sadd.s32 1, %s20
      %p26 = scmp.ge.s32.totalorder %s25, 12
      %s27 = scalar_select %p26, 0, %s25
      %s28 = sadd.s32 1, %s19
      %s29 = scalar_select %p26, %s28, %s19
      %p30 = scmp.ge.s32.totalorder %s29, 2
      %s31 = scalar_select %p30, 0, %s29
      %s32 = ssub.s32 %s19, %s31
      %s33 = ssub.s32 %s20, %s27
      %s34 = sor.u32 %s32, %s33
      %p35 = scmp.eq.s32.totalorder %s34, 0
      %s37 = sadd.s32 %s36, 1
      %s38 = scalar_select %p35, %s36, %s37
      %p41 = pneg %p35
      %p42 = scmp.eq.s32.totalorder %s12, 23
      %p43 = por %p41, %p42
      %p44 = scmp.ne.s32.totalorder %s36, %s39
      %p45 = scmp.eq.s32.totalorder %s12, 0
      %p46 = por %p44, %p45
      %p47 = scmp.ne.s32.totalorder %s36, %s39
      %p48 = scmp.eq.s32.totalorder %s17, 23
      %p49 = por %p47, %p48
      %p50 = scmp.ne.s32.totalorder %s39, %s40
      %p51 = scmp.eq.s32.totalorder %s17, 0
      %p52 = por %p50, %p51
      %p53 = scmp.ne.s32.totalorder %s39, %s40
      %p54 = scmp.eq.s32.totalorder %s18, 23
      %p55 = por %p53, %p54
      %p57 = scmp.ne.s32.totalorder %s40, %s56
      %p58 = scmp.eq.s32.totalorder %s18, 0
      %p59 = por %p57, %p58
      %s61 = sadd.s32 %s60, 1
      %p64 = scmp.eq.s32.totalorder %s12, 23
      %p65 = scmp.ne.s32.totalorder %s60, %s62
      %p66 = scmp.eq.s32.totalorder %s12, 0
      %p67 = por %p65, %p66
      %p68 = scmp.ne.s32.totalorder %s60, %s62
      %p69 = scmp.eq.s32.totalorder %s17, 23
      %p70 = por %p68, %p69
      %p71 = scmp.ne.s32.totalorder %s62, %s63
      %p72 = scmp.eq.s32.totalorder %s17, 0
      %p73 = por %p71, %p72
      %p74 = scmp.ne.s32.totalorder %s62, %s63
      %p75 = scmp.eq.s32.totalorder %s18, 23
      %p76 = por %p74, %p75
      %p78 = scmp.ne.s32.totalorder %s63, %s77
      %p79 = scmp.eq.s32.totalorder %s18, 0
      %p80 = por %p78, %p79
      %s82 = sadd.s32 %s81, 1
      %p85 = scmp.eq.s32.totalorder %s12, 23
      %p86 = scmp.ne.s32.totalorder %s81, %s83
      %p87 = scmp.eq.s32.totalorder %s12, 0
      %p88 = por %p86, %p87
      %p89 = scmp.ne.s32.totalorder %s81, %s83
      %p90 = scmp.eq.s32.totalorder %s17, 23
      %p91 = por %p89, %p90
      %p92 = scmp.ne.s32.totalorder %s83, %s84
      %p93 = scmp.eq.s32.totalorder %s17, 0
      %p94 = por %p92, %p93
      %p95 = scmp.ne.s32.totalorder %s83, %s84
      %p96 = scmp.eq.s32.totalorder %s18, 23
      %p97 = por %p95, %p96
      %p99 = scmp.ne.s32.totalorder %s84, %s98
      %p100 = scmp.eq.s32.totalorder %s18, 0
      %p101 = por %p99, %p100
      %s103 = sadd.s32 %s102, 1
      %p106 = scmp.eq.s32.totalorder %s12, 23
      %p107 = scmp.ne.s32.totalorder %s102, %s104
      %p108 = scmp.eq.s32.totalorder %s12, 0
      %p109 = por %p107, %p108
      %p110 = scmp.ne.s32.totalorder %s102, %s104
      %p111 = scmp.eq.s32.totalorder %s17, 23
      %p112 = por %p110, %p111
      %p113 = scmp.ne.s32.totalorder %s104, %s105
      %p114 = scmp.eq.s32.totalorder %s17, 0
      %p115 = por %p113, %p114
      %p116 = scmp.ne.s32.totalorder %s104, %s105
      %p117 = scmp.eq.s32.totalorder %s18, 23
      %p118 = por %p116, %p117
      %p120 = scmp.ne.s32.totalorder %s105, %s119
      %p121 = scmp.eq.s32.totalorder %s18, 0
      %p122 = por %p120, %p121
      %s124 = sadd.s32 %s123, 1
      %p127 = scmp.eq.s32.totalorder %s12, 23
      %p128 = scmp.ne.s32.totalorder %s123, %s125
      %p129 = scmp.eq.s32.totalorder %s12, 0
      %p130 = por %p128, %p129
      %p131 = scmp.ne.s32.totalorder %s123, %s125
      %p132 = scmp.eq.s32.totalorder %s17, 23
      %p133 = por %p131, %p132
      %p134 = scmp.ne.s32.totalorder %s125, %s126
      %p135 = scmp.eq.s32.totalorder %s17, 0
      %p136 = por %p134, %p135
      %p137 = scmp.ne.s32.totalorder %s125, %s126
      %p138 = scmp.eq.s32.totalorder %s18, 23
      %p139 = por %p137, %p138
      %p141 = scmp.ne.s32.totalorder %s126, %s140
      %p142 = scmp.eq.s32.totalorder %s18, 0
      %p143 = por %p141, %p142
      %s144 = ssub.s32 %s19, %s31
      %s145 = ssub.s32 %s20, %s27
      %s146 = sor.u32 %s144, %s145
      %p147 = scmp.eq.s32.totalorder %s146, 0
      %s149 = sadd.s32 %s148, 1
      %s150 = scalar_select %p147, %s148, %s149
      %p153 = pneg %p147
      %p154 = scmp.eq.s32.totalorder %s12, 23
      %p155 = por %p153, %p154
      %p156 = scmp.ne.s32.totalorder %s148, %s151
      %p157 = scmp.eq.s32.totalorder %s12, 0
      %p158 = por %p156, %p157
      %p159 = scmp.ne.s32.totalorder %s148, %s151
      %p160 = scmp.eq.s32.totalorder %s17, 23
      %p161 = por %p159, %p160
      %p162 = scmp.ne.s32.totalorder %s151, %s152
      %p163 = scmp.eq.s32.totalorder %s17, 0
      %p164 = por %p162, %p163
      %p165 = scmp.ne.s32.totalorder %s151, %s152
      %p166 = scmp.eq.s32.totalorder %s18, 23
      %p167 = por %p165, %p166
      %p169 = scmp.ne.s32.totalorder %s152, %s168
      %p170 = scmp.eq.s32.totalorder %s18, 0
      %p171 = por %p169, %p170
      %s172 = ssub.s32 %s19, %s31
      %s173 = ssub.s32 %s20, %s27
      %s174 = sor.u32 %s172, %s173
      %p175 = scmp.eq.s32.totalorder %s174, 0
      %s177 = sadd.s32 %s176, 1
      %s178 = scalar_select %p175, %s176, %s177
      %p181 = pneg %p175
      %p182 = scmp.eq.s32.totalorder %s12, 23
      %p183 = por %p181, %p182
      %p184 = scmp.ne.s32.totalorder %s176, %s179
      %p185 = scmp.eq.s32.totalorder %s12, 0
      %p186 = por %p184, %p185
      %p187 = scmp.ne.s32.totalorder %s176, %s179
      %p188 = scmp.eq.s32.totalorder %s17, 23
      %p189 = por %p187, %p188
      %p190 = scmp.ne.s32.totalorder %s179, %s180
      %p191 = scmp.eq.s32.totalorder %s17, 0
      %p192 = por %p190, %p191
      %p193 = scmp.ne.s32.totalorder %s179, %s180
      %p194 = scmp.eq.s32.totalorder %s18, 23
      %p195 = por %p193, %p194
      %p197 = scmp.ne.s32.totalorder %s180, %s196
      %p198 = scmp.eq.s32.totalorder %s18, 0
      %p199 = por %p197, %p198
      %p200 = scmp.le.s32.totalorder 1, %s12
      %p201 = scmp.lt.s32.totalorder %s12, 25
      %p202 = pnand %p200, %p201
      %p203 = pneg %p202
      // Predicated region
      $region9: #{conv_blockT_forward.5} parent=5 // pred_check
        _
      $region10: #{conv_blockT_forward.5} parent=5 // pred_check_branch
        %205 = sbr.rel (%p202) target = $region12
      $region11: #{conv_blockT_forward.5} parent=5 // pred_region
        %s206 = ssub.s32 %s12, 1
        // Predicated region
        $region13: #{conv_blockT_forward.5} parent=11 // pred_check
          %p207 = pneg %p73
        $region14: #{conv_blockT_forward.5} parent=11 // pred_check_branch
          %209 = sbr.rel (%p207) target = $region16
        $region15: #{conv_blockT_forward.5} parent=11 // pred_region
          _
        $region16: #{conv_blockT_forward.5} parent=11 // pred_fallthru
          _
        // Predicated region
        $region17: #{conv_blockT_forward.5} parent=11 // pred_check
          %p210 = pneg %p94
        $region18: #{conv_blockT_forward.5} parent=11 // pred_check_branch
          %212 = sbr.rel (%p210) target = $region20
        $region19: #{conv_blockT_forward.5} parent=11 // pred_region
          _
        $region20: #{conv_blockT_forward.5} parent=11 // pred_fallthru
          _
        // Predicated region
        $region21: #{conv_blockT_forward.5} parent=11 // pred_check
          %p213 = pneg %p115
        $region22: #{conv_blockT_forward.5} parent=11 // pred_check_branch
          %215 = sbr.rel (%p213) target = $region24
        $region23: #{conv_blockT_forward.5} parent=11 // pred_region
          _
        $region24: #{conv_blockT_forward.5} parent=11 // pred_fallthru
          _
        // Predicated region
        $region25: #{conv_blockT_forward.5} parent=11 // pred_check
          %p216 = pneg %p136
        $region26: #{conv_blockT_forward.5} parent=11 // pred_check_branch
          %218 = sbr.rel (%p216) target = $region28
        $region27: #{conv_blockT_forward.5} parent=11 // pred_region
          _
        $region28: #{conv_blockT_forward.5} parent=11 // pred_fallthru
          _
      $region12: #{conv_blockT_forward.5} parent=5 // pred_fallthru
        _
      %p219 = scmp.lt.s32.totalorder %s12, 24
      // Predicated region
      $region29: #{conv_blockT_forward.5} parent=5 // pred_check
        %p220 = pneg %p219
      $region30: #{conv_blockT_forward.5} parent=5 // pred_check_branch
        %222 = sbr.rel (%p220) target = $region32
      $region31: #{conv_blockT_forward.5} parent=5 // pred_region
        // Predicated region
        $region33: #{conv_blockT_forward.5} parent=31 // pred_check
          %p223 = pneg %p46
        $region34: #{conv_blockT_forward.5} parent=31 // pred_check_branch
          %225 = sbr.rel (%p223) target = $region36
        $region35: #{conv_blockT_forward.5} parent=31 // pred_region
          %s226 = sand.u32 %s36, 1
          %s227 = sand.u32 %s36, 1
          %s228 = smul.addr %s227, 2304
          %s229 = scalar_lea.vmem [#allocation2], %s228
          %s230 = smul.u32 32, %s20
          %s231 = smul.addr %s19, 3456
          %s232 = sadd.s32 %s230, %s231
          %s233 = smul.addr %s232, 8
          %s234 = scalar_lea.vmem %s0, %s233
          // Predicated region
          $region37: #{conv_blockT_forward.5} parent=35 // pred_check
            _
          $region38: #{conv_blockT_forward.5} parent=35 // pred_check_branch
            %236 = sbr.rel (0) target = $region40
          $region39: #{conv_blockT_forward.5} parent=35 // pred_region
            // Predicated region
            $region41: #{conv_blockT_forward.5} parent=39 // pred_check
              _
            $region42: #{conv_blockT_forward.5} parent=39 // pred_check_branch
              %238 = sbr.rel (0) target = $region44
            $region43: #{conv_blockT_forward.5} parent=39 // pred_region
              loop: start=0, step=1, limit=1
              $region45: #{conv_blockT_forward.5} parent=43 // loop_pre_header
                _
              $region46: #{conv_blockT_forward.5} parent=43 // loop_header
                %s240 = sphi 0, %s244
                %p241 = scmp.ge.s32.totalorder %s240, 1
                %s245 = sphi %s234, %s234
                %s246 = sphi %s229, %s229
              $region47: #{conv_blockT_forward.5} parent=43 // loop_header_branch
                %243 = sbr.rel (%p241) target = $region51
              $region48: #{conv_blockT_forward.5} parent=43 // loop_body
                %v247 = vld [vmem:[%s245] sm:$0xff]
                %248 = vst [vmem:[%s246] sm:$0xff] %v247
                %v249 = vld [vmem:[%s245 + $0x8] sm:$0xff]
                %250 = vst [vmem:[%s246 + $0x8] sm:$0xff] %v249
                %v251 = vld [vmem:[%s245 + $0x10] sm:$0xff]
                %252 = vst [vmem:[%s246 + $0x10] sm:$0xff] %v251
                %v253 = vld [vmem:[%s245 + $0x18] sm:$0xff]
                %254 = vst [vmem:[%s246 + $0x18] sm:$0xff] %v253
                %v255 = vld [vmem:[%s245 + $0x20] sm:$0xff]
                %256 = vst [vmem:[%s246 + $0x20] sm:$0xff] %v255
                %v257 = vld [vmem:[%s245 + $0x28] sm:$0xff]
                %258 = vst [vmem:[%s246 + $0x28] sm:$0xff] %v257
                %v259 = vld [vmem:[%s245 + $0x30] sm:$0xff]
                %260 = vst [vmem:[%s246 + $0x30] sm:$0xff] %v259
                %v261 = vld [vmem:[%s245 + $0x38] sm:$0xff]
                %262 = vst [vmem:[%s246 + $0x38] sm:$0xff] %v261
                %v263 = vld [vmem:[%s245 + $0x40] sm:$0xff]
                %264 = vst [vmem:[%s246 + $0x40] sm:$0xff] %v263
                %v265 = vld [vmem:[%s245 + $0x48] sm:$0xff]
                %266 = vst [vmem:[%s246 + $0x48] sm:$0xff] %v265
                %v267 = vld [vmem:[%s245 + $0x50] sm:$0xff]
                %268 = vst [vmem:[%s246 + $0x50] sm:$0xff] %v267
                %v269 = vld [vmem:[%s245 + $0x58] sm:$0xff]
                %270 = vst [vmem:[%s246 + $0x58] sm:$0xff] %v269
                %v271 = vld [vmem:[%s245 + $0x60] sm:$0xff]
                %272 = vst [vmem:[%s246 + $0x60] sm:$0xff] %v271
                %v273 = vld [vmem:[%s245 + $0x68] sm:$0xff]
                %274 = vst [vmem:[%s246 + $0x68] sm:$0xff] %v273
                %v275 = vld [vmem:[%s245 + $0x70] sm:$0xff]
                %276 = vst [vmem:[%s246 + $0x70] sm:$0xff] %v275
                %v277 = vld [vmem:[%s245 + $0x78] sm:$0xff]
                %278 = vst [vmem:[%s246 + $0x78] sm:$0xff] %v277
                %v279 = vld [vmem:[%s245 + $0x80] sm:$0xff]
                %280 = vst [vmem:[%s246 + $0x80] sm:$0xff] %v279
                %v281 = vld [vmem:[%s245 + $0x88] sm:$0xff]
                %282 = vst [vmem:[%s246 + $0x88] sm:$0xff] %v281
                %v283 = vld [vmem:[%s245 + $0x90] sm:$0xff]
                %284 = vst [vmem:[%s246 + $0x90] sm:$0xff] %v283
                %v285 = vld [vmem:[%s245 + $0x98] sm:$0xff]
                %286 = vst [vmem:[%s246 + $0x98] sm:$0xff] %v285
                %v287 = vld [vmem:[%s245 + $0xa0] sm:$0xff]
                %288 = vst [vmem:[%s246 + $0xa0] sm:$0xff] %v287
                %v289 = vld [vmem:[%s245 + $0xa8] sm:$0xff]
                %290 = vst [vmem:[%s246 + $0xa8] sm:$0xff] %v289
                %v291 = vld [vmem:[%s245 + $0xb0] sm:$0xff]
                %292 = vst [vmem:[%s246 + $0xb0] sm:$0xff] %v291
                %v293 = vld [vmem:[%s245 + $0xb8] sm:$0xff]
                %294 = vst [vmem:[%s246 + $0xb8] sm:$0xff] %v293
                %v295 = vld [vmem:[%s245 + $0xc0] sm:$0xff]
                %296 = vst [vmem:[%s246 + $0xc0] sm:$0xff] %v295
                %v297 = vld [vmem:[%s245 + $0xc8] sm:$0xff]
                %298 = vst [vmem:[%s246 + $0xc8] sm:$0xff] %v297
                %v299 = vld [vmem:[%s245 + $0xd0] sm:$0xff]
                %300 = vst [vmem:[%s246 + $0xd0] sm:$0xff] %v299
                %v301 = vld [vmem:[%s245 + $0xd8] sm:$0xff]
                %302 = vst [vmem:[%s246 + $0xd8] sm:$0xff] %v301
                %v303 = vld [vmem:[%s245 + $0xe0] sm:$0xff]
                %304 = vst [vmem:[%s246 + $0xe0] sm:$0xff] %v303
                %v305 = vld [vmem:[%s245 + $0xe8] sm:$0xff]
                %306 = vst [vmem:[%s246 + $0xe8] sm:$0xff] %v305
                %v307 = vld [vmem:[%s245 + $0xf0] sm:$0xff]
                %308 = vst [vmem:[%s246 + $0xf0] sm:$0xff] %v307
                %v309 = vld [vmem:[%s245 + $0xf8] sm:$0xff]
                %310 = vst [vmem:[%s246 + $0xf8] sm:$0xff] %v309
                %v311 = vld [vmem:[%s245 + $0xc00] sm:$0xff]
                %312 = vst [vmem:[%s246 + $0x100] sm:$0xff] %v311
                %v313 = vld [vmem:[%s245 + $0xc08] sm:$0xff]
                %314 = vst [vmem:[%s246 + $0x108] sm:$0xff] %v313
                %v315 = vld [vmem:[%s245 + $0xc10] sm:$0xff]
                %316 = vst [vmem:[%s246 + $0x110] sm:$0xff] %v315
                %v317 = vld [vmem:[%s245 + $0xc18] sm:$0xff]
                %318 = vst [vmem:[%s246 + $0x118] sm:$0xff] %v317
                %v319 = vld [vmem:[%s245 + $0xc20] sm:$0xff]
                %320 = vst [vmem:[%s246 + $0x120] sm:$0xff] %v319
                %v321 = vld [vmem:[%s245 + $0xc28] sm:$0xff]
                %322 = vst [vmem:[%s246 + $0x128] sm:$0xff] %v321
                %v323 = vld [vmem:[%s245 + $0xc30] sm:$0xff]
                %324 = vst [vmem:[%s246 + $0x130] sm:$0xff] %v323
                %v325 = vld [vmem:[%s245 + $0xc38] sm:$0xff]
                %326 = vst [vmem:[%s246 + $0x138] sm:$0xff] %v325
                %v327 = vld [vmem:[%s245 + $0xc40] sm:$0xff]
                %328 = vst [vmem:[%s246 + $0x140] sm:$0xff] %v327
                %v329 = vld [vmem:[%s245 + $0xc48] sm:$0xff]
                %330 = vst [vmem:[%s246 + $0x148] sm:$0xff] %v329
                %v331 = vld [vmem:[%s245 + $0xc50] sm:$0xff]
                %332 = vst [vmem:[%s246 + $0x150] sm:$0xff] %v331
                %v333 = vld [vmem:[%s245 + $0xc58] sm:$0xff]
                %334 = vst [vmem:[%s246 + $0x158] sm:$0xff] %v333
                %v335 = vld [vmem:[%s245 + $0xc60] sm:$0xff]
                %336 = vst [vmem:[%s246 + $0x160] sm:$0xff] %v335
                %v337 = vld [vmem:[%s245 + $0xc68] sm:$0xff]
                %338 = vst [vmem:[%s246 + $0x168] sm:$0xff] %v337
                %v339 = vld [vmem:[%s245 + $0xc70] sm:$0xff]
                %340 = vst [vmem:[%s246 + $0x170] sm:$0xff] %v339
                %v341 = vld [vmem:[%s245 + $0xc78] sm:$0xff]
                %342 = vst [vmem:[%s246 + $0x178] sm:$0xff] %v341
                %v343 = vld [vmem:[%s245 + $0xc80] sm:$0xff]
                %344 = vst [vmem:[%s246 + $0x180] sm:$0xff] %v343
                %v345 = vld [vmem:[%s245 + $0xc88] sm:$0xff]
                %346 = vst [vmem:[%s246 + $0x188] sm:$0xff] %v345
                %v347 = vld [vmem:[%s245 + $0xc90] sm:$0xff]
                %348 = vst [vmem:[%s246 + $0x190] sm:$0xff] %v347
                %v349 = vld [vmem:[%s245 + $0xc98] sm:$0xff]
                %350 = vst [vmem:[%s246 + $0x198] sm:$0xff] %v349
                %v351 = vld [vmem:[%s245 + $0xca0] sm:$0xff]
                %352 = vst [vmem:[%s246 + $0x1a0] sm:$0xff] %v351
                %v353 = vld [vmem:[%s245 + $0xca8] sm:$0xff]
                %354 = vst [vmem:[%s246 + $0x1a8] sm:$0xff] %v353
                %v355 = vld [vmem:[%s245 + $0xcb0] sm:$0xff]
                %356 = vst [vmem:[%s246 + $0x1b0] sm:$0xff] %v355
                %v357 = vld [vmem:[%s245 + $0xcb8] sm:$0xff]
                %358 = vst [vmem:[%s246 + $0x1b8] sm:$0xff] %v357
                %v359 = vld [vmem:[%s245 + $0xcc0] sm:$0xff]
                %360 = vst [vmem:[%s246 + $0x1c0] sm:$0xff] %v359
                %v361 = vld [vmem:[%s245 + $0xcc8] sm:$0xff]
                %362 = vst [vmem:[%s246 + $0x1c8] sm:$0xff] %v361
                %v363 = vld [vmem:[%s245 + $0xcd0] sm:$0xff]
                %364 = vst [vmem:[%s246 + $0x1d0] sm:$0xff] %v363
                %v365 = vld [vmem:[%s245 + $0xcd8] sm:$0xff]
                %366 = vst [vmem:[%s246 + $0x1d8] sm:$0xff] %v365
                %v367 = vld [vmem:[%s245 + $0xce0] sm:$0xff]
                %368 = vst [vmem:[%s246 + $0x1e0] sm:$0xff] %v367
                %v369 = vld [vmem:[%s245 + $0xce8] sm:$0xff]
                %370 = vst [vmem:[%s246 + $0x1e8] sm:$0xff] %v369
                %v371 = vld [vmem:[%s245 + $0xcf0] sm:$0xff]
                %372 = vst [vmem:[%s246 + $0x1f0] sm:$0xff] %v371
                %v373 = vld [vmem:[%s245 + $0xcf8] sm:$0xff]
                %374 = vst [vmem:[%s246 + $0x1f8] sm:$0xff] %v373
                %v375 = vld [vmem:[%s245 + $0x1800] sm:$0xff]
                %376 = vst [vmem:[%s246 + $0x200] sm:$0xff] %v375
                %v377 = vld [vmem:[%s245 + $0x1808] sm:$0xff]
                %378 = vst [vmem:[%s246 + $0x208] sm:$0xff] %v377
                %v379 = vld [vmem:[%s245 + $0x1810] sm:$0xff]
                %380 = vst [vmem:[%s246 + $0x210] sm:$0xff] %v379
                %v381 = vld [vmem:[%s245 + $0x1818] sm:$0xff]
                %382 = vst [vmem:[%s246 + $0x218] sm:$0xff] %v381
                %v383 = vld [vmem:[%s245 + $0x1820] sm:$0xff]
                %384 = vst [vmem:[%s246 + $0x220] sm:$0xff] %v383
                %v385 = vld [vmem:[%s245 + $0x1828] sm:$0xff]
                %386 = vst [vmem:[%s246 + $0x228] sm:$0xff] %v385
                %v387 = vld [vmem:[%s245 + $0x1830] sm:$0xff]
                %388 = vst [vmem:[%s246 + $0x230] sm:$0xff] %v387
                %v389 = vld [vmem:[%s245 + $0x1838] sm:$0xff]
                %390 = vst [vmem:[%s246 + $0x238] sm:$0xff] %v389
                %v391 = vld [vmem:[%s245 + $0x1840] sm:$0xff]
                %392 = vst [vmem:[%s246 + $0x240] sm:$0xff] %v391
                %v393 = vld [vmem:[%s245 + $0x1848] sm:$0xff]
                %394 = vst [vmem:[%s246 + $0x248] sm:$0xff] %v393
                %v395 = vld [vmem:[%s245 + $0x1850] sm:$0xff]
                %396 = vst [vmem:[%s246 + $0x250] sm:$0xff] %v395
                %v397 = vld [vmem:[%s245 + $0x1858] sm:$0xff]
                %398 = vst [vmem:[%s246 + $0x258] sm:$0xff] %v397
                %v399 = vld [vmem:[%s245 + $0x1860] sm:$0xff]
                %400 = vst [vmem:[%s246 + $0x260] sm:$0xff] %v399
                %v401 = vld [vmem:[%s245 + $0x1868] sm:$0xff]
                %402 = vst [vmem:[%s246 + $0x268] sm:$0xff] %v401
                %v403 = vld [vmem:[%s245 + $0x1870] sm:$0xff]
                %404 = vst [vmem:[%s246 + $0x270] sm:$0xff] %v403
                %v405 = vld [vmem:[%s245 + $0x1878] sm:$0xff]
                %406 = vst [vmem:[%s246 + $0x278] sm:$0xff] %v405
                %v407 = vld [vmem:[%s245 + $0x1880] sm:$0xff]
                %408 = vst [vmem:[%s246 + $0x280] sm:$0xff] %v407
                %v409 = vld [vmem:[%s245 + $0x1888] sm:$0xff]
                %410 = vst [vmem:[%s246 + $0x288] sm:$0xff] %v409
                %v411 = vld [vmem:[%s245 + $0x1890] sm:$0xff]
                %412 = vst [vmem:[%s246 + $0x290] sm:$0xff] %v411
                %v413 = vld [vmem:[%s245 + $0x1898] sm:$0xff]
                %414 = vst [vmem:[%s246 + $0x298] sm:$0xff] %v413
                %v415 = vld [vmem:[%s245 + $0x18a0] sm:$0xff]
                %416 = vst [vmem:[%s246 + $0x2a0] sm:$0xff] %v415
                %v417 = vld [vmem:[%s245 + $0x18a8] sm:$0xff]
                %418 = vst [vmem:[%s246 + $0x2a8] sm:$0xff] %v417
                %v419 = vld [vmem:[%s245 + $0x18b0] sm:$0xff]
                %420 = vst [vmem:[%s246 + $0x2b0] sm:$0xff] %v419
                %v421 = vld [vmem:[%s245 + $0x18b8] sm:$0xff]
                %422 = vst [vmem:[%s246 + $0x2b8] sm:$0xff] %v421
                %v423 = vld [vmem:[%s245 + $0x18c0] sm:$0xff]
                %424 = vst [vmem:[%s246 + $0x2c0] sm:$0xff] %v423
                %v425 = vld [vmem:[%s245 + $0x18c8] sm:$0xff]
                %426 = vst [vmem:[%s246 + $0x2c8] sm:$0xff] %v425
                %v427 = vld [vmem:[%s245 + $0x18d0] sm:$0xff]
                %428 = vst [vmem:[%s246 + $0x2d0] sm:$0xff] %v427
                %v429 = vld [vmem:[%s245 + $0x18d8] sm:$0xff]
                %430 = vst [vmem:[%s246 + $0x2d8] sm:$0xff] %v429
                %v431 = vld [vmem:[%s245 + $0x18e0] sm:$0xff]
                %432 = vst [vmem:[%s246 + $0x2e0] sm:$0xff] %v431
                %v433 = vld [vmem:[%s245 + $0x18e8] sm:$0xff]
                %434 = vst [vmem:[%s246 + $0x2e8] sm:$0xff] %v433
                %v435 = vld [vmem:[%s245 + $0x18f0] sm:$0xff]
                %436 = vst [vmem:[%s246 + $0x2f0] sm:$0xff] %v435
                %v437 = vld [vmem:[%s245 + $0x18f8] sm:$0xff]
                %438 = vst [vmem:[%s246 + $0x2f8] sm:$0xff] %v437
                %v439 = vld [vmem:[%s245 + $0x2400] sm:$0xff]
                %440 = vst [vmem:[%s246 + $0x300] sm:$0xff] %v439
                %v441 = vld [vmem:[%s245 + $0x2408] sm:$0xff]
                %442 = vst [vmem:[%s246 + $0x308] sm:$0xff] %v441
                %v443 = vld [vmem:[%s245 + $0x2410] sm:$0xff]
                %444 = vst [vmem:[%s246 + $0x310] sm:$0xff] %v443
                %v445 = vld [vmem:[%s245 + $0x2418] sm:$0xff]
                %446 = vst [vmem:[%s246 + $0x318] sm:$0xff] %v445
                %v447 = vld [vmem:[%s245 + $0x2420] sm:$0xff]
                %448 = vst [vmem:[%s246 + $0x320] sm:$0xff] %v447
                %v449 = vld [vmem:[%s245 + $0x2428] sm:$0xff]
                %450 = vst [vmem:[%s246 + $0x328] sm:$0xff] %v449
                %v451 = vld [vmem:[%s245 + $0x2430] sm:$0xff]
                %452 = vst [vmem:[%s246 + $0x330] sm:$0xff] %v451
                %v453 = vld [vmem:[%s245 + $0x2438] sm:$0xff]
                %454 = vst [vmem:[%s246 + $0x338] sm:$0xff] %v453
                %v455 = vld [vmem:[%s245 + $0x2440] sm:$0xff]
                %456 = vst [vmem:[%s246 + $0x340] sm:$0xff] %v455
                %v457 = vld [vmem:[%s245 + $0x2448] sm:$0xff]
                %458 = vst [vmem:[%s246 + $0x348] sm:$0xff] %v457
                %v459 = vld [vmem:[%s245 + $0x2450] sm:$0xff]
                %460 = vst [vmem:[%s246 + $0x350] sm:$0xff] %v459
                %v461 = vld [vmem:[%s245 + $0x2458] sm:$0xff]
                %462 = vst [vmem:[%s246 + $0x358] sm:$0xff] %v461
                %v463 = vld [vmem:[%s245 + $0x2460] sm:$0xff]
                %464 = vst [vmem:[%s246 + $0x360] sm:$0xff] %v463
                %v465 = vld [vmem:[%s245 + $0x2468] sm:$0xff]
                %466 = vst [vmem:[%s246 + $0x368] sm:$0xff] %v465
                %v467 = vld [vmem:[%s245 + $0x2470] sm:$0xff]
                %468 = vst [vmem:[%s246 + $0x370] sm:$0xff] %v467
                %v469 = vld [vmem:[%s245 + $0x2478] sm:$0xff]
                %470 = vst [vmem:[%s246 + $0x378] sm:$0xff] %v469
                %v471 = vld [vmem:[%s245 + $0x2480] sm:$0xff]
                %472 = vst [vmem:[%s246 + $0x380] sm:$0xff] %v471
                %v473 = vld [vmem:[%s245 + $0x2488] sm:$0xff]
                %474 = vst [vmem:[%s246 + $0x388] sm:$0xff] %v473
                %v475 = vld [vmem:[%s245 + $0x2490] sm:$0xff]
                %476 = vst [vmem:[%s246 + $0x390] sm:$0xff] %v475
                %v477 = vld [vmem:[%s245 + $0x2498] sm:$0xff]
                %478 = vst [vmem:[%s246 + $0x398] sm:$0xff] %v477
                %v479 = vld [vmem:[%s245 + $0x24a0] sm:$0xff]
                %480 = vst [vmem:[%s246 + $0x3a0] sm:$0xff] %v479
                %v481 = vld [vmem:[%s245 + $0x24a8] sm:$0xff]
                %482 = vst [vmem:[%s246 + $0x3a8] sm:$0xff] %v481
                %v483 = vld [vmem:[%s245 + $0x24b0] sm:$0xff]
                %484 = vst [vmem:[%s246 + $0x3b0] sm:$0xff] %v483
                %v485 = vld [vmem:[%s245 + $0x24b8] sm:$0xff]
                %486 = vst [vmem:[%s246 + $0x3b8] sm:$0xff] %v485
                %v487 = vld [vmem:[%s245 + $0x24c0] sm:$0xff]
                %488 = vst [vmem:[%s246 + $0x3c0] sm:$0xff] %v487
                %v489 = vld [vmem:[%s245 + $0x24c8] sm:$0xff]
                %490 = vst [vmem:[%s246 + $0x3c8] sm:$0xff] %v489
                %v491 = vld [vmem:[%s245 + $0x24d0] sm:$0xff]
                %492 = vst [vmem:[%s246 + $0x3d0] sm:$0xff] %v491
                %v493 = vld [vmem:[%s245 + $0x24d8] sm:$0xff]
                %494 = vst [vmem:[%s246 + $0x3d8] sm:$0xff] %v493
                %v495 = vld [vmem:[%s245 + $0x24e0] sm:$0xff]
                %496 = vst [vmem:[%s246 + $0x3e0] sm:$0xff] %v495
                %v497 = vld [vmem:[%s245 + $0x24e8] sm:$0xff]
                %498 = vst [vmem:[%s246 + $0x3e8] sm:$0xff] %v497
                %v499 = vld [vmem:[%s245 + $0x24f0] sm:$0xff]
                %500 = vst [vmem:[%s246 + $0x3f0] sm:$0xff] %v499
                %v501 = vld [vmem:[%s245 + $0x24f8] sm:$0xff]
                %502 = vst [vmem:[%s246 + $0x3f8] sm:$0xff] %v501
                %v503 = vld [vmem:[%s245 + $0x3000] sm:$0xff]
                %504 = vst [vmem:[%s246 + $0x400] sm:$0xff] %v503
                %v505 = vld [vmem:[%s245 + $0x3008] sm:$0xff]
                %506 = vst [vmem:[%s246 + $0x408] sm:$0xff] %v505
                %v507 = vld [vmem:[%s245 + $0x3010] sm:$0xff]
                %508 = vst [vmem:[%s246 + $0x410] sm:$0xff] %v507
                %v509 = vld [vmem:[%s245 + $0x3018] sm:$0xff]
                %510 = vst [vmem:[%s246 + $0x418] sm:$0xff] %v509
                %v511 = vld [vmem:[%s245 + $0x3020] sm:$0xff]
                %512 = vst [vmem:[%s246 + $0x420] sm:$0xff] %v511
                %v513 = vld [vmem:[%s245 + $0x3028] sm:$0xff]
                %514 = vst [vmem:[%s246 + $0x428] sm:$0xff] %v513
                %v515 = vld [vmem:[%s245 + $0x3030] sm:$0xff]
                %516 = vst [vmem:[%s246 + $0x430] sm:$0xff] %v515
                %v517 = vld [vmem:[%s245 + $0x3038] sm:$0xff]
                %518 = vst [vmem:[%s246 + $0x438] sm:$0xff] %v517
                %v519 = vld [vmem:[%s245 + $0x3040] sm:$0xff]
                %520 = vst [vmem:[%s246 + $0x440] sm:$0xff] %v519
                %v521 = vld [vmem:[%s245 + $0x3048] sm:$0xff]
                %522 = vst [vmem:[%s246 + $0x448] sm:$0xff] %v521
                %v523 = vld [vmem:[%s245 + $0x3050] sm:$0xff]
                %524 = vst [vmem:[%s246 + $0x450] sm:$0xff] %v523
                %v525 = vld [vmem:[%s245 + $0x3058] sm:$0xff]
                %526 = vst [vmem:[%s246 + $0x458] sm:$0xff] %v525
                %v527 = vld [vmem:[%s245 + $0x3060] sm:$0xff]
                %528 = vst [vmem:[%s246 + $0x460] sm:$0xff] %v527
                %v529 = vld [vmem:[%s245 + $0x3068] sm:$0xff]
                %530 = vst [vmem:[%s246 + $0x468] sm:$0xff] %v529
                %v531 = vld [vmem:[%s245 + $0x3070] sm:$0xff]
                %532 = vst [vmem:[%s246 + $0x470] sm:$0xff] %v531
                %v533 = vld [vmem:[%s245 + $0x3078] sm:$0xff]
                %534 = vst [vmem:[%s246 + $0x478] sm:$0xff] %v533
                %v535 = vld [vmem:[%s245 + $0x3080] sm:$0xff]
                %536 = vst [vmem:[%s246 + $0x480] sm:$0xff] %v535
                %v537 = vld [vmem:[%s245 + $0x3088] sm:$0xff]
                %538 = vst [vmem:[%s246 + $0x488] sm:$0xff] %v537
                %v539 = vld [vmem:[%s245 + $0x3090] sm:$0xff]
                %540 = vst [vmem:[%s246 + $0x490] sm:$0xff] %v539
                %v541 = vld [vmem:[%s245 + $0x3098] sm:$0xff]
                %542 = vst [vmem:[%s246 + $0x498] sm:$0xff] %v541
                %v543 = vld [vmem:[%s245 + $0x30a0] sm:$0xff]
                %544 = vst [vmem:[%s246 + $0x4a0] sm:$0xff] %v543
                %v545 = vld [vmem:[%s245 + $0x30a8] sm:$0xff]
                %546 = vst [vmem:[%s246 + $0x4a8] sm:$0xff] %v545
                %v547 = vld [vmem:[%s245 + $0x30b0] sm:$0xff]
                %548 = vst [vmem:[%s246 + $0x4b0] sm:$0xff] %v547
                %v549 = vld [vmem:[%s245 + $0x30b8] sm:$0xff]
                %550 = vst [vmem:[%s246 + $0x4b8] sm:$0xff] %v549
                %v551 = vld [vmem:[%s245 + $0x30c0] sm:$0xff]
                %552 = vst [vmem:[%s246 + $0x4c0] sm:$0xff] %v551
                %v553 = vld [vmem:[%s245 + $0x30c8] sm:$0xff]
                %554 = vst [vmem:[%s246 + $0x4c8] sm:$0xff] %v553
                %v555 = vld [vmem:[%s245 + $0x30d0] sm:$0xff]
                %556 = vst [vmem:[%s246 + $0x4d0] sm:$0xff] %v555
                %v557 = vld [vmem:[%s245 + $0x30d8] sm:$0xff]
                %558 = vst [vmem:[%s246 + $0x4d8] sm:$0xff] %v557
                %v559 = vld [vmem:[%s245 + $0x30e0] sm:$0xff]
                %560 = vst [vmem:[%s246 + $0x4e0] sm:$0xff] %v559
                %v561 = vld [vmem:[%s245 + $0x30e8] sm:$0xff]
                %562 = vst [vmem:[%s246 + $0x4e8] sm:$0xff] %v561
                %v563 = vld [vmem:[%s245 + $0x30f0] sm:$0xff]
                %564 = vst [vmem:[%s246 + $0x4f0] sm:$0xff] %v563
                %v565 = vld [vmem:[%s245 + $0x30f8] sm:$0xff]
                %566 = vst [vmem:[%s246 + $0x4f8] sm:$0xff] %v565
                %v567 = vld [vmem:[%s245 + $0x3c00] sm:$0xff]
                %568 = vst [vmem:[%s246 + $0x500] sm:$0xff] %v567
                %v569 = vld [vmem:[%s245 + $0x3c08] sm:$0xff]
                %570 = vst [vmem:[%s246 + $0x508] sm:$0xff] %v569
                %v571 = vld [vmem:[%s245 + $0x3c10] sm:$0xff]
                %572 = vst [vmem:[%s246 + $0x510] sm:$0xff] %v571
                %v573 = vld [vmem:[%s245 + $0x3c18] sm:$0xff]
                %574 = vst [vmem:[%s246 + $0x518] sm:$0xff] %v573
                %v575 = vld [vmem:[%s245 + $0x3c20] sm:$0xff]
                %576 = vst [vmem:[%s246 + $0x520] sm:$0xff] %v575
                %v577 = vld [vmem:[%s245 + $0x3c28] sm:$0xff]
                %578 = vst [vmem:[%s246 + $0x528] sm:$0xff] %v577
                %v579 = vld [vmem:[%s245 + $0x3c30] sm:$0xff]
                %580 = vst [vmem:[%s246 + $0x530] sm:$0xff] %v579
                %v581 = vld [vmem:[%s245 + $0x3c38] sm:$0xff]
                %582 = vst [vmem:[%s246 + $0x538] sm:$0xff] %v581
                %v583 = vld [vmem:[%s245 + $0x3c40] sm:$0xff]
                %584 = vst [vmem:[%s246 + $0x540] sm:$0xff] %v583
                %v585 = vld [vmem:[%s245 + $0x3c48] sm:$0xff]
                %586 = vst [vmem:[%s246 + $0x548] sm:$0xff] %v585
                %v587 = vld [vmem:[%s245 + $0x3c50] sm:$0xff]
                %588 = vst [vmem:[%s246 + $0x550] sm:$0xff] %v587
                %v589 = vld [vmem:[%s245 + $0x3c58] sm:$0xff]
                %590 = vst [vmem:[%s246 + $0x558] sm:$0xff] %v589
                %v591 = vld [vmem:[%s245 + $0x3c60] sm:$0xff]
                %592 = vst [vmem:[%s246 + $0x560] sm:$0xff] %v591
                %v593 = vld [vmem:[%s245 + $0x3c68] sm:$0xff]
                %594 = vst [vmem:[%s246 + $0x568] sm:$0xff] %v593
                %v595 = vld [vmem:[%s245 + $0x3c70] sm:$0xff]
                %596 = vst [vmem:[%s246 + $0x570] sm:$0xff] %v595
                %v597 = vld [vmem:[%s245 + $0x3c78] sm:$0xff]
                %598 = vst [vmem:[%s246 + $0x578] sm:$0xff] %v597
                %v599 = vld [vmem:[%s245 + $0x3c80] sm:$0xff]
                %600 = vst [vmem:[%s246 + $0x580] sm:$0xff] %v599
                %v601 = vld [vmem:[%s245 + $0x3c88] sm:$0xff]
                %602 = vst [vmem:[%s246 + $0x588] sm:$0xff] %v601
                %v603 = vld [vmem:[%s245 + $0x3c90] sm:$0xff]
                %604 = vst [vmem:[%s246 + $0x590] sm:$0xff] %v603
                %v605 = vld [vmem:[%s245 + $0x3c98] sm:$0xff]
                %606 = vst [vmem:[%s246 + $0x598] sm:$0xff] %v605
                %v607 = vld [vmem:[%s245 + $0x3ca0] sm:$0xff]
                %608 = vst [vmem:[%s246 + $0x5a0] sm:$0xff] %v607
                %v609 = vld [vmem:[%s245 + $0x3ca8] sm:$0xff]
                %610 = vst [vmem:[%s246 + $0x5a8] sm:$0xff] %v609
                %v611 = vld [vmem:[%s245 + $0x3cb0] sm:$0xff]
                %612 = vst [vmem:[%s246 + $0x5b0] sm:$0xff] %v611
                %v613 = vld [vmem:[%s245 + $0x3cb8] sm:$0xff]
                %614 = vst [vmem:[%s246 + $0x5b8] sm:$0xff] %v613
                %v615 = vld [vmem:[%s245 + $0x3cc0] sm:$0xff]
                %616 = vst [vmem:[%s246 + $0x5c0] sm:$0xff] %v615
                %v617 = vld [vmem:[%s245 + $0x3cc8] sm:$0xff]
                %618 = vst [vmem:[%s246 + $0x5c8] sm:$0xff] %v617
                %v619 = vld [vmem:[%s245 + $0x3cd0] sm:$0xff]
                %620 = vst [vmem:[%s246 + $0x5d0] sm:$0xff] %v619
                %v621 = vld [vmem:[%s245 + $0x3cd8] sm:$0xff]
                %622 = vst [vmem:[%s246 + $0x5d8] sm:$0xff] %v621
                %v623 = vld [vmem:[%s245 + $0x3ce0] sm:$0xff]
                %624 = vst [vmem:[%s246 + $0x5e0] sm:$0xff] %v623
                %v625 = vld [vmem:[%s245 + $0x3ce8] sm:$0xff]
                %626 = vst [vmem:[%s246 + $0x5e8] sm:$0xff] %v625
                %v627 = vld [vmem:[%s245 + $0x3cf0] sm:$0xff]
                %628 = vst [vmem:[%s246 + $0x5f0] sm:$0xff] %v627
                %v629 = vld [vmem:[%s245 + $0x3cf8] sm:$0xff]
                %630 = vst [vmem:[%s246 + $0x5f8] sm:$0xff] %v629
                %v631 = vld [vmem:[%s245 + $0x4800] sm:$0xff]
                %632 = vst [vmem:[%s246 + $0x600] sm:$0xff] %v631
                %v633 = vld [vmem:[%s245 + $0x4808] sm:$0xff]
                %634 = vst [vmem:[%s246 + $0x608] sm:$0xff] %v633
                %v635 = vld [vmem:[%s245 + $0x4810] sm:$0xff]
                %636 = vst [vmem:[%s246 + $0x610] sm:$0xff] %v635
                %v637 = vld [vmem:[%s245 + $0x4818] sm:$0xff]
                %638 = vst [vmem:[%s246 + $0x618] sm:$0xff] %v637
                %v639 = vld [vmem:[%s245 + $0x4820] sm:$0xff]
                %640 = vst [vmem:[%s246 + $0x620] sm:$0xff] %v639
                %v641 = vld [vmem:[%s245 + $0x4828] sm:$0xff]
                %642 = vst [vmem:[%s246 + $0x628] sm:$0xff] %v641
                %v643 = vld [vmem:[%s245 + $0x4830] sm:$0xff]
                %644 = vst [vmem:[%s246 + $0x630] sm:$0xff] %v643
                %v645 = vld [vmem:[%s245 + $0x4838] sm:$0xff]
                %646 = vst [vmem:[%s246 + $0x638] sm:$0xff] %v645
                %v647 = vld [vmem:[%s245 + $0x4840] sm:$0xff]
                %648 = vst [vmem:[%s246 + $0x640] sm:$0xff] %v647
                %v649 = vld [vmem:[%s245 + $0x4848] sm:$0xff]
                %650 = vst [vmem:[%s246 + $0x648] sm:$0xff] %v649
                %v651 = vld [vmem:[%s245 + $0x4850] sm:$0xff]
                %652 = vst [vmem:[%s246 + $0x650] sm:$0xff] %v651
                %v653 = vld [vmem:[%s245 + $0x4858] sm:$0xff]
                %654 = vst [vmem:[%s246 + $0x658] sm:$0xff] %v653
                %v655 = vld [vmem:[%s245 + $0x4860] sm:$0xff]
                %656 = vst [vmem:[%s246 + $0x660] sm:$0xff] %v655
                %v657 = vld [vmem:[%s245 + $0x4868] sm:$0xff]
                %658 = vst [vmem:[%s246 + $0x668] sm:$0xff] %v657
                %v659 = vld [vmem:[%s245 + $0x4870] sm:$0xff]
                %660 = vst [vmem:[%s246 + $0x670] sm:$0xff] %v659
                %v661 = vld [vmem:[%s245 + $0x4878] sm:$0xff]
                %662 = vst [vmem:[%s246 + $0x678] sm:$0xff] %v661
                %v663 = vld [vmem:[%s245 + $0x4880] sm:$0xff]
                %664 = vst [vmem:[%s246 + $0x680] sm:$0xff] %v663
                %v665 = vld [vmem:[%s245 + $0x4888] sm:$0xff]
                %666 = vst [vmem:[%s246 + $0x688] sm:$0xff] %v665
                %v667 = vld [vmem:[%s245 + $0x4890] sm:$0xff]
                %668 = vst [vmem:[%s246 + $0x690] sm:$0xff] %v667
                %v669 = vld [vmem:[%s245 + $0x4898] sm:$0xff]
                %670 = vst [vmem:[%s246 + $0x698] sm:$0xff] %v669
                %v671 = vld [vmem:[%s245 + $0x48a0] sm:$0xff]
                %672 = vst [vmem:[%s246 + $0x6a0] sm:$0xff] %v671
                %v673 = vld [vmem:[%s245 + $0x48a8] sm:$0xff]
                %674 = vst [vmem:[%s246 + $0x6a8] sm:$0xff] %v673
                %v675 = vld [vmem:[%s245 + $0x48b0] sm:$0xff]
                %676 = vst [vmem:[%s246 + $0x6b0] sm:$0xff] %v675
                %v677 = vld [vmem:[%s245 + $0x48b8] sm:$0xff]
                %678 = vst [vmem:[%s246 + $0x6b8] sm:$0xff] %v677
                %v679 = vld [vmem:[%s245 + $0x48c0] sm:$0xff]
                %680 = vst [vmem:[%s246 + $0x6c0] sm:$0xff] %v679
                %v681 = vld [vmem:[%s245 + $0x48c8] sm:$0xff]
                %682 = vst [vmem:[%s246 + $0x6c8] sm:$0xff] %v681
                %v683 = vld [vmem:[%s245 + $0x48d0] sm:$0xff]
                %684 = vst [vmem:[%s246 + $0x6d0] sm:$0xff] %v683
                %v685 = vld [vmem:[%s245 + $0x48d8] sm:$0xff]
                %686 = vst [vmem:[%s246 + $0x6d8] sm:$0xff] %v685
                %v687 = vld [vmem:[%s245 + $0x48e0] sm:$0xff]
                %688 = vst [vmem:[%s246 + $0x6e0] sm:$0xff] %v687
                %v689 = vld [vmem:[%s245 + $0x48e8] sm:$0xff]
                %690 = vst [vmem:[%s246 + $0x6e8] sm:$0xff] %v689
                %v691 = vld [vmem:[%s245 + $0x48f0] sm:$0xff]
                %692 = vst [vmem:[%s246 + $0x6f0] sm:$0xff] %v691
                %v693 = vld [vmem:[%s245 + $0x48f8] sm:$0xff]
                %694 = vst [vmem:[%s246 + $0x6f8] sm:$0xff] %v693
                %v695 = vld [vmem:[%s245 + $0x5400] sm:$0xff]
                %696 = vst [vmem:[%s246 + $0x700] sm:$0xff] %v695
                %v697 = vld [vmem:[%s245 + $0x5408] sm:$0xff]
                %698 = vst [vmem:[%s246 + $0x708] sm:$0xff] %v697
                %v699 = vld [vmem:[%s245 + $0x5410] sm:$0xff]
                %700 = vst [vmem:[%s246 + $0x710] sm:$0xff] %v699
                %v701 = vld [vmem:[%s245 + $0x5418] sm:$0xff]
                %702 = vst [vmem:[%s246 + $0x718] sm:$0xff] %v701
                %v703 = vld [vmem:[%s245 + $0x5420] sm:$0xff]
                %704 = vst [vmem:[%s246 + $0x720] sm:$0xff] %v703
                %v705 = vld [vmem:[%s245 + $0x5428] sm:$0xff]
                %706 = vst [vmem:[%s246 + $0x728] sm:$0xff] %v705
                %v707 = vld [vmem:[%s245 + $0x5430] sm:$0xff]
                %708 = vst [vmem:[%s246 + $0x730] sm:$0xff] %v707
                %v709 = vld [vmem:[%s245 + $0x5438] sm:$0xff]
                %710 = vst [vmem:[%s246 + $0x738] sm:$0xff] %v709
                %v711 = vld [vmem:[%s245 + $0x5440] sm:$0xff]
                %712 = vst [vmem:[%s246 + $0x740] sm:$0xff] %v711
                %v713 = vld [vmem:[%s245 + $0x5448] sm:$0xff]
                %714 = vst [vmem:[%s246 + $0x748] sm:$0xff] %v713
                %v715 = vld [vmem:[%s245 + $0x5450] sm:$0xff]
                %716 = vst [vmem:[%s246 + $0x750] sm:$0xff] %v715
                %v717 = vld [vmem:[%s245 + $0x5458] sm:$0xff]
                %718 = vst [vmem:[%s246 + $0x758] sm:$0xff] %v717
                %v719 = vld [vmem:[%s245 + $0x5460] sm:$0xff]
                %720 = vst [vmem:[%s246 + $0x760] sm:$0xff] %v719
                %v721 = vld [vmem:[%s245 + $0x5468] sm:$0xff]
                %722 = vst [vmem:[%s246 + $0x768] sm:$0xff] %v721
                %v723 = vld [vmem:[%s245 + $0x5470] sm:$0xff]
                %724 = vst [vmem:[%s246 + $0x770] sm:$0xff] %v723
                %v725 = vld [vmem:[%s245 + $0x5478] sm:$0xff]
                %726 = vst [vmem:[%s246 + $0x778] sm:$0xff] %v725
                %v727 = vld [vmem:[%s245 + $0x5480] sm:$0xff]
                %728 = vst [vmem:[%s246 + $0x780] sm:$0xff] %v727
                %v729 = vld [vmem:[%s245 + $0x5488] sm:$0xff]
                %730 = vst [vmem:[%s246 + $0x788] sm:$0xff] %v729
                %v731 = vld [vmem:[%s245 + $0x5490] sm:$0xff]
                %732 = vst [vmem:[%s246 + $0x790] sm:$0xff] %v731
                %v733 = vld [vmem:[%s245 + $0x5498] sm:$0xff]
                %734 = vst [vmem:[%s246 + $0x798] sm:$0xff] %v733
                %v735 = vld [vmem:[%s245 + $0x54a0] sm:$0xff]
                %736 = vst [vmem:[%s246 + $0x7a0] sm:$0xff] %v735
                %v737 = vld [vmem:[%s245 + $0x54a8] sm:$0xff]
                %738 = vst [vmem:[%s246 + $0x7a8] sm:$0xff] %v737
                %v739 = vld [vmem:[%s245 + $0x54b0] sm:$0xff]
                %740 = vst [vmem:[%s246 + $0x7b0] sm:$0xff] %v739
                %v741 = vld [vmem:[%s245 + $0x54b8] sm:$0xff]
                %742 = vst [vmem:[%s246 + $0x7b8] sm:$0xff] %v741
                %v743 = vld [vmem:[%s245 + $0x54c0] sm:$0xff]
                %744 = vst [vmem:[%s246 + $0x7c0] sm:$0xff] %v743
                %v745 = vld [vmem:[%s245 + $0x54c8] sm:$0xff]
                %746 = vst [vmem:[%s246 + $0x7c8] sm:$0xff] %v745
                %v747 = vld [vmem:[%s245 + $0x54d0] sm:$0xff]
                %748 = vst [vmem:[%s246 + $0x7d0] sm:$0xff] %v747
                %v749 = vld [vmem:[%s245 + $0x54d8] sm:$0xff]
                %750 = vst [vmem:[%s246 + $0x7d8] sm:$0xff] %v749
                %v751 = vld [vmem:[%s245 + $0x54e0] sm:$0xff]
                %752 = vst [vmem:[%s246 + $0x7e0] sm:$0xff] %v751
                %v753 = vld [vmem:[%s245 + $0x54e8] sm:$0xff]
                %754 = vst [vmem:[%s246 + $0x7e8] sm:$0xff] %v753
                %v755 = vld [vmem:[%s245 + $0x54f0] sm:$0xff]
                %756 = vst [vmem:[%s246 + $0x7f0] sm:$0xff] %v755
                %v757 = vld [vmem:[%s245 + $0x54f8] sm:$0xff]
                %758 = vst [vmem:[%s246 + $0x7f8] sm:$0xff] %v757
                %v759 = vld [vmem:[%s245 + $0x6000] sm:$0xff]
                %760 = vst [vmem:[%s246 + $0x800] sm:$0xff] %v759
                %v761 = vld [vmem:[%s245 + $0x6008] sm:$0xff]
                %762 = vst [vmem:[%s246 + $0x808] sm:$0xff] %v761
                %v763 = vld [vmem:[%s245 + $0x6010] sm:$0xff]
                %764 = vst [vmem:[%s246 + $0x810] sm:$0xff] %v763
                %v765 = vld [vmem:[%s245 + $0x6018] sm:$0xff]
                %766 = vst [vmem:[%s246 + $0x818] sm:$0xff] %v765
                %v767 = vld [vmem:[%s245 + $0x6020] sm:$0xff]
                %768 = vst [vmem:[%s246 + $0x820] sm:$0xff] %v767
                %v769 = vld [vmem:[%s245 + $0x6028] sm:$0xff]
                %770 = vst [vmem:[%s246 + $0x828] sm:$0xff] %v769
                %v771 = vld [vmem:[%s245 + $0x6030] sm:$0xff]
                %772 = vst [vmem:[%s246 + $0x830] sm:$0xff] %v771
                %v773 = vld [vmem:[%s245 + $0x6038] sm:$0xff]
                %774 = vst [vmem:[%s246 + $0x838] sm:$0xff] %v773
                %v775 = vld [vmem:[%s245 + $0x6040] sm:$0xff]
                %776 = vst [vmem:[%s246 + $0x840] sm:$0xff] %v775
                %v777 = vld [vmem:[%s245 + $0x6048] sm:$0xff]
                %778 = vst [vmem:[%s246 + $0x848] sm:$0xff] %v777
                %v779 = vld [vmem:[%s245 + $0x6050] sm:$0xff]
                %780 = vst [vmem:[%s246 + $0x850] sm:$0xff] %v779
                %v781 = vld [vmem:[%s245 + $0x6058] sm:$0xff]
                %782 = vst [vmem:[%s246 + $0x858] sm:$0xff] %v781
                %v783 = vld [vmem:[%s245 + $0x6060] sm:$0xff]
                %784 = vst [vmem:[%s246 + $0x860] sm:$0xff] %v783
                %v785 = vld [vmem:[%s245 + $0x6068] sm:$0xff]
                %786 = vst [vmem:[%s246 + $0x868] sm:$0xff] %v785
                %v787 = vld [vmem:[%s245 + $0x6070] sm:$0xff]
                %788 = vst [vmem:[%s246 + $0x870] sm:$0xff] %v787
                %v789 = vld [vmem:[%s245 + $0x6078] sm:$0xff]
                %790 = vst [vmem:[%s246 + $0x878] sm:$0xff] %v789
                %v791 = vld [vmem:[%s245 + $0x6080] sm:$0xff]
                %792 = vst [vmem:[%s246 + $0x880] sm:$0xff] %v791
                %v793 = vld [vmem:[%s245 + $0x6088] sm:$0xff]
                %794 = vst [vmem:[%s246 + $0x888] sm:$0xff] %v793
                %v795 = vld [vmem:[%s245 + $0x6090] sm:$0xff]
                %796 = vst [vmem:[%s246 + $0x890] sm:$0xff] %v795
                %v797 = vld [vmem:[%s245 + $0x6098] sm:$0xff]
                %798 = vst [vmem:[%s246 + $0x898] sm:$0xff] %v797
                %v799 = vld [vmem:[%s245 + $0x60a0] sm:$0xff]
                %800 = vst [vmem:[%s246 + $0x8a0] sm:$0xff] %v799
                %v801 = vld [vmem:[%s245 + $0x60a8] sm:$0xff]
                %802 = vst [vmem:[%s246 + $0x8a8] sm:$0xff] %v801
                %v803 = vld [vmem:[%s245 + $0x60b0] sm:$0xff]
                %804 = vst [vmem:[%s246 + $0x8b0] sm:$0xff] %v803
                %v805 = vld [vmem:[%s245 + $0x60b8] sm:$0xff]
                %806 = vst [vmem:[%s246 + $0x8b8] sm:$0xff] %v805
                %v807 = vld [vmem:[%s245 + $0x60c0] sm:$0xff]
                %808 = vst [vmem:[%s246 + $0x8c0] sm:$0xff] %v807
                %v809 = vld [vmem:[%s245 + $0x60c8] sm:$0xff]
                %810 = vst [vmem:[%s246 + $0x8c8] sm:$0xff] %v809
                %v811 = vld [vmem:[%s245 + $0x60d0] sm:$0xff]
                %812 = vst [vmem:[%s246 + $0x8d0] sm:$0xff] %v811
                %v813 = vld [vmem:[%s245 + $0x60d8] sm:$0xff]
                %814 = vst [vmem:[%s246 + $0x8d8] sm:$0xff] %v813
                %v815 = vld [vmem:[%s245 + $0x60e0] sm:$0xff]
                %816 = vst [vmem:[%s246 + $0x8e0] sm:$0xff] %v815
                %v817 = vld [vmem:[%s245 + $0x60e8] sm:$0xff]
                %818 = vst [vmem:[%s246 + $0x8e8] sm:$0xff] %v817
                %v819 = vld [vmem:[%s245 + $0x60f0] sm:$0xff]
                %820 = vst [vmem:[%s246 + $0x8f0] sm:$0xff] %v819
                %v821 = vld [vmem:[%s245 + $0x60f8] sm:$0xff]
                %822 = vst [vmem:[%s246 + $0x8f8] sm:$0xff] %v821
              $region49: #{conv_blockT_forward.5} parent=43 // loop_footer
                %s244 = sadd.s32 1, %s240
              $region50: #{conv_blockT_forward.5} parent=43 // loop_footer_branch
                %239 = sbr.rel target = $region46
              $region51: #{conv_blockT_forward.5} parent=43 // loop_exit
                _
            $region44: #{conv_blockT_forward.5} parent=39 // pred_fallthru
              _
            // Predicated region
            $region52: #{conv_blockT_forward.5} parent=39 // pred_check
              _
            $region53: #{conv_blockT_forward.5} parent=39 // pred_check_branch
              %824 = sbr.rel target = $region55
            $region54: #{conv_blockT_forward.5} parent=39 // pred_region
              _
            $region55: #{conv_blockT_forward.5} parent=39 // pred_fallthru
              _
          $region40: #{conv_blockT_forward.5} parent=35 // pred_fallthru
            _
          %825 = vnop
        $region36: #{conv_blockT_forward.5} parent=31 // pred_fallthru
          _
        // Predicated region
        $region56: #{conv_blockT_forward.5} parent=31 // pred_check
          %p826 = pneg %p158
        $region57: #{conv_blockT_forward.5} parent=31 // pred_check_branch
          %828 = sbr.rel (%p826) target = $region59
        $region58: #{conv_blockT_forward.5} parent=31 // pred_region
          %s829 = smul.u32 32, %s20
          %p830 = scmp.lt.s32.totalorder %s19, 1
          %s831 = scalar_select %p830, %s19, 1
          %p832 = scmp.lt.s32.totalorder %s829, 383
          %s833 = scalar_select %p832, %s829, 383
          %s834 = smul.addr %s831, 384
          %s835 = sadd.s32 %s833, %s834
          %s836 = smul.addr %s835, 8
          %s837 = scalar_lea.vmem %s5, %s836
          %s838 = smul.u32 32, %s20
        $region59: #{conv_blockT_forward.5} parent=31 // pred_fallthru
          _
      $region32: #{conv_blockT_forward.5} parent=5 // pred_fallthru
        _
      %p839 = scmp.le.s32.totalorder 1, %s12
      %p840 = scmp.lt.s32.totalorder %s12, 25
      %p841 = pnand %p839, %p840
      %p842 = pneg %p841
      // Predicated region
      $region60: #{conv_blockT_forward.5} parent=5 // pred_check
        _
      $region61: #{conv_blockT_forward.5} parent=5 // pred_check_branch
        %844 = sbr.rel (%p841) target = $region63
      $region62: #{conv_blockT_forward.5} parent=5 // pred_region
        %s845 = ssub.s32 %s12, 1
        %s846 = sand.u32 %s39, 1
        %s847 = sand.u32 %s39, 1
        %s848 = smul.addr %s847, 2304
        %s849 = scalar_lea.vmem [#allocation2], %s848
        // Predicated region
        $region64: #{conv_blockT_forward.5} parent=62 // pred_check
          %p850 = pneg %p52
        $region65: #{conv_blockT_forward.5} parent=62 // pred_check_branch
          %852 = sbr.rel (%p850) target = $region67
        $region66: #{conv_blockT_forward.5} parent=62 // pred_region
          _
        $region67: #{conv_blockT_forward.5} parent=62 // pred_fallthru
          _
        %s853 = sand.u32 %s39, 1
        %s854 = sand.u32 %s39, 1
        %s855 = smul.addr %s854, 2304
        %s856 = scalar_lea.vmem [#allocation2], %s855
        %p857 = pneg %p52
        %p858 = pneg %p49
        %p859 = pneg %p73
        %p860 = pneg %p70
        %p861 = pneg %p94
        %p862 = pneg %p91
        %p863 = pneg %p115
        %p864 = pneg %p112
        %p865 = pneg %p136
        %p866 = pneg %p133
        %s867 = smul.u32 32, %s22
        %p868 = scmp.lt.s32.totalorder %s21, 1
        %s869 = scalar_select %p868, %s21, 1
        %p870 = scmp.lt.s32.totalorder %s867, 383
        %s871 = scalar_select %p870, %s867, 383
        %s872 = smul.addr %s869, 384
        %s873 = sadd.s32 %s871, %s872
        %s874 = smul.addr %s873, 8
        %s875 = scalar_lea.vmem %s5, %s874
        %p876 = pneg %p164
        %p877 = pneg %p161
        %p878 = pneg %p192
        %p879 = pneg %p189
        %s880 = smul.u32 32, %s22
        %p881 = scmp.lt.s32.totalorder %s21, 1
        %s882 = scalar_select %p881, %s21, 1
        %p883 = scmp.lt.s32.totalorder %s880, 383
        %s884 = scalar_select %p883, %s880, 383
        %s885 = smul.addr %s882, 384
        %s886 = sadd.s32 %s884, %s885
        %s887 = smul.addr %s886, 8
        %s888 = scalar_lea.vmem %s6, %s887
        %s889 = smul.u32 32, %s22
        %s890 = smul.u32 32, %s22
        %p891 = scmp.lt.s32.totalorder %s21, 1
        %s892 = scalar_select %p891, %s21, 1
        %p893 = scmp.lt.s32.totalorder %s890, 383
        %s894 = scalar_select %p893, %s890, 383
        %s895 = smul.addr %s892, 384
        %s896 = sadd.s32 %s894, %s895
        %s897 = smul.addr %s896, 8
        %s898 = scalar_lea.vmem %s5, %s897
        %s899 = smul.u32 32, %s22
        %s900 = smul.u32 32, %s22
        %p901 = scmp.lt.s32.totalorder %s21, 1
        %s902 = scalar_select %p901, %s21, 1
        %p903 = scmp.lt.s32.totalorder %s900, 383
        %s904 = scalar_select %p903, %s900, 383
        %s905 = smul.addr %s902, 384
        %s906 = sadd.s32 %s904, %s905
        %s907 = smul.addr %s906, 8
        %s908 = scalar_lea.vmem %s6, %s907
        %s909 = smul.u32 32, %s22
        %v910 = vld [vmem:[%s849] sm:$0xff]
        %v911 = vld [vmem:[%s849 + $0x8] sm:$0xff]
        %v912 = vld [vmem:[%s849 + $0x10] sm:$0xff]
        %v913 = vld [vmem:[%s849 + $0x18] sm:$0xff]
        %v914 = vld [vmem:[%s849 + $0x20] sm:$0xff]
        %v915 = vld [vmem:[%s849 + $0x28] sm:$0xff]
        %v916 = vld [vmem:[%s849 + $0x30] sm:$0xff]
        %v917 = vld [vmem:[%s849 + $0x38] sm:$0xff]
        %v918 = vld [vmem:[%s849 + $0x40] sm:$0xff]
        %v919 = vld [vmem:[%s849 + $0x48] sm:$0xff]
        %v920 = vld [vmem:[%s849 + $0x50] sm:$0xff]
        %v921 = vld [vmem:[%s849 + $0x58] sm:$0xff]
        %v922 = vld [vmem:[%s849 + $0x60] sm:$0xff]
        %v923 = vld [vmem:[%s849 + $0x68] sm:$0xff]
        %v924 = vld [vmem:[%s849 + $0x70] sm:$0xff]
        %v925 = vld [vmem:[%s849 + $0x78] sm:$0xff]
        %v926 = vld [vmem:[%s849 + $0x80] sm:$0xff]
        %v927 = vld [vmem:[%s849 + $0x88] sm:$0xff]
        %v928 = vld [vmem:[%s849 + $0x90] sm:$0xff]
        %v929 = vld [vmem:[%s849 + $0x98] sm:$0xff]
        %v930 = vld [vmem:[%s849 + $0xa0] sm:$0xff]
        %v931 = vld [vmem:[%s849 + $0xa8] sm:$0xff]
        %v932 = vld [vmem:[%s849 + $0xb0] sm:$0xff]
        %v933 = vld [vmem:[%s849 + $0xb8] sm:$0xff]
        %v934 = vld [vmem:[%s849 + $0xc0] sm:$0xff]
        %v935 = vld [vmem:[%s849 + $0xc8] sm:$0xff]
        %v936 = vld [vmem:[%s849 + $0xd0] sm:$0xff]
        %v937 = vld [vmem:[%s849 + $0xd8] sm:$0xff]
        %v938 = vld [vmem:[%s849 + $0xe0] sm:$0xff]
        %v939 = vld [vmem:[%s849 + $0xe8] sm:$0xff]
        %v940 = vld [vmem:[%s849 + $0xf0] sm:$0xff]
        %v941 = vld [vmem:[%s849 + $0xf8] sm:$0xff]
        %v942 = vld [vmem:[%s849 + $0x100] sm:$0xff]
        %v943 = vld [vmem:[%s849 + $0x108] sm:$0xff]
        %v944 = vld [vmem:[%s849 + $0x110] sm:$0xff]
        %v945 = vld [vmem:[%s849 + $0x118] sm:$0xff]
        %v946 = vld [vmem:[%s849 + $0x120] sm:$0xff]
        %v947 = vld [vmem:[%s849 + $0x128] sm:$0xff]
        %v948 = vld [vmem:[%s849 + $0x130] sm:$0xff]
        %v949 = vld [vmem:[%s849 + $0x138] sm:$0xff]
        %v950 = vld [vmem:[%s849 + $0x140] sm:$0xff]
        %v951 = vld [vmem:[%s849 + $0x148] sm:$0xff]
        %v952 = vld [vmem:[%s849 + $0x150] sm:$0xff]
        %v953 = vld [vmem:[%s849 + $0x158] sm:$0xff]
        %v954 = vld [vmem:[%s849 + $0x160] sm:$0xff]
        %v955 = vld [vmem:[%s849 + $0x168] sm:$0xff]
        %v956 = vld [vmem:[%s849 + $0x170] sm:$0xff]
        %v957 = vld [vmem:[%s849 + $0x178] sm:$0xff]
        %v958 = vld [vmem:[%s849 + $0x180] sm:$0xff]
        %v959 = vld [vmem:[%s849 + $0x188] sm:$0xff]
        %v960 = vld [vmem:[%s849 + $0x190] sm:$0xff]
        %v961 = vld [vmem:[%s849 + $0x198] sm:$0xff]
        %v962 = vld [vmem:[%s849 + $0x1a0] sm:$0xff]
        %v963 = vld [vmem:[%s849 + $0x1a8] sm:$0xff]
        %v964 = vld [vmem:[%s849 + $0x1b0] sm:$0xff]
        %v965 = vld [vmem:[%s849 + $0x1b8] sm:$0xff]
        %v966 = vld [vmem:[%s849 + $0x1c0] sm:$0xff]
        %v967 = vld [vmem:[%s849 + $0x1c8] sm:$0xff]
        %v968 = vld [vmem:[%s849 + $0x1d0] sm:$0xff]
        %v969 = vld [vmem:[%s849 + $0x1d8] sm:$0xff]
        %v970 = vld [vmem:[%s849 + $0x1e0] sm:$0xff]
        %v971 = vld [vmem:[%s849 + $0x1e8] sm:$0xff]
        %v972 = vld [vmem:[%s849 + $0x1f0] sm:$0xff]
        %v973 = vld [vmem:[%s849 + $0x1f8] sm:$0xff]
        %v974 = vld [vmem:[%s849 + $0x200] sm:$0xff]
        %v975 = vld [vmem:[%s849 + $0x208] sm:$0xff]
        %v976 = vld [vmem:[%s849 + $0x210] sm:$0xff]
        %v977 = vld [vmem:[%s849 + $0x218] sm:$0xff]
        %v978 = vld [vmem:[%s849 + $0x220] sm:$0xff]
        %v979 = vld [vmem:[%s849 + $0x228] sm:$0xff]
        %v980 = vld [vmem:[%s849 + $0x230] sm:$0xff]
        %v981 = vld [vmem:[%s849 + $0x238] sm:$0xff]
        %v982 = vld [vmem:[%s849 + $0x240] sm:$0xff]
        %v983 = vld [vmem:[%s849 + $0x248] sm:$0xff]
        %v984 = vld [vmem:[%s849 + $0x250] sm:$0xff]
        %v985 = vld [vmem:[%s849 + $0x258] sm:$0xff]
        %v986 = vld [vmem:[%s849 + $0x260] sm:$0xff]
        %v987 = vld [vmem:[%s849 + $0x268] sm:$0xff]
        %v988 = vld [vmem:[%s849 + $0x270] sm:$0xff]
        %v989 = vld [vmem:[%s849 + $0x278] sm:$0xff]
        %v990 = vld [vmem:[%s849 + $0x280] sm:$0xff]
        %v991 = vld [vmem:[%s849 + $0x288] sm:$0xff]
        %v992 = vld [vmem:[%s849 + $0x290] sm:$0xff]
        %v993 = vld [vmem:[%s849 + $0x298] sm:$0xff]
        %v994 = vld [vmem:[%s849 + $0x2a0] sm:$0xff]
        %v995 = vld [vmem:[%s849 + $0x2a8] sm:$0xff]
        %v996 = vld [vmem:[%s849 + $0x2b0] sm:$0xff]
        %v997 = vld [vmem:[%s849 + $0x2b8] sm:$0xff]
        %v998 = vld [vmem:[%s849 + $0x2c0] sm:$0xff]
        %v999 = vld [vmem:[%s849 + $0x2c8] sm:$0xff]
        %v1000 = vld [vmem:[%s849 + $0x2d0] sm:$0xff]
        %v1001 = vld [vmem:[%s849 + $0x2d8] sm:$0xff]
        %v1002 = vld [vmem:[%s849 + $0x2e0] sm:$0xff]
        %v1003 = vld [vmem:[%s849 + $0x2e8] sm:$0xff]
        %v1004 = vld [vmem:[%s849 + $0x2f0] sm:$0xff]
        %v1005 = vld [vmem:[%s849 + $0x2f8] sm:$0xff]
        %v1006 = vld [vmem:[%s849 + $0x300] sm:$0xff]
        %v1007 = vld [vmem:[%s849 + $0x308] sm:$0xff]
        %v1008 = vld [vmem:[%s849 + $0x310] sm:$0xff]
        %v1009 = vld [vmem:[%s849 + $0x318] sm:$0xff]
        %v1010 = vld [vmem:[%s849 + $0x320] sm:$0xff]
        %v1011 = vld [vmem:[%s849 + $0x328] sm:$0xff]
        %v1012 = vld [vmem:[%s849 + $0x330] sm:$0xff]
        %v1013 = vld [vmem:[%s849 + $0x338] sm:$0xff]
        %v1014 = vld [vmem:[%s849 + $0x340] sm:$0xff]
        %v1015 = vld [vmem:[%s849 + $0x348] sm:$0xff]
        %v1016 = vld [vmem:[%s849 + $0x350] sm:$0xff]
        %v1017 = vld [vmem:[%s849 + $0x358] sm:$0xff]
        %v1018 = vld [vmem:[%s849 + $0x360] sm:$0xff]
        %v1019 = vld [vmem:[%s849 + $0x368] sm:$0xff]
        %v1020 = vld [vmem:[%s849 + $0x370] sm:$0xff]
        %v1021 = vld [vmem:[%s849 + $0x378] sm:$0xff]
        %v1022 = vld [vmem:[%s849 + $0x380] sm:$0xff]
        %v1023 = vld [vmem:[%s849 + $0x388] sm:$0xff]
        %v1024 = vld [vmem:[%s849 + $0x390] sm:$0xff]
        %v1025 = vld [vmem:[%s849 + $0x398] sm:$0xff]
        %v1026 = vld [vmem:[%s849 + $0x3a0] sm:$0xff]
        %v1027 = vld [vmem:[%s849 + $0x3a8] sm:$0xff]
        %v1028 = vld [vmem:[%s849 + $0x3b0] sm:$0xff]
        %v1029 = vld [vmem:[%s849 + $0x3b8] sm:$0xff]
        %v1030 = vld [vmem:[%s849 + $0x3c0] sm:$0xff]
        %v1031 = vld [vmem:[%s849 + $0x3c8] sm:$0xff]
        %v1032 = vld [vmem:[%s849 + $0x3d0] sm:$0xff]
        %v1033 = vld [vmem:[%s849 + $0x3d8] sm:$0xff]
        %v1034 = vld [vmem:[%s849 + $0x3e0] sm:$0xff]
        %v1035 = vld [vmem:[%s849 + $0x3e8] sm:$0xff]
        %v1036 = vld [vmem:[%s849 + $0x3f0] sm:$0xff]
        %v1037 = vld [vmem:[%s849 + $0x3f8] sm:$0xff]
        %v1038 = vld [vmem:[%s849 + $0x400] sm:$0xff]
        %v1039 = vld [vmem:[%s849 + $0x408] sm:$0xff]
        %v1040 = vld [vmem:[%s849 + $0x410] sm:$0xff]
        %v1041 = vld [vmem:[%s849 + $0x418] sm:$0xff]
        %v1042 = vld [vmem:[%s849 + $0x420] sm:$0xff]
        %v1043 = vld [vmem:[%s849 + $0x428] sm:$0xff]
        %v1044 = vld [vmem:[%s849 + $0x430] sm:$0xff]
        %v1045 = vld [vmem:[%s849 + $0x438] sm:$0xff]
        %v1046 = vld [vmem:[%s849 + $0x440] sm:$0xff]
        %v1047 = vld [vmem:[%s849 + $0x448] sm:$0xff]
        %v1048 = vld [vmem:[%s849 + $0x450] sm:$0xff]
        %v1049 = vld [vmem:[%s849 + $0x458] sm:$0xff]
        %v1050 = vld [vmem:[%s849 + $0x460] sm:$0xff]
        %v1051 = vld [vmem:[%s849 + $0x468] sm:$0xff]
        %v1052 = vld [vmem:[%s849 + $0x470] sm:$0xff]
        %v1053 = vld [vmem:[%s849 + $0x478] sm:$0xff]
        %v1054 = vld [vmem:[%s849 + $0x480] sm:$0xff]
        %v1055 = vld [vmem:[%s849 + $0x488] sm:$0xff]
        %v1056 = vld [vmem:[%s849 + $0x490] sm:$0xff]
        %v1057 = vld [vmem:[%s849 + $0x498] sm:$0xff]
        %v1058 = vld [vmem:[%s849 + $0x4a0] sm:$0xff]
        %v1059 = vld [vmem:[%s849 + $0x4a8] sm:$0xff]
        %v1060 = vld [vmem:[%s849 + $0x4b0] sm:$0xff]
        %v1061 = vld [vmem:[%s849 + $0x4b8] sm:$0xff]
        %v1062 = vld [vmem:[%s849 + $0x4c0] sm:$0xff]
        %v1063 = vld [vmem:[%s849 + $0x4c8] sm:$0xff]
        %v1064 = vld [vmem:[%s849 + $0x4d0] sm:$0xff]
        %v1065 = vld [vmem:[%s849 + $0x4d8] sm:$0xff]
        %v1066 = vld [vmem:[%s849 + $0x4e0] sm:$0xff]
        %v1067 = vld [vmem:[%s849 + $0x4e8] sm:$0xff]
        %v1068 = vld [vmem:[%s849 + $0x4f0] sm:$0xff]
        %v1069 = vld [vmem:[%s849 + $0x4f8] sm:$0xff]
        %v1070 = vld [vmem:[%s849 + $0x500] sm:$0xff]
        %v1071 = vld [vmem:[%s849 + $0x508] sm:$0xff]
        %v1072 = vld [vmem:[%s849 + $0x510] sm:$0xff]
        %v1073 = vld [vmem:[%s849 + $0x518] sm:$0xff]
        %v1074 = vld [vmem:[%s849 + $0x520] sm:$0xff]
        %v1075 = vld [vmem:[%s849 + $0x528] sm:$0xff]
        %v1076 = vld [vmem:[%s849 + $0x530] sm:$0xff]
        %v1077 = vld [vmem:[%s849 + $0x538] sm:$0xff]
        %v1078 = vld [vmem:[%s849 + $0x540] sm:$0xff]
        %v1079 = vld [vmem:[%s849 + $0x548] sm:$0xff]
        %v1080 = vld [vmem:[%s849 + $0x550] sm:$0xff]
        %v1081 = vld [vmem:[%s849 + $0x558] sm:$0xff]
        %v1082 = vld [vmem:[%s849 + $0x560] sm:$0xff]
        %v1083 = vld [vmem:[%s849 + $0x568] sm:$0xff]
        %v1084 = vld [vmem:[%s849 + $0x570] sm:$0xff]
        %v1085 = vld [vmem:[%s849 + $0x578] sm:$0xff]
        %v1086 = vld [vmem:[%s849 + $0x580] sm:$0xff]
        %v1087 = vld [vmem:[%s849 + $0x588] sm:$0xff]
        %v1088 = vld [vmem:[%s849 + $0x590] sm:$0xff]
        %v1089 = vld [vmem:[%s849 + $0x598] sm:$0xff]
        %v1090 = vld [vmem:[%s849 + $0x5a0] sm:$0xff]
        %v1091 = vld [vmem:[%s849 + $0x5a8] sm:$0xff]
        %v1092 = vld [vmem:[%s849 + $0x5b0] sm:$0xff]
        %v1093 = vld [vmem:[%s849 + $0x5b8] sm:$0xff]
        %v1094 = vld [vmem:[%s849 + $0x5c0] sm:$0xff]
        %v1095 = vld [vmem:[%s849 + $0x5c8] sm:$0xff]
        %v1096 = vld [vmem:[%s849 + $0x5d0] sm:$0xff]
        %v1097 = vld [vmem:[%s849 + $0x5d8] sm:$0xff]
        %v1098 = vld [vmem:[%s849 + $0x5e0] sm:$0xff]
        %v1099 = vld [vmem:[%s849 + $0x5e8] sm:$0xff]
        %v1100 = vld [vmem:[%s849 + $0x5f0] sm:$0xff]
        %v1101 = vld [vmem:[%s849 + $0x5f8] sm:$0xff]
        %v1102 = vld [vmem:[%s849 + $0x600] sm:$0xff]
        %v1103 = vld [vmem:[%s849 + $0x608] sm:$0xff]
        %v1104 = vld [vmem:[%s849 + $0x610] sm:$0xff]
        %v1105 = vld [vmem:[%s849 + $0x618] sm:$0xff]
        %v1106 = vld [vmem:[%s849 + $0x620] sm:$0xff]
        %v1107 = vld [vmem:[%s849 + $0x628] sm:$0xff]
        %v1108 = vld [vmem:[%s849 + $0x630] sm:$0xff]
        %v1109 = vld [vmem:[%s849 + $0x638] sm:$0xff]
        %v1110 = vld [vmem:[%s849 + $0x640] sm:$0xff]
        %v1111 = vld [vmem:[%s849 + $0x648] sm:$0xff]
        %v1112 = vld [vmem:[%s849 + $0x650] sm:$0xff]
        %v1113 = vld [vmem:[%s849 + $0x658] sm:$0xff]
        %v1114 = vld [vmem:[%s849 + $0x660] sm:$0xff]
        %v1115 = vld [vmem:[%s849 + $0x668] sm:$0xff]
        %v1116 = vld [vmem:[%s849 + $0x670] sm:$0xff]
        %v1117 = vld [vmem:[%s849 + $0x678] sm:$0xff]
        %v1118 = vld [vmem:[%s849 + $0x680] sm:$0xff]
        %v1119 = vld [vmem:[%s849 + $0x688] sm:$0xff]
        %v1120 = vld [vmem:[%s849 + $0x690] sm:$0xff]
        %v1121 = vld [vmem:[%s849 + $0x698] sm:$0xff]
        %v1122 = vld [vmem:[%s849 + $0x6a0] sm:$0xff]
        %v1123 = vld [vmem:[%s849 + $0x6a8] sm:$0xff]
        %v1124 = vld [vmem:[%s849 + $0x6b0] sm:$0xff]
        %v1125 = vld [vmem:[%s849 + $0x6b8] sm:$0xff]
        %v1126 = vld [vmem:[%s849 + $0x6c0] sm:$0xff]
        %v1127 = vld [vmem:[%s849 + $0x6c8] sm:$0xff]
        %v1128 = vld [vmem:[%s849 + $0x6d0] sm:$0xff]
        %v1129 = vld [vmem:[%s849 + $0x6d8] sm:$0xff]
        %v1130 = vld [vmem:[%s849 + $0x6e0] sm:$0xff]
        %v1131 = vld [vmem:[%s849 + $0x6e8] sm:$0xff]
        %v1132 = vld [vmem:[%s849 + $0x6f0] sm:$0xff]
        %v1133 = vld [vmem:[%s849 + $0x6f8] sm:$0xff]
        %v1134 = vld [vmem:[%s849 + $0x700] sm:$0xff]
        %v1135 = vld [vmem:[%s849 + $0x708] sm:$0xff]
        %v1136 = vld [vmem:[%s849 + $0x710] sm:$0xff]
        %v1137 = vld [vmem:[%s849 + $0x718] sm:$0xff]
        %v1138 = vld [vmem:[%s849 + $0x720] sm:$0xff]
        %v1139 = vld [vmem:[%s849 + $0x728] sm:$0xff]
        %v1140 = vld [vmem:[%s849 + $0x730] sm:$0xff]
        %v1141 = vld [vmem:[%s849 + $0x738] sm:$0xff]
        %v1142 = vld [vmem:[%s849 + $0x740] sm:$0xff]
        %v1143 = vld [vmem:[%s849 + $0x748] sm:$0xff]
        %v1144 = vld [vmem:[%s849 + $0x750] sm:$0xff]
        %v1145 = vld [vmem:[%s849 + $0x758] sm:$0xff]
        %v1146 = vld [vmem:[%s849 + $0x760] sm:$0xff]
        %v1147 = vld [vmem:[%s849 + $0x768] sm:$0xff]
        %v1148 = vld [vmem:[%s849 + $0x770] sm:$0xff]
        %v1149 = vld [vmem:[%s849 + $0x778] sm:$0xff]
        %v1150 = vld [vmem:[%s849 + $0x780] sm:$0xff]
        %v1151 = vld [vmem:[%s849 + $0x788] sm:$0xff]
        %v1152 = vld [vmem:[%s849 + $0x790] sm:$0xff]
        %v1153 = vld [vmem:[%s849 + $0x798] sm:$0xff]
        %v1154 = vld [vmem:[%s849 + $0x7a0] sm:$0xff]
        %v1155 = vld [vmem:[%s849 + $0x7a8] sm:$0xff]
        %v1156 = vld [vmem:[%s849 + $0x7b0] sm:$0xff]
        %v1157 = vld [vmem:[%s849 + $0x7b8] sm:$0xff]
        %v1158 = vld [vmem:[%s849 + $0x7c0] sm:$0xff]
        %v1159 = vld [vmem:[%s849 + $0x7c8] sm:$0xff]
        %v1160 = vld [vmem:[%s849 + $0x7d0] sm:$0xff]
        %v1161 = vld [vmem:[%s849 + $0x7d8] sm:$0xff]
        %v1162 = vld [vmem:[%s849 + $0x7e0] sm:$0xff]
        %v1163 = vld [vmem:[%s849 + $0x7e8] sm:$0xff]
        %v1164 = vld [vmem:[%s849 + $0x7f0] sm:$0xff]
        %v1165 = vld [vmem:[%s849 + $0x7f8] sm:$0xff]
        %v1166 = vld [vmem:[%s849 + $0x800] sm:$0xff]
        %v1167 = vld [vmem:[%s849 + $0x808] sm:$0xff]
        %v1168 = vld [vmem:[%s849 + $0x810] sm:$0xff]
        %v1169 = vld [vmem:[%s849 + $0x818] sm:$0xff]
        %v1170 = vld [vmem:[%s849 + $0x820] sm:$0xff]
        %v1171 = vld [vmem:[%s849 + $0x828] sm:$0xff]
        %v1172 = vld [vmem:[%s849 + $0x830] sm:$0xff]
        %v1173 = vld [vmem:[%s849 + $0x838] sm:$0xff]
        %v1174 = vld [vmem:[%s849 + $0x840] sm:$0xff]
        %v1175 = vld [vmem:[%s849 + $0x848] sm:$0xff]
        %v1176 = vld [vmem:[%s849 + $0x850] sm:$0xff]
        %v1177 = vld [vmem:[%s849 + $0x858] sm:$0xff]
        %v1178 = vld [vmem:[%s849 + $0x860] sm:$0xff]
        %v1179 = vld [vmem:[%s849 + $0x868] sm:$0xff]
        %v1180 = vld [vmem:[%s849 + $0x870] sm:$0xff]
        %v1181 = vld [vmem:[%s849 + $0x878] sm:$0xff]
        %v1182 = vld [vmem:[%s849 + $0x880] sm:$0xff]
        %v1183 = vld [vmem:[%s849 + $0x888] sm:$0xff]
        %v1184 = vld [vmem:[%s849 + $0x890] sm:$0xff]
        %v1185 = vld [vmem:[%s849 + $0x898] sm:$0xff]
        %v1186 = vld [vmem:[%s849 + $0x8a0] sm:$0xff]
        %v1187 = vld [vmem:[%s849 + $0x8a8] sm:$0xff]
        %v1188 = vld [vmem:[%s849 + $0x8b0] sm:$0xff]
        %v1189 = vld [vmem:[%s849 + $0x8b8] sm:$0xff]
        %v1190 = vld [vmem:[%s849 + $0x8c0] sm:$0xff]
        %v1191 = vld [vmem:[%s849 + $0x8c8] sm:$0xff]
        %v1192 = vld [vmem:[%s849 + $0x8d0] sm:$0xff]
        %v1193 = vld [vmem:[%s849 + $0x8d8] sm:$0xff]
        %v1194 = vld [vmem:[%s849 + $0x8e0] sm:$0xff]
        %v1195 = vld [vmem:[%s849 + $0x8e8] sm:$0xff]
        %v1196 = vld [vmem:[%s849 + $0x8f0] sm:$0xff]
        %v1197 = vld [vmem:[%s849 + $0x8f8] sm:$0xff]
        %v1198 = vmax.f32 %v910, 0.0
        %v1199 = vmax.f32 %v911, 0.0
        %v1200 = vmax.f32 %v912, 0.0
        %v1201 = vmax.f32 %v913, 0.0
        %v1202 = vmax.f32 %v914, 0.0
        %v1203 = vmax.f32 %v915, 0.0
        %v1204 = vmax.f32 %v916, 0.0
        %v1205 = vmax.f32 %v917, 0.0
        %v1206 = vmax.f32 %v918, 0.0
        %v1207 = vmax.f32 %v919, 0.0
        %v1208 = vmax.f32 %v920, 0.0
        %v1209 = vmax.f32 %v921, 0.0
        %v1210 = vmax.f32 %v922, 0.0
        %v1211 = vmax.f32 %v923, 0.0
        %v1212 = vmax.f32 %v924, 0.0
        %v1213 = vmax.f32 %v925, 0.0
        %v1214 = vmax.f32 %v926, 0.0
        %v1215 = vmax.f32 %v927, 0.0
        %v1216 = vmax.f32 %v928, 0.0
        %v1217 = vmax.f32 %v929, 0.0
        %v1218 = vmax.f32 %v930, 0.0
        %v1219 = vmax.f32 %v931, 0.0
        %v1220 = vmax.f32 %v932, 0.0
        %v1221 = vmax.f32 %v933, 0.0
        %v1222 = vmax.f32 %v934, 0.0
        %v1223 = vmax.f32 %v935, 0.0
        %v1224 = vmax.f32 %v936, 0.0
        %v1225 = vmax.f32 %v937, 0.0
        %v1226 = vmax.f32 %v938, 0.0
        %v1227 = vmax.f32 %v939, 0.0
        %v1228 = vmax.f32 %v940, 0.0
        %v1229 = vmax.f32 %v941, 0.0
        %v1230 = vmax.f32 %v942, 0.0
        %v1231 = vmax.f32 %v943, 0.0
        %v1232 = vmax.f32 %v944, 0.0
        %v1233 = vmax.f32 %v945, 0.0
        %v1234 = vmax.f32 %v946, 0.0
        %v1235 = vmax.f32 %v947, 0.0
        %v1236 = vmax.f32 %v948, 0.0
        %v1237 = vmax.f32 %v949, 0.0
        %v1238 = vmax.f32 %v950, 0.0
        %v1239 = vmax.f32 %v951, 0.0
        %v1240 = vmax.f32 %v952, 0.0
        %v1241 = vmax.f32 %v953, 0.0
        %v1242 = vmax.f32 %v954, 0.0
        %v1243 = vmax.f32 %v955, 0.0
        %v1244 = vmax.f32 %v956, 0.0
        %v1245 = vmax.f32 %v957, 0.0
        %v1246 = vmax.f32 %v958, 0.0
        %v1247 = vmax.f32 %v959, 0.0
        %v1248 = vmax.f32 %v960, 0.0
        %v1249 = vmax.f32 %v961, 0.0
        %v1250 = vmax.f32 %v962, 0.0
        %v1251 = vmax.f32 %v963, 0.0
        %v1252 = vmax.f32 %v964, 0.0
        %v1253 = vmax.f32 %v965, 0.0
        %v1254 = vmax.f32 %v966, 0.0
        %v1255 = vmax.f32 %v967, 0.0
        %v1256 = vmax.f32 %v968, 0.0
        %v1257 = vmax.f32 %v969, 0.0
        %v1258 = vmax.f32 %v970, 0.0
        %v1259 = vmax.f32 %v971, 0.0
        %v1260 = vmax.f32 %v972, 0.0
        %v1261 = vmax.f32 %v973, 0.0
        %v1262 = vmax.f32 %v974, 0.0
        %v1263 = vmax.f32 %v975, 0.0
        %v1264 = vmax.f32 %v976, 0.0
        %v1265 = vmax.f32 %v977, 0.0
        %v1266 = vmax.f32 %v978, 0.0
        %v1267 = vmax.f32 %v979, 0.0
        %v1268 = vmax.f32 %v980, 0.0
        %v1269 = vmax.f32 %v981, 0.0
        %v1270 = vmax.f32 %v982, 0.0
        %v1271 = vmax.f32 %v983, 0.0
        %v1272 = vmax.f32 %v984, 0.0
        %v1273 = vmax.f32 %v985, 0.0
        %v1274 = vmax.f32 %v986, 0.0
        %v1275 = vmax.f32 %v987, 0.0
        %v1276 = vmax.f32 %v988, 0.0
        %v1277 = vmax.f32 %v989, 0.0
        %v1278 = vmax.f32 %v990, 0.0
        %v1279 = vmax.f32 %v991, 0.0
        %v1280 = vmax.f32 %v992, 0.0
        %v1281 = vmax.f32 %v993, 0.0
        %v1282 = vmax.f32 %v994, 0.0
        %v1283 = vmax.f32 %v995, 0.0
        %v1284 = vmax.f32 %v996, 0.0
        %v1285 = vmax.f32 %v997, 0.0
        %v1286 = vmax.f32 %v998, 0.0
        %v1287 = vmax.f32 %v999, 0.0
        %v1288 = vmax.f32 %v1000, 0.0
        %v1289 = vmax.f32 %v1001, 0.0
        %v1290 = vmax.f32 %v1002, 0.0
        %v1291 = vmax.f32 %v1003, 0.0
        %v1292 = vmax.f32 %v1004, 0.0
        %v1293 = vmax.f32 %v1005, 0.0
        %v1294 = vmax.f32 %v1006, 0.0
        %v1295 = vmax.f32 %v1007, 0.0
        %v1296 = vmax.f32 %v1008, 0.0
        %v1297 = vmax.f32 %v1009, 0.0
        %v1298 = vmax.f32 %v1010, 0.0
        %v1299 = vmax.f32 %v1011, 0.0
        %v1300 = vmax.f32 %v1012, 0.0
        %v1301 = vmax.f32 %v1013, 0.0
        %v1302 = vmax.f32 %v1014, 0.0
        %v1303 = vmax.f32 %v1015, 0.0
        %v1304 = vmax.f32 %v1016, 0.0
        %v1305 = vmax.f32 %v1017, 0.0
        %v1306 = vmax.f32 %v1018, 0.0
        %v1307 = vmax.f32 %v1019, 0.0
        %v1308 = vmax.f32 %v1020, 0.0
        %v1309 = vmax.f32 %v1021, 0.0
        %v1310 = vmax.f32 %v1022, 0.0
        %v1311 = vmax.f32 %v1023, 0.0
        %v1312 = vmax.f32 %v1024, 0.0
        %v1313 = vmax.f32 %v1025, 0.0
        %v1314 = vmax.f32 %v1026, 0.0
        %v1315 = vmax.f32 %v1027, 0.0
        %v1316 = vmax.f32 %v1028, 0.0
        %v1317 = vmax.f32 %v1029, 0.0
        %v1318 = vmax.f32 %v1030, 0.0
        %v1319 = vmax.f32 %v1031, 0.0
        %v1320 = vmax.f32 %v1032, 0.0
        %v1321 = vmax.f32 %v1033, 0.0
        %v1322 = vmax.f32 %v1034, 0.0
        %v1323 = vmax.f32 %v1035, 0.0
        %v1324 = vmax.f32 %v1036, 0.0
        %v1325 = vmax.f32 %v1037, 0.0
        %v1326 = vmax.f32 %v1038, 0.0
        %v1327 = vmax.f32 %v1039, 0.0
        %v1328 = vmax.f32 %v1040, 0.0
        %v1329 = vmax.f32 %v1041, 0.0
        %v1330 = vmax.f32 %v1042, 0.0
        %v1331 = vmax.f32 %v1043, 0.0
        %v1332 = vmax.f32 %v1044, 0.0
        %v1333 = vmax.f32 %v1045, 0.0
        %v1334 = vmax.f32 %v1046, 0.0
        %v1335 = vmax.f32 %v1047, 0.0
        %v1336 = vmax.f32 %v1048, 0.0
        %v1337 = vmax.f32 %v1049, 0.0
        %v1338 = vmax.f32 %v1050, 0.0
        %v1339 = vmax.f32 %v1051, 0.0
        %v1340 = vmax.f32 %v1052, 0.0
        %v1341 = vmax.f32 %v1053, 0.0
        %v1342 = vmax.f32 %v1054, 0.0
        %v1343 = vmax.f32 %v1055, 0.0
        %v1344 = vmax.f32 %v1056, 0.0
        %v1345 = vmax.f32 %v1057, 0.0
        %v1346 = vmax.f32 %v1058, 0.0
        %v1347 = vmax.f32 %v1059, 0.0
        %v1348 = vmax.f32 %v1060, 0.0
        %v1349 = vmax.f32 %v1061, 0.0
        %v1350 = vmax.f32 %v1062, 0.0
        %v1351 = vmax.f32 %v1063, 0.0
        %v1352 = vmax.f32 %v1064, 0.0
        %v1353 = vmax.f32 %v1065, 0.0
        %v1354 = vmax.f32 %v1066, 0.0
        %v1355 = vmax.f32 %v1067, 0.0
        %v1356 = vmax.f32 %v1068, 0.0
        %v1357 = vmax.f32 %v1069, 0.0
        %v1358 = vmax.f32 %v1070, 0.0
        %v1359 = vmax.f32 %v1071, 0.0
        %v1360 = vmax.f32 %v1072, 0.0
        %v1361 = vmax.f32 %v1073, 0.0
        %v1362 = vmax.f32 %v1074, 0.0
        %v1363 = vmax.f32 %v1075, 0.0
        %v1364 = vmax.f32 %v1076, 0.0
        %v1365 = vmax.f32 %v1077, 0.0
        %v1366 = vmax.f32 %v1078, 0.0
        %v1367 = vmax.f32 %v1079, 0.0
        %v1368 = vmax.f32 %v1080, 0.0
        %v1369 = vmax.f32 %v1081, 0.0
        %v1370 = vmax.f32 %v1082, 0.0
        %v1371 = vmax.f32 %v1083, 0.0
        %v1372 = vmax.f32 %v1084, 0.0
        %v1373 = vmax.f32 %v1085, 0.0
        %v1374 = vmax.f32 %v1086, 0.0
        %v1375 = vmax.f32 %v1087, 0.0
        %v1376 = vmax.f32 %v1088, 0.0
        %v1377 = vmax.f32 %v1089, 0.0
        %v1378 = vmax.f32 %v1090, 0.0
        %v1379 = vmax.f32 %v1091, 0.0
        %v1380 = vmax.f32 %v1092, 0.0
        %v1381 = vmax.f32 %v1093, 0.0
        %v1382 = vmax.f32 %v1094, 0.0
        %v1383 = vmax.f32 %v1095, 0.0
        %v1384 = vmax.f32 %v1096, 0.0
        %v1385 = vmax.f32 %v1097, 0.0
        %v1386 = vmax.f32 %v1098, 0.0
        %v1387 = vmax.f32 %v1099, 0.0
        %v1388 = vmax.f32 %v1100, 0.0
        %v1389 = vmax.f32 %v1101, 0.0
        %v1390 = vmax.f32 %v1102, 0.0
        %v1391 = vmax.f32 %v1103, 0.0
        %v1392 = vmax.f32 %v1104, 0.0
        %v1393 = vmax.f32 %v1105, 0.0
        %v1394 = vmax.f32 %v1106, 0.0
        %v1395 = vmax.f32 %v1107, 0.0
        %v1396 = vmax.f32 %v1108, 0.0
        %v1397 = vmax.f32 %v1109, 0.0
        %v1398 = vmax.f32 %v1110, 0.0
        %v1399 = vmax.f32 %v1111, 0.0
        %v1400 = vmax.f32 %v1112, 0.0
        %v1401 = vmax.f32 %v1113, 0.0
        %v1402 = vmax.f32 %v1114, 0.0
        %v1403 = vmax.f32 %v1115, 0.0
        %v1404 = vmax.f32 %v1116, 0.0
        %v1405 = vmax.f32 %v1117, 0.0
        %v1406 = vmax.f32 %v1118, 0.0
        %v1407 = vmax.f32 %v1119, 0.0
        %v1408 = vmax.f32 %v1120, 0.0
        %v1409 = vmax.f32 %v1121, 0.0
        %v1410 = vmax.f32 %v1122, 0.0
        %v1411 = vmax.f32 %v1123, 0.0
        %v1412 = vmax.f32 %v1124, 0.0
        %v1413 = vmax.f32 %v1125, 0.0
        %v1414 = vmax.f32 %v1126, 0.0
        %v1415 = vmax.f32 %v1127, 0.0
        %v1416 = vmax.f32 %v1128, 0.0
        %v1417 = vmax.f32 %v1129, 0.0
        %v1418 = vmax.f32 %v1130, 0.0
        %v1419 = vmax.f32 %v1131, 0.0
        %v1420 = vmax.f32 %v1132, 0.0
        %v1421 = vmax.f32 %v1133, 0.0
        %v1422 = vmax.f32 %v1134, 0.0
        %v1423 = vmax.f32 %v1135, 0.0
        %v1424 = vmax.f32 %v1136, 0.0
        %v1425 = vmax.f32 %v1137, 0.0
        %v1426 = vmax.f32 %v1138, 0.0
        %v1427 = vmax.f32 %v1139, 0.0
        %v1428 = vmax.f32 %v1140, 0.0
        %v1429 = vmax.f32 %v1141, 0.0
        %v1430 = vmax.f32 %v1142, 0.0
        %v1431 = vmax.f32 %v1143, 0.0
        %v1432 = vmax.f32 %v1144, 0.0
        %v1433 = vmax.f32 %v1145, 0.0
        %v1434 = vmax.f32 %v1146, 0.0
        %v1435 = vmax.f32 %v1147, 0.0
        %v1436 = vmax.f32 %v1148, 0.0
        %v1437 = vmax.f32 %v1149, 0.0
        %v1438 = vmax.f32 %v1150, 0.0
        %v1439 = vmax.f32 %v1151, 0.0
        %v1440 = vmax.f32 %v1152, 0.0
        %v1441 = vmax.f32 %v1153, 0.0
        %v1442 = vmax.f32 %v1154, 0.0
        %v1443 = vmax.f32 %v1155, 0.0
        %v1444 = vmax.f32 %v1156, 0.0
        %v1445 = vmax.f32 %v1157, 0.0
        %v1446 = vmax.f32 %v1158, 0.0
        %v1447 = vmax.f32 %v1159, 0.0
        %v1448 = vmax.f32 %v1160, 0.0
        %v1449 = vmax.f32 %v1161, 0.0
        %v1450 = vmax.f32 %v1162, 0.0
        %v1451 = vmax.f32 %v1163, 0.0
        %v1452 = vmax.f32 %v1164, 0.0
        %v1453 = vmax.f32 %v1165, 0.0
        %v1454 = vmax.f32 %v1166, 0.0
        %v1455 = vmax.f32 %v1167, 0.0
        %v1456 = vmax.f32 %v1168, 0.0
        %v1457 = vmax.f32 %v1169, 0.0
        %v1458 = vmax.f32 %v1170, 0.0
        %v1459 = vmax.f32 %v1171, 0.0
        %v1460 = vmax.f32 %v1172, 0.0
        %v1461 = vmax.f32 %v1173, 0.0
        %v1462 = vmax.f32 %v1174, 0.0
        %v1463 = vmax.f32 %v1175, 0.0
        %v1464 = vmax.f32 %v1176, 0.0
        %v1465 = vmax.f32 %v1177, 0.0
        %v1466 = vmax.f32 %v1178, 0.0
        %v1467 = vmax.f32 %v1179, 0.0
        %v1468 = vmax.f32 %v1180, 0.0
        %v1469 = vmax.f32 %v1181, 0.0
        %v1470 = vmax.f32 %v1182, 0.0
        %v1471 = vmax.f32 %v1183, 0.0
        %v1472 = vmax.f32 %v1184, 0.0
        %v1473 = vmax.f32 %v1185, 0.0
        %v1474 = vmax.f32 %v1186, 0.0
        %v1475 = vmax.f32 %v1187, 0.0
        %v1476 = vmax.f32 %v1188, 0.0
        %v1477 = vmax.f32 %v1189, 0.0
        %v1478 = vmax.f32 %v1190, 0.0
        %v1479 = vmax.f32 %v1191, 0.0
        %v1480 = vmax.f32 %v1192, 0.0
        %v1481 = vmax.f32 %v1193, 0.0
        %v1482 = vmax.f32 %v1194, 0.0
        %v1483 = vmax.f32 %v1195, 0.0
        %v1484 = vmax.f32 %v1196, 0.0
        %v1485 = vmax.f32 %v1197, 0.0
        %v1486 = vld [vmem:[%s3] sm:$0xff]
        %v1487 = vld [vmem:[%s3 + $0x8] sm:$0xff]
        %v1488 = vld [vmem:[%s3 + $0x10] sm:$0xff]
        %v1489 = vld [vmem:[%s3 + $0x18] sm:$0xff]
        %v1490 = vld [vmem:[%s3 + $0x20] sm:$0xff]
        %v1491 = vld [vmem:[%s3 + $0x28] sm:$0xff]
        %v1492 = vld [vmem:[%s3 + $0x30] sm:$0xff]
        %v1493 = vld [vmem:[%s3 + $0x38] sm:$0xff]
        %v1494 = vld [vmem:[%s3 + $0x40] sm:$0xff]
        %1496 = vset.pattern.permute.xlu0 0
        %1497 = vperm.xlu0 %1496, %v1486
        %v1498 = vpop.permute.xlu0 %1497
        %1501 = vset.pattern.permute.xlu0 0
        %1502 = vperm.xlu0 %1501, %v1487
        %v1503 = vpop.permute.xlu0 %1502
        %1506 = vset.pattern.permute.xlu0 0
        %1507 = vperm.xlu0 %1506, %v1488
        %v1508 = vpop.permute.xlu0 %1507
        %1511 = vset.pattern.permute.xlu0 0
        %1512 = vperm.xlu0 %1511, %v1489
        %v1513 = vpop.permute.xlu0 %1512
        %1516 = vset.pattern.permute.xlu0 0
        %1517 = vperm.xlu0 %1516, %v1490
        %v1518 = vpop.permute.xlu0 %1517
        %1521 = vset.pattern.permute.xlu0 0
        %1522 = vperm.xlu0 %1521, %v1491
        %v1523 = vpop.permute.xlu0 %1522
        %1526 = vset.pattern.permute.xlu0 0
        %1527 = vperm.xlu0 %1526, %v1492
        %v1528 = vpop.permute.xlu0 %1527
        %1531 = vset.pattern.permute.xlu0 0
        %1532 = vperm.xlu0 %1531, %v1493
        %v1533 = vpop.permute.xlu0 %1532
        %1536 = vset.pattern.permute.xlu0 0
        %1537 = vperm.xlu0 %1536, %v1494
        %v1538 = vpop.permute.xlu0 %1537
        %v1540 = vmul.f32 %v1198, %v1498
        %v1541 = vmul.f32 %v1199, %v1498
        %v1542 = vmul.f32 %v1200, %v1498
        %v1543 = vmul.f32 %v1201, %v1498
        %v1544 = vmul.f32 %v1202, %v1498
        %v1545 = vmul.f32 %v1203, %v1498
        %v1546 = vmul.f32 %v1204, %v1498
        %v1547 = vmul.f32 %v1205, %v1498
        %v1548 = vmul.f32 %v1206, %v1498
        %v1549 = vmul.f32 %v1207, %v1498
        %v1550 = vmul.f32 %v1208, %v1498
        %v1551 = vmul.f32 %v1209, %v1498
        %v1552 = vmul.f32 %v1210, %v1498
        %v1553 = vmul.f32 %v1211, %v1498
        %v1554 = vmul.f32 %v1212, %v1498
        %v1555 = vmul.f32 %v1213, %v1498
        %v1556 = vmul.f32 %v1214, %v1498
        %v1557 = vmul.f32 %v1215, %v1498
        %v1558 = vmul.f32 %v1216, %v1498
        %v1559 = vmul.f32 %v1217, %v1498
        %v1560 = vmul.f32 %v1218, %v1498
        %v1561 = vmul.f32 %v1219, %v1498
        %v1562 = vmul.f32 %v1220, %v1498
        %v1563 = vmul.f32 %v1221, %v1498
        %v1564 = vmul.f32 %v1222, %v1498
        %v1565 = vmul.f32 %v1223, %v1498
        %v1566 = vmul.f32 %v1224, %v1498
        %v1567 = vmul.f32 %v1225, %v1498
        %v1568 = vmul.f32 %v1226, %v1498
        %v1569 = vmul.f32 %v1227, %v1498
        %v1570 = vmul.f32 %v1228, %v1498
        %v1571 = vmul.f32 %v1229, %v1498
        %v1572 = vmul.f32 %v1230, %v1503
        %v1573 = vmul.f32 %v1231, %v1503
        %v1574 = vmul.f32 %v1232, %v1503
        %v1575 = vmul.f32 %v1233, %v1503
        %v1576 = vmul.f32 %v1234, %v1503
        %v1577 = vmul.f32 %v1235, %v1503
        %v1578 = vmul.f32 %v1236, %v1503
        %v1579 = vmul.f32 %v1237, %v1503
        %v1580 = vmul.f32 %v1238, %v1503
        %v1581 = vmul.f32 %v1239, %v1503
        %v1582 = vmul.f32 %v1240, %v1503
        %v1583 = vmul.f32 %v1241, %v1503
        %v1584 = vmul.f32 %v1242, %v1503
        %v1585 = vmul.f32 %v1243, %v1503
        %v1586 = vmul.f32 %v1244, %v1503
        %v1587 = vmul.f32 %v1245, %v1503
        %v1588 = vmul.f32 %v1246, %v1503
        %v1589 = vmul.f32 %v1247, %v1503
        %v1590 = vmul.f32 %v1248, %v1503
        %v1591 = vmul.f32 %v1249, %v1503
        %v1592 = vmul.f32 %v1250, %v1503
        %v1593 = vmul.f32 %v1251, %v1503
        %v1594 = vmul.f32 %v1252, %v1503
        %v1595 = vmul.f32 %v1253, %v1503
        %v1596 = vmul.f32 %v1254, %v1503
        %v1597 = vmul.f32 %v1255, %v1503
        %v1598 = vmul.f32 %v1256, %v1503
        %v1599 = vmul.f32 %v1257, %v1503
        %v1600 = vmul.f32 %v1258, %v1503
        %v1601 = vmul.f32 %v1259, %v1503
        %v1602 = vmul.f32 %v1260, %v1503
        %v1603 = vmul.f32 %v1261, %v1503
        %v1604 = vmul.f32 %v1262, %v1508
        %v1605 = vmul.f32 %v1263, %v1508
        %v1606 = vmul.f32 %v1264, %v1508
        %v1607 = vmul.f32 %v1265, %v1508
        %v1608 = vmul.f32 %v1266, %v1508
        %v1609 = vmul.f32 %v1267, %v1508
        %v1610 = vmul.f32 %v1268, %v1508
        %v1611 = vmul.f32 %v1269, %v1508
        %v1612 = vmul.f32 %v1270, %v1508
        %v1613 = vmul.f32 %v1271, %v1508
        %v1614 = vmul.f32 %v1272, %v1508
        %v1615 = vmul.f32 %v1273, %v1508
        %v1616 = vmul.f32 %v1274, %v1508
        %v1617 = vmul.f32 %v1275, %v1508
        %v1618 = vmul.f32 %v1276, %v1508
        %v1619 = vmul.f32 %v1277, %v1508
        %v1620 = vmul.f32 %v1278, %v1508
        %v1621 = vmul.f32 %v1279, %v1508
        %v1622 = vmul.f32 %v1280, %v1508
        %v1623 = vmul.f32 %v1281, %v1508
        %v1624 = vmul.f32 %v1282, %v1508
        %v1625 = vmul.f32 %v1283, %v1508
        %v1626 = vmul.f32 %v1284, %v1508
        %v1627 = vmul.f32 %v1285, %v1508
        %v1628 = vmul.f32 %v1286, %v1508
        %v1629 = vmul.f32 %v1287, %v1508
        %v1630 = vmul.f32 %v1288, %v1508
        %v1631 = vmul.f32 %v1289, %v1508
        %v1632 = vmul.f32 %v1290, %v1508
        %v1633 = vmul.f32 %v1291, %v1508
        %v1634 = vmul.f32 %v1292, %v1508
        %v1635 = vmul.f32 %v1293, %v1508
        %v1636 = vmul.f32 %v1294, %v1513
        %v1637 = vmul.f32 %v1295, %v1513
        %v1638 = vmul.f32 %v1296, %v1513
        %v1639 = vmul.f32 %v1297, %v1513
        %v1640 = vmul.f32 %v1298, %v1513
        %v1641 = vmul.f32 %v1299, %v1513
        %v1642 = vmul.f32 %v1300, %v1513
        %v1643 = vmul.f32 %v1301, %v1513
        %v1644 = vmul.f32 %v1302, %v1513
        %v1645 = vmul.f32 %v1303, %v1513
        %v1646 = vmul.f32 %v1304, %v1513
        %v1647 = vmul.f32 %v1305, %v1513
        %v1648 = vmul.f32 %v1306, %v1513
        %v1649 = vmul.f32 %v1307, %v1513
        %v1650 = vmul.f32 %v1308, %v1513
        %v1651 = vmul.f32 %v1309, %v1513
        %v1652 = vmul.f32 %v1310, %v1513
        %v1653 = vmul.f32 %v1311, %v1513
        %v1654 = vmul.f32 %v1312, %v1513
        %v1655 = vmul.f32 %v1313, %v1513
        %v1656 = vmul.f32 %v1314, %v1513
        %v1657 = vmul.f32 %v1315, %v1513
        %v1658 = vmul.f32 %v1316, %v1513
        %v1659 = vmul.f32 %v1317, %v1513
        %v1660 = vmul.f32 %v1318, %v1513
        %v1661 = vmul.f32 %v1319, %v1513
        %v1662 = vmul.f32 %v1320, %v1513
        %v1663 = vmul.f32 %v1321, %v1513
        %v1664 = vmul.f32 %v1322, %v1513
        %v1665 = vmul.f32 %v1323, %v1513
        %v1666 = vmul.f32 %v1324, %v1513
        %v1667 = vmul.f32 %v1325, %v1513
        %v1668 = vmul.f32 %v1326, %v1518
        %v1669 = vmul.f32 %v1327, %v1518
        %v1670 = vmul.f32 %v1328, %v1518
        %v1671 = vmul.f32 %v1329, %v1518
        %v1672 = vmul.f32 %v1330, %v1518
        %v1673 = vmul.f32 %v1331, %v1518
        %v1674 = vmul.f32 %v1332, %v1518
        %v1675 = vmul.f32 %v1333, %v1518
        %v1676 = vmul.f32 %v1334, %v1518
        %v1677 = vmul.f32 %v1335, %v1518
        %v1678 = vmul.f32 %v1336, %v1518
        %v1679 = vmul.f32 %v1337, %v1518
        %v1680 = vmul.f32 %v1338, %v1518
        %v1681 = vmul.f32 %v1339, %v1518
        %v1682 = vmul.f32 %v1340, %v1518
        %v1683 = vmul.f32 %v1341, %v1518
        %v1684 = vmul.f32 %v1342, %v1518
        %v1685 = vmul.f32 %v1343, %v1518
        %v1686 = vmul.f32 %v1344, %v1518
        %v1687 = vmul.f32 %v1345, %v1518
        %v1688 = vmul.f32 %v1346, %v1518
        %v1689 = vmul.f32 %v1347, %v1518
        %v1690 = vmul.f32 %v1348, %v1518
        %v1691 = vmul.f32 %v1349, %v1518
        %v1692 = vmul.f32 %v1350, %v1518
        %v1693 = vmul.f32 %v1351, %v1518
        %v1694 = vmul.f32 %v1352, %v1518
        %v1695 = vmul.f32 %v1353, %v1518
        %v1696 = vmul.f32 %v1354, %v1518
        %v1697 = vmul.f32 %v1355, %v1518
        %v1698 = vmul.f32 %v1356, %v1518
        %v1699 = vmul.f32 %v1357, %v1518
        %v1700 = vmul.f32 %v1358, %v1523
        %v1701 = vmul.f32 %v1359, %v1523
        %v1702 = vmul.f32 %v1360, %v1523
        %v1703 = vmul.f32 %v1361, %v1523
        %v1704 = vmul.f32 %v1362, %v1523
        %v1705 = vmul.f32 %v1363, %v1523
        %v1706 = vmul.f32 %v1364, %v1523
        %v1707 = vmul.f32 %v1365, %v1523
        %v1708 = vmul.f32 %v1366, %v1523
        %v1709 = vmul.f32 %v1367, %v1523
        %v1710 = vmul.f32 %v1368, %v1523
        %v1711 = vmul.f32 %v1369, %v1523
        %v1712 = vmul.f32 %v1370, %v1523
        %v1713 = vmul.f32 %v1371, %v1523
        %v1714 = vmul.f32 %v1372, %v1523
        %v1715 = vmul.f32 %v1373, %v1523
        %v1716 = vmul.f32 %v1374, %v1523
        %v1717 = vmul.f32 %v1375, %v1523
        %v1718 = vmul.f32 %v1376, %v1523
        %v1719 = vmul.f32 %v1377, %v1523
        %v1720 = vmul.f32 %v1378, %v1523
        %v1721 = vmul.f32 %v1379, %v1523
        %v1722 = vmul.f32 %v1380, %v1523
        %v1723 = vmul.f32 %v1381, %v1523
        %v1724 = vmul.f32 %v1382, %v1523
        %v1725 = vmul.f32 %v1383, %v1523
        %v1726 = vmul.f32 %v1384, %v1523
        %v1727 = vmul.f32 %v1385, %v1523
        %v1728 = vmul.f32 %v1386, %v1523
        %v1729 = vmul.f32 %v1387, %v1523
        %v1730 = vmul.f32 %v1388, %v1523
        %v1731 = vmul.f32 %v1389, %v1523
        %v1732 = vmul.f32 %v1390, %v1528
        %v1733 = vmul.f32 %v1391, %v1528
        %v1734 = vmul.f32 %v1392, %v1528
        %v1735 = vmul.f32 %v1393, %v1528
        %v1736 = vmul.f32 %v1394, %v1528
        %v1737 = vmul.f32 %v1395, %v1528
        %v1738 = vmul.f32 %v1396, %v1528
        %v1739 = vmul.f32 %v1397, %v1528
        %v1740 = vmul.f32 %v1398, %v1528
        %v1741 = vmul.f32 %v1399, %v1528
        %v1742 = vmul.f32 %v1400, %v1528
        %v1743 = vmul.f32 %v1401, %v1528
        %v1744 = vmul.f32 %v1402, %v1528
        %v1745 = vmul.f32 %v1403, %v1528
        %v1746 = vmul.f32 %v1404, %v1528
        %v1747 = vmul.f32 %v1405, %v1528
        %v1748 = vmul.f32 %v1406, %v1528
        %v1749 = vmul.f32 %v1407, %v1528
        %v1750 = vmul.f32 %v1408, %v1528
        %v1751 = vmul.f32 %v1409, %v1528
        %v1752 = vmul.f32 %v1410, %v1528
        %v1753 = vmul.f32 %v1411, %v1528
        %v1754 = vmul.f32 %v1412, %v1528
        %v1755 = vmul.f32 %v1413, %v1528
        %v1756 = vmul.f32 %v1414, %v1528
        %v1757 = vmul.f32 %v1415, %v1528
        %v1758 = vmul.f32 %v1416, %v1528
        %v1759 = vmul.f32 %v1417, %v1528
        %v1760 = vmul.f32 %v1418, %v1528
        %v1761 = vmul.f32 %v1419, %v1528
        %v1762 = vmul.f32 %v1420, %v1528
        %v1763 = vmul.f32 %v1421, %v1528
        %v1764 = vmul.f32 %v1422, %v1533
        %v1765 = vmul.f32 %v1423, %v1533
        %v1766 = vmul.f32 %v1424, %v1533
        %v1767 = vmul.f32 %v1425, %v1533
        %v1768 = vmul.f32 %v1426, %v1533
        %v1769 = vmul.f32 %v1427, %v1533
        %v1770 = vmul.f32 %v1428, %v1533
        %v1771 = vmul.f32 %v1429, %v1533
        %v1772 = vmul.f32 %v1430, %v1533
        %v1773 = vmul.f32 %v1431, %v1533
        %v1774 = vmul.f32 %v1432, %v1533
        %v1775 = vmul.f32 %v1433, %v1533
        %v1776 = vmul.f32 %v1434, %v1533
        %v1777 = vmul.f32 %v1435, %v1533
        %v1778 = vmul.f32 %v1436, %v1533
        %v1779 = vmul.f32 %v1437, %v1533
        %v1780 = vmul.f32 %v1438, %v1533
        %v1781 = vmul.f32 %v1439, %v1533
        %v1782 = vmul.f32 %v1440, %v1533
        %v1783 = vmul.f32 %v1441, %v1533
        %v1784 = vmul.f32 %v1442, %v1533
        %v1785 = vmul.f32 %v1443, %v1533
        %v1786 = vmul.f32 %v1444, %v1533
        %v1787 = vmul.f32 %v1445, %v1533
        %v1788 = vmul.f32 %v1446, %v1533
        %v1789 = vmul.f32 %v1447, %v1533
        %v1790 = vmul.f32 %v1448, %v1533
        %v1791 = vmul.f32 %v1449, %v1533
        %v1792 = vmul.f32 %v1450, %v1533
        %v1793 = vmul.f32 %v1451, %v1533
        %v1794 = vmul.f32 %v1452, %v1533
        %v1795 = vmul.f32 %v1453, %v1533
        %v1796 = vmul.f32 %v1454, %v1538
        %v1797 = vmul.f32 %v1455, %v1538
        %v1798 = vmul.f32 %v1456, %v1538
        %v1799 = vmul.f32 %v1457, %v1538
        %v1800 = vmul.f32 %v1458, %v1538
        %v1801 = vmul.f32 %v1459, %v1538
        %v1802 = vmul.f32 %v1460, %v1538
        %v1803 = vmul.f32 %v1461, %v1538
        %v1804 = vmul.f32 %v1462, %v1538
        %v1805 = vmul.f32 %v1463, %v1538
        %v1806 = vmul.f32 %v1464, %v1538
        %v1807 = vmul.f32 %v1465, %v1538
        %v1808 = vmul.f32 %v1466, %v1538
        %v1809 = vmul.f32 %v1467, %v1538
        %v1810 = vmul.f32 %v1468, %v1538
        %v1811 = vmul.f32 %v1469, %v1538
        %v1812 = vmul.f32 %v1470, %v1538
        %v1813 = vmul.f32 %v1471, %v1538
        %v1814 = vmul.f32 %v1472, %v1538
        %v1815 = vmul.f32 %v1473, %v1538
        %v1816 = vmul.f32 %v1474, %v1538
        %v1817 = vmul.f32 %v1475, %v1538
        %v1818 = vmul.f32 %v1476, %v1538
        %v1819 = vmul.f32 %v1477, %v1538
        %v1820 = vmul.f32 %v1478, %v1538
        %v1821 = vmul.f32 %v1479, %v1538
        %v1822 = vmul.f32 %v1480, %v1538
        %v1823 = vmul.f32 %v1481, %v1538
        %v1824 = vmul.f32 %v1482, %v1538
        %v1825 = vmul.f32 %v1483, %v1538
        %v1826 = vmul.f32 %v1484, %v1538
        %v1827 = vmul.f32 %v1485, %v1538
        %v1828 = vld [vmem:[%s4] sm:$0xff]
        %v1829 = vld [vmem:[%s4 + $0x8] sm:$0xff]
        %v1830 = vld [vmem:[%s4 + $0x10] sm:$0xff]
        %v1831 = vld [vmem:[%s4 + $0x18] sm:$0xff]
        %v1832 = vld [vmem:[%s4 + $0x20] sm:$0xff]
        %v1833 = vld [vmem:[%s4 + $0x28] sm:$0xff]
        %v1834 = vld [vmem:[%s4 + $0x30] sm:$0xff]
        %v1835 = vld [vmem:[%s4 + $0x38] sm:$0xff]
        %v1836 = vld [vmem:[%s4 + $0x40] sm:$0xff]
        %1838 = vset.pattern.permute.xlu0 0
        %1839 = vperm.xlu0 %1838, %v1828
        %v1840 = vpop.permute.xlu0 %1839
        %1843 = vset.pattern.permute.xlu0 0
        %1844 = vperm.xlu0 %1843, %v1829
        %v1845 = vpop.permute.xlu0 %1844
        %1848 = vset.pattern.permute.xlu0 0
        %1849 = vperm.xlu0 %1848, %v1830
        %v1850 = vpop.permute.xlu0 %1849
        %1853 = vset.pattern.permute.xlu0 0
        %1854 = vperm.xlu0 %1853, %v1831
        %v1855 = vpop.permute.xlu0 %1854
        %1858 = vset.pattern.permute.xlu0 0
        %1859 = vperm.xlu0 %1858, %v1832
        %v1860 = vpop.permute.xlu0 %1859
        %1863 = vset.pattern.permute.xlu0 0
        %1864 = vperm.xlu0 %1863, %v1833
        %v1865 = vpop.permute.xlu0 %1864
        %1868 = vset.pattern.permute.xlu0 0
        %1869 = vperm.xlu0 %1868, %v1834
        %v1870 = vpop.permute.xlu0 %1869
        %1873 = vset.pattern.permute.xlu0 0
        %1874 = vperm.xlu0 %1873, %v1835
        %v1875 = vpop.permute.xlu0 %1874
        %1878 = vset.pattern.permute.xlu0 0
        %1879 = vperm.xlu0 %1878, %v1836
        %v1880 = vpop.permute.xlu0 %1879
        %v1882 = vadd.f32 %v1540, %v1840
        %v1883 = vadd.f32 %v1541, %v1840
        %v1884 = vadd.f32 %v1542, %v1840
        %v1885 = vadd.f32 %v1543, %v1840
        %v1886 = vadd.f32 %v1544, %v1840
        %v1887 = vadd.f32 %v1545, %v1840
        %v1888 = vadd.f32 %v1546, %v1840
        %v1889 = vadd.f32 %v1547, %v1840
        %v1890 = vadd.f32 %v1548, %v1840
        %v1891 = vadd.f32 %v1549, %v1840
        %v1892 = vadd.f32 %v1550, %v1840
        %v1893 = vadd.f32 %v1551, %v1840
        %v1894 = vadd.f32 %v1552, %v1840
        %v1895 = vadd.f32 %v1553, %v1840
        %v1896 = vadd.f32 %v1554, %v1840
        %v1897 = vadd.f32 %v1555, %v1840
        %v1898 = vadd.f32 %v1556, %v1840
        %v1899 = vadd.f32 %v1557, %v1840
        %v1900 = vadd.f32 %v1558, %v1840
        %v1901 = vadd.f32 %v1559, %v1840
        %v1902 = vadd.f32 %v1560, %v1840
        %v1903 = vadd.f32 %v1561, %v1840
        %v1904 = vadd.f32 %v1562, %v1840
        %v1905 = vadd.f32 %v1563, %v1840
        %v1906 = vadd.f32 %v1564, %v1840
        %v1907 = vadd.f32 %v1565, %v1840
        %v1908 = vadd.f32 %v1566, %v1840
        %v1909 = vadd.f32 %v1567, %v1840
        %v1910 = vadd.f32 %v1568, %v1840
        %v1911 = vadd.f32 %v1569, %v1840
        %v1912 = vadd.f32 %v1570, %v1840
        %v1913 = vadd.f32 %v1571, %v1840
        %v1914 = vadd.f32 %v1572, %v1845
        %v1915 = vadd.f32 %v1573, %v1845
        %v1916 = vadd.f32 %v1574, %v1845
        %v1917 = vadd.f32 %v1575, %v1845
        %v1918 = vadd.f32 %v1576, %v1845
        %v1919 = vadd.f32 %v1577, %v1845
        %v1920 = vadd.f32 %v1578, %v1845
        %v1921 = vadd.f32 %v1579, %v1845
        %v1922 = vadd.f32 %v1580, %v1845
        %v1923 = vadd.f32 %v1581, %v1845
        %v1924 = vadd.f32 %v1582, %v1845
        %v1925 = vadd.f32 %v1583, %v1845
        %v1926 = vadd.f32 %v1584, %v1845
        %v1927 = vadd.f32 %v1585, %v1845
        %v1928 = vadd.f32 %v1586, %v1845
        %v1929 = vadd.f32 %v1587, %v1845
        %v1930 = vadd.f32 %v1588, %v1845
        %v1931 = vadd.f32 %v1589, %v1845
        %v1932 = vadd.f32 %v1590, %v1845
        %v1933 = vadd.f32 %v1591, %v1845
        %v1934 = vadd.f32 %v1592, %v1845
        %v1935 = vadd.f32 %v1593, %v1845
        %v1936 = vadd.f32 %v1594, %v1845
        %v1937 = vadd.f32 %v1595, %v1845
        %v1938 = vadd.f32 %v1596, %v1845
        %v1939 = vadd.f32 %v1597, %v1845
        %v1940 = vadd.f32 %v1598, %v1845
        %v1941 = vadd.f32 %v1599, %v1845
        %v1942 = vadd.f32 %v1600, %v1845
        %v1943 = vadd.f32 %v1601, %v1845
        %v1944 = vadd.f32 %v1602, %v1845
        %v1945 = vadd.f32 %v1603, %v1845
        %v1946 = vadd.f32 %v1604, %v1850
        %v1947 = vadd.f32 %v1605, %v1850
        %v1948 = vadd.f32 %v1606, %v1850
        %v1949 = vadd.f32 %v1607, %v1850
        %v1950 = vadd.f32 %v1608, %v1850
        %v1951 = vadd.f32 %v1609, %v1850
        %v1952 = vadd.f32 %v1610, %v1850
        %v1953 = vadd.f32 %v1611, %v1850
        %v1954 = vadd.f32 %v1612, %v1850
        %v1955 = vadd.f32 %v1613, %v1850
        %v1956 = vadd.f32 %v1614, %v1850
        %v1957 = vadd.f32 %v1615, %v1850
        %v1958 = vadd.f32 %v1616, %v1850
        %v1959 = vadd.f32 %v1617, %v1850
        %v1960 = vadd.f32 %v1618, %v1850
        %v1961 = vadd.f32 %v1619, %v1850
        %v1962 = vadd.f32 %v1620, %v1850
        %v1963 = vadd.f32 %v1621, %v1850
        %v1964 = vadd.f32 %v1622, %v1850
        %v1965 = vadd.f32 %v1623, %v1850
        %v1966 = vadd.f32 %v1624, %v1850
        %v1967 = vadd.f32 %v1625, %v1850
        %v1968 = vadd.f32 %v1626, %v1850
        %v1969 = vadd.f32 %v1627, %v1850
        %v1970 = vadd.f32 %v1628, %v1850
        %v1971 = vadd.f32 %v1629, %v1850
        %v1972 = vadd.f32 %v1630, %v1850
        %v1973 = vadd.f32 %v1631, %v1850
        %v1974 = vadd.f32 %v1632, %v1850
        %v1975 = vadd.f32 %v1633, %v1850
        %v1976 = vadd.f32 %v1634, %v1850
        %v1977 = vadd.f32 %v1635, %v1850
        %v1978 = vadd.f32 %v1636, %v1855
        %v1979 = vadd.f32 %v1637, %v1855
        %v1980 = vadd.f32 %v1638, %v1855
        %v1981 = vadd.f32 %v1639, %v1855
        %v1982 = vadd.f32 %v1640, %v1855
        %v1983 = vadd.f32 %v1641, %v1855
        %v1984 = vadd.f32 %v1642, %v1855
        %v1985 = vadd.f32 %v1643, %v1855
        %v1986 = vadd.f32 %v1644, %v1855
        %v1987 = vadd.f32 %v1645, %v1855
        %v1988 = vadd.f32 %v1646, %v1855
        %v1989 = vadd.f32 %v1647, %v1855
        %v1990 = vadd.f32 %v1648, %v1855
        %v1991 = vadd.f32 %v1649, %v1855
        %v1992 = vadd.f32 %v1650, %v1855
        %v1993 = vadd.f32 %v1651, %v1855
        %v1994 = vadd.f32 %v1652, %v1855
        %v1995 = vadd.f32 %v1653, %v1855
        %v1996 = vadd.f32 %v1654, %v1855
        %v1997 = vadd.f32 %v1655, %v1855
        %v1998 = vadd.f32 %v1656, %v1855
        %v1999 = vadd.f32 %v1657, %v1855
        %v2000 = vadd.f32 %v1658, %v1855
        %v2001 = vadd.f32 %v1659, %v1855
        %v2002 = vadd.f32 %v1660, %v1855
        %v2003 = vadd.f32 %v1661, %v1855
        %v2004 = vadd.f32 %v1662, %v1855
        %v2005 = vadd.f32 %v1663, %v1855
        %v2006 = vadd.f32 %v1664, %v1855
        %v2007 = vadd.f32 %v1665, %v1855
        %v2008 = vadd.f32 %v1666, %v1855
        %v2009 = vadd.f32 %v1667, %v1855
        %v2010 = vadd.f32 %v1668, %v1860
        %v2011 = vadd.f32 %v1669, %v1860
        %v2012 = vadd.f32 %v1670, %v1860
        %v2013 = vadd.f32 %v1671, %v1860
        %v2014 = vadd.f32 %v1672, %v1860
        %v2015 = vadd.f32 %v1673, %v1860
        %v2016 = vadd.f32 %v1674, %v1860
        %v2017 = vadd.f32 %v1675, %v1860
        %v2018 = vadd.f32 %v1676, %v1860
        %v2019 = vadd.f32 %v1677, %v1860
        %v2020 = vadd.f32 %v1678, %v1860
        %v2021 = vadd.f32 %v1679, %v1860
        %v2022 = vadd.f32 %v1680, %v1860
        %v2023 = vadd.f32 %v1681, %v1860
        %v2024 = vadd.f32 %v1682, %v1860
        %v2025 = vadd.f32 %v1683, %v1860
        %v2026 = vadd.f32 %v1684, %v1860
        %v2027 = vadd.f32 %v1685, %v1860
        %v2028 = vadd.f32 %v1686, %v1860
        %v2029 = vadd.f32 %v1687, %v1860
        %v2030 = vadd.f32 %v1688, %v1860
        %v2031 = vadd.f32 %v1689, %v1860
        %v2032 = vadd.f32 %v1690, %v1860
        %v2033 = vadd.f32 %v1691, %v1860
        %v2034 = vadd.f32 %v1692, %v1860
        %v2035 = vadd.f32 %v1693, %v1860
        %v2036 = vadd.f32 %v1694, %v1860
        %v2037 = vadd.f32 %v1695, %v1860
        %v2038 = vadd.f32 %v1696, %v1860
        %v2039 = vadd.f32 %v1697, %v1860
        %v2040 = vadd.f32 %v1698, %v1860
        %v2041 = vadd.f32 %v1699, %v1860
        %v2042 = vadd.f32 %v1700, %v1865
        %v2043 = vadd.f32 %v1701, %v1865
        %v2044 = vadd.f32 %v1702, %v1865
        %v2045 = vadd.f32 %v1703, %v1865
        %v2046 = vadd.f32 %v1704, %v1865
        %v2047 = vadd.f32 %v1705, %v1865
        %v2048 = vadd.f32 %v1706, %v1865
        %v2049 = vadd.f32 %v1707, %v1865
        %v2050 = vadd.f32 %v1708, %v1865
        %v2051 = vadd.f32 %v1709, %v1865
        %v2052 = vadd.f32 %v1710, %v1865
        %v2053 = vadd.f32 %v1711, %v1865
        %v2054 = vadd.f32 %v1712, %v1865
        %v2055 = vadd.f32 %v1713, %v1865
        %v2056 = vadd.f32 %v1714, %v1865
        %v2057 = vadd.f32 %v1715, %v1865
        %v2058 = vadd.f32 %v1716, %v1865
        %v2059 = vadd.f32 %v1717, %v1865
        %v2060 = vadd.f32 %v1718, %v1865
        %v2061 = vadd.f32 %v1719, %v1865
        %v2062 = vadd.f32 %v1720, %v1865
        %v2063 = vadd.f32 %v1721, %v1865
        %v2064 = vadd.f32 %v1722, %v1865
        %v2065 = vadd.f32 %v1723, %v1865
        %v2066 = vadd.f32 %v1724, %v1865
        %v2067 = vadd.f32 %v1725, %v1865
        %v2068 = vadd.f32 %v1726, %v1865
        %v2069 = vadd.f32 %v1727, %v1865
        %v2070 = vadd.f32 %v1728, %v1865
        %v2071 = vadd.f32 %v1729, %v1865
        %v2072 = vadd.f32 %v1730, %v1865
        %v2073 = vadd.f32 %v1731, %v1865
        %v2074 = vadd.f32 %v1732, %v1870
        %v2075 = vadd.f32 %v1733, %v1870
        %v2076 = vadd.f32 %v1734, %v1870
        %v2077 = vadd.f32 %v1735, %v1870
        %v2078 = vadd.f32 %v1736, %v1870
        %v2079 = vadd.f32 %v1737, %v1870
        %v2080 = vadd.f32 %v1738, %v1870
        %v2081 = vadd.f32 %v1739, %v1870
        %v2082 = vadd.f32 %v1740, %v1870
        %v2083 = vadd.f32 %v1741, %v1870
        %v2084 = vadd.f32 %v1742, %v1870
        %v2085 = vadd.f32 %v1743, %v1870
        %v2086 = vadd.f32 %v1744, %v1870
        %v2087 = vadd.f32 %v1745, %v1870
        %v2088 = vadd.f32 %v1746, %v1870
        %v2089 = vadd.f32 %v1747, %v1870
        %v2090 = vadd.f32 %v1748, %v1870
        %v2091 = vadd.f32 %v1749, %v1870
        %v2092 = vadd.f32 %v1750, %v1870
        %v2093 = vadd.f32 %v1751, %v1870
        %v2094 = vadd.f32 %v1752, %v1870
        %v2095 = vadd.f32 %v1753, %v1870
        %v2096 = vadd.f32 %v1754, %v1870
        %v2097 = vadd.f32 %v1755, %v1870
        %v2098 = vadd.f32 %v1756, %v1870
        %v2099 = vadd.f32 %v1757, %v1870
        %v2100 = vadd.f32 %v1758, %v1870
        %v2101 = vadd.f32 %v1759, %v1870
        %v2102 = vadd.f32 %v1760, %v1870
        %v2103 = vadd.f32 %v1761, %v1870
        %v2104 = vadd.f32 %v1762, %v1870
        %v2105 = vadd.f32 %v1763, %v1870
        %v2106 = vadd.f32 %v1764, %v1875
        %v2107 = vadd.f32 %v1765, %v1875
        %v2108 = vadd.f32 %v1766, %v1875
        %v2109 = vadd.f32 %v1767, %v1875
        %v2110 = vadd.f32 %v1768, %v1875
        %v2111 = vadd.f32 %v1769, %v1875
        %v2112 = vadd.f32 %v1770, %v1875
        %v2113 = vadd.f32 %v1771, %v1875
        %v2114 = vadd.f32 %v1772, %v1875
        %v2115 = vadd.f32 %v1773, %v1875
        %v2116 = vadd.f32 %v1774, %v1875
        %v2117 = vadd.f32 %v1775, %v1875
        %v2118 = vadd.f32 %v1776, %v1875
        %v2119 = vadd.f32 %v1777, %v1875
        %v2120 = vadd.f32 %v1778, %v1875
        %v2121 = vadd.f32 %v1779, %v1875
        %v2122 = vadd.f32 %v1780, %v1875
        %v2123 = vadd.f32 %v1781, %v1875
        %v2124 = vadd.f32 %v1782, %v1875
        %v2125 = vadd.f32 %v1783, %v1875
        %v2126 = vadd.f32 %v1784, %v1875
        %v2127 = vadd.f32 %v1785, %v1875
        %v2128 = vadd.f32 %v1786, %v1875
        %v2129 = vadd.f32 %v1787, %v1875
        %v2130 = vadd.f32 %v1788, %v1875
        %v2131 = vadd.f32 %v1789, %v1875
        %v2132 = vadd.f32 %v1790, %v1875
        %v2133 = vadd.f32 %v1791, %v1875
        %v2134 = vadd.f32 %v1792, %v1875
        %v2135 = vadd.f32 %v1793, %v1875
        %v2136 = vadd.f32 %v1794, %v1875
        %v2137 = vadd.f32 %v1795, %v1875
        %v2138 = vadd.f32 %v1796, %v1880
        %v2139 = vadd.f32 %v1797, %v1880
        %v2140 = vadd.f32 %v1798, %v1880
        %v2141 = vadd.f32 %v1799, %v1880
        %v2142 = vadd.f32 %v1800, %v1880
        %v2143 = vadd.f32 %v1801, %v1880
        %v2144 = vadd.f32 %v1802, %v1880
        %v2145 = vadd.f32 %v1803, %v1880
        %v2146 = vadd.f32 %v1804, %v1880
        %v2147 = vadd.f32 %v1805, %v1880
        %v2148 = vadd.f32 %v1806, %v1880
        %v2149 = vadd.f32 %v1807, %v1880
        %v2150 = vadd.f32 %v1808, %v1880
        %v2151 = vadd.f32 %v1809, %v1880
        %v2152 = vadd.f32 %v1810, %v1880
        %v2153 = vadd.f32 %v1811, %v1880
        %v2154 = vadd.f32 %v1812, %v1880
        %v2155 = vadd.f32 %v1813, %v1880
        %v2156 = vadd.f32 %v1814, %v1880
        %v2157 = vadd.f32 %v1815, %v1880
        %v2158 = vadd.f32 %v1816, %v1880
        %v2159 = vadd.f32 %v1817, %v1880
        %v2160 = vadd.f32 %v1818, %v1880
        %v2161 = vadd.f32 %v1819, %v1880
        %v2162 = vadd.f32 %v1820, %v1880
        %v2163 = vadd.f32 %v1821, %v1880
        %v2164 = vadd.f32 %v1822, %v1880
        %v2165 = vadd.f32 %v1823, %v1880
        %v2166 = vadd.f32 %v1824, %v1880
        %v2167 = vadd.f32 %v1825, %v1880
        %v2168 = vadd.f32 %v1826, %v1880
        %v2169 = vadd.f32 %v1827, %v1880
        %vm2170 = vcmp.lt.f32.partialorder %v910, -1e+29
        %vm2171 = vcmp.lt.f32.partialorder %v911, -1e+29
        %vm2172 = vcmp.lt.f32.partialorder %v912, -1e+29
        %vm2173 = vcmp.lt.f32.partialorder %v913, -1e+29
        %vm2174 = vcmp.lt.f32.partialorder %v914, -1e+29
        %vm2175 = vcmp.lt.f32.partialorder %v915, -1e+29
        %vm2176 = vcmp.lt.f32.partialorder %v916, -1e+29
        %vm2177 = vcmp.lt.f32.partialorder %v917, -1e+29
        %vm2178 = vcmp.lt.f32.partialorder %v918, -1e+29
        %vm2179 = vcmp.lt.f32.partialorder %v919, -1e+29
        %vm2180 = vcmp.lt.f32.partialorder %v920, -1e+29
        %vm2181 = vcmp.lt.f32.partialorder %v921, -1e+29
        %vm2182 = vcmp.lt.f32.partialorder %v922, -1e+29
        %vm2183 = vcmp.lt.f32.partialorder %v923, -1e+29
        %vm2184 = vcmp.lt.f32.partialorder %v924, -1e+29
        %vm2185 = vcmp.lt.f32.partialorder %v925, -1e+29
        %vm2186 = vcmp.lt.f32.partialorder %v926, -1e+29
        %vm2187 = vcmp.lt.f32.partialorder %v927, -1e+29
        %vm2188 = vcmp.lt.f32.partialorder %v928, -1e+29
        %vm2189 = vcmp.lt.f32.partialorder %v929, -1e+29
        %vm2190 = vcmp.lt.f32.partialorder %v930, -1e+29
        %vm2191 = vcmp.lt.f32.partialorder %v931, -1e+29
        %vm2192 = vcmp.lt.f32.partialorder %v932, -1e+29
        %vm2193 = vcmp.lt.f32.partialorder %v933, -1e+29
        %vm2194 = vcmp.lt.f32.partialorder %v934, -1e+29
        %vm2195 = vcmp.lt.f32.partialorder %v935, -1e+29
        %vm2196 = vcmp.lt.f32.partialorder %v936, -1e+29
        %vm2197 = vcmp.lt.f32.partialorder %v937, -1e+29
        %vm2198 = vcmp.lt.f32.partialorder %v938, -1e+29
        %vm2199 = vcmp.lt.f32.partialorder %v939, -1e+29
        %vm2200 = vcmp.lt.f32.partialorder %v940, -1e+29
        %vm2201 = vcmp.lt.f32.partialorder %v941, -1e+29
        %vm2202 = vcmp.lt.f32.partialorder %v942, -1e+29
        %vm2203 = vcmp.lt.f32.partialorder %v943, -1e+29
        %vm2204 = vcmp.lt.f32.partialorder %v944, -1e+29
        %vm2205 = vcmp.lt.f32.partialorder %v945, -1e+29
        %vm2206 = vcmp.lt.f32.partialorder %v946, -1e+29
        %vm2207 = vcmp.lt.f32.partialorder %v947, -1e+29
        %vm2208 = vcmp.lt.f32.partialorder %v948, -1e+29
        %vm2209 = vcmp.lt.f32.partialorder %v949, -1e+29
        %vm2210 = vcmp.lt.f32.partialorder %v950, -1e+29
        %vm2211 = vcmp.lt.f32.partialorder %v951, -1e+29
        %vm2212 = vcmp.lt.f32.partialorder %v952, -1e+29
        %vm2213 = vcmp.lt.f32.partialorder %v953, -1e+29
        %vm2214 = vcmp.lt.f32.partialorder %v954, -1e+29
        %vm2215 = vcmp.lt.f32.partialorder %v955, -1e+29
        %vm2216 = vcmp.lt.f32.partialorder %v956, -1e+29
        %vm2217 = vcmp.lt.f32.partialorder %v957, -1e+29
        %vm2218 = vcmp.lt.f32.partialorder %v958, -1e+29
        %vm2219 = vcmp.lt.f32.partialorder %v959, -1e+29
        %vm2220 = vcmp.lt.f32.partialorder %v960, -1e+29
        %vm2221 = vcmp.lt.f32.partialorder %v961, -1e+29
        %vm2222 = vcmp.lt.f32.partialorder %v962, -1e+29
        %vm2223 = vcmp.lt.f32.partialorder %v963, -1e+29
        %vm2224 = vcmp.lt.f32.partialorder %v964, -1e+29
        %vm2225 = vcmp.lt.f32.partialorder %v965, -1e+29
        %vm2226 = vcmp.lt.f32.partialorder %v966, -1e+29
        %vm2227 = vcmp.lt.f32.partialorder %v967, -1e+29
        %vm2228 = vcmp.lt.f32.partialorder %v968, -1e+29
        %vm2229 = vcmp.lt.f32.partialorder %v969, -1e+29
        %vm2230 = vcmp.lt.f32.partialorder %v970, -1e+29
        %vm2231 = vcmp.lt.f32.partialorder %v971, -1e+29
        %vm2232 = vcmp.lt.f32.partialorder %v972, -1e+29
        %vm2233 = vcmp.lt.f32.partialorder %v973, -1e+29
        %vm2234 = vcmp.lt.f32.partialorder %v974, -1e+29
        %vm2235 = vcmp.lt.f32.partialorder %v975, -1e+29
        %vm2236 = vcmp.lt.f32.partialorder %v976, -1e+29
        %vm2237 = vcmp.lt.f32.partialorder %v977, -1e+29
        %vm2238 = vcmp.lt.f32.partialorder %v978, -1e+29
        %vm2239 = vcmp.lt.f32.partialorder %v979, -1e+29
        %vm2240 = vcmp.lt.f32.partialorder %v980, -1e+29
        %vm2241 = vcmp.lt.f32.partialorder %v981, -1e+29
        %vm2242 = vcmp.lt.f32.partialorder %v982, -1e+29
        %vm2243 = vcmp.lt.f32.partialorder %v983, -1e+29
        %vm2244 = vcmp.lt.f32.partialorder %v984, -1e+29
        %vm2245 = vcmp.lt.f32.partialorder %v985, -1e+29
        %vm2246 = vcmp.lt.f32.partialorder %v986, -1e+29
        %vm2247 = vcmp.lt.f32.partialorder %v987, -1e+29
        %vm2248 = vcmp.lt.f32.partialorder %v988, -1e+29
        %vm2249 = vcmp.lt.f32.partialorder %v989, -1e+29
        %vm2250 = vcmp.lt.f32.partialorder %v990, -1e+29
        %vm2251 = vcmp.lt.f32.partialorder %v991, -1e+29
        %vm2252 = vcmp.lt.f32.partialorder %v992, -1e+29
        %vm2253 = vcmp.lt.f32.partialorder %v993, -1e+29
        %vm2254 = vcmp.lt.f32.partialorder %v994, -1e+29
        %vm2255 = vcmp.lt.f32.partialorder %v995, -1e+29
        %vm2256 = vcmp.lt.f32.partialorder %v996, -1e+29
        %vm2257 = vcmp.lt.f32.partialorder %v997, -1e+29
        %vm2258 = vcmp.lt.f32.partialorder %v998, -1e+29
        %vm2259 = vcmp.lt.f32.partialorder %v999, -1e+29
        %vm2260 = vcmp.lt.f32.partialorder %v1000, -1e+29
        %vm2261 = vcmp.lt.f32.partialorder %v1001, -1e+29
        %vm2262 = vcmp.lt.f32.partialorder %v1002, -1e+29
        %vm2263 = vcmp.lt.f32.partialorder %v1003, -1e+29
        %vm2264 = vcmp.lt.f32.partialorder %v1004, -1e+29
        %vm2265 = vcmp.lt.f32.partialorder %v1005, -1e+29
        %vm2266 = vcmp.lt.f32.partialorder %v1006, -1e+29
        %vm2267 = vcmp.lt.f32.partialorder %v1007, -1e+29
        %vm2268 = vcmp.lt.f32.partialorder %v1008, -1e+29
        %vm2269 = vcmp.lt.f32.partialorder %v1009, -1e+29
        %vm2270 = vcmp.lt.f32.partialorder %v1010, -1e+29
        %vm2271 = vcmp.lt.f32.partialorder %v1011, -1e+29
        %vm2272 = vcmp.lt.f32.partialorder %v1012, -1e+29
        %vm2273 = vcmp.lt.f32.partialorder %v1013, -1e+29
        %vm2274 = vcmp.lt.f32.partialorder %v1014, -1e+29
        %vm2275 = vcmp.lt.f32.partialorder %v1015, -1e+29
        %vm2276 = vcmp.lt.f32.partialorder %v1016, -1e+29
        %vm2277 = vcmp.lt.f32.partialorder %v1017, -1e+29
        %vm2278 = vcmp.lt.f32.partialorder %v1018, -1e+29
        %vm2279 = vcmp.lt.f32.partialorder %v1019, -1e+29
        %vm2280 = vcmp.lt.f32.partialorder %v1020, -1e+29
        %vm2281 = vcmp.lt.f32.partialorder %v1021, -1e+29
        %vm2282 = vcmp.lt.f32.partialorder %v1022, -1e+29
        %vm2283 = vcmp.lt.f32.partialorder %v1023, -1e+29
        %vm2284 = vcmp.lt.f32.partialorder %v1024, -1e+29
        %vm2285 = vcmp.lt.f32.partialorder %v1025, -1e+29
        %vm2286 = vcmp.lt.f32.partialorder %v1026, -1e+29
        %vm2287 = vcmp.lt.f32.partialorder %v1027, -1e+29
        %vm2288 = vcmp.lt.f32.partialorder %v1028, -1e+29
        %vm2289 = vcmp.lt.f32.partialorder %v1029, -1e+29
        %vm2290 = vcmp.lt.f32.partialorder %v1030, -1e+29
        %vm2291 = vcmp.lt.f32.partialorder %v1031, -1e+29
        %vm2292 = vcmp.lt.f32.partialorder %v1032, -1e+29
        %vm2293 = vcmp.lt.f32.partialorder %v1033, -1e+29
        %vm2294 = vcmp.lt.f32.partialorder %v1034, -1e+29
        %vm2295 = vcmp.lt.f32.partialorder %v1035, -1e+29
        %vm2296 = vcmp.lt.f32.partialorder %v1036, -1e+29
        %vm2297 = vcmp.lt.f32.partialorder %v1037, -1e+29
        %vm2298 = vcmp.lt.f32.partialorder %v1038, -1e+29
        %vm2299 = vcmp.lt.f32.partialorder %v1039, -1e+29
        %vm2300 = vcmp.lt.f32.partialorder %v1040, -1e+29
        %vm2301 = vcmp.lt.f32.partialorder %v1041, -1e+29
        %vm2302 = vcmp.lt.f32.partialorder %v1042, -1e+29
        %vm2303 = vcmp.lt.f32.partialorder %v1043, -1e+29
        %vm2304 = vcmp.lt.f32.partialorder %v1044, -1e+29
        %vm2305 = vcmp.lt.f32.partialorder %v1045, -1e+29
        %vm2306 = vcmp.lt.f32.partialorder %v1046, -1e+29
        %vm2307 = vcmp.lt.f32.partialorder %v1047, -1e+29
        %vm2308 = vcmp.lt.f32.partialorder %v1048, -1e+29
        %vm2309 = vcmp.lt.f32.partialorder %v1049, -1e+29
        %vm2310 = vcmp.lt.f32.partialorder %v1050, -1e+29
        %vm2311 = vcmp.lt.f32.partialorder %v1051, -1e+29
        %vm2312 = vcmp.lt.f32.partialorder %v1052, -1e+29
        %vm2313 = vcmp.lt.f32.partialorder %v1053, -1e+29
        %vm2314 = vcmp.lt.f32.partialorder %v1054, -1e+29
        %vm2315 = vcmp.lt.f32.partialorder %v1055, -1e+29
        %vm2316 = vcmp.lt.f32.partialorder %v1056, -1e+29
        %vm2317 = vcmp.lt.f32.partialorder %v1057, -1e+29
        %vm2318 = vcmp.lt.f32.partialorder %v1058, -1e+29
        %vm2319 = vcmp.lt.f32.partialorder %v1059, -1e+29
        %vm2320 = vcmp.lt.f32.partialorder %v1060, -1e+29
        %vm2321 = vcmp.lt.f32.partialorder %v1061, -1e+29
        %vm2322 = vcmp.lt.f32.partialorder %v1062, -1e+29
        %vm2323 = vcmp.lt.f32.partialorder %v1063, -1e+29
        %vm2324 = vcmp.lt.f32.partialorder %v1064, -1e+29
        %vm2325 = vcmp.lt.f32.partialorder %v1065, -1e+29
        %vm2326 = vcmp.lt.f32.partialorder %v1066, -1e+29
        %vm2327 = vcmp.lt.f32.partialorder %v1067, -1e+29
        %vm2328 = vcmp.lt.f32.partialorder %v1068, -1e+29
        %vm2329 = vcmp.lt.f32.partialorder %v1069, -1e+29
        %vm2330 = vcmp.lt.f32.partialorder %v1070, -1e+29
        %vm2331 = vcmp.lt.f32.partialorder %v1071, -1e+29
        %vm2332 = vcmp.lt.f32.partialorder %v1072, -1e+29
        %vm2333 = vcmp.lt.f32.partialorder %v1073, -1e+29
        %vm2334 = vcmp.lt.f32.partialorder %v1074, -1e+29
        %vm2335 = vcmp.lt.f32.partialorder %v1075, -1e+29
        %vm2336 = vcmp.lt.f32.partialorder %v1076, -1e+29
        %vm2337 = vcmp.lt.f32.partialorder %v1077, -1e+29
        %vm2338 = vcmp.lt.f32.partialorder %v1078, -1e+29
        %vm2339 = vcmp.lt.f32.partialorder %v1079, -1e+29
        %vm2340 = vcmp.lt.f32.partialorder %v1080, -1e+29
        %vm2341 = vcmp.lt.f32.partialorder %v1081, -1e+29
        %vm2342 = vcmp.lt.f32.partialorder %v1082, -1e+29
        %vm2343 = vcmp.lt.f32.partialorder %v1083, -1e+29
        %vm2344 = vcmp.lt.f32.partialorder %v1084, -1e+29
        %vm2345 = vcmp.lt.f32.partialorder %v1085, -1e+29
        %vm2346 = vcmp.lt.f32.partialorder %v1086, -1e+29
        %vm2347 = vcmp.lt.f32.partialorder %v1087, -1e+29
        %vm2348 = vcmp.lt.f32.partialorder %v1088, -1e+29
        %vm2349 = vcmp.lt.f32.partialorder %v1089, -1e+29
        %vm2350 = vcmp.lt.f32.partialorder %v1090, -1e+29
        %vm2351 = vcmp.lt.f32.partialorder %v1091, -1e+29
        %vm2352 = vcmp.lt.f32.partialorder %v1092, -1e+29
        %vm2353 = vcmp.lt.f32.partialorder %v1093, -1e+29
        %vm2354 = vcmp.lt.f32.partialorder %v1094, -1e+29
        %vm2355 = vcmp.lt.f32.partialorder %v1095, -1e+29
        %vm2356 = vcmp.lt.f32.partialorder %v1096, -1e+29
        %vm2357 = vcmp.lt.f32.partialorder %v1097, -1e+29
        %vm2358 = vcmp.lt.f32.partialorder %v1098, -1e+29
        %vm2359 = vcmp.lt.f32.partialorder %v1099, -1e+29
        %vm2360 = vcmp.lt.f32.partialorder %v1100, -1e+29
        %vm2361 = vcmp.lt.f32.partialorder %v1101, -1e+29
        %vm2362 = vcmp.lt.f32.partialorder %v1102, -1e+29
        %vm2363 = vcmp.lt.f32.partialorder %v1103, -1e+29
        %vm2364 = vcmp.lt.f32.partialorder %v1104, -1e+29
        %vm2365 = vcmp.lt.f32.partialorder %v1105, -1e+29
        %vm2366 = vcmp.lt.f32.partialorder %v1106, -1e+29
        %vm2367 = vcmp.lt.f32.partialorder %v1107, -1e+29
        %vm2368 = vcmp.lt.f32.partialorder %v1108, -1e+29
        %vm2369 = vcmp.lt.f32.partialorder %v1109, -1e+29
        %vm2370 = vcmp.lt.f32.partialorder %v1110, -1e+29
        %vm2371 = vcmp.lt.f32.partialorder %v1111, -1e+29
        %vm2372 = vcmp.lt.f32.partialorder %v1112, -1e+29
        %vm2373 = vcmp.lt.f32.partialorder %v1113, -1e+29
        %vm2374 = vcmp.lt.f32.partialorder %v1114, -1e+29
        %vm2375 = vcmp.lt.f32.partialorder %v1115, -1e+29
        %vm2376 = vcmp.lt.f32.partialorder %v1116, -1e+29
        %vm2377 = vcmp.lt.f32.partialorder %v1117, -1e+29
        %vm2378 = vcmp.lt.f32.partialorder %v1118, -1e+29
        %vm2379 = vcmp.lt.f32.partialorder %v1119, -1e+29
        %vm2380 = vcmp.lt.f32.partialorder %v1120, -1e+29
        %vm2381 = vcmp.lt.f32.partialorder %v1121, -1e+29
        %vm2382 = vcmp.lt.f32.partialorder %v1122, -1e+29
        %vm2383 = vcmp.lt.f32.partialorder %v1123, -1e+29
        %vm2384 = vcmp.lt.f32.partialorder %v1124, -1e+29
        %vm2385 = vcmp.lt.f32.partialorder %v1125, -1e+29
        %vm2386 = vcmp.lt.f32.partialorder %v1126, -1e+29
        %vm2387 = vcmp.lt.f32.partialorder %v1127, -1e+29
        %vm2388 = vcmp.lt.f32.partialorder %v1128, -1e+29
        %vm2389 = vcmp.lt.f32.partialorder %v1129, -1e+29
        %vm2390 = vcmp.lt.f32.partialorder %v1130, -1e+29
        %vm2391 = vcmp.lt.f32.partialorder %v1131, -1e+29
        %vm2392 = vcmp.lt.f32.partialorder %v1132, -1e+29
        %vm2393 = vcmp.lt.f32.partialorder %v1133, -1e+29
        %vm2394 = vcmp.lt.f32.partialorder %v1134, -1e+29
        %vm2395 = vcmp.lt.f32.partialorder %v1135, -1e+29
        %vm2396 = vcmp.lt.f32.partialorder %v1136, -1e+29
        %vm2397 = vcmp.lt.f32.partialorder %v1137, -1e+29
        %vm2398 = vcmp.lt.f32.partialorder %v1138, -1e+29
        %vm2399 = vcmp.lt.f32.partialorder %v1139, -1e+29
        %vm2400 = vcmp.lt.f32.partialorder %v1140, -1e+29
        %vm2401 = vcmp.lt.f32.partialorder %v1141, -1e+29
        %vm2402 = vcmp.lt.f32.partialorder %v1142, -1e+29
        %vm2403 = vcmp.lt.f32.partialorder %v1143, -1e+29
        %vm2404 = vcmp.lt.f32.partialorder %v1144, -1e+29
        %vm2405 = vcmp.lt.f32.partialorder %v1145, -1e+29
        %vm2406 = vcmp.lt.f32.partialorder %v1146, -1e+29
        %vm2407 = vcmp.lt.f32.partialorder %v1147, -1e+29
        %vm2408 = vcmp.lt.f32.partialorder %v1148, -1e+29
        %vm2409 = vcmp.lt.f32.partialorder %v1149, -1e+29
        %vm2410 = vcmp.lt.f32.partialorder %v1150, -1e+29
        %vm2411 = vcmp.lt.f32.partialorder %v1151, -1e+29
        %vm2412 = vcmp.lt.f32.partialorder %v1152, -1e+29
        %vm2413 = vcmp.lt.f32.partialorder %v1153, -1e+29
        %vm2414 = vcmp.lt.f32.partialorder %v1154, -1e+29
        %vm2415 = vcmp.lt.f32.partialorder %v1155, -1e+29
        %vm2416 = vcmp.lt.f32.partialorder %v1156, -1e+29
        %vm2417 = vcmp.lt.f32.partialorder %v1157, -1e+29
        %vm2418 = vcmp.lt.f32.partialorder %v1158, -1e+29
        %vm2419 = vcmp.lt.f32.partialorder %v1159, -1e+29
        %vm2420 = vcmp.lt.f32.partialorder %v1160, -1e+29
        %vm2421 = vcmp.lt.f32.partialorder %v1161, -1e+29
        %vm2422 = vcmp.lt.f32.partialorder %v1162, -1e+29
        %vm2423 = vcmp.lt.f32.partialorder %v1163, -1e+29
        %vm2424 = vcmp.lt.f32.partialorder %v1164, -1e+29
        %vm2425 = vcmp.lt.f32.partialorder %v1165, -1e+29
        %vm2426 = vcmp.lt.f32.partialorder %v1166, -1e+29
        %vm2427 = vcmp.lt.f32.partialorder %v1167, -1e+29
        %vm2428 = vcmp.lt.f32.partialorder %v1168, -1e+29
        %vm2429 = vcmp.lt.f32.partialorder %v1169, -1e+29
        %vm2430 = vcmp.lt.f32.partialorder %v1170, -1e+29
        %vm2431 = vcmp.lt.f32.partialorder %v1171, -1e+29
        %vm2432 = vcmp.lt.f32.partialorder %v1172, -1e+29
        %vm2433 = vcmp.lt.f32.partialorder %v1173, -1e+29
        %vm2434 = vcmp.lt.f32.partialorder %v1174, -1e+29
        %vm2435 = vcmp.lt.f32.partialorder %v1175, -1e+29
        %vm2436 = vcmp.lt.f32.partialorder %v1176, -1e+29
        %vm2437 = vcmp.lt.f32.partialorder %v1177, -1e+29
        %vm2438 = vcmp.lt.f32.partialorder %v1178, -1e+29
        %vm2439 = vcmp.lt.f32.partialorder %v1179, -1e+29
        %vm2440 = vcmp.lt.f32.partialorder %v1180, -1e+29
        %vm2441 = vcmp.lt.f32.partialorder %v1181, -1e+29
        %vm2442 = vcmp.lt.f32.partialorder %v1182, -1e+29
        %vm2443 = vcmp.lt.f32.partialorder %v1183, -1e+29
        %vm2444 = vcmp.lt.f32.partialorder %v1184, -1e+29
        %vm2445 = vcmp.lt.f32.partialorder %v1185, -1e+29
        %vm2446 = vcmp.lt.f32.partialorder %v1186, -1e+29
        %vm2447 = vcmp.lt.f32.partialorder %v1187, -1e+29
        %vm2448 = vcmp.lt.f32.partialorder %v1188, -1e+29
        %vm2449 = vcmp.lt.f32.partialorder %v1189, -1e+29
        %vm2450 = vcmp.lt.f32.partialorder %v1190, -1e+29
        %vm2451 = vcmp.lt.f32.partialorder %v1191, -1e+29
        %vm2452 = vcmp.lt.f32.partialorder %v1192, -1e+29
        %vm2453 = vcmp.lt.f32.partialorder %v1193, -1e+29
        %vm2454 = vcmp.lt.f32.partialorder %v1194, -1e+29
        %vm2455 = vcmp.lt.f32.partialorder %v1195, -1e+29
        %vm2456 = vcmp.lt.f32.partialorder %v1196, -1e+29
        %vm2457 = vcmp.lt.f32.partialorder %v1197, -1e+29
        %v2458 = vsel %vm2170, 0.0, %v1882
        %v2459 = vsel %vm2171, 0.0, %v1883
        %v2460 = vsel %vm2172, 0.0, %v1884
        %v2461 = vsel %vm2173, 0.0, %v1885
        %v2462 = vsel %vm2174, 0.0, %v1886
        %v2463 = vsel %vm2175, 0.0, %v1887
        %v2464 = vsel %vm2176, 0.0, %v1888
        %v2465 = vsel %vm2177, 0.0, %v1889
        %v2466 = vsel %vm2178, 0.0, %v1890
        %v2467 = vsel %vm2179, 0.0, %v1891
        %v2468 = vsel %vm2180, 0.0, %v1892
        %v2469 = vsel %vm2181, 0.0, %v1893
        %v2470 = vsel %vm2182, 0.0, %v1894
        %v2471 = vsel %vm2183, 0.0, %v1895
        %v2472 = vsel %vm2184, 0.0, %v1896
        %v2473 = vsel %vm2185, 0.0, %v1897
        %v2474 = vsel %vm2186, 0.0, %v1898
        %v2475 = vsel %vm2187, 0.0, %v1899
        %v2476 = vsel %vm2188, 0.0, %v1900
        %v2477 = vsel %vm2189, 0.0, %v1901
        %v2478 = vsel %vm2190, 0.0, %v1902
        %v2479 = vsel %vm2191, 0.0, %v1903
        %v2480 = vsel %vm2192, 0.0, %v1904
        %v2481 = vsel %vm2193, 0.0, %v1905
        %v2482 = vsel %vm2194, 0.0, %v1906
        %v2483 = vsel %vm2195, 0.0, %v1907
        %v2484 = vsel %vm2196, 0.0, %v1908
        %v2485 = vsel %vm2197, 0.0, %v1909
        %v2486 = vsel %vm2198, 0.0, %v1910
        %v2487 = vsel %vm2199, 0.0, %v1911
        %v2488 = vsel %vm2200, 0.0, %v1912
        %v2489 = vsel %vm2201, 0.0, %v1913
        %v2490 = vsel %vm2202, 0.0, %v1914
        %v2491 = vsel %vm2203, 0.0, %v1915
        %v2492 = vsel %vm2204, 0.0, %v1916
        %v2493 = vsel %vm2205, 0.0, %v1917
        %v2494 = vsel %vm2206, 0.0, %v1918
        %v2495 = vsel %vm2207, 0.0, %v1919
        %v2496 = vsel %vm2208, 0.0, %v1920
        %v2497 = vsel %vm2209, 0.0, %v1921
        %v2498 = vsel %vm2210, 0.0, %v1922
        %v2499 = vsel %vm2211, 0.0, %v1923
        %v2500 = vsel %vm2212, 0.0, %v1924
        %v2501 = vsel %vm2213, 0.0, %v1925
        %v2502 = vsel %vm2214, 0.0, %v1926
        %v2503 = vsel %vm2215, 0.0, %v1927
        %v2504 = vsel %vm2216, 0.0, %v1928
        %v2505 = vsel %vm2217, 0.0, %v1929
        %v2506 = vsel %vm2218, 0.0, %v1930
        %v2507 = vsel %vm2219, 0.0, %v1931
        %v2508 = vsel %vm2220, 0.0, %v1932
        %v2509 = vsel %vm2221, 0.0, %v1933
        %v2510 = vsel %vm2222, 0.0, %v1934
        %v2511 = vsel %vm2223, 0.0, %v1935
        %v2512 = vsel %vm2224, 0.0, %v1936
        %v2513 = vsel %vm2225, 0.0, %v1937
        %v2514 = vsel %vm2226, 0.0, %v1938
        %v2515 = vsel %vm2227, 0.0, %v1939
        %v2516 = vsel %vm2228, 0.0, %v1940
        %v2517 = vsel %vm2229, 0.0, %v1941
        %v2518 = vsel %vm2230, 0.0, %v1942
        %v2519 = vsel %vm2231, 0.0, %v1943
        %v2520 = vsel %vm2232, 0.0, %v1944
        %v2521 = vsel %vm2233, 0.0, %v1945
        %v2522 = vsel %vm2234, 0.0, %v1946
        %v2523 = vsel %vm2235, 0.0, %v1947
        %v2524 = vsel %vm2236, 0.0, %v1948
        %v2525 = vsel %vm2237, 0.0, %v1949
        %v2526 = vsel %vm2238, 0.0, %v1950
        %v2527 = vsel %vm2239, 0.0, %v1951
        %v2528 = vsel %vm2240, 0.0, %v1952
        %v2529 = vsel %vm2241, 0.0, %v1953
        %v2530 = vsel %vm2242, 0.0, %v1954
        %v2531 = vsel %vm2243, 0.0, %v1955
        %v2532 = vsel %vm2244, 0.0, %v1956
        %v2533 = vsel %vm2245, 0.0, %v1957
        %v2534 = vsel %vm2246, 0.0, %v1958
        %v2535 = vsel %vm2247, 0.0, %v1959
        %v2536 = vsel %vm2248, 0.0, %v1960
        %v2537 = vsel %vm2249, 0.0, %v1961
        %v2538 = vsel %vm2250, 0.0, %v1962
        %v2539 = vsel %vm2251, 0.0, %v1963
        %v2540 = vsel %vm2252, 0.0, %v1964
        %v2541 = vsel %vm2253, 0.0, %v1965
        %v2542 = vsel %vm2254, 0.0, %v1966
        %v2543 = vsel %vm2255, 0.0, %v1967
        %v2544 = vsel %vm2256, 0.0, %v1968
        %v2545 = vsel %vm2257, 0.0, %v1969
        %v2546 = vsel %vm2258, 0.0, %v1970
        %v2547 = vsel %vm2259, 0.0, %v1971
        %v2548 = vsel %vm2260, 0.0, %v1972
        %v2549 = vsel %vm2261, 0.0, %v1973
        %v2550 = vsel %vm2262, 0.0, %v1974
        %v2551 = vsel %vm2263, 0.0, %v1975
        %v2552 = vsel %vm2264, 0.0, %v1976
        %v2553 = vsel %vm2265, 0.0, %v1977
        %v2554 = vsel %vm2266, 0.0, %v1978
        %v2555 = vsel %vm2267, 0.0, %v1979
        %v2556 = vsel %vm2268, 0.0, %v1980
        %v2557 = vsel %vm2269, 0.0, %v1981
        %v2558 = vsel %vm2270, 0.0, %v1982
        %v2559 = vsel %vm2271, 0.0, %v1983
        %v2560 = vsel %vm2272, 0.0, %v1984
        %v2561 = vsel %vm2273, 0.0, %v1985
        %v2562 = vsel %vm2274, 0.0, %v1986
        %v2563 = vsel %vm2275, 0.0, %v1987
        %v2564 = vsel %vm2276, 0.0, %v1988
        %v2565 = vsel %vm2277, 0.0, %v1989
        %v2566 = vsel %vm2278, 0.0, %v1990
        %v2567 = vsel %vm2279, 0.0, %v1991
        %v2568 = vsel %vm2280, 0.0, %v1992
        %v2569 = vsel %vm2281, 0.0, %v1993
        %v2570 = vsel %vm2282, 0.0, %v1994
        %v2571 = vsel %vm2283, 0.0, %v1995
        %v2572 = vsel %vm2284, 0.0, %v1996
        %v2573 = vsel %vm2285, 0.0, %v1997
        %v2574 = vsel %vm2286, 0.0, %v1998
        %v2575 = vsel %vm2287, 0.0, %v1999
        %v2576 = vsel %vm2288, 0.0, %v2000
        %v2577 = vsel %vm2289, 0.0, %v2001
        %v2578 = vsel %vm2290, 0.0, %v2002
        %v2579 = vsel %vm2291, 0.0, %v2003
        %v2580 = vsel %vm2292, 0.0, %v2004
        %v2581 = vsel %vm2293, 0.0, %v2005
        %v2582 = vsel %vm2294, 0.0, %v2006
        %v2583 = vsel %vm2295, 0.0, %v2007
        %v2584 = vsel %vm2296, 0.0, %v2008
        %v2585 = vsel %vm2297, 0.0, %v2009
        %v2586 = vsel %vm2298, 0.0, %v2010
        %v2587 = vsel %vm2299, 0.0, %v2011
        %v2588 = vsel %vm2300, 0.0, %v2012
        %v2589 = vsel %vm2301, 0.0, %v2013
        %v2590 = vsel %vm2302, 0.0, %v2014
        %v2591 = vsel %vm2303, 0.0, %v2015
        %v2592 = vsel %vm2304, 0.0, %v2016
        %v2593 = vsel %vm2305, 0.0, %v2017
        %v2594 = vsel %vm2306, 0.0, %v2018
        %v2595 = vsel %vm2307, 0.0, %v2019
        %v2596 = vsel %vm2308, 0.0, %v2020
        %v2597 = vsel %vm2309, 0.0, %v2021
        %v2598 = vsel %vm2310, 0.0, %v2022
        %v2599 = vsel %vm2311, 0.0, %v2023
        %v2600 = vsel %vm2312, 0.0, %v2024
        %v2601 = vsel %vm2313, 0.0, %v2025
        %v2602 = vsel %vm2314, 0.0, %v2026
        %v2603 = vsel %vm2315, 0.0, %v2027
        %v2604 = vsel %vm2316, 0.0, %v2028
        %v2605 = vsel %vm2317, 0.0, %v2029
        %v2606 = vsel %vm2318, 0.0, %v2030
        %v2607 = vsel %vm2319, 0.0, %v2031
        %v2608 = vsel %vm2320, 0.0, %v2032
        %v2609 = vsel %vm2321, 0.0, %v2033
        %v2610 = vsel %vm2322, 0.0, %v2034
        %v2611 = vsel %vm2323, 0.0, %v2035
        %v2612 = vsel %vm2324, 0.0, %v2036
        %v2613 = vsel %vm2325, 0.0, %v2037
        %v2614 = vsel %vm2326, 0.0, %v2038
        %v2615 = vsel %vm2327, 0.0, %v2039
        %v2616 = vsel %vm2328, 0.0, %v2040
        %v2617 = vsel %vm2329, 0.0, %v2041
        %v2618 = vsel %vm2330, 0.0, %v2042
        %v2619 = vsel %vm2331, 0.0, %v2043
        %v2620 = vsel %vm2332, 0.0, %v2044
        %v2621 = vsel %vm2333, 0.0, %v2045
        %v2622 = vsel %vm2334, 0.0, %v2046
        %v2623 = vsel %vm2335, 0.0, %v2047
        %v2624 = vsel %vm2336, 0.0, %v2048
        %v2625 = vsel %vm2337, 0.0, %v2049
        %v2626 = vsel %vm2338, 0.0, %v2050
        %v2627 = vsel %vm2339, 0.0, %v2051
        %v2628 = vsel %vm2340, 0.0, %v2052
        %v2629 = vsel %vm2341, 0.0, %v2053
        %v2630 = vsel %vm2342, 0.0, %v2054
        %v2631 = vsel %vm2343, 0.0, %v2055
        %v2632 = vsel %vm2344, 0.0, %v2056
        %v2633 = vsel %vm2345, 0.0, %v2057
        %v2634 = vsel %vm2346, 0.0, %v2058
        %v2635 = vsel %vm2347, 0.0, %v2059
        %v2636 = vsel %vm2348, 0.0, %v2060
        %v2637 = vsel %vm2349, 0.0, %v2061
        %v2638 = vsel %vm2350, 0.0, %v2062
        %v2639 = vsel %vm2351, 0.0, %v2063
        %v2640 = vsel %vm2352, 0.0, %v2064
        %v2641 = vsel %vm2353, 0.0, %v2065
        %v2642 = vsel %vm2354, 0.0, %v2066
        %v2643 = vsel %vm2355, 0.0, %v2067
        %v2644 = vsel %vm2356, 0.0, %v2068
        %v2645 = vsel %vm2357, 0.0, %v2069
        %v2646 = vsel %vm2358, 0.0, %v2070
        %v2647 = vsel %vm2359, 0.0, %v2071
        %v2648 = vsel %vm2360, 0.0, %v2072
        %v2649 = vsel %vm2361, 0.0, %v2073
        %v2650 = vsel %vm2362, 0.0, %v2074
        %v2651 = vsel %vm2363, 0.0, %v2075
        %v2652 = vsel %vm2364, 0.0, %v2076
        %v2653 = vsel %vm2365, 0.0, %v2077
        %v2654 = vsel %vm2366, 0.0, %v2078
        %v2655 = vsel %vm2367, 0.0, %v2079
        %v2656 = vsel %vm2368, 0.0, %v2080
        %v2657 = vsel %vm2369, 0.0, %v2081
        %v2658 = vsel %vm2370, 0.0, %v2082
        %v2659 = vsel %vm2371, 0.0, %v2083
        %v2660 = vsel %vm2372, 0.0, %v2084
        %v2661 = vsel %vm2373, 0.0, %v2085
        %v2662 = vsel %vm2374, 0.0, %v2086
        %v2663 = vsel %vm2375, 0.0, %v2087
        %v2664 = vsel %vm2376, 0.0, %v2088
        %v2665 = vsel %vm2377, 0.0, %v2089
        %v2666 = vsel %vm2378, 0.0, %v2090
        %v2667 = vsel %vm2379, 0.0, %v2091
        %v2668 = vsel %vm2380, 0.0, %v2092
        %v2669 = vsel %vm2381, 0.0, %v2093
        %v2670 = vsel %vm2382, 0.0, %v2094
        %v2671 = vsel %vm2383, 0.0, %v2095
        %v2672 = vsel %vm2384, 0.0, %v2096
        %v2673 = vsel %vm2385, 0.0, %v2097
        %v2674 = vsel %vm2386, 0.0, %v2098
        %v2675 = vsel %vm2387, 0.0, %v2099
        %v2676 = vsel %vm2388, 0.0, %v2100
        %v2677 = vsel %vm2389, 0.0, %v2101
        %v2678 = vsel %vm2390, 0.0, %v2102
        %v2679 = vsel %vm2391, 0.0, %v2103
        %v2680 = vsel %vm2392, 0.0, %v2104
        %v2681 = vsel %vm2393, 0.0, %v2105
        %v2682 = vsel %vm2394, 0.0, %v2106
        %v2683 = vsel %vm2395, 0.0, %v2107
        %v2684 = vsel %vm2396, 0.0, %v2108
        %v2685 = vsel %vm2397, 0.0, %v2109
        %v2686 = vsel %vm2398, 0.0, %v2110
        %v2687 = vsel %vm2399, 0.0, %v2111
        %v2688 = vsel %vm2400, 0.0, %v2112
        %v2689 = vsel %vm2401, 0.0, %v2113
        %v2690 = vsel %vm2402, 0.0, %v2114
        %v2691 = vsel %vm2403, 0.0, %v2115
        %v2692 = vsel %vm2404, 0.0, %v2116
        %v2693 = vsel %vm2405, 0.0, %v2117
        %v2694 = vsel %vm2406, 0.0, %v2118
        %v2695 = vsel %vm2407, 0.0, %v2119
        %v2696 = vsel %vm2408, 0.0, %v2120
        %v2697 = vsel %vm2409, 0.0, %v2121
        %v2698 = vsel %vm2410, 0.0, %v2122
        %v2699 = vsel %vm2411, 0.0, %v2123
        %v2700 = vsel %vm2412, 0.0, %v2124
        %v2701 = vsel %vm2413, 0.0, %v2125
        %v2702 = vsel %vm2414, 0.0, %v2126
        %v2703 = vsel %vm2415, 0.0, %v2127
        %v2704 = vsel %vm2416, 0.0, %v2128
        %v2705 = vsel %vm2417, 0.0, %v2129
        %v2706 = vsel %vm2418, 0.0, %v2130
        %v2707 = vsel %vm2419, 0.0, %v2131
        %v2708 = vsel %vm2420, 0.0, %v2132
        %v2709 = vsel %vm2421, 0.0, %v2133
        %v2710 = vsel %vm2422, 0.0, %v2134
        %v2711 = vsel %vm2423, 0.0, %v2135
        %v2712 = vsel %vm2424, 0.0, %v2136
        %v2713 = vsel %vm2425, 0.0, %v2137
        %v2714 = vsel %vm2426, 0.0, %v2138
        %v2715 = vsel %vm2427, 0.0, %v2139
        %v2716 = vsel %vm2428, 0.0, %v2140
        %v2717 = vsel %vm2429, 0.0, %v2141
        %v2718 = vsel %vm2430, 0.0, %v2142
        %v2719 = vsel %vm2431, 0.0, %v2143
        %v2720 = vsel %vm2432, 0.0, %v2144
        %v2721 = vsel %vm2433, 0.0, %v2145
        %v2722 = vsel %vm2434, 0.0, %v2146
        %v2723 = vsel %vm2435, 0.0, %v2147
        %v2724 = vsel %vm2436, 0.0, %v2148
        %v2725 = vsel %vm2437, 0.0, %v2149
        %v2726 = vsel %vm2438, 0.0, %v2150
        %v2727 = vsel %vm2439, 0.0, %v2151
        %v2728 = vsel %vm2440, 0.0, %v2152
        %v2729 = vsel %vm2441, 0.0, %v2153
        %v2730 = vsel %vm2442, 0.0, %v2154
        %v2731 = vsel %vm2443, 0.0, %v2155
        %v2732 = vsel %vm2444, 0.0, %v2156
        %v2733 = vsel %vm2445, 0.0, %v2157
        %v2734 = vsel %vm2446, 0.0, %v2158
        %v2735 = vsel %vm2447, 0.0, %v2159
        %v2736 = vsel %vm2448, 0.0, %v2160
        %v2737 = vsel %vm2449, 0.0, %v2161
        %v2738 = vsel %vm2450, 0.0, %v2162
        %v2739 = vsel %vm2451, 0.0, %v2163
        %v2740 = vsel %vm2452, 0.0, %v2164
        %v2741 = vsel %vm2453, 0.0, %v2165
        %v2742 = vsel %vm2454, 0.0, %v2166
        %v2743 = vsel %vm2455, 0.0, %v2167
        %v2744 = vsel %vm2456, 0.0, %v2168
        %v2745 = vsel %vm2457, 0.0, %v2169
        %v2746 = vld [vmem:[%s1] sm:$0xff]
        %v2747 = vld [vmem:[%s2] sm:$0xff]
        %2749 = vset.pattern.permute.xlu0 0
        %2750 = vperm.xlu0 %2749, %v2747
        %v2751 = vpop.permute.xlu0 %2750
        %vm2753 = vcmask 588800
        %v2755 = vsel %vm2753, %v2746, 0
        %2757 = vmatpush.msra.mxu0 0.0
        %2758 = vmatpush.msra.mxu0 0.0
        %2759 = vmatpush.msra.mxu0 0.0
        %2760 = vmatpush.msra.mxu0 0.0
        %2761 = vmatpush.msra.mxu0 0.0
        %2762 = vmatpush.msra.mxu0 0.0
        %2763 = vmatpush.msra.mxu0 0.0
        %2764 = vmatpush.msra.mxu0 %v2714
        %2765 = vmatpush.msra.mxu0 %v2682
        %2766 = vmatpush.msra.mxu0 %v2650
        %2767 = vmatpush.msra.mxu0 %v2618
        %2768 = vmatpush.msra.mxu0 %v2586
        %2769 = vmatpush.msra.mxu0 %v2554
        %2770 = vmatpush.msra.mxu0 %v2522
        %2771 = vmatpush.msra.mxu0 %v2490
        %2772 = vmatpush.msra.mxu0 %v2458
        %2773 = vmatmul.f32.gmra.mxu0 %v2755
        %v2774 = vpop.f32.mrf.mxu0
        %v2775 = vadd.f32 %v2751, %v2774
        %2776 = vdwg.mxu0
        %2777 = vmatpush.msra.mxu0 0.0
        %2778 = vmatpush.msra.mxu0 0.0
        %2779 = vmatpush.msra.mxu0 0.0
        %2780 = vmatpush.msra.mxu0 0.0
        %2781 = vmatpush.msra.mxu0 0.0
        %2782 = vmatpush.msra.mxu0 0.0
        %2783 = vmatpush.msra.mxu0 0.0
        %2784 = vmatpush.msra.mxu0 %v2715
        %2785 = vmatpush.msra.mxu0 %v2683
        %2786 = vmatpush.msra.mxu0 %v2651
        %2787 = vmatpush.msra.mxu0 %v2619
        %2788 = vmatpush.msra.mxu0 %v2587
        %2789 = vmatpush.msra.mxu0 %v2555
        %2790 = vmatpush.msra.mxu0 %v2523
        %2791 = vmatpush.msra.mxu0 %v2491
        %2792 = vmatpush.msra.mxu0 %v2459
        %2793 = vmatmul.f32.gmra.mxu0 %v2755
        %v2794 = vpop.f32.mrf.mxu0
        %v2795 = vadd.f32 %v2751, %v2794
        %2796 = vdwg.mxu0
        %2797 = vmatpush.msra.mxu0 0.0
        %2798 = vmatpush.msra.mxu0 0.0
        %2799 = vmatpush.msra.mxu0 0.0
        %2800 = vmatpush.msra.mxu0 0.0
        %2801 = vmatpush.msra.mxu0 0.0
        %2802 = vmatpush.msra.mxu0 0.0
        %2803 = vmatpush.msra.mxu0 0.0
        %2804 = vmatpush.msra.mxu0 %v2716
        %2805 = vmatpush.msra.mxu0 %v2684
        %2806 = vmatpush.msra.mxu0 %v2652
        %2807 = vmatpush.msra.mxu0 %v2620
        %2808 = vmatpush.msra.mxu0 %v2588
        %2809 = vmatpush.msra.mxu0 %v2556
        %2810 = vmatpush.msra.mxu0 %v2524
        %2811 = vmatpush.msra.mxu0 %v2492
        %2812 = vmatpush.msra.mxu0 %v2460
        %2813 = vmatmul.f32.gmra.mxu0 %v2755
        %v2814 = vpop.f32.mrf.mxu0
        %v2815 = vadd.f32 %v2751, %v2814
        %2816 = vdwg.mxu0
        %2817 = vmatpush.msra.mxu0 0.0
        %2818 = vmatpush.msra.mxu0 0.0
        %2819 = vmatpush.msra.mxu0 0.0
        %2820 = vmatpush.msra.mxu0 0.0
        %2821 = vmatpush.msra.mxu0 0.0
        %2822 = vmatpush.msra.mxu0 0.0
        %2823 = vmatpush.msra.mxu0 0.0
        %2824 = vmatpush.msra.mxu0 %v2717
        %2825 = vmatpush.msra.mxu0 %v2685
        %2826 = vmatpush.msra.mxu0 %v2653
        %2827 = vmatpush.msra.mxu0 %v2621
        %2828 = vmatpush.msra.mxu0 %v2589
        %2829 = vmatpush.msra.mxu0 %v2557
        %2830 = vmatpush.msra.mxu0 %v2525
        %2831 = vmatpush.msra.mxu0 %v2493
        %2832 = vmatpush.msra.mxu0 %v2461
        %2833 = vmatmul.f32.gmra.mxu0 %v2755
        %v2834 = vpop.f32.mrf.mxu0
        %v2835 = vadd.f32 %v2751, %v2834
        %2836 = vdwg.mxu0
        %2837 = vmatpush.msra.mxu0 0.0
        %2838 = vmatpush.msra.mxu0 0.0
        %2839 = vmatpush.msra.mxu0 0.0
        %2840 = vmatpush.msra.mxu0 0.0
        %2841 = vmatpush.msra.mxu0 0.0
        %2842 = vmatpush.msra.mxu0 0.0
        %2843 = vmatpush.msra.mxu0 0.0
        %2844 = vmatpush.msra.mxu0 %v2718
        %2845 = vmatpush.msra.mxu0 %v2686
        %2846 = vmatpush.msra.mxu0 %v2654
        %2847 = vmatpush.msra.mxu0 %v2622
        %2848 = vmatpush.msra.mxu0 %v2590
        %2849 = vmatpush.msra.mxu0 %v2558
        %2850 = vmatpush.msra.mxu0 %v2526
        %2851 = vmatpush.msra.mxu0 %v2494
        %2852 = vmatpush.msra.mxu0 %v2462
        %2853 = vmatmul.f32.gmra.mxu0 %v2755
        %v2854 = vpop.f32.mrf.mxu0
        %v2855 = vadd.f32 %v2751, %v2854
        %2856 = vdwg.mxu0
        %2857 = vmatpush.msra.mxu0 0.0
        %2858 = vmatpush.msra.mxu0 0.0
        %2859 = vmatpush.msra.mxu0 0.0
        %2860 = vmatpush.msra.mxu0 0.0
        %2861 = vmatpush.msra.mxu0 0.0
        %2862 = vmatpush.msra.mxu0 0.0
        %2863 = vmatpush.msra.mxu0 0.0
        %2864 = vmatpush.msra.mxu0 %v2719
        %2865 = vmatpush.msra.mxu0 %v2687
        %2866 = vmatpush.msra.mxu0 %v2655
        %2867 = vmatpush.msra.mxu0 %v2623
        %2868 = vmatpush.msra.mxu0 %v2591
        %2869 = vmatpush.msra.mxu0 %v2559
        %2870 = vmatpush.msra.mxu0 %v2527
        %2871 = vmatpush.msra.mxu0 %v2495
        %2872 = vmatpush.msra.mxu0 %v2463
        %2873 = vmatmul.f32.gmra.mxu0 %v2755
        %v2874 = vpop.f32.mrf.mxu0
        %v2875 = vadd.f32 %v2751, %v2874
        %2876 = vdwg.mxu0
        %2877 = vmatpush.msra.mxu0 0.0
        %2878 = vmatpush.msra.mxu0 0.0
        %2879 = vmatpush.msra.mxu0 0.0
        %2880 = vmatpush.msra.mxu0 0.0
        %2881 = vmatpush.msra.mxu0 0.0
        %2882 = vmatpush.msra.mxu0 0.0
        %2883 = vmatpush.msra.mxu0 0.0
        %2884 = vmatpush.msra.mxu0 %v2720
        %2885 = vmatpush.msra.mxu0 %v2688
        %2886 = vmatpush.msra.mxu0 %v2656
        %2887 = vmatpush.msra.mxu0 %v2624
        %2888 = vmatpush.msra.mxu0 %v2592
        %2889 = vmatpush.msra.mxu0 %v2560
        %2890 = vmatpush.msra.mxu0 %v2528
        %2891 = vmatpush.msra.mxu0 %v2496
        %2892 = vmatpush.msra.mxu0 %v2464
        %2893 = vmatmul.f32.gmra.mxu0 %v2755
        %v2894 = vpop.f32.mrf.mxu0
        %v2895 = vadd.f32 %v2751, %v2894
        %2896 = vdwg.mxu0
        %2897 = vmatpush.msra.mxu0 0.0
        %2898 = vmatpush.msra.mxu0 0.0
        %2899 = vmatpush.msra.mxu0 0.0
        %2900 = vmatpush.msra.mxu0 0.0
        %2901 = vmatpush.msra.mxu0 0.0
        %2902 = vmatpush.msra.mxu0 0.0
        %2903 = vmatpush.msra.mxu0 0.0
        %2904 = vmatpush.msra.mxu0 %v2721
        %2905 = vmatpush.msra.mxu0 %v2689
        %2906 = vmatpush.msra.mxu0 %v2657
        %2907 = vmatpush.msra.mxu0 %v2625
        %2908 = vmatpush.msra.mxu0 %v2593
        %2909 = vmatpush.msra.mxu0 %v2561
        %2910 = vmatpush.msra.mxu0 %v2529
        %2911 = vmatpush.msra.mxu0 %v2497
        %2912 = vmatpush.msra.mxu0 %v2465
        %2913 = vmatmul.f32.gmra.mxu0 %v2755
        %v2914 = vpop.f32.mrf.mxu0
        %v2915 = vadd.f32 %v2751, %v2914
        %2916 = vdwg.mxu0
        %2917 = vmatpush.msra.mxu0 0.0
        %2918 = vmatpush.msra.mxu0 0.0
        %2919 = vmatpush.msra.mxu0 0.0
        %2920 = vmatpush.msra.mxu0 0.0
        %2921 = vmatpush.msra.mxu0 0.0
        %2922 = vmatpush.msra.mxu0 0.0
        %2923 = vmatpush.msra.mxu0 0.0
        %2924 = vmatpush.msra.mxu0 %v2722
        %2925 = vmatpush.msra.mxu0 %v2690
        %2926 = vmatpush.msra.mxu0 %v2658
        %2927 = vmatpush.msra.mxu0 %v2626
        %2928 = vmatpush.msra.mxu0 %v2594
        %2929 = vmatpush.msra.mxu0 %v2562
        %2930 = vmatpush.msra.mxu0 %v2530
        %2931 = vmatpush.msra.mxu0 %v2498
        %2932 = vmatpush.msra.mxu0 %v2466
        %2933 = vmatmul.f32.gmra.mxu0 %v2755
        %v2934 = vpop.f32.mrf.mxu0
        %v2935 = vadd.f32 %v2751, %v2934
        %2936 = vdwg.mxu0
        %2937 = vmatpush.msra.mxu0 0.0
        %2938 = vmatpush.msra.mxu0 0.0
        %2939 = vmatpush.msra.mxu0 0.0
        %2940 = vmatpush.msra.mxu0 0.0
        %2941 = vmatpush.msra.mxu0 0.0
        %2942 = vmatpush.msra.mxu0 0.0
        %2943 = vmatpush.msra.mxu0 0.0
        %2944 = vmatpush.msra.mxu0 %v2723
        %2945 = vmatpush.msra.mxu0 %v2691
        %2946 = vmatpush.msra.mxu0 %v2659
        %2947 = vmatpush.msra.mxu0 %v2627
        %2948 = vmatpush.msra.mxu0 %v2595
        %2949 = vmatpush.msra.mxu0 %v2563
        %2950 = vmatpush.msra.mxu0 %v2531
        %2951 = vmatpush.msra.mxu0 %v2499
        %2952 = vmatpush.msra.mxu0 %v2467
        %2953 = vmatmul.f32.gmra.mxu0 %v2755
        %v2954 = vpop.f32.mrf.mxu0
        %v2955 = vadd.f32 %v2751, %v2954
        %2956 = vdwg.mxu0
        %2957 = vmatpush.msra.mxu0 0.0
        %2958 = vmatpush.msra.mxu0 0.0
        %2959 = vmatpush.msra.mxu0 0.0
        %2960 = vmatpush.msra.mxu0 0.0
        %2961 = vmatpush.msra.mxu0 0.0
        %2962 = vmatpush.msra.mxu0 0.0
        %2963 = vmatpush.msra.mxu0 0.0
        %2964 = vmatpush.msra.mxu0 %v2724
        %2965 = vmatpush.msra.mxu0 %v2692
        %2966 = vmatpush.msra.mxu0 %v2660
        %2967 = vmatpush.msra.mxu0 %v2628
        %2968 = vmatpush.msra.mxu0 %v2596
        %2969 = vmatpush.msra.mxu0 %v2564
        %2970 = vmatpush.msra.mxu0 %v2532
        %2971 = vmatpush.msra.mxu0 %v2500
        %2972 = vmatpush.msra.mxu0 %v2468
        %2973 = vmatmul.f32.gmra.mxu0 %v2755
        %v2974 = vpop.f32.mrf.mxu0
        %v2975 = vadd.f32 %v2751, %v2974
        %2976 = vdwg.mxu0
        %2977 = vmatpush.msra.mxu0 0.0
        %2978 = vmatpush.msra.mxu0 0.0
        %2979 = vmatpush.msra.mxu0 0.0
        %2980 = vmatpush.msra.mxu0 0.0
        %2981 = vmatpush.msra.mxu0 0.0
        %2982 = vmatpush.msra.mxu0 0.0
        %2983 = vmatpush.msra.mxu0 0.0
        %2984 = vmatpush.msra.mxu0 %v2725
        %2985 = vmatpush.msra.mxu0 %v2693
        %2986 = vmatpush.msra.mxu0 %v2661
        %2987 = vmatpush.msra.mxu0 %v2629
        %2988 = vmatpush.msra.mxu0 %v2597
        %2989 = vmatpush.msra.mxu0 %v2565
        %2990 = vmatpush.msra.mxu0 %v2533
        %2991 = vmatpush.msra.mxu0 %v2501
        %2992 = vmatpush.msra.mxu0 %v2469
        %2993 = vmatmul.f32.gmra.mxu0 %v2755
        %v2994 = vpop.f32.mrf.mxu0
        %v2995 = vadd.f32 %v2751, %v2994
        %2996 = vdwg.mxu0
        %2997 = vmatpush.msra.mxu0 0.0
        %2998 = vmatpush.msra.mxu0 0.0
        %2999 = vmatpush.msra.mxu0 0.0
        %3000 = vmatpush.msra.mxu0 0.0
        %3001 = vmatpush.msra.mxu0 0.0
        %3002 = vmatpush.msra.mxu0 0.0
        %3003 = vmatpush.msra.mxu0 0.0
        %3004 = vmatpush.msra.mxu0 %v2726
        %3005 = vmatpush.msra.mxu0 %v2694
        %3006 = vmatpush.msra.mxu0 %v2662
        %3007 = vmatpush.msra.mxu0 %v2630
        %3008 = vmatpush.msra.mxu0 %v2598
        %3009 = vmatpush.msra.mxu0 %v2566
        %3010 = vmatpush.msra.mxu0 %v2534
        %3011 = vmatpush.msra.mxu0 %v2502
        %3012 = vmatpush.msra.mxu0 %v2470
        %3013 = vmatmul.f32.gmra.mxu0 %v2755
        %v3014 = vpop.f32.mrf.mxu0
        %v3015 = vadd.f32 %v2751, %v3014
        %3016 = vdwg.mxu0
        %3017 = vmatpush.msra.mxu0 0.0
        %3018 = vmatpush.msra.mxu0 0.0
        %3019 = vmatpush.msra.mxu0 0.0
        %3020 = vmatpush.msra.mxu0 0.0
        %3021 = vmatpush.msra.mxu0 0.0
        %3022 = vmatpush.msra.mxu0 0.0
        %3023 = vmatpush.msra.mxu0 0.0
        %3024 = vmatpush.msra.mxu0 %v2727
        %3025 = vmatpush.msra.mxu0 %v2695
        %3026 = vmatpush.msra.mxu0 %v2663
        %3027 = vmatpush.msra.mxu0 %v2631
        %3028 = vmatpush.msra.mxu0 %v2599
        %3029 = vmatpush.msra.mxu0 %v2567
        %3030 = vmatpush.msra.mxu0 %v2535
        %3031 = vmatpush.msra.mxu0 %v2503
        %3032 = vmatpush.msra.mxu0 %v2471
        %3033 = vmatmul.f32.gmra.mxu0 %v2755
        %v3034 = vpop.f32.mrf.mxu0
        %v3035 = vadd.f32 %v2751, %v3034
        %3036 = vdwg.mxu0
        %3037 = vmatpush.msra.mxu0 0.0
        %3038 = vmatpush.msra.mxu0 0.0
        %3039 = vmatpush.msra.mxu0 0.0
        %3040 = vmatpush.msra.mxu0 0.0
        %3041 = vmatpush.msra.mxu0 0.0
        %3042 = vmatpush.msra.mxu0 0.0
        %3043 = vmatpush.msra.mxu0 0.0
        %3044 = vmatpush.msra.mxu0 %v2728
        %3045 = vmatpush.msra.mxu0 %v2696
        %3046 = vmatpush.msra.mxu0 %v2664
        %3047 = vmatpush.msra.mxu0 %v2632
        %3048 = vmatpush.msra.mxu0 %v2600
        %3049 = vmatpush.msra.mxu0 %v2568
        %3050 = vmatpush.msra.mxu0 %v2536
        %3051 = vmatpush.msra.mxu0 %v2504
        %3052 = vmatpush.msra.mxu0 %v2472
        %3053 = vmatmul.f32.gmra.mxu0 %v2755
        %v3054 = vpop.f32.mrf.mxu0
        %v3055 = vadd.f32 %v2751, %v3054
        %3056 = vdwg.mxu0
        %3057 = vmatpush.msra.mxu0 0.0
        %3058 = vmatpush.msra.mxu0 0.0
        %3059 = vmatpush.msra.mxu0 0.0
        %3060 = vmatpush.msra.mxu0 0.0
        %3061 = vmatpush.msra.mxu0 0.0
        %3062 = vmatpush.msra.mxu0 0.0
        %3063 = vmatpush.msra.mxu0 0.0
        %3064 = vmatpush.msra.mxu0 %v2729
        %3065 = vmatpush.msra.mxu0 %v2697
        %3066 = vmatpush.msra.mxu0 %v2665
        %3067 = vmatpush.msra.mxu0 %v2633
        %3068 = vmatpush.msra.mxu0 %v2601
        %3069 = vmatpush.msra.mxu0 %v2569
        %3070 = vmatpush.msra.mxu0 %v2537
        %3071 = vmatpush.msra.mxu0 %v2505
        %3072 = vmatpush.msra.mxu0 %v2473
        %3073 = vmatmul.f32.gmra.mxu0 %v2755
        %v3074 = vpop.f32.mrf.mxu0
        %v3075 = vadd.f32 %v2751, %v3074
        %3076 = vdwg.mxu0
        %3077 = vmatpush.msra.mxu0 0.0
        %3078 = vmatpush.msra.mxu0 0.0
        %3079 = vmatpush.msra.mxu0 0.0
        %3080 = vmatpush.msra.mxu0 0.0
        %3081 = vmatpush.msra.mxu0 0.0
        %3082 = vmatpush.msra.mxu0 0.0
        %3083 = vmatpush.msra.mxu0 0.0
        %3084 = vmatpush.msra.mxu0 %v2730
        %3085 = vmatpush.msra.mxu0 %v2698
        %3086 = vmatpush.msra.mxu0 %v2666
        %3087 = vmatpush.msra.mxu0 %v2634
        %3088 = vmatpush.msra.mxu0 %v2602
        %3089 = vmatpush.msra.mxu0 %v2570
        %3090 = vmatpush.msra.mxu0 %v2538
        %3091 = vmatpush.msra.mxu0 %v2506
        %3092 = vmatpush.msra.mxu0 %v2474
        %3093 = vmatmul.f32.gmra.mxu0 %v2755
        %v3094 = vpop.f32.mrf.mxu0
        %v3095 = vadd.f32 %v2751, %v3094
        %3096 = vdwg.mxu0
        %3097 = vmatpush.msra.mxu0 0.0
        %3098 = vmatpush.msra.mxu0 0.0
        %3099 = vmatpush.msra.mxu0 0.0
        %3100 = vmatpush.msra.mxu0 0.0
        %3101 = vmatpush.msra.mxu0 0.0
        %3102 = vmatpush.msra.mxu0 0.0
        %3103 = vmatpush.msra.mxu0 0.0
        %3104 = vmatpush.msra.mxu0 %v2731
        %3105 = vmatpush.msra.mxu0 %v2699
        %3106 = vmatpush.msra.mxu0 %v2667
        %3107 = vmatpush.msra.mxu0 %v2635
        %3108 = vmatpush.msra.mxu0 %v2603
        %3109 = vmatpush.msra.mxu0 %v2571
        %3110 = vmatpush.msra.mxu0 %v2539
        %3111 = vmatpush.msra.mxu0 %v2507
        %3112 = vmatpush.msra.mxu0 %v2475
        %3113 = vmatmul.f32.gmra.mxu0 %v2755
        %v3114 = vpop.f32.mrf.mxu0
        %v3115 = vadd.f32 %v2751, %v3114
        %3116 = vdwg.mxu0
        %3117 = vmatpush.msra.mxu0 0.0
        %3118 = vmatpush.msra.mxu0 0.0
        %3119 = vmatpush.msra.mxu0 0.0
        %3120 = vmatpush.msra.mxu0 0.0
        %3121 = vmatpush.msra.mxu0 0.0
        %3122 = vmatpush.msra.mxu0 0.0
        %3123 = vmatpush.msra.mxu0 0.0
        %3124 = vmatpush.msra.mxu0 %v2732
        %3125 = vmatpush.msra.mxu0 %v2700
        %3126 = vmatpush.msra.mxu0 %v2668
        %3127 = vmatpush.msra.mxu0 %v2636
        %3128 = vmatpush.msra.mxu0 %v2604
        %3129 = vmatpush.msra.mxu0 %v2572
        %3130 = vmatpush.msra.mxu0 %v2540
        %3131 = vmatpush.msra.mxu0 %v2508
        %3132 = vmatpush.msra.mxu0 %v2476
        %3133 = vmatmul.f32.gmra.mxu0 %v2755
        %v3134 = vpop.f32.mrf.mxu0
        %v3135 = vadd.f32 %v2751, %v3134
        %3136 = vdwg.mxu0
        %3137 = vmatpush.msra.mxu0 0.0
        %3138 = vmatpush.msra.mxu0 0.0
        %3139 = vmatpush.msra.mxu0 0.0
        %3140 = vmatpush.msra.mxu0 0.0
        %3141 = vmatpush.msra.mxu0 0.0
        %3142 = vmatpush.msra.mxu0 0.0
        %3143 = vmatpush.msra.mxu0 0.0
        %3144 = vmatpush.msra.mxu0 %v2733
        %3145 = vmatpush.msra.mxu0 %v2701
        %3146 = vmatpush.msra.mxu0 %v2669
        %3147 = vmatpush.msra.mxu0 %v2637
        %3148 = vmatpush.msra.mxu0 %v2605
        %3149 = vmatpush.msra.mxu0 %v2573
        %3150 = vmatpush.msra.mxu0 %v2541
        %3151 = vmatpush.msra.mxu0 %v2509
        %3152 = vmatpush.msra.mxu0 %v2477
        %3153 = vmatmul.f32.gmra.mxu0 %v2755
        %v3154 = vpop.f32.mrf.mxu0
        %v3155 = vadd.f32 %v2751, %v3154
        %3156 = vdwg.mxu0
        %3157 = vmatpush.msra.mxu0 0.0
        %3158 = vmatpush.msra.mxu0 0.0
        %3159 = vmatpush.msra.mxu0 0.0
        %3160 = vmatpush.msra.mxu0 0.0
        %3161 = vmatpush.msra.mxu0 0.0
        %3162 = vmatpush.msra.mxu0 0.0
        %3163 = vmatpush.msra.mxu0 0.0
        %3164 = vmatpush.msra.mxu0 %v2734
        %3165 = vmatpush.msra.mxu0 %v2702
        %3166 = vmatpush.msra.mxu0 %v2670
        %3167 = vmatpush.msra.mxu0 %v2638
        %3168 = vmatpush.msra.mxu0 %v2606
        %3169 = vmatpush.msra.mxu0 %v2574
        %3170 = vmatpush.msra.mxu0 %v2542
        %3171 = vmatpush.msra.mxu0 %v2510
        %3172 = vmatpush.msra.mxu0 %v2478
        %3173 = vmatmul.f32.gmra.mxu0 %v2755
        %v3174 = vpop.f32.mrf.mxu0
        %v3175 = vadd.f32 %v2751, %v3174
        %3176 = vdwg.mxu0
        %3177 = vmatpush.msra.mxu0 0.0
        %3178 = vmatpush.msra.mxu0 0.0
        %3179 = vmatpush.msra.mxu0 0.0
        %3180 = vmatpush.msra.mxu0 0.0
        %3181 = vmatpush.msra.mxu0 0.0
        %3182 = vmatpush.msra.mxu0 0.0
        %3183 = vmatpush.msra.mxu0 0.0
        %3184 = vmatpush.msra.mxu0 %v2735
        %3185 = vmatpush.msra.mxu0 %v2703
        %3186 = vmatpush.msra.mxu0 %v2671
        %3187 = vmatpush.msra.mxu0 %v2639
        %3188 = vmatpush.msra.mxu0 %v2607
        %3189 = vmatpush.msra.mxu0 %v2575
        %3190 = vmatpush.msra.mxu0 %v2543
        %3191 = vmatpush.msra.mxu0 %v2511
        %3192 = vmatpush.msra.mxu0 %v2479
        %3193 = vmatmul.f32.gmra.mxu0 %v2755
        %v3194 = vpop.f32.mrf.mxu0
        %v3195 = vadd.f32 %v2751, %v3194
        %3196 = vdwg.mxu0
        %3197 = vmatpush.msra.mxu0 0.0
        %3198 = vmatpush.msra.mxu0 0.0
        %3199 = vmatpush.msra.mxu0 0.0
        %3200 = vmatpush.msra.mxu0 0.0
        %3201 = vmatpush.msra.mxu0 0.0
        %3202 = vmatpush.msra.mxu0 0.0
        %3203 = vmatpush.msra.mxu0 0.0
        %3204 = vmatpush.msra.mxu0 %v2736
        %3205 = vmatpush.msra.mxu0 %v2704
        %3206 = vmatpush.msra.mxu0 %v2672
        %3207 = vmatpush.msra.mxu0 %v2640
        %3208 = vmatpush.msra.mxu0 %v2608
        %3209 = vmatpush.msra.mxu0 %v2576
        %3210 = vmatpush.msra.mxu0 %v2544
        %3211 = vmatpush.msra.mxu0 %v2512
        %3212 = vmatpush.msra.mxu0 %v2480
        %3213 = vmatmul.f32.gmra.mxu0 %v2755
        %v3214 = vpop.f32.mrf.mxu0
        %v3215 = vadd.f32 %v2751, %v3214
        %3216 = vdwg.mxu0
        %3217 = vmatpush.msra.mxu0 0.0
        %3218 = vmatpush.msra.mxu0 0.0
        %3219 = vmatpush.msra.mxu0 0.0
        %3220 = vmatpush.msra.mxu0 0.0
        %3221 = vmatpush.msra.mxu0 0.0
        %3222 = vmatpush.msra.mxu0 0.0
        %3223 = vmatpush.msra.mxu0 0.0
        %3224 = vmatpush.msra.mxu0 %v2737
        %3225 = vmatpush.msra.mxu0 %v2705
        %3226 = vmatpush.msra.mxu0 %v2673
        %3227 = vmatpush.msra.mxu0 %v2641
        %3228 = vmatpush.msra.mxu0 %v2609
        %3229 = vmatpush.msra.mxu0 %v2577
        %3230 = vmatpush.msra.mxu0 %v2545
        %3231 = vmatpush.msra.mxu0 %v2513
        %3232 = vmatpush.msra.mxu0 %v2481
        %3233 = vmatmul.f32.gmra.mxu0 %v2755
        %v3234 = vpop.f32.mrf.mxu0
        %v3235 = vadd.f32 %v2751, %v3234
        %3236 = vdwg.mxu0
        %3237 = vmatpush.msra.mxu0 0.0
        %3238 = vmatpush.msra.mxu0 0.0
        %3239 = vmatpush.msra.mxu0 0.0
        %3240 = vmatpush.msra.mxu0 0.0
        %3241 = vmatpush.msra.mxu0 0.0
        %3242 = vmatpush.msra.mxu0 0.0
        %3243 = vmatpush.msra.mxu0 0.0
        %3244 = vmatpush.msra.mxu0 %v2738
        %3245 = vmatpush.msra.mxu0 %v2706
        %3246 = vmatpush.msra.mxu0 %v2674
        %3247 = vmatpush.msra.mxu0 %v2642
        %3248 = vmatpush.msra.mxu0 %v2610
        %3249 = vmatpush.msra.mxu0 %v2578
        %3250 = vmatpush.msra.mxu0 %v2546
        %3251 = vmatpush.msra.mxu0 %v2514
        %3252 = vmatpush.msra.mxu0 %v2482
        %3253 = vmatmul.f32.gmra.mxu0 %v2755
        %v3254 = vpop.f32.mrf.mxu0
        %v3255 = vadd.f32 %v2751, %v3254
        %3256 = vdwg.mxu0
        %3257 = vmatpush.msra.mxu0 0.0
        %3258 = vmatpush.msra.mxu0 0.0
        %3259 = vmatpush.msra.mxu0 0.0
        %3260 = vmatpush.msra.mxu0 0.0
        %3261 = vmatpush.msra.mxu0 0.0
        %3262 = vmatpush.msra.mxu0 0.0
        %3263 = vmatpush.msra.mxu0 0.0
        %3264 = vmatpush.msra.mxu0 %v2739
        %3265 = vmatpush.msra.mxu0 %v2707
        %3266 = vmatpush.msra.mxu0 %v2675
        %3267 = vmatpush.msra.mxu0 %v2643
        %3268 = vmatpush.msra.mxu0 %v2611
        %3269 = vmatpush.msra.mxu0 %v2579
        %3270 = vmatpush.msra.mxu0 %v2547
        %3271 = vmatpush.msra.mxu0 %v2515
        %3272 = vmatpush.msra.mxu0 %v2483
        %3273 = vmatmul.f32.gmra.mxu0 %v2755
        %v3274 = vpop.f32.mrf.mxu0
        %v3275 = vadd.f32 %v2751, %v3274
        %3276 = vdwg.mxu0
        %3277 = vmatpush.msra.mxu0 0.0
        %3278 = vmatpush.msra.mxu0 0.0
        %3279 = vmatpush.msra.mxu0 0.0
        %3280 = vmatpush.msra.mxu0 0.0
        %3281 = vmatpush.msra.mxu0 0.0
        %3282 = vmatpush.msra.mxu0 0.0
        %3283 = vmatpush.msra.mxu0 0.0
        %3284 = vmatpush.msra.mxu0 %v2740
        %3285 = vmatpush.msra.mxu0 %v2708
        %3286 = vmatpush.msra.mxu0 %v2676
        %3287 = vmatpush.msra.mxu0 %v2644
        %3288 = vmatpush.msra.mxu0 %v2612
        %3289 = vmatpush.msra.mxu0 %v2580
        %3290 = vmatpush.msra.mxu0 %v2548
        %3291 = vmatpush.msra.mxu0 %v2516
        %3292 = vmatpush.msra.mxu0 %v2484
        %3293 = vmatmul.f32.gmra.mxu0 %v2755
        %v3294 = vpop.f32.mrf.mxu0
        %v3295 = vadd.f32 %v2751, %v3294
        %3296 = vdwg.mxu0
        %3297 = vmatpush.msra.mxu0 0.0
        %3298 = vmatpush.msra.mxu0 0.0
        %3299 = vmatpush.msra.mxu0 0.0
        %3300 = vmatpush.msra.mxu0 0.0
        %3301 = vmatpush.msra.mxu0 0.0
        %3302 = vmatpush.msra.mxu0 0.0
        %3303 = vmatpush.msra.mxu0 0.0
        %3304 = vmatpush.msra.mxu0 %v2741
        %3305 = vmatpush.msra.mxu0 %v2709
        %3306 = vmatpush.msra.mxu0 %v2677
        %3307 = vmatpush.msra.mxu0 %v2645
        %3308 = vmatpush.msra.mxu0 %v2613
        %3309 = vmatpush.msra.mxu0 %v2581
        %3310 = vmatpush.msra.mxu0 %v2549
        %3311 = vmatpush.msra.mxu0 %v2517
        %3312 = vmatpush.msra.mxu0 %v2485
        %3313 = vmatmul.f32.gmra.mxu0 %v2755
        %v3314 = vpop.f32.mrf.mxu0
        %v3315 = vadd.f32 %v2751, %v3314
        %3316 = vdwg.mxu0
        %3317 = vmatpush.msra.mxu0 0.0
        %3318 = vmatpush.msra.mxu0 0.0
        %3319 = vmatpush.msra.mxu0 0.0
        %3320 = vmatpush.msra.mxu0 0.0
        %3321 = vmatpush.msra.mxu0 0.0
        %3322 = vmatpush.msra.mxu0 0.0
        %3323 = vmatpush.msra.mxu0 0.0
        %3324 = vmatpush.msra.mxu0 %v2742
        %3325 = vmatpush.msra.mxu0 %v2710
        %3326 = vmatpush.msra.mxu0 %v2678
        %3327 = vmatpush.msra.mxu0 %v2646
        %3328 = vmatpush.msra.mxu0 %v2614
        %3329 = vmatpush.msra.mxu0 %v2582
        %3330 = vmatpush.msra.mxu0 %v2550
        %3331 = vmatpush.msra.mxu0 %v2518
        %3332 = vmatpush.msra.mxu0 %v2486
        %3333 = vmatmul.f32.gmra.mxu0 %v2755
        %v3334 = vpop.f32.mrf.mxu0
        %v3335 = vadd.f32 %v2751, %v3334
        %3336 = vdwg.mxu0
        %3337 = vmatpush.msra.mxu0 0.0
        %3338 = vmatpush.msra.mxu0 0.0
        %3339 = vmatpush.msra.mxu0 0.0
        %3340 = vmatpush.msra.mxu0 0.0
        %3341 = vmatpush.msra.mxu0 0.0
        %3342 = vmatpush.msra.mxu0 0.0
        %3343 = vmatpush.msra.mxu0 0.0
        %3344 = vmatpush.msra.mxu0 %v2743
        %3345 = vmatpush.msra.mxu0 %v2711
        %3346 = vmatpush.msra.mxu0 %v2679
        %3347 = vmatpush.msra.mxu0 %v2647
        %3348 = vmatpush.msra.mxu0 %v2615
        %3349 = vmatpush.msra.mxu0 %v2583
        %3350 = vmatpush.msra.mxu0 %v2551
        %3351 = vmatpush.msra.mxu0 %v2519
        %3352 = vmatpush.msra.mxu0 %v2487
        %3353 = vmatmul.f32.gmra.mxu0 %v2755
        %v3354 = vpop.f32.mrf.mxu0
        %v3355 = vadd.f32 %v2751, %v3354
        %3356 = vdwg.mxu0
        %3357 = vmatpush.msra.mxu0 0.0
        %3358 = vmatpush.msra.mxu0 0.0
        %3359 = vmatpush.msra.mxu0 0.0
        %3360 = vmatpush.msra.mxu0 0.0
        %3361 = vmatpush.msra.mxu0 0.0
        %3362 = vmatpush.msra.mxu0 0.0
        %3363 = vmatpush.msra.mxu0 0.0
        %3364 = vmatpush.msra.mxu0 %v2744
        %3365 = vmatpush.msra.mxu0 %v2712
        %3366 = vmatpush.msra.mxu0 %v2680
        %3367 = vmatpush.msra.mxu0 %v2648
        %3368 = vmatpush.msra.mxu0 %v2616
        %3369 = vmatpush.msra.mxu0 %v2584
        %3370 = vmatpush.msra.mxu0 %v2552
        %3371 = vmatpush.msra.mxu0 %v2520
        %3372 = vmatpush.msra.mxu0 %v2488
        %3373 = vmatmul.f32.gmra.mxu0 %v2755
        %v3374 = vpop.f32.mrf.mxu0
        %v3375 = vadd.f32 %v2751, %v3374
        %3376 = vdwg.mxu0
        %3377 = vmatpush.msra.mxu0 0.0
        %3378 = vmatpush.msra.mxu0 0.0
        %3379 = vmatpush.msra.mxu0 0.0
        %3380 = vmatpush.msra.mxu0 0.0
        %3381 = vmatpush.msra.mxu0 0.0
        %3382 = vmatpush.msra.mxu0 0.0
        %3383 = vmatpush.msra.mxu0 0.0
        %3384 = vmatpush.msra.mxu0 %v2745
        %3385 = vmatpush.msra.mxu0 %v2713
        %3386 = vmatpush.msra.mxu0 %v2681
        %3387 = vmatpush.msra.mxu0 %v2649
        %3388 = vmatpush.msra.mxu0 %v2617
        %3389 = vmatpush.msra.mxu0 %v2585
        %3390 = vmatpush.msra.mxu0 %v2553
        %3391 = vmatpush.msra.mxu0 %v2521
        %3392 = vmatpush.msra.mxu0 %v2489
        %3393 = vmatmul.f32.gmra.mxu0 %v2755
        %v3394 = vpop.f32.mrf.mxu0
        %v3395 = vadd.f32 %v2751, %v3394
        %3396 = vdwg.mxu0
        %v3397 = vld [vmem:[%s898] sm:$0xff]
        %v3398 = vld [vmem:[%s898 + $0x8] sm:$0xff]
        %v3399 = vld [vmem:[%s898 + $0x10] sm:$0xff]
        %v3400 = vld [vmem:[%s898 + $0x18] sm:$0xff]
        %v3401 = vld [vmem:[%s898 + $0x20] sm:$0xff]
        %v3402 = vld [vmem:[%s898 + $0x28] sm:$0xff]
        %v3403 = vld [vmem:[%s898 + $0x30] sm:$0xff]
        %v3404 = vld [vmem:[%s898 + $0x38] sm:$0xff]
        %v3405 = vld [vmem:[%s898 + $0x40] sm:$0xff]
        %v3406 = vld [vmem:[%s898 + $0x48] sm:$0xff]
        %v3407 = vld [vmem:[%s898 + $0x50] sm:$0xff]
        %v3408 = vld [vmem:[%s898 + $0x58] sm:$0xff]
        %v3409 = vld [vmem:[%s898 + $0x60] sm:$0xff]
        %v3410 = vld [vmem:[%s898 + $0x68] sm:$0xff]
        %v3411 = vld [vmem:[%s898 + $0x70] sm:$0xff]
        %v3412 = vld [vmem:[%s898 + $0x78] sm:$0xff]
        %v3413 = vld [vmem:[%s898 + $0x80] sm:$0xff]
        %v3414 = vld [vmem:[%s898 + $0x88] sm:$0xff]
        %v3415 = vld [vmem:[%s898 + $0x90] sm:$0xff]
        %v3416 = vld [vmem:[%s898 + $0x98] sm:$0xff]
        %v3417 = vld [vmem:[%s898 + $0xa0] sm:$0xff]
        %v3418 = vld [vmem:[%s898 + $0xa8] sm:$0xff]
        %v3419 = vld [vmem:[%s898 + $0xb0] sm:$0xff]
        %v3420 = vld [vmem:[%s898 + $0xb8] sm:$0xff]
        %v3421 = vld [vmem:[%s898 + $0xc0] sm:$0xff]
        %v3422 = vld [vmem:[%s898 + $0xc8] sm:$0xff]
        %v3423 = vld [vmem:[%s898 + $0xd0] sm:$0xff]
        %v3424 = vld [vmem:[%s898 + $0xd8] sm:$0xff]
        %v3425 = vld [vmem:[%s898 + $0xe0] sm:$0xff]
        %v3426 = vld [vmem:[%s898 + $0xe8] sm:$0xff]
        %v3427 = vld [vmem:[%s898 + $0xf0] sm:$0xff]
        %v3428 = vld [vmem:[%s898 + $0xf8] sm:$0xff]
        %v3429 = vadd.f32 %v2775, %v3397
        %v3430 = vadd.f32 %v2795, %v3398
        %v3431 = vadd.f32 %v2815, %v3399
        %v3432 = vadd.f32 %v2835, %v3400
        %v3433 = vadd.f32 %v2855, %v3401
        %v3434 = vadd.f32 %v2875, %v3402
        %v3435 = vadd.f32 %v2895, %v3403
        %v3436 = vadd.f32 %v2915, %v3404
        %v3437 = vadd.f32 %v2935, %v3405
        %v3438 = vadd.f32 %v2955, %v3406
        %v3439 = vadd.f32 %v2975, %v3407
        %v3440 = vadd.f32 %v2995, %v3408
        %v3441 = vadd.f32 %v3015, %v3409
        %v3442 = vadd.f32 %v3035, %v3410
        %v3443 = vadd.f32 %v3055, %v3411
        %v3444 = vadd.f32 %v3075, %v3412
        %v3445 = vadd.f32 %v3095, %v3413
        %v3446 = vadd.f32 %v3115, %v3414
        %v3447 = vadd.f32 %v3135, %v3415
        %v3448 = vadd.f32 %v3155, %v3416
        %v3449 = vadd.f32 %v3175, %v3417
        %v3450 = vadd.f32 %v3195, %v3418
        %v3451 = vadd.f32 %v3215, %v3419
        %v3452 = vadd.f32 %v3235, %v3420
        %v3453 = vadd.f32 %v3255, %v3421
        %v3454 = vadd.f32 %v3275, %v3422
        %v3455 = vadd.f32 %v3295, %v3423
        %v3456 = vadd.f32 %v3315, %v3424
        %v3457 = vadd.f32 %v3335, %v3425
        %v3458 = vadd.f32 %v3355, %v3426
        %v3459 = vadd.f32 %v3375, %v3427
        %v3460 = vadd.f32 %v3395, %v3428
        %3461 = vst [vmem:[%s908] sm:$0xff] %v3429
        %3462 = vst [vmem:[%s908 + $0x8] sm:$0xff] %v3430
        %3463 = vst [vmem:[%s908 + $0x10] sm:$0xff] %v3431
        %3464 = vst [vmem:[%s908 + $0x18] sm:$0xff] %v3432
        %3465 = vst [vmem:[%s908 + $0x20] sm:$0xff] %v3433
        %3466 = vst [vmem:[%s908 + $0x28] sm:$0xff] %v3434
        %3467 = vst [vmem:[%s908 + $0x30] sm:$0xff] %v3435
        %3468 = vst [vmem:[%s908 + $0x38] sm:$0xff] %v3436
        %3469 = vst [vmem:[%s908 + $0x40] sm:$0xff] %v3437
        %3470 = vst [vmem:[%s908 + $0x48] sm:$0xff] %v3438
        %3471 = vst [vmem:[%s908 + $0x50] sm:$0xff] %v3439
        %3472 = vst [vmem:[%s908 + $0x58] sm:$0xff] %v3440
        %3473 = vst [vmem:[%s908 + $0x60] sm:$0xff] %v3441
        %3474 = vst [vmem:[%s908 + $0x68] sm:$0xff] %v3442
        %3475 = vst [vmem:[%s908 + $0x70] sm:$0xff] %v3443
        %3476 = vst [vmem:[%s908 + $0x78] sm:$0xff] %v3444
        %3477 = vst [vmem:[%s908 + $0x80] sm:$0xff] %v3445
        %3478 = vst [vmem:[%s908 + $0x88] sm:$0xff] %v3446
        %3479 = vst [vmem:[%s908 + $0x90] sm:$0xff] %v3447
        %3480 = vst [vmem:[%s908 + $0x98] sm:$0xff] %v3448
        %3481 = vst [vmem:[%s908 + $0xa0] sm:$0xff] %v3449
        %3482 = vst [vmem:[%s908 + $0xa8] sm:$0xff] %v3450
        %3483 = vst [vmem:[%s908 + $0xb0] sm:$0xff] %v3451
        %3484 = vst [vmem:[%s908 + $0xb8] sm:$0xff] %v3452
        %3485 = vst [vmem:[%s908 + $0xc0] sm:$0xff] %v3453
        %3486 = vst [vmem:[%s908 + $0xc8] sm:$0xff] %v3454
        %3487 = vst [vmem:[%s908 + $0xd0] sm:$0xff] %v3455
        %3488 = vst [vmem:[%s908 + $0xd8] sm:$0xff] %v3456
        %3489 = vst [vmem:[%s908 + $0xe0] sm:$0xff] %v3457
        %3490 = vst [vmem:[%s908 + $0xe8] sm:$0xff] %v3458
        %3491 = vst [vmem:[%s908 + $0xf0] sm:$0xff] %v3459
        %3492 = vst [vmem:[%s908 + $0xf8] sm:$0xff] %v3460
        %s3493 = smul.u32 32, %s22
        %p3494 = scmp.lt.s32.totalorder %s21, 1
        %s3495 = scalar_select %p3494, %s21, 1
        %p3496 = scmp.lt.s32.totalorder %s3493, 383
        %s3497 = scalar_select %p3496, %s3493, 383
        %s3498 = smul.addr %s3495, 384
        %s3499 = sadd.s32 %s3497, %s3498
        %s3500 = smul.addr %s3499, 8
        %s3501 = scalar_lea.vmem %s6, %s3500
        // Predicated region
        $region68: #{conv_blockT_forward.5} parent=62 // pred_check
          %p3502 = pneg %p189
        $region69: #{conv_blockT_forward.5} parent=62 // pred_check_branch
          %3504 = sbr.rel (%p3502) target = $region71
        $region70: #{conv_blockT_forward.5} parent=62 // pred_region
          %s3505 = smul.u32 32, %s22
        $region71: #{conv_blockT_forward.5} parent=62 // pred_fallthru
          _
      $region63: #{conv_blockT_forward.5} parent=5 // pred_fallthru
        _
      %p3506 = scmp.le.s32.totalorder 2, %s12
      // Predicated region
      $region72: #{conv_blockT_forward.5} parent=5 // pred_check
        %p3507 = pneg %p3506
      $region73: #{conv_blockT_forward.5} parent=5 // pred_check_branch
        %3509 = sbr.rel (%p3507) target = $region75
      $region74: #{conv_blockT_forward.5} parent=5 // pred_region
        %s3510 = ssub.s32 %s12, 2
        // Predicated region
        $region76: #{conv_blockT_forward.5} parent=74 // pred_check
          %p3511 = pneg %p195
        $region77: #{conv_blockT_forward.5} parent=74 // pred_check_branch
          %3513 = sbr.rel (%p3511) target = $region79
        $region78: #{conv_blockT_forward.5} parent=74 // pred_region
          %s3514 = smul.u32 32, %s24
          %p3515 = scmp.lt.s32.totalorder %s23, 1
          %s3516 = scalar_select %p3515, %s23, 1
          %p3517 = scmp.lt.s32.totalorder %s3514, 383
          %s3518 = scalar_select %p3517, %s3514, 383
          %s3519 = smul.addr %s3516, 384
          %s3520 = sadd.s32 %s3518, %s3519
          %s3521 = smul.addr %s3520, 8
          %s3522 = scalar_lea.vmem %s6, %s3521
        $region79: #{conv_blockT_forward.5} parent=74 // pred_fallthru
          _
      $region75: #{conv_blockT_forward.5} parent=5 // pred_fallthru
        _
    $region6: #{conv_blockT_forward.5} parent=1 // loop_footer
      %s16 = sadd.s32 1, %s12
    $region7: #{conv_blockT_forward.5} parent=1 // loop_footer_branch
      %11 = sbr.rel target = $region3
    $region8: #{conv_blockT_forward.5} parent=1 // loop_exit
      _

</llo_original>
